<compile_context>
chip_gen: v6e
topology: v6e:2x2x1
jax: 0.10.0
libtpu: 0.0.40
codegen_flags: <defaults>
</compile_context>

<pallas_src>
import functools
import numpy as np
import jax
import jax.numpy as jnp
from jax.experimental import pallas as pl
from jax.experimental.pallas import tpu as pltpu

MAX_TM = 256  # M tile for the matmul kernel (full-extent single block below this)


# ----------------------------- activations ---------------------------------
def _act(x, act):
    if act == "linear":
        return x
    if act == "relu":
        return jnp.maximum(x, 0.0)
    if act == "hardswish":
        return x * jnp.clip(x + 3.0, 0.0, 6.0) * (1.0 / 6.0)
    if act == "hardsigmoid":
        return jnp.clip(x + 3.0, 0.0, 6.0) * (1.0 / 6.0)
    raise ValueError(act)


# --------------------------- matmul kernel -----------------------------------
def _matmul_kernel(a_ref, b_ref, bias_ref, o_ref, *, act):
    acc = jnp.dot(a_ref[...], b_ref[...], preferred_element_type=jnp.float32)
    o_ref[...] = _act(acc + bias_ref[...], act).astype(o_ref.dtype)


def matmul_bias_act(a, b, bias, act="linear"):
    """Fused (a @ b + bias) + activation on the MXU.

    Single K block (every K in this model is <= 360), bf16 operands,
    f32 accumulation, grid only over M ("parallel" -> megacore friendly).
    Full-extent blocks on small dims avoid all 128-padding copies.
    """
    M, K = a.shape
    K2, N = b.shape
    assert K == K2
    a = a.astype(jnp.bfloat16)
    b = b.astype(jnp.bfloat16)
    bias2 = bias.astype(jnp.float32).reshape(1, N)

    if M <= MAX_TM:
        tm, Mp = M, M                       # single full-extent block, no padding
    else:
        tm = MAX_TM
        Mp = -(-M // tm) * tm
        if Mp != M:
            a = jnp.pad(a, ((0, Mp - M), (0, 0)))

    out = pl.pallas_call(
        functools.partial(_matmul_kernel, act=act),
        out_shape=jax.ShapeDtypeStruct((Mp, N), jnp.float32),
        grid_spec=pltpu.PrefetchScalarGridSpec(
            num_scalar_prefetch=0,
            grid=(Mp // tm,),
            in_specs=[
                pl.BlockSpec((tm, K), lambda i: (i, 0)),
                pl.BlockSpec((K, N), lambda i: (0, 0)),
                pl.BlockSpec((1, N), lambda i: (0, 0)),
            ],
            out_specs=pl.BlockSpec((tm, N), lambda i: (i, 0)),
        ),
        compiler_params=pltpu.CompilerParams(
            dimension_semantics=("parallel",)),
    )(a, b, bias2)
    return out if Mp == M else out[:M]


# --------------------------- depthwise conv kernel ---------------------------
def _dw_kernel(x_ref, w_ref, b_ref, o_ref, *, kh, kw, dilation, act):
    # x: (1, Hp, Wp, C)  w: (kh*kw, 1, 1, C)  b: (1, 1, 1, C)  o: (1, Ho, Wo, C)
    Ho, Wo = o_ref.shape[1], o_ref.shape[2]
    x = x_ref[...].astype(jnp.float32)
    w = w_ref[...]
    acc = None
    for i in range(kh):
        for j in range(kw):
            sl = x[:, i * dilation:i * dilation + Ho,
                      j * dilation:j * dilation + Wo, :]
            term = sl * w[i * kw + j]
            acc = term if acc is None else acc + term
    o_ref[...] = _act(acc + b_ref[...], act)


def dwconv2d(x, w, bias, stride=1, padding=1, dilation=1, act="linear"):
    """Depthwise 3x3: direct shifted-MAC VPU kernel on NHWC tiles, no im2col.

    Stride > 1 is computed as the stride-1 result subsampled afterwards
    (identical values; the extra positions are negligible at these sizes).
    """
    kh, kw, C = w.shape
    N, H, W, _ = x.shape
    xp = jnp.pad(x.astype(jnp.bfloat16),
                 ((0, 0), (padding, padding), (padding, padding), (0, 0)))
    Hp, Wp = H + 2 * padding, W + 2 * padding
    Ho, Wo = Hp - dilation * (kh - 1), Wp - dilation * (kw - 1)
    w2 = w.astype(jnp.float32).reshape(kh * kw, 1, 1, C)
    b2 = bias.astype(jnp.float32).reshape(1, 1, 1, C)
    out = pl.pallas_call(
        functools.partial(_dw_kernel, kh=kh, kw=kw, dilation=dilation, act=act),
        out_shape=jax.ShapeDtypeStruct((N, Ho, Wo, C), jnp.float32),
        grid_spec=pltpu.PrefetchScalarGridSpec(
            num_scalar_prefetch=0,
            grid=(N,),
            in_specs=[
                pl.BlockSpec((1, Hp, Wp, C), lambda n: (n, 0, 0, 0)),
                pl.BlockSpec((kh * kw, 1, 1, C), lambda n: (0, 0, 0, 0)),
                pl.BlockSpec((1, 1, 1, C), lambda n: (0, 0, 0, 0)),
            ],
            out_specs=pl.BlockSpec((1, Ho, Wo, C), lambda n: (n, 0, 0, 0)),
        ),
        compiler_params=pltpu.CompilerParams(
            dimension_semantics=("parallel",)),
    )(xp, w2, b2)
    if stride > 1:
        out = out[:, ::stride, ::stride, :]
    return out


# --------------------------- fused SE kernel ---------------------------------
def _se_kernel(x_ref, w1_ref, b1_ref, w2_ref, b2_ref, o_ref):
    # Squeeze-excite: global avg pool -> FC relu -> FC hardsigmoid -> scale.
    x = x_ref[...]                                   # (N, HW, C) f32
    s = jnp.mean(x, axis=1)                          # (N, C)
    s = jnp.maximum(
        jnp.dot(s, w1_ref[...], preferred_element_type=jnp.float32)
        + b1_ref[...], 0.0)
    s = jnp.dot(s, w2_ref[...], preferred_element_type=jnp.float32) + b2_ref[...]
    s = jnp.clip(s + 3.0, 0.0, 6.0) * (1.0 / 6.0)    # hardsigmoid
    o_ref[...] = x * s[:, None, :]


def se_apply(h, w1, b1, w2, b2):
    N, H, W, C = h.shape
    out = pl.pallas_call(
        _se_kernel,
        out_shape=jax.ShapeDtypeStruct((N, H * W, C), jnp.float32),
    )(h.reshape(N, H * W, C), w1, b1.reshape(1, -1), w2, b2.reshape(1, -1))
    return out.reshape(N, H, W, C)


# ---------------- fused global-pool + 1x1 conv (ASPP pooling branch) ----------
def _pool_fc_kernel(x_ref, w_ref, b_ref, o_ref, *, act):
    s = jnp.mean(x_ref[...], axis=1)                 # (N, C)
    acc = jnp.dot(s.astype(jnp.bfloat16), w_ref[...],
                  preferred_element_type=jnp.float32)
    o_ref[...] = _act(acc + b_ref[...], act)


def global_pool_fc(x_nhwc, w, bias, act="relu"):
    """AdaptiveAvgPool2d(1) + 1x1 conv, fused into one kernel."""
    N, H, W, C = x_nhwc.shape
    Cout = w.shape[-1]
    return pl.pallas_call(
        functools.partial(_pool_fc_kernel, act=act),
        out_shape=jax.ShapeDtypeStruct((N, Cout), jnp.float32),
    )(x_nhwc.reshape(N, H * W, C), w.astype(jnp.bfloat16),
      bias.astype(jnp.float32).reshape(1, Cout))


# --------------------------- conv wrappers ------------------------------------
def _im2col(x, kh, kw, stride, padding, dilation):
    N, H, W, C = x.shape
    ph, pw = padding
    xp = jnp.pad(x, ((0, 0), (ph, ph), (pw, pw), (0, 0)))
    Ho = (H + 2 * ph - dilation * (kh - 1) - 1) // stride + 1
    Wo = (W + 2 * pw - dilation * (kw - 1) - 1) // stride + 1
    cols = []
    for i in range(kh):
        for j in range(kw):
            i0, j0 = i * dilation, j * dilation
            sl = xp[:, i0:i0 + stride * (Ho - 1) + 1:stride,
                       j0:j0 + stride * (Wo - 1) + 1:stride, :]
            cols.append(sl)
    patches = jnp.stack(cols, axis=3)   # (N, Ho, Wo, kh*kw, C)
    return patches, Ho, Wo


def conv2d(x, w, bias, stride=1, padding=0, dilation=1, act="linear"):
    # x: NHWC f32;  w: (kh, kw, Cin, Cout) BN-folded bf16  ->  NHWC f32
    kh, kw, Cin, Cout = w.shape
    N, H, W, _ = x.shape
    if kh == 1 and kw == 1 and stride == 1 and padding == 0:
        out = matmul_bias_act(x.reshape(N * H * W, Cin),
                              w.reshape(Cin, Cout), bias, act)
        return out.reshape(N, H, W, Cout)
    if (kh == 3 and kw == 3 and stride == 1 and padding == dilation
            and dilation >= H and dilation >= W):
        # Atrous rate >= feature size: off-center taps only see zero padding,
        # so the conv reduces exactly to its center tap (a 1x1 conv).
        return conv2d(x, w[1:2, 1:2], bias, act=act)
    # TODO(synk): patch extraction uses XLA gathers (only the 3x3 stem and the
    # 3x3 head conv reach this path at these sizes); a fused in-kernel im2col
    # would remove the remaining patch materialization.
    patches, Ho, Wo = _im2col(x.astype(jnp.bfloat16), kh, kw, stride,
                              (padding, padding), dilation)
    a = patches.reshape(N * Ho * Wo, kh * kw * Cin)
    out = matmul_bias_act(a, w.reshape(kh * kw * Cin, Cout), bias, act)
    return out.reshape(N, Ho, Wo, Cout)


# ---------------------- bilinear upsample (matmul form) -----------------------
def _bilinear_matrix(out_size, in_size):
    """PyTorch F.interpolate(mode='bilinear', align_corners=False) matrix."""
    if in_size == 1:
        return np.ones((out_size, 1), np.float32)
    scale = in_size / out_size
    dst = np.arange(out_size, dtype=np.float64)
    src = np.clip((dst + 0.5) * scale - 0.5, 0.0, in_size - 1)
    i0 = np.floor(src).astype(np.int64)
    i1 = np.minimum(i0 + 1, in_size - 1)
    w1 = src - i0
    w0 = 1.0 - w1
    m = np.zeros((out_size, in_size), np.float64)
    m[np.arange(out_size), i0] += w0
    m[np.arange(out_size), i1] += w1
    return m.astype(np.float32)


def bilinear_upsample(x, out_h, out_w):
    # x: (N, h, w, C) -> (N, out_h, out_w, C) via two small, unpadded matmuls.
    N, h, w, C = x.shape
    Mh = jnp.asarray(_bilinear_matrix(out_h, h))
    Mw = jnp.asarray(_bilinear_matrix(out_w, w))
    t = x.transpose(1, 0, 2, 3).reshape(h, N * w * C)
    t = matmul_bias_act(Mh, t, jnp.zeros((N * w * C,), jnp.float32))
    t = t.reshape(out_h, N, w, C).transpose(1, 0, 2, 3)          # (N, H, w, C)
    t2 = t.transpose(2, 0, 1, 3).reshape(w, N * out_h * C)
    t2 = matmul_bias_act(Mw, t2, jnp.zeros((N * out_h * C,), jnp.float32))
    return t2.reshape(out_w, N, out_h, C).transpose(1, 2, 0, 3)  # (N, H, W, C)


# ------------------------- deterministic params --------------------------------
class ParamGen:
    def __init__(self, seed):
        self.key = jax.random.PRNGKey(seed)
        self.count = 0

    def next(self, shape, scale=None):
        self.count += 1
        k = jax.random.fold_in(self.key, self.count)
        fan_in = int(np.prod(shape[:-1])) if len(shape) > 1 else shape[0]
        s = scale if scale is not None else 1.0 / np.sqrt(max(fan_in, 1))
        return s * jax.random.normal(k, shape, jnp.float32)


def conv_bn_params(pg, kh, kw, cin, cout):
    """Conv (no bias) + BatchNorm, folded once at build time into (bf16 w, f32 b)."""
    w = pg.next((kh, kw, cin, cout))
    gamma = 1.0 + 0.1 * pg.next((cout,), scale=1.0)
    beta = 0.1 * pg.next((cout,), scale=1.0)
    mean = 0.1 * pg.next((cout,), scale=1.0)
    var = jnp.abs(pg.next((cout,), scale=1.0)) + 1.0
    s = gamma / jnp.sqrt(var + 1e-5)
    return (w * s).astype(jnp.bfloat16), (beta - mean * s).astype(jnp.float32)


def dwconv_bn_params(pg, kh, kw, c):
    w = pg.next((kh, kw, c), scale=1.0 / np.sqrt(kh * kw))
    gamma = 1.0 + 0.1 * pg.next((c,), scale=1.0)
    beta = 0.1 * pg.next((c,), scale=1.0)
    mean = 0.1 * pg.next((c,), scale=1.0)
    var = jnp.abs(pg.next((c,), scale=1.0)) + 1.0
    s = gamma / jnp.sqrt(var + 1e-5)
    return ((w * s[None, None, :]).astype(jnp.float32),
            (beta - mean * s).astype(jnp.float32))


def build_params(seed=42):
    pg = ParamGen(seed)
    C_hi, C_head, N_CLS = 40, 32, 7
    P = {}
    P["stem"] = conv_bn_params(pg, 3, 3, 3, 16)
    P["b1"] = {"exp": conv_bn_params(pg, 1, 1, 16, 32),
               "dw": dwconv_bn_params(pg, 3, 3, 32),
               "proj": conv_bn_params(pg, 1, 1, 32, 24)}
    P["b2"] = {"exp": conv_bn_params(pg, 1, 1, 24, 48),
               "dw": dwconv_bn_params(pg, 3, 3, 48),
               "se1": (pg.next((48, 12)), 0.1 * pg.next((12,), scale=1.0)),
               "se2": (pg.next((12, 48)), 0.1 * pg.next((48,), scale=1.0)),
               "proj": conv_bn_params(pg, 1, 1, 48, 40)}
    P["b3"] = {"exp": conv_bn_params(pg, 1, 1, 40, 80),
               "dw": dwconv_bn_params(pg, 3, 3, 80),
               "se1": (pg.next((80, 20)), 0.1 * pg.next((20,), scale=1.0)),
               "se2": (pg.next((20, 80)), 0.1 * pg.next((80,), scale=1.0)),
               "proj": conv_bn_params(pg, 1, 1, 80, 40)}
    P["aspp"] = {"b0": conv_bn_params(pg, 1, 1, C_hi, C_head),
                 "b1": conv_bn_params(pg, 3, 3, C_hi, C_head),
                 "b2": conv_bn_params(pg, 3, 3, C_hi, C_head),
                 "b3": conv_bn_params(pg, 3, 3, C_hi, C_head),
                 "bp": conv_bn_params(pg, 1, 1, C_hi, C_head),
                 "proj": conv_bn_params(pg, 1, 1, 5 * C_head, C_head)}
    P["head_conv"] = conv_bn_params(pg, 3, 3, C_head, C_head)
    # classifier[4] = nn.Sequential(nn.Conv2d(256, 7, 1, 1))  (scaled: 32 -> 7)
    P["cls"] = (pg.next((1, 1, C_head, N_CLS)).astype(jnp.bfloat16),
                (0.1 * pg.next((N_CLS,), scale=1.0)).astype(jnp.float32))
    return P


# ------------------------------ model graph ------------------------------------
def inverted_residual(x, p, stride, dilation, use_se, act):
    inp = x
    h = conv2d(x, *p["exp"], act=act)                                # 1x1 expand
    h = dwconv2d(h, *p["dw"], stride=stride, padding=dilation,
                 dilation=dilation, act=act)                         # depthwise 3x3
    if use_se:                                                       # fused SE
        h = se_apply(h, *p["se1"], *p["se2"])
    h = conv2d(h, *p["proj"], act="linear")                          # 1x1 project
    if stride == 1 and inp.shape[-1] == h.shape[-1]:
        h = h + inp
    return h


def aspp(x, p):
    N, h, w, C = x.shape
    rates = (12, 24, 36)
    if all(r >= h and r >= w for r in rates):
        # All atrous branches reduce exactly to their center taps at this
        # feature size -> one fused, lane-dense 1x1 matmul for [b0|b1|b2|b3].
        w_cat = jnp.concatenate(
            [p["b0"][0].reshape(C, -1)]
            + [p[n][0][1, 1].reshape(C, -1) for n in ("b1", "b2", "b3")], axis=1)
        b_cat = jnp.concatenate([p["b0"][1], p["b1"][1], p["b2"][1], p["b3"][1]])
        branches = matmul_bias_act(x.reshape(N * h * w, C), w_cat, b_cat,
                                   "relu").reshape(N, h, w, -1)
    else:
        outs = [conv2d(x, *p["b0"], act="relu")]
        for name, rate in zip(("b1", "b2", "b3"), rates):
            outs.append(conv2d(x, *p[name], padding=rate, dilation=rate,
                               act="relu"))
        branches = jnp.concatenate(outs, axis=-1)
    # pooling branch: AdaptiveAvgPool2d(1) -> 1x1 conv -> broadcast back
    Cbp = p["bp"][0].shape[-1]
    pooled = global_pool_fc(x, p["bp"][0].reshape(C, Cbp), p["bp"][1], "relu")
    pooled = jnp.broadcast_to(pooled[:, None, None, :], (N, h, w, Cbp))
    cat = jnp.concatenate([branches, pooled], axis=-1)
    # TODO(synk): nn.Dropout(0.5) after the ASPP projection is identity in eval().
    return conv2d(cat, *p["proj"], act="relu")


@jax.jit
def deeplabv3_forward(params, x_nchw):
    """Equivalent of model(x)['out'] for Deeplabv3_Mobilenet_Model (eval)."""
    x = jnp.transpose(x_nchw.astype(jnp.float32), (0, 2, 3, 1))   # NCHW -> NHWC
    in_h, in_w = x.shape[1], x.shape[2]
    # --- backbone (MobileNetV3-style, output stride 8, dilated last block) ---
    x = conv2d(x, *params["stem"], stride=2, padding=1, act="hardswish")
    x = inverted_residual(x, params["b1"], stride=2, dilation=1, use_se=False, act="relu")
    x = inverted_residual(x, params["b2"], stride=2, dilation=1, use_se=True, act="relu")
    x = inverted_residual(x, params["b3"], stride=1, dilation=2, use_se=True, act="hardswish")
    # --- DeepLabHead: ASPP -> 3x3 conv -> (replaced) 1x1 conv to 7 classes ---
    x = aspp(x, params["aspp"])
    x = conv2d(x, *params["head_conv"], padding=1, act="relu")
    x = conv2d(x, params["cls"][0], params["cls"][1], act="linear")
    # --- F.interpolate(size=input_hw, mode='bilinear', align_corners=False) ---
    x = bilinear_upsample(x, in_h, in_w)
    return jnp.transpose(x, (0, 3, 1, 2))                          # NHWC -> NCHW


# --------------------------------- main -----------------------------------------
if __name__ == "__main__":
    params = build_params(seed=42)
    x = jax.random.normal(jax.random.PRNGKey(0), (2, 3, 32, 32), jnp.float32)
    out = deeplabv3_forward(params, x)
    out = jax.block_until_ready(out)
    assert out.shape == (2, 7, 32, 32), out.shape
    assert out.dtype == jnp.float32
    assert bool(jnp.all(jnp.isfinite(out)))
    print("KERNEL_OK")
</pallas_src>

<mosaic_0001>
module attributes {stable_mosaic.version = 11 : i64} {
  func.func @_matmul_kernel(%arg0: i32, %arg1: memref<256x27xbf16, #tpu.memory_space<vmem>>, %arg2: memref<27x16xbf16, #tpu.memory_space<vmem>>, %arg3: memref<1x16xf32, #tpu.memory_space<vmem>>, %arg4: memref<256x16xf32, #tpu.memory_space<vmem>>) attributes {dimension_semantics = [#tpu.dimension_semantics<parallel>], iteration_bounds = array<i64: 2>, scalar_prefetch = 0 : i64, scratch_operands = 0 : i64, tpu.core_type = #tpu.core_type<tc>, window_params = [{transform_indices = @transform_0, window_bounds = array<i64: 256, 27>}, {pipeline_mode = #tpu.pipeline_mode<synchronous>, transform_indices = @transform_1, window_bounds = array<i64: 27, 16>}, {pipeline_mode = #tpu.pipeline_mode<synchronous>, transform_indices = @transform_2, window_bounds = array<i64: 1, 16>}, {transform_indices = @transform_3, window_bounds = array<i64: 256, 16>}]} {
    %c0 = arith.constant 0 : index
    %c0_0 = arith.constant 0 : index
    %0 = vector.load %arg1[%c0, %c0_0] : memref<256x27xbf16, #tpu.memory_space<vmem>>, vector<256x27xbf16>
    %c0_1 = arith.constant 0 : index
    %c0_2 = arith.constant 0 : index
    %1 = vector.load %arg2[%c0_1, %c0_2] : memref<27x16xbf16, #tpu.memory_space<vmem>>, vector<27x16xbf16>
    %cst = arith.constant dense<0.000000e+00> : vector<256x16xf32>
    %2 = tpu.matmul %0, %1, %cst {dimension_numbers = #tpu.dot_dimension_numbers<[1], [0], [0], [1], [0, 0, 1, 1], [], []>} : vector<256x27xbf16>, vector<27x16xbf16>, vector<256x16xf32> -> vector<256x16xf32>
    %c0_3 = arith.constant 0 : index
    %c0_4 = arith.constant 0 : index
    %3 = vector.load %arg3[%c0_3, %c0_4] : memref<1x16xf32, #tpu.memory_space<vmem>>, vector<1x16xf32>
    %4 = vector.broadcast %3 : vector<1x16xf32> to vector<256x16xf32>
    %5 = arith.addf %2, %4 : vector<256x16xf32>
    %cst_5 = arith.constant 3.000000e+00 : f32
    %6 = vector.broadcast %cst_5 : f32 to vector<256x16xf32>
    %7 = arith.addf %5, %6 : vector<256x16xf32>
    %cst_6 = arith.constant 0.000000e+00 : f32
    %cst_7 = arith.constant 6.000000e+00 : f32
    %8 = vector.broadcast %cst_6 : f32 to vector<256x16xf32>
    %9 = arith.maximumf %8, %7 : vector<256x16xf32>
    %10 = vector.broadcast %cst_7 : f32 to vector<256x16xf32>
    %11 = arith.minimumf %10, %9 : vector<256x16xf32>
    %12 = arith.mulf %5, %11 : vector<256x16xf32>
    %cst_8 = arith.constant 0.166666672 : f32
    %13 = vector.broadcast %cst_8 : f32 to vector<256x16xf32>
    %14 = arith.mulf %12, %13 : vector<256x16xf32>
    %c0_9 = arith.constant 0 : index
    %c0_10 = arith.constant 0 : index
    %15 = vector.load %arg4[%c0_9, %c0_10] : memref<256x16xf32, #tpu.memory_space<vmem>>, vector<256x16xf32>
    tpu.vector_store %arg4[%c0_9, %c0_10], %14 {strides = array<i32>} : memref<256x16xf32, #tpu.memory_space<vmem>>, vector<256x16xf32>,
    return
  }
  func.func @transform_0(%arg0: i32) -> (i32, i32) {
    %c0_i32 = arith.constant 0 : i32
    %c0_i32_0 = arith.constant 0 : i32
    return %arg0, %c0_i32 : i32, i32
  }
  func.func @transform_1(%arg0: i32) -> (i32, i32) {
    %c0_i32 = arith.constant 0 : i32
    %c0_i32_0 = arith.constant 0 : i32
    %c0_i32_1 = arith.constant 0 : i32
    return %c0_i32, %c0_i32_0 : i32, i32
  }
  func.func @transform_2(%arg0: i32) -> (i32, i32) {
    %c0_i32 = arith.constant 0 : i32
    %c0_i32_0 = arith.constant 0 : i32
    %c0_i32_1 = arith.constant 0 : i32
    return %c0_i32, %c0_i32_0 : i32, i32
  }
  func.func @transform_3(%arg0: i32) -> (i32, i32) {
    %c0_i32 = arith.constant 0 : i32
    %c0_i32_0 = arith.constant 0 : i32
    return %arg0, %c0_i32 : i32, i32
  }
}

module attributes {stable_mosaic.version = 11 : i64} {
  func.func @_matmul_kernel(%arg0: i32, %arg1: memref<256x16xbf16, #tpu.memory_space<vmem>>, %arg2: memref<16x32xbf16, #tpu.memory_space<vmem>>, %arg3: memref<1x32xf32, #tpu.memory_space<vmem>>, %arg4: memref<256x32xf32, #tpu.memory_space<vmem>>) attributes {dimension_semantics = [#tpu.dimension_semantics<parallel>], iteration_bounds = array<i64: 2>, scalar_prefetch = 0 : i64, scratch_operands = 0 : i64, tpu.core_type = #tpu.core_type<tc>, window_params = [{transform_indices = @transform_0, window_bounds = array<i64: 256, 16>}, {pipeline_mode = #tpu.pipeline_mode<synchronous>, transform_indices = @transform_1, window_bounds = array<i64: 16, 32>}, {pipeline_mode = #tpu.pipeline_mode<synchronous>, transform_indices = @transform_2, window_bounds = array<i64: 1, 32>}, {transform_indices = @transform_3, window_bounds = array<i64: 256, 32>}]} {
    %c0 = arith.constant 0 : index
    %c0_0 = arith.constant 0 : index
    %0 = vector.load %arg1[%c0, %c0_0] : memref<256x16xbf16, #tpu.memory_space<vmem>>, vector<256x16xbf16>
    %c0_1 = arith.constant 0 : index
    %c0_2 = arith.constant 0 : index
    %1 = vector.load %arg2[%c0_1, %c0_2] : memref<16x32xbf16, #tpu.memory_space<vmem>>, vector<16x32xbf16>
    %cst = arith.constant dense<0.000000e+00> : vector<256x32xf32>
    %2 = tpu.matmul %0, %1, %cst {dimension_numbers = #tpu.dot_dimension_numbers<[1], [0], [0], [1], [0, 0, 1, 1], [], []>} : vector<256x16xbf16>, vector<16x32xbf16>, vector<256x32xf32> -> vector<256x32xf32>
    %c0_3 = arith.constant 0 : index
    %c0_4 = arith.constant 0 : index
    %3 = vector.load %arg3[%c0_3, %c0_4] : memref<1x32xf32, #tpu.memory_space<vmem>>, vector<1x32xf32>
    %4 = vector.broadcast %3 : vector<1x32xf32> to vector<256x32xf32>
    %5 = arith.addf %2, %4 : vector<256x32xf32>
    %cst_5 = arith.constant 0.000000e+00 : f32
    %6 = vector.broadcast %cst_5 : f32 to vector<256x32xf32>
    %7 = arith.maximumf %5, %6 : vector<256x32xf32>
    %c0_6 = arith.constant 0 : index
    %c0_7 = arith.constant 0 : index
    %8 = vector.load %arg4[%c0_6, %c0_7] : memref<256x32xf32, #tpu.memory_space<vmem>>, vector<256x32xf32>
    tpu.vector_store %arg4[%c0_6, %c0_7], %7 {strides = array<i32>} : memref<256x32xf32, #tpu.memory_space<vmem>>, vector<256x32xf32>,
    return
  }
  func.func @transform_0(%arg0: i32) -> (i32, i32) {
    %c0_i32 = arith.constant 0 : i32
    %c0_i32_0 = arith.constant 0 : i32
    return %arg0, %c0_i32 : i32, i32
  }
  func.func @transform_1(%arg0: i32) -> (i32, i32) {
    %c0_i32 = arith.constant 0 : i32
    %c0_i32_0 = arith.constant 0 : i32
    %c0_i32_1 = arith.constant 0 : i32
    return %c0_i32, %c0_i32_0 : i32, i32
  }
  func.func @transform_2(%arg0: i32) -> (i32, i32) {
    %c0_i32 = arith.constant 0 : i32
    %c0_i32_0 = arith.constant 0 : i32
    %c0_i32_1 = arith.constant 0 : i32
    return %c0_i32, %c0_i32_0 : i32, i32
  }
  func.func @transform_3(%arg0: i32) -> (i32, i32) {
    %c0_i32 = arith.constant 0 : i32
    %c0_i32_0 = arith.constant 0 : i32
    return %arg0, %c0_i32 : i32, i32
  }
}

module attributes {stable_mosaic.version = 11 : i64} {
  func.func @_dw_kernel(%arg0: i32, %arg1: memref<1x18x18x32xbf16, #tpu.memory_space<vmem>>, %arg2: memref<9x1x1x32xf32, #tpu.memory_space<vmem>>, %arg3: memref<1x1x1x32xf32, #tpu.memory_space<vmem>>, %arg4: memref<1x16x16x32xf32, #tpu.memory_space<vmem>>) attributes {dimension_semantics = [#tpu.dimension_semantics<parallel>], iteration_bounds = array<i64: 2>, scalar_prefetch = 0 : i64, scratch_operands = 0 : i64, tpu.core_type = #tpu.core_type<tc>, window_params = [{transform_indices = @transform_0, window_bounds = array<i64: 1, 18, 18, 32>}, {pipeline_mode = #tpu.pipeline_mode<synchronous>, transform_indices = @transform_1, window_bounds = array<i64: 9, 1, 1, 32>}, {pipeline_mode = #tpu.pipeline_mode<synchronous>, transform_indices = @transform_2, window_bounds = array<i64: 1, 1, 1, 32>}, {transform_indices = @transform_3, window_bounds = array<i64: 1, 16, 16, 32>}]} {
    %c0 = arith.constant 0 : index
    %c0_0 = arith.constant 0 : index
    %c0_1 = arith.constant 0 : index
    %c0_2 = arith.constant 0 : index
    %0 = vector.load %arg1[%c0, %c0_0, %c0_1, %c0_2] : memref<1x18x18x32xbf16, #tpu.memory_space<vmem>>, vector<1x18x18x32xbf16>
    %1 = arith.extf %0 : vector<1x18x18x32xbf16> to vector<1x18x18x32xf32>
    %c0_3 = arith.constant 0 : index
    %c0_4 = arith.constant 0 : index
    %c0_5 = arith.constant 0 : index
    %c0_6 = arith.constant 0 : index
    %2 = vector.load %arg2[%c0_3, %c0_4, %c0_5, %c0_6] : memref<9x1x1x32xf32, #tpu.memory_space<vmem>>, vector<9x1x1x32xf32>
    %3 = vector.extract_strided_slice %1 {offsets = [0, 0, 0, 0], sizes = [1, 16, 16, 32], strides = [1, 1, 1, 1]} : vector<1x18x18x32xf32> to vector<1x16x16x32xf32>
    %4 = vector.extract_strided_slice %2 {offsets = [0, 0, 0, 0], sizes = [1, 1, 1, 32], strides = [1, 1, 1, 1]} : vector<9x1x1x32xf32> to vector<1x1x1x32xf32>
    %5 = vector.shape_cast %4 : vector<1x1x1x32xf32> to vector<1x1x32xf32>
    %6 = vector.shape_cast %5 : vector<1x1x32xf32> to vector<1x1x1x32xf32>
    %7 = vector.broadcast %6 : vector<1x1x1x32xf32> to vector<1x16x16x32xf32>
    %8 = arith.mulf %3, %7 : vector<1x16x16x32xf32>
    %9 = vector.extract_strided_slice %1 {offsets = [0, 0, 1, 0], sizes = [1, 16, 16, 32], strides = [1, 1, 1, 1]} : vector<1x18x18x32xf32> to vector<1x16x16x32xf32>
    %10 = vector.extract_strided_slice %2 {offsets = [1, 0, 0, 0], sizes = [1, 1, 1, 32], strides = [1, 1, 1, 1]} : vector<9x1x1x32xf32> to vector<1x1x1x32xf32>
    %11 = vector.shape_cast %10 : vector<1x1x1x32xf32> to vector<1x1x32xf32>
    %12 = vector.shape_cast %11 : vector<1x1x32xf32> to vector<1x1x1x32xf32>
    %13 = vector.broadcast %12 : vector<1x1x1x32xf32> to vector<1x16x16x32xf32>
    %14 = arith.mulf %9, %13 : vector<1x16x16x32xf32>
    %15 = arith.addf %8, %14 : vector<1x16x16x32xf32>
    %16 = vector.extract_strided_slice %1 {offsets = [0, 0, 2, 0], sizes = [1, 16, 16, 32], strides = [1, 1, 1, 1]} : vector<1x18x18x32xf32> to vector<1x16x16x32xf32>
    %17 = vector.extract_strided_slice %2 {offsets = [2, 0, 0, 0], sizes = [1, 1, 1, 32], strides = [1, 1, 1, 1]} : vector<9x1x1x32xf32> to vector<1x1x1x32xf32>
    %18 = vector.shape_cast %17 : vector<1x1x1x32xf32> to vector<1x1x32xf32>
    %19 = vector.shape_cast %18 : vector<1x1x32xf32> to vector<1x1x1x32xf32>
    %20 = vector.broadcast %19 : vector<1x1x1x32xf32> to vector<1x16x16x32xf32>
    %21 = arith.mulf %16, %20 : vector<1x16x16x32xf32>
    %22 = arith.addf %15, %21 : vector<1x16x16x32xf32>
    %23 = vector.extract_strided_slice %1 {offsets = [0, 1, 0, 0], sizes = [1, 16, 16, 32], strides = [1, 1, 1, 1]} : vector<1x18x18x32xf32> to vector<1x16x16x32xf32>
    %24 = vector.extract_strided_slice %2 {offsets = [3, 0, 0, 0], sizes = [1, 1, 1, 32], strides = [1, 1, 1, 1]} : vector<9x1x1x32xf32> to vector<1x1x1x32xf32>
    %25 = vector.shape_cast %24 : vector<1x1x1x32xf32> to vector<1x1x32xf32>
    %26 = vector.shape_cast %25 : vector<1x1x32xf32> to vector<1x1x1x32xf32>
    %27 = vector.broadcast %26 : vector<1x1x1x32xf32> to vector<1x16x16x32xf32>
    %28 = arith.mulf %23, %27 : vector<1x16x16x32xf32>
    %29 = arith.addf %22, %28 : vector<1x16x16x32xf32>
    %30 = vector.extract_strided_slice %1 {offsets = [0, 1, 1, 0], sizes = [1, 16, 16, 32], strides = [1, 1, 1, 1]} : vector<1x18x18x32xf32> to vector<1x16x16x32xf32>
    %31 = vector.extract_strided_slice %2 {offsets = [4, 0, 0, 0], sizes = [1, 1, 1, 32], strides = [1, 1, 1, 1]} : vector<9x1x1x32xf32> to vector<1x1x1x32xf32>
    %32 = vector.shape_cast %31 : vector<1x1x1x32xf32> to vector<1x1x32xf32>
    %33 = vector.shape_cast %32 : vector<1x1x32xf32> to vector<1x1x1x32xf32>
    %34 = vector.broadcast %33 : vector<1x1x1x32xf32> to vector<1x16x16x32xf32>
    %35 = arith.mulf %30, %34 : vector<1x16x16x32xf32>
    %36 = arith.addf %29, %35 : vector<1x16x16x32xf32>
    %37 = vector.extract_strided_slice %1 {offsets = [0, 1, 2, 0], sizes = [1, 16, 16, 32], strides = [1, 1, 1, 1]} : vector<1x18x18x32xf32> to vector<1x16x16x32xf32>
    %38 = vector.extract_strided_slice %2 {offsets = [5, 0, 0, 0], sizes = [1, 1, 1, 32], strides = [1, 1, 1, 1]} : vector<9x1x1x32xf32> to vector<1x1x1x32xf32>
    %39 = vector.shape_cast %38 : vector<1x1x1x32xf32> to vector<1x1x32xf32>
    %40 = vector.shape_cast %39 : vector<1x1x32xf32> to vector<1x1x1x32xf32>
    %41 = vector.broadcast %40 : vector<1x1x1x32xf32> to vector<1x16x16x32xf32>
    %42 = arith.mulf %37, %41 : vector<1x16x16x32xf32>
    %43 = arith.addf %36, %42 : vector<1x16x16x32xf32>
    %44 = vector.extract_strided_slice %1 {offsets = [0, 2, 0, 0], sizes = [1, 16, 16, 32], strides = [1, 1, 1, 1]} : vector<1x18x18x32xf32> to vector<1x16x16x32xf32>
    %45 = vector.extract_strided_slice %2 {offsets = [6, 0, 0, 0], sizes = [1, 1, 1, 32], strides = [1, 1, 1, 1]} : vector<9x1x1x32xf32> to vector<1x1x1x32xf32>
    %46 = vector.shape_cast %45 : vector<1x1x1x32xf32> to vector<1x1x32xf32>
    %47 = vector.shape_cast %46 : vector<1x1x32xf32> to vector<1x1x1x32xf32>
    %48 = vector.broadcast %47 : vector<1x1x1x32xf32> to vector<1x16x16x32xf32>
    %49 = arith.mulf %44, %48 : vector<1x16x16x32xf32>
    %50 = arith.addf %43, %49 : vector<1x16x16x32xf32>
    %51 = vector.extract_strided_slice %1 {offsets = [0, 2, 1, 0], sizes = [1, 16, 16, 32], strides = [1, 1, 1, 1]} : vector<1x18x18x32xf32> to vector<1x16x16x32xf32>
    %52 = vector.extract_strided_slice %2 {offsets = [7, 0, 0, 0], sizes = [1, 1, 1, 32], strides = [1, 1, 1, 1]} : vector<9x1x1x32xf32> to vector<1x1x1x32xf32>
    %53 = vector.shape_cast %52 : vector<1x1x1x32xf32> to vector<1x1x32xf32>
    %54 = vector.shape_cast %53 : vector<1x1x32xf32> to vector<1x1x1x32xf32>
    %55 = vector.broadcast %54 : vector<1x1x1x32xf32> to vector<1x16x16x32xf32>
    %56 = arith.mulf %51, %55 : vector<1x16x16x32xf32>
    %57 = arith.addf %50, %56 : vector<1x16x16x32xf32>
    %58 = vector.extract_strided_slice %1 {offsets = [0, 2, 2, 0], sizes = [1, 16, 16, 32], strides = [1, 1, 1, 1]} : vector<1x18x18x32xf32> to vector<1x16x16x32xf32>
    %59 = vector.extract_strided_slice %2 {offsets = [8, 0, 0, 0], sizes = [1, 1, 1, 32], strides = [1, 1, 1, 1]} : vector<9x1x1x32xf32> to vector<1x1x1x32xf32>
    %60 = vector.shape_cast %59 : vector<1x1x1x32xf32> to vector<1x1x32xf32>
    %61 = vector.shape_cast %60 : vector<1x1x32xf32> to vector<1x1x1x32xf32>
    %62 = vector.broadcast %61 : vector<1x1x1x32xf32> to vector<1x16x16x32xf32>
    %63 = arith.mulf %58, %62 : vector<1x16x16x32xf32>
    %64 = arith.addf %57, %63 : vector<1x16x16x32xf32>
    %c0_7 = arith.constant 0 : index
    %c0_8 = arith.constant 0 : index
    %c0_9 = arith.constant 0 : index
    %c0_10 = arith.constant 0 : index
    %65 = vector.load %arg3[%c0_7, %c0_8, %c0_9, %c0_10] : memref<1x1x1x32xf32, #tpu.memory_space<vmem>>, vector<1x1x1x32xf32>
    %66 = vector.broadcast %65 : vector<1x1x1x32xf32> to vector<1x16x16x32xf32>
    %67 = arith.addf %64, %66 : vector<1x16x16x32xf32>
    %cst = arith.constant 0.000000e+00 : f32
    %68 = vector.broadcast %cst : f32 to vector<1x16x16x32xf32>
    %69 = arith.maximumf %67, %68 : vector<1x16x16x32xf32>
    %c0_11 = arith.constant 0 : index
    %c0_12 = arith.constant 0 : index
    %c0_13 = arith.constant 0 : index
    %c0_14 = arith.constant 0 : index
    %70 = vector.load %arg4[%c0_11, %c0_12, %c0_13, %c0_14] : memref<1x16x16x32xf32, #tpu.memory_space<vmem>>, vector<1x16x16x32xf32>
    tpu.vector_store %arg4[%c0_11, %c0_12, %c0_13, %c0_14], %69 {strides = array<i32>} : memref<1x16x16x32xf32, #tpu.memory_space<vmem>>, vector<1x16x16x32xf32>,
    return
  }
  func.func @transform_0(%arg0: i32) -> (i32, i32, i32, i32) {
    %c0_i32 = arith.constant 0 : i32
    %c0_i32_0 = arith.constant 0 : i32
    %c0_i32_1 = arith.constant 0 : i32
    %c0_i32_2 = arith.constant 0 : i32
    return %arg0, %c0_i32, %c0_i32_0, %c0_i32_1 : i32, i32, i32, i32
  }
  func.func @transform_1(%arg0: i32) -> (i32, i32, i32, i32) {
    %c0_i32 = arith.constant 0 : i32
    %c0_i32_0 = arith.constant 0 : i32
    %c0_i32_1 = arith.constant 0 : i32
    %c0_i32_2 = arith.constant 0 : i32
    %c0_i32_3 = arith.constant 0 : i32
    return %c0_i32, %c0_i32_0, %c0_i32_1, %c0_i32_2 : i32, i32, i32, i32
  }
  func.func @transform_2(%arg0: i32) -> (i32, i32, i32, i32) {
    %c0_i32 = arith.constant 0 : i32
    %c0_i32_0 = arith.constant 0 : i32
    %c0_i32_1 = arith.constant 0 : i32
    %c0_i32_2 = arith.constant 0 : i32
    %c0_i32_3 = arith.constant 0 : i32
    return %c0_i32, %c0_i32_0, %c0_i32_1, %c0_i32_2 : i32, i32, i32, i32
  }
  func.func @transform_3(%arg0: i32) -> (i32, i32, i32, i32) {
    %c0_i32 = arith.constant 0 : i32
    %c0_i32_0 = arith.constant 0 : i32
    %c0_i32_1 = arith.constant 0 : i32
    %c0_i32_2 = arith.constant 0 : i32
    return %arg0, %c0_i32, %c0_i32_0, %c0_i32_1 : i32, i32, i32, i32
  }
}

module attributes {stable_mosaic.version = 11 : i64} {
  func.func @_matmul_kernel(%arg0: i32, %arg1: memref<128x32xbf16, #tpu.memory_space<vmem>>, %arg2: memref<32x24xbf16, #tpu.memory_space<vmem>>, %arg3: memref<1x24xf32, #tpu.memory_space<vmem>>, %arg4: memref<128x24xf32, #tpu.memory_space<vmem>>) attributes {dimension_semantics = [#tpu.dimension_semantics<parallel>], iteration_bounds = array<i64: 1>, scalar_prefetch = 0 : i64, scratch_operands = 0 : i64, tpu.core_type = #tpu.core_type<tc>, window_params = [{transform_indices = @transform_0, window_bounds = array<i64: 128, 32>}, {pipeline_mode = #tpu.pipeline_mode<synchronous>, transform_indices = @transform_1, window_bounds = array<i64: 32, 24>}, {pipeline_mode = #tpu.pipeline_mode<synchronous>, transform_indices = @transform_2, window_bounds = array<i64: 1, 24>}, {transform_indices = @transform_3, window_bounds = array<i64: 128, 24>}]} {
    %c0 = arith.constant 0 : index
    %c0_0 = arith.constant 0 : index
    %0 = vector.load %arg1[%c0, %c0_0] : memref<128x32xbf16, #tpu.memory_space<vmem>>, vector<128x32xbf16>
    %c0_1 = arith.constant 0 : index
    %c0_2 = arith.constant 0 : index
    %1 = vector.load %arg2[%c0_1, %c0_2] : memref<32x24xbf16, #tpu.memory_space<vmem>>, vector<32x24xbf16>
    %cst = arith.constant dense<0.000000e+00> : vector<128x24xf32>
    %2 = tpu.matmul %0, %1, %cst {dimension_numbers = #tpu.dot_dimension_numbers<[1], [0], [0], [1], [0, 0, 1, 1], [], []>} : vector<128x32xbf16>, vector<32x24xbf16>, vector<128x24xf32> -> vector<128x24xf32>
    %c0_3 = arith.constant 0 : index
    %c0_4 = arith.constant 0 : index
    %3 = vector.load %arg3[%c0_3, %c0_4] : memref<1x24xf32, #tpu.memory_space<vmem>>, vector<1x24xf32>
    %4 = vector.broadcast %3 : vector<1x24xf32> to vector<128x24xf32>
    %5 = arith.addf %2, %4 : vector<128x24xf32>
    %c0_5 = arith.constant 0 : index
    %c0_6 = arith.constant 0 : index
    %6 = vector.load %arg4[%c0_5, %c0_6] : memref<128x24xf32, #tpu.memory_space<vmem>>, vector<128x24xf32>
    tpu.vector_store %arg4[%c0_5, %c0_6], %5 {strides = array<i32>} : memref<128x24xf32, #tpu.memory_space<vmem>>, vector<128x24xf32>,
    return
  }
  func.func @transform_0(%arg0: i32) -> (i32, i32) {
    %c0_i32 = arith.constant 0 : i32
    %c0_i32_0 = arith.constant 0 : i32
    return %arg0, %c0_i32 : i32, i32
  }
  func.func @transform_1(%arg0: i32) -> (i32, i32) {
    %c0_i32 = arith.constant 0 : i32
    %c0_i32_0 = arith.constant 0 : i32
    %c0_i32_1 = arith.constant 0 : i32
    return %c0_i32, %c0_i32_0 : i32, i32
  }
  func.func @transform_2(%arg0: i32) -> (i32, i32) {
    %c0_i32 = arith.constant 0 : i32
    %c0_i32_0 = arith.constant 0 : i32
    %c0_i32_1 = arith.constant 0 : i32
    return %c0_i32, %c0_i32_0 : i32, i32
  }
  func.func @transform_3(%arg0: i32) -> (i32, i32) {
    %c0_i32 = arith.constant 0 : i32
    %c0_i32_0 = arith.constant 0 : i32
    return %arg0, %c0_i32 : i32, i32
  }
}

module attributes {stable_mosaic.version = 11 : i64} {
  func.func @_matmul_kernel(%arg0: i32, %arg1: memref<128x24xbf16, #tpu.memory_space<vmem>>, %arg2: memref<24x48xbf16, #tpu.memory_space<vmem>>, %arg3: memref<1x48xf32, #tpu.memory_space<vmem>>, %arg4: memref<128x48xf32, #tpu.memory_space<vmem>>) attributes {dimension_semantics = [#tpu.dimension_semantics<parallel>], iteration_bounds = array<i64: 1>, scalar_prefetch = 0 : i64, scratch_operands = 0 : i64, tpu.core_type = #tpu.core_type<tc>, window_params = [{transform_indices = @transform_0, window_bounds = array<i64: 128, 24>}, {pipeline_mode = #tpu.pipeline_mode<synchronous>, transform_indices = @transform_1, window_bounds = array<i64: 24, 48>}, {pipeline_mode = #tpu.pipeline_mode<synchronous>, transform_indices = @transform_2, window_bounds = array<i64: 1, 48>}, {transform_indices = @transform_3, window_bounds = array<i64: 128, 48>}]} {
    %c0 = arith.constant 0 : index
    %c0_0 = arith.constant 0 : index
    %0 = vector.load %arg1[%c0, %c0_0] : memref<128x24xbf16, #tpu.memory_space<vmem>>, vector<128x24xbf16>
    %c0_1 = arith.constant 0 : index
    %c0_2 = arith.constant 0 : index
    %1 = vector.load %arg2[%c0_1, %c0_2] : memref<24x48xbf16, #tpu.memory_space<vmem>>, vector<24x48xbf16>
    %cst = arith.constant dense<0.000000e+00> : vector<128x48xf32>
    %2 = tpu.matmul %0, %1, %cst {dimension_numbers = #tpu.dot_dimension_numbers<[1], [0], [0], [1], [0, 0, 1, 1], [], []>} : vector<128x24xbf16>, vector<24x48xbf16>, vector<128x48xf32> -> vector<128x48xf32>
    %c0_3 = arith.constant 0 : index
    %c0_4 = arith.constant 0 : index
    %3 = vector.load %arg3[%c0_3, %c0_4] : memref<1x48xf32, #tpu.memory_space<vmem>>, vector<1x48xf32>
    %4 = vector.broadcast %3 : vector<1x48xf32> to vector<128x48xf32>
    %5 = arith.addf %2, %4 : vector<128x48xf32>
    %cst_5 = arith.constant 0.000000e+00 : f32
    %6 = vector.broadcast %cst_5 : f32 to vector<128x48xf32>
    %7 = arith.maximumf %5, %6 : vector<128x48xf32>
    %c0_6 = arith.constant 0 : index
    %c0_7 = arith.constant 0 : index
    %8 = vector.load %arg4[%c0_6, %c0_7] : memref<128x48xf32, #tpu.memory_space<vmem>>, vector<128x48xf32>
    tpu.vector_store %arg4[%c0_6, %c0_7], %7 {strides = array<i32>} : memref<128x48xf32, #tpu.memory_space<vmem>>, vector<128x48xf32>,
    return
  }
  func.func @transform_0(%arg0: i32) -> (i32, i32) {
    %c0_i32 = arith.constant 0 : i32
    %c0_i32_0 = arith.constant 0 : i32
    return %arg0, %c0_i32 : i32, i32
  }
  func.func @transform_1(%arg0: i32) -> (i32, i32) {
    %c0_i32 = arith.constant 0 : i32
    %c0_i32_0 = arith.constant 0 : i32
    %c0_i32_1 = arith.constant 0 : i32
    return %c0_i32, %c0_i32_0 : i32, i32
  }
  func.func @transform_2(%arg0: i32) -> (i32, i32) {
    %c0_i32 = arith.constant 0 : i32
    %c0_i32_0 = arith.constant 0 : i32
    %c0_i32_1 = arith.constant 0 : i32
    return %c0_i32, %c0_i32_0 : i32, i32
  }
  func.func @transform_3(%arg0: i32) -> (i32, i32) {
    %c0_i32 = arith.constant 0 : i32
    %c0_i32_0 = arith.constant 0 : i32
    return %arg0, %c0_i32 : i32, i32
  }
}

module attributes {stable_mosaic.version = 11 : i64} {
  func.func @_dw_kernel(%arg0: i32, %arg1: memref<1x10x10x48xbf16, #tpu.memory_space<vmem>>, %arg2: memref<9x1x1x48xf32, #tpu.memory_space<vmem>>, %arg3: memref<1x1x1x48xf32, #tpu.memory_space<vmem>>, %arg4: memref<1x8x8x48xf32, #tpu.memory_space<vmem>>) attributes {dimension_semantics = [#tpu.dimension_semantics<parallel>], iteration_bounds = array<i64: 2>, scalar_prefetch = 0 : i64, scratch_operands = 0 : i64, tpu.core_type = #tpu.core_type<tc>, window_params = [{transform_indices = @transform_0, window_bounds = array<i64: 1, 10, 10, 48>}, {pipeline_mode = #tpu.pipeline_mode<synchronous>, transform_indices = @transform_1, window_bounds = array<i64: 9, 1, 1, 48>}, {pipeline_mode = #tpu.pipeline_mode<synchronous>, transform_indices = @transform_2, window_bounds = array<i64: 1, 1, 1, 48>}, {transform_indices = @transform_3, window_bounds = array<i64: 1, 8, 8, 48>}]} {
    %c0 = arith.constant 0 : index
    %c0_0 = arith.constant 0 : index
    %c0_1 = arith.constant 0 : index
    %c0_2 = arith.constant 0 : index
    %0 = vector.load %arg1[%c0, %c0_0, %c0_1, %c0_2] : memref<1x10x10x48xbf16, #tpu.memory_space<vmem>>, vector<1x10x10x48xbf16>
    %1 = arith.extf %0 : vector<1x10x10x48xbf16> to vector<1x10x10x48xf32>
    %c0_3 = arith.constant 0 : index
    %c0_4 = arith.constant 0 : index
    %c0_5 = arith.constant 0 : index
    %c0_6 = arith.constant 0 : index
    %2 = vector.load %arg2[%c0_3, %c0_4, %c0_5, %c0_6] : memref<9x1x1x48xf32, #tpu.memory_space<vmem>>, vector<9x1x1x48xf32>
    %3 = vector.extract_strided_slice %1 {offsets = [0, 0, 0, 0], sizes = [1, 8, 8, 48], strides = [1, 1, 1, 1]} : vector<1x10x10x48xf32> to vector<1x8x8x48xf32>
    %4 = vector.extract_strided_slice %2 {offsets = [0, 0, 0, 0], sizes = [1, 1, 1, 48], strides = [1, 1, 1, 1]} : vector<9x1x1x48xf32> to vector<1x1x1x48xf32>
    %5 = vector.shape_cast %4 : vector<1x1x1x48xf32> to vector<1x1x48xf32>
    %6 = vector.shape_cast %5 : vector<1x1x48xf32> to vector<1x1x1x48xf32>
    %7 = vector.broadcast %6 : vector<1x1x1x48xf32> to vector<1x8x8x48xf32>
    %8 = arith.mulf %3, %7 : vector<1x8x8x48xf32>
    %9 = vector.extract_strided_slice %1 {offsets = [0, 0, 1, 0], sizes = [1, 8, 8, 48], strides = [1, 1, 1, 1]} : vector<1x10x10x48xf32> to vector<1x8x8x48xf32>
    %10 = vector.extract_strided_slice %2 {offsets = [1, 0, 0, 0], sizes = [1, 1, 1, 48], strides = [1, 1, 1, 1]} : vector<9x1x1x48xf32> to vector<1x1x1x48xf32>
    %11 = vector.shape_cast %10 : vector<1x1x1x48xf32> to vector<1x1x48xf32>
    %12 = vector.shape_cast %11 : vector<1x1x48xf32> to vector<1x1x1x48xf32>
    %13 = vector.broadcast %12 : vector<1x1x1x48xf32> to vector<1x8x8x48xf32>
    %14 = arith.mulf %9, %13 : vector<1x8x8x48xf32>
    %15 = arith.addf %8, %14 : vector<1x8x8x48xf32>
    %16 = vector.extract_strided_slice %1 {offsets = [0, 0, 2, 0], sizes = [1, 8, 8, 48], strides = [1, 1, 1, 1]} : vector<1x10x10x48xf32> to vector<1x8x8x48xf32>
    %17 = vector.extract_strided_slice %2 {offsets = [2, 0, 0, 0], sizes = [1, 1, 1, 48], strides = [1, 1, 1, 1]} : vector<9x1x1x48xf32> to vector<1x1x1x48xf32>
    %18 = vector.shape_cast %17 : vector<1x1x1x48xf32> to vector<1x1x48xf32>
    %19 = vector.shape_cast %18 : vector<1x1x48xf32> to vector<1x1x1x48xf32>
    %20 = vector.broadcast %19 : vector<1x1x1x48xf32> to vector<1x8x8x48xf32>
    %21 = arith.mulf %16, %20 : vector<1x8x8x48xf32>
    %22 = arith.addf %15, %21 : vector<1x8x8x48xf32>
    %23 = vector.extract_strided_slice %1 {offsets = [0, 1, 0, 0], sizes = [1, 8, 8, 48], strides = [1, 1, 1, 1]} : vector<1x10x10x48xf32> to vector<1x8x8x48xf32>
    %24 = vector.extract_strided_slice %2 {offsets = [3, 0, 0, 0], sizes = [1, 1, 1, 48], strides = [1, 1, 1, 1]} : vector<9x1x1x48xf32> to vector<1x1x1x48xf32>
    %25 = vector.shape_cast %24 : vector<1x1x1x48xf32> to vector<1x1x48xf32>
    %26 = vector.shape_cast %25 : vector<1x1x48xf32> to vector<1x1x1x48xf32>
    %27 = vector.broadcast %26 : vector<1x1x1x48xf32> to vector<1x8x8x48xf32>
    %28 = arith.mulf %23, %27 : vector<1x8x8x48xf32>
    %29 = arith.addf %22, %28 : vector<1x8x8x48xf32>
    %30 = vector.extract_strided_slice %1 {offsets = [0, 1, 1, 0], sizes = [1, 8, 8, 48], strides = [1, 1, 1, 1]} : vector<1x10x10x48xf32> to vector<1x8x8x48xf32>
    %31 = vector.extract_strided_slice %2 {offsets = [4, 0, 0, 0], sizes = [1, 1, 1, 48], strides = [1, 1, 1, 1]} : vector<9x1x1x48xf32> to vector<1x1x1x48xf32>
    %32 = vector.shape_cast %31 : vector<1x1x1x48xf32> to vector<1x1x48xf32>
    %33 = vector.shape_cast %32 : vector<1x1x48xf32> to vector<1x1x1x48xf32>
    %34 = vector.broadcast %33 : vector<1x1x1x48xf32> to vector<1x8x8x48xf32>
    %35 = arith.mulf %30, %34 : vector<1x8x8x48xf32>
    %36 = arith.addf %29, %35 : vector<1x8x8x48xf32>
    %37 = vector.extract_strided_slice %1 {offsets = [0, 1, 2, 0], sizes = [1, 8, 8, 48], strides = [1, 1, 1, 1]} : vector<1x10x10x48xf32> to vector<1x8x8x48xf32>
    %38 = vector.extract_strided_slice %2 {offsets = [5, 0, 0, 0], sizes = [1, 1, 1, 48], strides = [1, 1, 1, 1]} : vector<9x1x1x48xf32> to vector<1x1x1x48xf32>
    %39 = vector.shape_cast %38 : vector<1x1x1x48xf32> to vector<1x1x48xf32>
    %40 = vector.shape_cast %39 : vector<1x1x48xf32> to vector<1x1x1x48xf32>
    %41 = vector.broadcast %40 : vector<1x1x1x48xf32> to vector<1x8x8x48xf32>
    %42 = arith.mulf %37, %41 : vector<1x8x8x48xf32>
    %43 = arith.addf %36, %42 : vector<1x8x8x48xf32>
    %44 = vector.extract_strided_slice %1 {offsets = [0, 2, 0, 0], sizes = [1, 8, 8, 48], strides = [1, 1, 1, 1]} : vector<1x10x10x48xf32> to vector<1x8x8x48xf32>
    %45 = vector.extract_strided_slice %2 {offsets = [6, 0, 0, 0], sizes = [1, 1, 1, 48], strides = [1, 1, 1, 1]} : vector<9x1x1x48xf32> to vector<1x1x1x48xf32>
    %46 = vector.shape_cast %45 : vector<1x1x1x48xf32> to vector<1x1x48xf32>
    %47 = vector.shape_cast %46 : vector<1x1x48xf32> to vector<1x1x1x48xf32>
    %48 = vector.broadcast %47 : vector<1x1x1x48xf32> to vector<1x8x8x48xf32>
    %49 = arith.mulf %44, %48 : vector<1x8x8x48xf32>
    %50 = arith.addf %43, %49 : vector<1x8x8x48xf32>
    %51 = vector.extract_strided_slice %1 {offsets = [0, 2, 1, 0], sizes = [1, 8, 8, 48], strides = [1, 1, 1, 1]} : vector<1x10x10x48xf32> to vector<1x8x8x48xf32>
    %52 = vector.extract_strided_slice %2 {offsets = [7, 0, 0, 0], sizes = [1, 1, 1, 48], strides = [1, 1, 1, 1]} : vector<9x1x1x48xf32> to vector<1x1x1x48xf32>
    %53 = vector.shape_cast %52 : vector<1x1x1x48xf32> to vector<1x1x48xf32>
    %54 = vector.shape_cast %53 : vector<1x1x48xf32> to vector<1x1x1x48xf32>
    %55 = vector.broadcast %54 : vector<1x1x1x48xf32> to vector<1x8x8x48xf32>
    %56 = arith.mulf %51, %55 : vector<1x8x8x48xf32>
    %57 = arith.addf %50, %56 : vector<1x8x8x48xf32>
    %58 = vector.extract_strided_slice %1 {offsets = [0, 2, 2, 0], sizes = [1, 8, 8, 48], strides = [1, 1, 1, 1]} : vector<1x10x10x48xf32> to vector<1x8x8x48xf32>
    %59 = vector.extract_strided_slice %2 {offsets = [8, 0, 0, 0], sizes = [1, 1, 1, 48], strides = [1, 1, 1, 1]} : vector<9x1x1x48xf32> to vector<1x1x1x48xf32>
    %60 = vector.shape_cast %59 : vector<1x1x1x48xf32> to vector<1x1x48xf32>
    %61 = vector.shape_cast %60 : vector<1x1x48xf32> to vector<1x1x1x48xf32>
    %62 = vector.broadcast %61 : vector<1x1x1x48xf32> to vector<1x8x8x48xf32>
    %63 = arith.mulf %58, %62 : vector<1x8x8x48xf32>
    %64 = arith.addf %57, %63 : vector<1x8x8x48xf32>
    %c0_7 = arith.constant 0 : index
    %c0_8 = arith.constant 0 : index
    %c0_9 = arith.constant 0 : index
    %c0_10 = arith.constant 0 : index
    %65 = vector.load %arg3[%c0_7, %c0_8, %c0_9, %c0_10] : memref<1x1x1x48xf32, #tpu.memory_space<vmem>>, vector<1x1x1x48xf32>
    %66 = vector.broadcast %65 : vector<1x1x1x48xf32> to vector<1x8x8x48xf32>
    %67 = arith.addf %64, %66 : vector<1x8x8x48xf32>
    %cst = arith.constant 0.000000e+00 : f32
    %68 = vector.broadcast %cst : f32 to vector<1x8x8x48xf32>
    %69 = arith.maximumf %67, %68 : vector<1x8x8x48xf32>
    %c0_11 = arith.constant 0 : index
    %c0_12 = arith.constant 0 : index
    %c0_13 = arith.constant 0 : index
    %c0_14 = arith.constant 0 : index
    %70 = vector.load %arg4[%c0_11, %c0_12, %c0_13, %c0_14] : memref<1x8x8x48xf32, #tpu.memory_space<vmem>>, vector<1x8x8x48xf32>
    tpu.vector_store %arg4[%c0_11, %c0_12, %c0_13, %c0_14], %69 {strides = array<i32>} : memref<1x8x8x48xf32, #tpu.memory_space<vmem>>, vector<1x8x8x48xf32>,
    return
  }
  func.func @transform_0(%arg0: i32) -> (i32, i32, i32, i32) {
    %c0_i32 = arith.constant 0 : i32
    %c0_i32_0 = arith.constant 0 : i32
    %c0_i32_1 = arith.constant 0 : i32
    %c0_i32_2 = arith.constant 0 : i32
    return %arg0, %c0_i32, %c0_i32_0, %c0_i32_1 : i32, i32, i32, i32
  }
  func.func @transform_1(%arg0: i32) -> (i32, i32, i32, i32) {
    %c0_i32 = arith.constant 0 : i32
    %c0_i32_0 = arith.constant 0 : i32
    %c0_i32_1 = arith.constant 0 : i32
    %c0_i32_2 = arith.constant 0 : i32
    %c0_i32_3 = arith.constant 0 : i32
    return %c0_i32, %c0_i32_0, %c0_i32_1, %c0_i32_2 : i32, i32, i32, i32
  }
  func.func @transform_2(%arg0: i32) -> (i32, i32, i32, i32) {
    %c0_i32 = arith.constant 0 : i32
    %c0_i32_0 = arith.constant 0 : i32
    %c0_i32_1 = arith.constant 0 : i32
    %c0_i32_2 = arith.constant 0 : i32
    %c0_i32_3 = arith.constant 0 : i32
    return %c0_i32, %c0_i32_0, %c0_i32_1, %c0_i32_2 : i32, i32, i32, i32
  }
  func.func @transform_3(%arg0: i32) -> (i32, i32, i32, i32) {
    %c0_i32 = arith.constant 0 : i32
    %c0_i32_0 = arith.constant 0 : i32
    %c0_i32_1 = arith.constant 0 : i32
    %c0_i32_2 = arith.constant 0 : i32
    return %arg0, %c0_i32, %c0_i32_0, %c0_i32_1 : i32, i32, i32, i32
  }
}

module attributes {stable_mosaic.version = 11 : i64} {
  func.func @_se_kernel(%arg0: memref<2x16x48xf32, #tpu.memory_space<vmem>>, %arg1: memref<48x12xf32, #tpu.memory_space<vmem>>, %arg2: memref<1x12xf32, #tpu.memory_space<vmem>>, %arg3: memref<12x48xf32, #tpu.memory_space<vmem>>, %arg4: memref<1x48xf32, #tpu.memory_space<vmem>>, %arg5: memref<2x16x48xf32, #tpu.memory_space<vmem>>) attributes {dimension_semantics = [], scalar_prefetch = 0 : i64, scratch_operands = 0 : i64, tpu.core_type = #tpu.core_type<tc>} {
    %c0 = arith.constant 0 : index
    %c0_0 = arith.constant 0 : index
    %c0_1 = arith.constant 0 : index
    %0 = vector.load %arg0[%c0, %c0_0, %c0_1] : memref<2x16x48xf32, #tpu.memory_space<vmem>>, vector<2x16x48xf32>
    %cst = arith.constant dense<0.000000e+00> : vector<2x48xf32>
    %1 = vector.multi_reduction <add>, %0, %cst [1] : vector<2x16x48xf32> to vector<2x48xf32>
    %cst_2 = arith.constant 1.600000e+01 : f32
    %2 = vector.broadcast %cst_2 : f32 to vector<2x48xf32>
    %3 = arith.divf %1, %2 : vector<2x48xf32>
    %c0_3 = arith.constant 0 : index
    %c0_4 = arith.constant 0 : index
    %4 = vector.load %arg1[%c0_3, %c0_4] : memref<48x12xf32, #tpu.memory_space<vmem>>, vector<48x12xf32>
    %cst_5 = arith.constant dense<0.000000e+00> : vector<2x12xf32>
    %5 = tpu.matmul %3, %4, %cst_5 {dimension_numbers = #tpu.dot_dimension_numbers<[1], [0], [0], [1], [0, 0, 1, 1], [], []>} : vector<2x48xf32>, vector<48x12xf32>, vector<2x12xf32> -> vector<2x12xf32>
    %c0_6 = arith.constant 0 : index
    %c0_7 = arith.constant 0 : index
    %6 = vector.load %arg2[%c0_6, %c0_7] : memref<1x12xf32, #tpu.memory_space<vmem>>, vector<1x12xf32>
    %7 = vector.broadcast %6 : vector<1x12xf32> to vector<2x12xf32>
    %8 = arith.addf %5, %7 : vector<2x12xf32>
    %cst_8 = arith.constant 0.000000e+00 : f32
    %9 = vector.broadcast %cst_8 : f32 to vector<2x12xf32>
    %10 = arith.maximumf %8, %9 : vector<2x12xf32>
    %c0_9 = arith.constant 0 : index
    %c0_10 = arith.constant 0 : index
    %11 = vector.load %arg3[%c0_9, %c0_10] : memref<12x48xf32, #tpu.memory_space<vmem>>, vector<12x48xf32>
    %cst_11 = arith.constant dense<0.000000e+00> : vector<2x48xf32>
    %12 = tpu.matmul %10, %11, %cst_11 {dimension_numbers = #tpu.dot_dimension_numbers<[1], [0], [0], [1], [0, 0, 1, 1], [], []>} : vector<2x12xf32>, vector<12x48xf32>, vector<2x48xf32> -> vector<2x48xf32>
    %c0_12 = arith.constant 0 : index
    %c0_13 = arith.constant 0 : index
    %13 = vector.load %arg4[%c0_12, %c0_13] : memref<1x48xf32, #tpu.memory_space<vmem>>, vector<1x48xf32>
    %14 = vector.broadcast %13 : vector<1x48xf32> to vector<2x48xf32>
    %15 = arith.addf %12, %14 : vector<2x48xf32>
    %cst_14 = arith.constant 3.000000e+00 : f32
    %16 = vector.broadcast %cst_14 : f32 to vector<2x48xf32>
    %17 = arith.addf %15, %16 : vector<2x48xf32>
    %cst_15 = arith.constant 0.000000e+00 : f32
    %cst_16 = arith.constant 6.000000e+00 : f32
    %18 = vector.broadcast %cst_15 : f32 to vector<2x48xf32>
    %19 = arith.maximumf %18, %17 : vector<2x48xf32>
    %20 = vector.broadcast %cst_16 : f32 to vector<2x48xf32>
    %21 = arith.minimumf %20, %19 : vector<2x48xf32>
    %cst_17 = arith.constant 0.166666672 : f32
    %22 = vector.broadcast %cst_17 : f32 to vector<2x48xf32>
    %23 = arith.mulf %21, %22 : vector<2x48xf32>
    %24 = vector.shape_cast %23 : vector<2x48xf32> to vector<2x1x48xf32>
    %25 = vector.broadcast %24 : vector<2x1x48xf32> to vector<2x16x48xf32>
    %26 = arith.mulf %0, %25 : vector<2x16x48xf32>
    %c0_18 = arith.constant 0 : index
    %c0_19 = arith.constant 0 : index
    %c0_20 = arith.constant 0 : index
    %27 = vector.load %arg5[%c0_18, %c0_19, %c0_20] : memref<2x16x48xf32, #tpu.memory_space<vmem>>, vector<2x16x48xf32>
    tpu.vector_store %arg5[%c0_18, %c0_19, %c0_20], %26 {strides = array<i32>} : memref<2x16x48xf32, #tpu.memory_space<vmem>>, vector<2x16x48xf32>,
    return
  }
}

module attributes {stable_mosaic.version = 11 : i64} {
  func.func @_matmul_kernel(%arg0: i32, %arg1: memref<32x48xbf16, #tpu.memory_space<vmem>>, %arg2: memref<48x40xbf16, #tpu.memory_space<vmem>>, %arg3: memref<1x40xf32, #tpu.memory_space<vmem>>, %arg4: memref<32x40xf32, #tpu.memory_space<vmem>>) attributes {dimension_semantics = [#tpu.dimension_semantics<parallel>], iteration_bounds = array<i64: 1>, scalar_prefetch = 0 : i64, scratch_operands = 0 : i64, tpu.core_type = #tpu.core_type<tc>, window_params = [{transform_indices = @transform_0, window_bounds = array<i64: 32, 48>}, {pipeline_mode = #tpu.pipeline_mode<synchronous>, transform_indices = @transform_1, window_bounds = array<i64: 48, 40>}, {pipeline_mode = #tpu.pipeline_mode<synchronous>, transform_indices = @transform_2, window_bounds = array<i64: 1, 40>}, {transform_indices = @transform_3, window_bounds = array<i64: 32, 40>}]} {
    %c0 = arith.constant 0 : index
    %c0_0 = arith.constant 0 : index
    %0 = vector.load %arg1[%c0, %c0_0] : memref<32x48xbf16, #tpu.memory_space<vmem>>, vector<32x48xbf16>
    %c0_1 = arith.constant 0 : index
    %c0_2 = arith.constant 0 : index
    %1 = vector.load %arg2[%c0_1, %c0_2] : memref<48x40xbf16, #tpu.memory_space<vmem>>, vector<48x40xbf16>
    %cst = arith.constant dense<0.000000e+00> : vector<32x40xf32>
    %2 = tpu.matmul %0, %1, %cst {dimension_numbers = #tpu.dot_dimension_numbers<[1], [0], [0], [1], [0, 0, 1, 1], [], []>} : vector<32x48xbf16>, vector<48x40xbf16>, vector<32x40xf32> -> vector<32x40xf32>
    %c0_3 = arith.constant 0 : index
    %c0_4 = arith.constant 0 : index
    %3 = vector.load %arg3[%c0_3, %c0_4] : memref<1x40xf32, #tpu.memory_space<vmem>>, vector<1x40xf32>
    %4 = vector.broadcast %3 : vector<1x40xf32> to vector<32x40xf32>
    %5 = arith.addf %2, %4 : vector<32x40xf32>
    %c0_5 = arith.constant 0 : index
    %c0_6 = arith.constant 0 : index
    %6 = vector.load %arg4[%c0_5, %c0_6] : memref<32x40xf32, #tpu.memory_space<vmem>>, vector<32x40xf32>
    tpu.vector_store %arg4[%c0_5, %c0_6], %5 {strides = array<i32>} : memref<32x40xf32, #tpu.memory_space<vmem>>, vector<32x40xf32>,
    return
  }
  func.func @transform_0(%arg0: i32) -> (i32, i32) {
    %c0_i32 = arith.constant 0 : i32
    %c0_i32_0 = arith.constant 0 : i32
    return %arg0, %c0_i32 : i32, i32
  }
  func.func @transform_1(%arg0: i32) -> (i32, i32) {
    %c0_i32 = arith.constant 0 : i32
    %c0_i32_0 = arith.constant 0 : i32
    %c0_i32_1 = arith.constant 0 : i32
    return %c0_i32, %c0_i32_0 : i32, i32
  }
  func.func @transform_2(%arg0: i32) -> (i32, i32) {
    %c0_i32 = arith.constant 0 : i32
    %c0_i32_0 = arith.constant 0 : i32
    %c0_i32_1 = arith.constant 0 : i32
    return %c0_i32, %c0_i32_0 : i32, i32
  }
  func.func @transform_3(%arg0: i32) -> (i32, i32) {
    %c0_i32 = arith.constant 0 : i32
    %c0_i32_0 = arith.constant 0 : i32
    return %arg0, %c0_i32 : i32, i32
  }
}

module attributes {stable_mosaic.version = 11 : i64} {
  func.func @_matmul_kernel(%arg0: i32, %arg1: memref<32x40xbf16, #tpu.memory_space<vmem>>, %arg2: memref<40x80xbf16, #tpu.memory_space<vmem>>, %arg3: memref<1x80xf32, #tpu.memory_space<vmem>>, %arg4: memref<32x80xf32, #tpu.memory_space<vmem>>) attributes {dimension_semantics = [#tpu.dimension_semantics<parallel>], iteration_bounds = array<i64: 1>, scalar_prefetch = 0 : i64, scratch_operands = 0 : i64, tpu.core_type = #tpu.core_type<tc>, window_params = [{transform_indices = @transform_0, window_bounds = array<i64: 32, 40>}, {pipeline_mode = #tpu.pipeline_mode<synchronous>, transform_indices = @transform_1, window_bounds = array<i64: 40, 80>}, {pipeline_mode = #tpu.pipeline_mode<synchronous>, transform_indices = @transform_2, window_bounds = array<i64: 1, 80>}, {transform_indices = @transform_3, window_bounds = array<i64: 32, 80>}]} {
    %c0 = arith.constant 0 : index
    %c0_0 = arith.constant 0 : index
    %0 = vector.load %arg1[%c0, %c0_0] : memref<32x40xbf16, #tpu.memory_space<vmem>>, vector<32x40xbf16>
    %c0_1 = arith.constant 0 : index
    %c0_2 = arith.constant 0 : index
    %1 = vector.load %arg2[%c0_1, %c0_2] : memref<40x80xbf16, #tpu.memory_space<vmem>>, vector<40x80xbf16>
    %cst = arith.constant dense<0.000000e+00> : vector<32x80xf32>
    %2 = tpu.matmul %0, %1, %cst {dimension_numbers = #tpu.dot_dimension_numbers<[1], [0], [0], [1], [0, 0, 1, 1], [], []>} : vector<32x40xbf16>, vector<40x80xbf16>, vector<32x80xf32> -> vector<32x80xf32>
    %c0_3 = arith.constant 0 : index
    %c0_4 = arith.constant 0 : index
    %3 = vector.load %arg3[%c0_3, %c0_4] : memref<1x80xf32, #tpu.memory_space<vmem>>, vector<1x80xf32>
    %4 = vector.broadcast %3 : vector<1x80xf32> to vector<32x80xf32>
    %5 = arith.addf %2, %4 : vector<32x80xf32>
    %cst_5 = arith.constant 3.000000e+00 : f32
    %6 = vector.broadcast %cst_5 : f32 to vector<32x80xf32>
    %7 = arith.addf %5, %6 : vector<32x80xf32>
    %cst_6 = arith.constant 0.000000e+00 : f32
    %cst_7 = arith.constant 6.000000e+00 : f32
    %8 = vector.broadcast %cst_6 : f32 to vector<32x80xf32>
    %9 = arith.maximumf %8, %7 : vector<32x80xf32>
    %10 = vector.broadcast %cst_7 : f32 to vector<32x80xf32>
    %11 = arith.minimumf %10, %9 : vector<32x80xf32>
    %12 = arith.mulf %5, %11 : vector<32x80xf32>
    %cst_8 = arith.constant 0.166666672 : f32
    %13 = vector.broadcast %cst_8 : f32 to vector<32x80xf32>
    %14 = arith.mulf %12, %13 : vector<32x80xf32>
    %c0_9 = arith.constant 0 : index
    %c0_10 = arith.constant 0 : index
    %15 = vector.load %arg4[%c0_9, %c0_10] : memref<32x80xf32, #tpu.memory_space<vmem>>, vector<32x80xf32>
    tpu.vector_store %arg4[%c0_9, %c0_10], %14 {strides = array<i32>} : memref<32x80xf32, #tpu.memory_space<vmem>>, vector<32x80xf32>,
    return
  }
  func.func @transform_0(%arg0: i32) -> (i32, i32) {
    %c0_i32 = arith.constant 0 : i32
    %c0_i32_0 = arith.constant 0 : i32
    return %arg0, %c0_i32 : i32, i32
  }
  func.func @transform_1(%arg0: i32) -> (i32, i32) {
    %c0_i32 = arith.constant 0 : i32
    %c0_i32_0 = arith.constant 0 : i32
    %c0_i32_1 = arith.constant 0 : i32
    return %c0_i32, %c0_i32_0 : i32, i32
  }
  func.func @transform_2(%arg0: i32) -> (i32, i32) {
    %c0_i32 = arith.constant 0 : i32
    %c0_i32_0 = arith.constant 0 : i32
    %c0_i32_1 = arith.constant 0 : i32
    return %c0_i32, %c0_i32_0 : i32, i32
  }
  func.func @transform_3(%arg0: i32) -> (i32, i32) {
    %c0_i32 = arith.constant 0 : i32
    %c0_i32_0 = arith.constant 0 : i32
    return %arg0, %c0_i32 : i32, i32
  }
}

module attributes {stable_mosaic.version = 11 : i64} {
  func.func @_se_kernel(%arg0: memref<2x16x80xf32, #tpu.memory_space<vmem>>, %arg1: memref<80x20xf32, #tpu.memory_space<vmem>>, %arg2: memref<1x20xf32, #tpu.memory_space<vmem>>, %arg3: memref<20x80xf32, #tpu.memory_space<vmem>>, %arg4: memref<1x80xf32, #tpu.memory_space<vmem>>, %arg5: memref<2x16x80xf32, #tpu.memory_space<vmem>>) attributes {dimension_semantics = [], scalar_prefetch = 0 : i64, scratch_operands = 0 : i64, tpu.core_type = #tpu.core_type<tc>} {
    %c0 = arith.constant 0 : index
    %c0_0 = arith.constant 0 : index
    %c0_1 = arith.constant 0 : index
    %0 = vector.load %arg0[%c0, %c0_0, %c0_1] : memref<2x16x80xf32, #tpu.memory_space<vmem>>, vector<2x16x80xf32>
    %cst = arith.constant dense<0.000000e+00> : vector<2x80xf32>
    %1 = vector.multi_reduction <add>, %0, %cst [1] : vector<2x16x80xf32> to vector<2x80xf32>
    %cst_2 = arith.constant 1.600000e+01 : f32
    %2 = vector.broadcast %cst_2 : f32 to vector<2x80xf32>
    %3 = arith.divf %1, %2 : vector<2x80xf32>
    %c0_3 = arith.constant 0 : index
    %c0_4 = arith.constant 0 : index
    %4 = vector.load %arg1[%c0_3, %c0_4] : memref<80x20xf32, #tpu.memory_space<vmem>>, vector<80x20xf32>
    %cst_5 = arith.constant dense<0.000000e+00> : vector<2x20xf32>
    %5 = tpu.matmul %3, %4, %cst_5 {dimension_numbers = #tpu.dot_dimension_numbers<[1], [0], [0], [1], [0, 0, 1, 1], [], []>} : vector<2x80xf32>, vector<80x20xf32>, vector<2x20xf32> -> vector<2x20xf32>
    %c0_6 = arith.constant 0 : index
    %c0_7 = arith.constant 0 : index
    %6 = vector.load %arg2[%c0_6, %c0_7] : memref<1x20xf32, #tpu.memory_space<vmem>>, vector<1x20xf32>
    %7 = vector.broadcast %6 : vector<1x20xf32> to vector<2x20xf32>
    %8 = arith.addf %5, %7 : vector<2x20xf32>
    %cst_8 = arith.constant 0.000000e+00 : f32
    %9 = vector.broadcast %cst_8 : f32 to vector<2x20xf32>
    %10 = arith.maximumf %8, %9 : vector<2x20xf32>
    %c0_9 = arith.constant 0 : index
    %c0_10 = arith.constant 0 : index
    %11 = vector.load %arg3[%c0_9, %c0_10] : memref<20x80xf32, #tpu.memory_space<vmem>>, vector<20x80xf32>
    %cst_11 = arith.constant dense<0.000000e+00> : vector<2x80xf32>
    %12 = tpu.matmul %10, %11, %cst_11 {dimension_numbers = #tpu.dot_dimension_numbers<[1], [0], [0], [1], [0, 0, 1, 1], [], []>} : vector<2x20xf32>, vector<20x80xf32>, vector<2x80xf32> -> vector<2x80xf32>
    %c0_12 = arith.constant 0 : index
    %c0_13 = arith.constant 0 : index
    %13 = vector.load %arg4[%c0_12, %c0_13] : memref<1x80xf32, #tpu.memory_space<vmem>>, vector<1x80xf32>
    %14 = vector.broadcast %13 : vector<1x80xf32> to vector<2x80xf32>
    %15 = arith.addf %12, %14 : vector<2x80xf32>
    %cst_14 = arith.constant 3.000000e+00 : f32
    %16 = vector.broadcast %cst_14 : f32 to vector<2x80xf32>
    %17 = arith.addf %15, %16 : vector<2x80xf32>
    %cst_15 = arith.constant 0.000000e+00 : f32
    %cst_16 = arith.constant 6.000000e+00 : f32
    %18 = vector.broadcast %cst_15 : f32 to vector<2x80xf32>
    %19 = arith.maximumf %18, %17 : vector<2x80xf32>
    %20 = vector.broadcast %cst_16 : f32 to vector<2x80xf32>
    %21 = arith.minimumf %20, %19 : vector<2x80xf32>
    %cst_17 = arith.constant 0.166666672 : f32
    %22 = vector.broadcast %cst_17 : f32 to vector<2x80xf32>
    %23 = arith.mulf %21, %22 : vector<2x80xf32>
    %24 = vector.shape_cast %23 : vector<2x80xf32> to vector<2x1x80xf32>
    %25 = vector.broadcast %24 : vector<2x1x80xf32> to vector<2x16x80xf32>
    %26 = arith.mulf %0, %25 : vector<2x16x80xf32>
    %c0_18 = arith.constant 0 : index
    %c0_19 = arith.constant 0 : index
    %c0_20 = arith.constant 0 : index
    %27 = vector.load %arg5[%c0_18, %c0_19, %c0_20] : memref<2x16x80xf32, #tpu.memory_space<vmem>>, vector<2x16x80xf32>
    tpu.vector_store %arg5[%c0_18, %c0_19, %c0_20], %26 {strides = array<i32>} : memref<2x16x80xf32, #tpu.memory_space<vmem>>, vector<2x16x80xf32>,
    return
  }
}

module attributes {stable_mosaic.version = 11 : i64} {
  func.func @_dw_kernel(%arg0: i32, %arg1: memref<1x8x8x80xbf16, #tpu.memory_space<vmem>>, %arg2: memref<9x1x1x80xf32, #tpu.memory_space<vmem>>, %arg3: memref<1x1x1x80xf32, #tpu.memory_space<vmem>>, %arg4: memref<1x4x4x80xf32, #tpu.memory_space<vmem>>) attributes {dimension_semantics = [#tpu.dimension_semantics<parallel>], iteration_bounds = array<i64: 2>, scalar_prefetch = 0 : i64, scratch_operands = 0 : i64, tpu.core_type = #tpu.core_type<tc>, window_params = [{transform_indices = @transform_0, window_bounds = array<i64: 1, 8, 8, 80>}, {pipeline_mode = #tpu.pipeline_mode<synchronous>, transform_indices = @transform_1, window_bounds = array<i64: 9, 1, 1, 80>}, {pipeline_mode = #tpu.pipeline_mode<synchronous>, transform_indices = @transform_2, window_bounds = array<i64: 1, 1, 1, 80>}, {transform_indices = @transform_3, window_bounds = array<i64: 1, 4, 4, 80>}]} {
    %c0 = arith.constant 0 : index
    %c0_0 = arith.constant 0 : index
    %c0_1 = arith.constant 0 : index
    %c0_2 = arith.constant 0 : index
    %0 = vector.load %arg1[%c0, %c0_0, %c0_1, %c0_2] : memref<1x8x8x80xbf16, #tpu.memory_space<vmem>>, vector<1x8x8x80xbf16>
    %1 = arith.extf %0 : vector<1x8x8x80xbf16> to vector<1x8x8x80xf32>
    %c0_3 = arith.constant 0 : index
    %c0_4 = arith.constant 0 : index
    %c0_5 = arith.constant 0 : index
    %c0_6 = arith.constant 0 : index
    %2 = vector.load %arg2[%c0_3, %c0_4, %c0_5, %c0_6] : memref<9x1x1x80xf32, #tpu.memory_space<vmem>>, vector<9x1x1x80xf32>
    %3 = vector.extract_strided_slice %1 {offsets = [0, 0, 0, 0], sizes = [1, 4, 4, 80], strides = [1, 1, 1, 1]} : vector<1x8x8x80xf32> to vector<1x4x4x80xf32>
    %4 = vector.extract_strided_slice %2 {offsets = [0, 0, 0, 0], sizes = [1, 1, 1, 80], strides = [1, 1, 1, 1]} : vector<9x1x1x80xf32> to vector<1x1x1x80xf32>
    %5 = vector.shape_cast %4 : vector<1x1x1x80xf32> to vector<1x1x80xf32>
    %6 = vector.shape_cast %5 : vector<1x1x80xf32> to vector<1x1x1x80xf32>
    %7 = vector.broadcast %6 : vector<1x1x1x80xf32> to vector<1x4x4x80xf32>
    %8 = arith.mulf %3, %7 : vector<1x4x4x80xf32>
    %9 = vector.extract_strided_slice %1 {offsets = [0, 0, 2, 0], sizes = [1, 4, 4, 80], strides = [1, 1, 1, 1]} : vector<1x8x8x80xf32> to vector<1x4x4x80xf32>
    %10 = vector.extract_strided_slice %2 {offsets = [1, 0, 0, 0], sizes = [1, 1, 1, 80], strides = [1, 1, 1, 1]} : vector<9x1x1x80xf32> to vector<1x1x1x80xf32>
    %11 = vector.shape_cast %10 : vector<1x1x1x80xf32> to vector<1x1x80xf32>
    %12 = vector.shape_cast %11 : vector<1x1x80xf32> to vector<1x1x1x80xf32>
    %13 = vector.broadcast %12 : vector<1x1x1x80xf32> to vector<1x4x4x80xf32>
    %14 = arith.mulf %9, %13 : vector<1x4x4x80xf32>
    %15 = arith.addf %8, %14 : vector<1x4x4x80xf32>
    %16 = vector.extract_strided_slice %1 {offsets = [0, 0, 4, 0], sizes = [1, 4, 4, 80], strides = [1, 1, 1, 1]} : vector<1x8x8x80xf32> to vector<1x4x4x80xf32>
    %17 = vector.extract_strided_slice %2 {offsets = [2, 0, 0, 0], sizes = [1, 1, 1, 80], strides = [1, 1, 1, 1]} : vector<9x1x1x80xf32> to vector<1x1x1x80xf32>
    %18 = vector.shape_cast %17 : vector<1x1x1x80xf32> to vector<1x1x80xf32>
    %19 = vector.shape_cast %18 : vector<1x1x80xf32> to vector<1x1x1x80xf32>
    %20 = vector.broadcast %19 : vector<1x1x1x80xf32> to vector<1x4x4x80xf32>
    %21 = arith.mulf %16, %20 : vector<1x4x4x80xf32>
    %22 = arith.addf %15, %21 : vector<1x4x4x80xf32>
    %23 = vector.extract_strided_slice %1 {offsets = [0, 2, 0, 0], sizes = [1, 4, 4, 80], strides = [1, 1, 1, 1]} : vector<1x8x8x80xf32> to vector<1x4x4x80xf32>
    %24 = vector.extract_strided_slice %2 {offsets = [3, 0, 0, 0], sizes = [1, 1, 1, 80], strides = [1, 1, 1, 1]} : vector<9x1x1x80xf32> to vector<1x1x1x80xf32>
    %25 = vector.shape_cast %24 : vector<1x1x1x80xf32> to vector<1x1x80xf32>
    %26 = vector.shape_cast %25 : vector<1x1x80xf32> to vector<1x1x1x80xf32>
    %27 = vector.broadcast %26 : vector<1x1x1x80xf32> to vector<1x4x4x80xf32>
    %28 = arith.mulf %23, %27 : vector<1x4x4x80xf32>
    %29 = arith.addf %22, %28 : vector<1x4x4x80xf32>
    %30 = vector.extract_strided_slice %1 {offsets = [0, 2, 2, 0], sizes = [1, 4, 4, 80], strides = [1, 1, 1, 1]} : vector<1x8x8x80xf32> to vector<1x4x4x80xf32>
    %31 = vector.extract_strided_slice %2 {offsets = [4, 0, 0, 0], sizes = [1, 1, 1, 80], strides = [1, 1, 1, 1]} : vector<9x1x1x80xf32> to vector<1x1x1x80xf32>
    %32 = vector.shape_cast %31 : vector<1x1x1x80xf32> to vector<1x1x80xf32>
    %33 = vector.shape_cast %32 : vector<1x1x80xf32> to vector<1x1x1x80xf32>
    %34 = vector.broadcast %33 : vector<1x1x1x80xf32> to vector<1x4x4x80xf32>
    %35 = arith.mulf %30, %34 : vector<1x4x4x80xf32>
    %36 = arith.addf %29, %35 : vector<1x4x4x80xf32>
    %37 = vector.extract_strided_slice %1 {offsets = [0, 2, 4, 0], sizes = [1, 4, 4, 80], strides = [1, 1, 1, 1]} : vector<1x8x8x80xf32> to vector<1x4x4x80xf32>
    %38 = vector.extract_strided_slice %2 {offsets = [5, 0, 0, 0], sizes = [1, 1, 1, 80], strides = [1, 1, 1, 1]} : vector<9x1x1x80xf32> to vector<1x1x1x80xf32>
    %39 = vector.shape_cast %38 : vector<1x1x1x80xf32> to vector<1x1x80xf32>
    %40 = vector.shape_cast %39 : vector<1x1x80xf32> to vector<1x1x1x80xf32>
    %41 = vector.broadcast %40 : vector<1x1x1x80xf32> to vector<1x4x4x80xf32>
    %42 = arith.mulf %37, %41 : vector<1x4x4x80xf32>
    %43 = arith.addf %36, %42 : vector<1x4x4x80xf32>
    %44 = vector.extract_strided_slice %1 {offsets = [0, 4, 0, 0], sizes = [1, 4, 4, 80], strides = [1, 1, 1, 1]} : vector<1x8x8x80xf32> to vector<1x4x4x80xf32>
    %45 = vector.extract_strided_slice %2 {offsets = [6, 0, 0, 0], sizes = [1, 1, 1, 80], strides = [1, 1, 1, 1]} : vector<9x1x1x80xf32> to vector<1x1x1x80xf32>
    %46 = vector.shape_cast %45 : vector<1x1x1x80xf32> to vector<1x1x80xf32>
    %47 = vector.shape_cast %46 : vector<1x1x80xf32> to vector<1x1x1x80xf32>
    %48 = vector.broadcast %47 : vector<1x1x1x80xf32> to vector<1x4x4x80xf32>
    %49 = arith.mulf %44, %48 : vector<1x4x4x80xf32>
    %50 = arith.addf %43, %49 : vector<1x4x4x80xf32>
    %51 = vector.extract_strided_slice %1 {offsets = [0, 4, 2, 0], sizes = [1, 4, 4, 80], strides = [1, 1, 1, 1]} : vector<1x8x8x80xf32> to vector<1x4x4x80xf32>
    %52 = vector.extract_strided_slice %2 {offsets = [7, 0, 0, 0], sizes = [1, 1, 1, 80], strides = [1, 1, 1, 1]} : vector<9x1x1x80xf32> to vector<1x1x1x80xf32>
    %53 = vector.shape_cast %52 : vector<1x1x1x80xf32> to vector<1x1x80xf32>
    %54 = vector.shape_cast %53 : vector<1x1x80xf32> to vector<1x1x1x80xf32>
    %55 = vector.broadcast %54 : vector<1x1x1x80xf32> to vector<1x4x4x80xf32>
    %56 = arith.mulf %51, %55 : vector<1x4x4x80xf32>
    %57 = arith.addf %50, %56 : vector<1x4x4x80xf32>
    %58 = vector.extract_strided_slice %1 {offsets = [0, 4, 4, 0], sizes = [1, 4, 4, 80], strides = [1, 1, 1, 1]} : vector<1x8x8x80xf32> to vector<1x4x4x80xf32>
    %59 = vector.extract_strided_slice %2 {offsets = [8, 0, 0, 0], sizes = [1, 1, 1, 80], strides = [1, 1, 1, 1]} : vector<9x1x1x80xf32> to vector<1x1x1x80xf32>
    %60 = vector.shape_cast %59 : vector<1x1x1x80xf32> to vector<1x1x80xf32>
    %61 = vector.shape_cast %60 : vector<1x1x80xf32> to vector<1x1x1x80xf32>
    %62 = vector.broadcast %61 : vector<1x1x1x80xf32> to vector<1x4x4x80xf32>
    %63 = arith.mulf %58, %62 : vector<1x4x4x80xf32>
    %64 = arith.addf %57, %63 : vector<1x4x4x80xf32>
    %c0_7 = arith.constant 0 : index
    %c0_8 = arith.constant 0 : index
    %c0_9 = arith.constant 0 : index
    %c0_10 = arith.constant 0 : index
    %65 = vector.load %arg3[%c0_7, %c0_8, %c0_9, %c0_10] : memref<1x1x1x80xf32, #tpu.memory_space<vmem>>, vector<1x1x1x80xf32>
    %66 = vector.broadcast %65 : vector<1x1x1x80xf32> to vector<1x4x4x80xf32>
    %67 = arith.addf %64, %66 : vector<1x4x4x80xf32>
    %cst = arith.constant 3.000000e+00 : f32
    %68 = vector.broadcast %cst : f32 to vector<1x4x4x80xf32>
    %69 = arith.addf %67, %68 : vector<1x4x4x80xf32>
    %cst_11 = arith.constant 0.000000e+00 : f32
    %cst_12 = arith.constant 6.000000e+00 : f32
    %70 = vector.broadcast %cst_11 : f32 to vector<1x4x4x80xf32>
    %71 = arith.maximumf %70, %69 : vector<1x4x4x80xf32>
    %72 = vector.broadcast %cst_12 : f32 to vector<1x4x4x80xf32>
    %73 = arith.minimumf %72, %71 : vector<1x4x4x80xf32>
    %74 = arith.mulf %67, %73 : vector<1x4x4x80xf32>
    %cst_13 = arith.constant 0.166666672 : f32
    %75 = vector.broadcast %cst_13 : f32 to vector<1x4x4x80xf32>
    %76 = arith.mulf %74, %75 : vector<1x4x4x80xf32>
    %c0_14 = arith.constant 0 : index
    %c0_15 = arith.constant 0 : index
    %c0_16 = arith.constant 0 : index
    %c0_17 = arith.constant 0 : index
    %77 = vector.load %arg4[%c0_14, %c0_15, %c0_16, %c0_17] : memref<1x4x4x80xf32, #tpu.memory_space<vmem>>, vector<1x4x4x80xf32>
    tpu.vector_store %arg4[%c0_14, %c0_15, %c0_16, %c0_17], %76 {strides = array<i32>} : memref<1x4x4x80xf32, #tpu.memory_space<vmem>>, vector<1x4x4x80xf32>,
    return
  }
  func.func @transform_0(%arg0: i32) -> (i32, i32, i32, i32) {
    %c0_i32 = arith.constant 0 : i32
    %c0_i32_0 = arith.constant 0 : i32
    %c0_i32_1 = arith.constant 0 : i32
    %c0_i32_2 = arith.constant 0 : i32
    return %arg0, %c0_i32, %c0_i32_0, %c0_i32_1 : i32, i32, i32, i32
  }
  func.func @transform_1(%arg0: i32) -> (i32, i32, i32, i32) {
    %c0_i32 = arith.constant 0 : i32
    %c0_i32_0 = arith.constant 0 : i32
    %c0_i32_1 = arith.constant 0 : i32
    %c0_i32_2 = arith.constant 0 : i32
    %c0_i32_3 = arith.constant 0 : i32
    return %c0_i32, %c0_i32_0, %c0_i32_1, %c0_i32_2 : i32, i32, i32, i32
  }
  func.func @transform_2(%arg0: i32) -> (i32, i32, i32, i32) {
    %c0_i32 = arith.constant 0 : i32
    %c0_i32_0 = arith.constant 0 : i32
    %c0_i32_1 = arith.constant 0 : i32
    %c0_i32_2 = arith.constant 0 : i32
    %c0_i32_3 = arith.constant 0 : i32
    return %c0_i32, %c0_i32_0, %c0_i32_1, %c0_i32_2 : i32, i32, i32, i32
  }
  func.func @transform_3(%arg0: i32) -> (i32, i32, i32, i32) {
    %c0_i32 = arith.constant 0 : i32
    %c0_i32_0 = arith.constant 0 : i32
    %c0_i32_1 = arith.constant 0 : i32
    %c0_i32_2 = arith.constant 0 : i32
    return %arg0, %c0_i32, %c0_i32_0, %c0_i32_1 : i32, i32, i32, i32
  }
}

module attributes {stable_mosaic.version = 11 : i64} {
  func.func @_matmul_kernel(%arg0: i32, %arg1: memref<32x80xbf16, #tpu.memory_space<vmem>>, %arg2: memref<80x40xbf16, #tpu.memory_space<vmem>>, %arg3: memref<1x40xf32, #tpu.memory_space<vmem>>, %arg4: memref<32x40xf32, #tpu.memory_space<vmem>>) attributes {dimension_semantics = [#tpu.dimension_semantics<parallel>], iteration_bounds = array<i64: 1>, scalar_prefetch = 0 : i64, scratch_operands = 0 : i64, tpu.core_type = #tpu.core_type<tc>, window_params = [{transform_indices = @transform_0, window_bounds = array<i64: 32, 80>}, {pipeline_mode = #tpu.pipeline_mode<synchronous>, transform_indices = @transform_1, window_bounds = array<i64: 80, 40>}, {pipeline_mode = #tpu.pipeline_mode<synchronous>, transform_indices = @transform_2, window_bounds = array<i64: 1, 40>}, {transform_indices = @transform_3, window_bounds = array<i64: 32, 40>}]} {
    %c0 = arith.constant 0 : index
    %c0_0 = arith.constant 0 : index
    %0 = vector.load %arg1[%c0, %c0_0] : memref<32x80xbf16, #tpu.memory_space<vmem>>, vector<32x80xbf16>
    %c0_1 = arith.constant 0 : index
    %c0_2 = arith.constant 0 : index
    %1 = vector.load %arg2[%c0_1, %c0_2] : memref<80x40xbf16, #tpu.memory_space<vmem>>, vector<80x40xbf16>
    %cst = arith.constant dense<0.000000e+00> : vector<32x40xf32>
    %2 = tpu.matmul %0, %1, %cst {dimension_numbers = #tpu.dot_dimension_numbers<[1], [0], [0], [1], [0, 0, 1, 1], [], []>} : vector<32x80xbf16>, vector<80x40xbf16>, vector<32x40xf32> -> vector<32x40xf32>
    %c0_3 = arith.constant 0 : index
    %c0_4 = arith.constant 0 : index
    %3 = vector.load %arg3[%c0_3, %c0_4] : memref<1x40xf32, #tpu.memory_space<vmem>>, vector<1x40xf32>
    %4 = vector.broadcast %3 : vector<1x40xf32> to vector<32x40xf32>
    %5 = arith.addf %2, %4 : vector<32x40xf32>
    %c0_5 = arith.constant 0 : index
    %c0_6 = arith.constant 0 : index
    %6 = vector.load %arg4[%c0_5, %c0_6] : memref<32x40xf32, #tpu.memory_space<vmem>>, vector<32x40xf32>
    tpu.vector_store %arg4[%c0_5, %c0_6], %5 {strides = array<i32>} : memref<32x40xf32, #tpu.memory_space<vmem>>, vector<32x40xf32>,
    return
  }
  func.func @transform_0(%arg0: i32) -> (i32, i32) {
    %c0_i32 = arith.constant 0 : i32
    %c0_i32_0 = arith.constant 0 : i32
    return %arg0, %c0_i32 : i32, i32
  }
  func.func @transform_1(%arg0: i32) -> (i32, i32) {
    %c0_i32 = arith.constant 0 : i32
    %c0_i32_0 = arith.constant 0 : i32
    %c0_i32_1 = arith.constant 0 : i32
    return %c0_i32, %c0_i32_0 : i32, i32
  }
  func.func @transform_2(%arg0: i32) -> (i32, i32) {
    %c0_i32 = arith.constant 0 : i32
    %c0_i32_0 = arith.constant 0 : i32
    %c0_i32_1 = arith.constant 0 : i32
    return %c0_i32, %c0_i32_0 : i32, i32
  }
  func.func @transform_3(%arg0: i32) -> (i32, i32) {
    %c0_i32 = arith.constant 0 : i32
    %c0_i32_0 = arith.constant 0 : i32
    return %arg0, %c0_i32 : i32, i32
  }
}

module attributes {stable_mosaic.version = 11 : i64} {
  func.func @_matmul_kernel(%arg0: i32, %arg1: memref<32x40xbf16, #tpu.memory_space<vmem>>, %arg2: memref<40x128xbf16, #tpu.memory_space<vmem>>, %arg3: memref<1x128xf32, #tpu.memory_space<vmem>>, %arg4: memref<32x128xf32, #tpu.memory_space<vmem>>) attributes {dimension_semantics = [#tpu.dimension_semantics<parallel>], iteration_bounds = array<i64: 1>, scalar_prefetch = 0 : i64, scratch_operands = 0 : i64, tpu.core_type = #tpu.core_type<tc>, window_params = [{transform_indices = @transform_0, window_bounds = array<i64: 32, 40>}, {pipeline_mode = #tpu.pipeline_mode<synchronous>, transform_indices = @transform_1, window_bounds = array<i64: 40, 128>}, {pipeline_mode = #tpu.pipeline_mode<synchronous>, transform_indices = @transform_2, window_bounds = array<i64: 1, 128>}, {transform_indices = @transform_3, window_bounds = array<i64: 32, 128>}]} {
    %c0 = arith.constant 0 : index
    %c0_0 = arith.constant 0 : index
    %0 = vector.load %arg1[%c0, %c0_0] : memref<32x40xbf16, #tpu.memory_space<vmem>>, vector<32x40xbf16>
    %c0_1 = arith.constant 0 : index
    %c0_2 = arith.constant 0 : index
    %1 = vector.load %arg2[%c0_1, %c0_2] : memref<40x128xbf16, #tpu.memory_space<vmem>>, vector<40x128xbf16>
    %cst = arith.constant dense<0.000000e+00> : vector<32x128xf32>
    %2 = tpu.matmul %0, %1, %cst {dimension_numbers = #tpu.dot_dimension_numbers<[1], [0], [0], [1], [0, 0, 1, 1], [], []>} : vector<32x40xbf16>, vector<40x128xbf16>, vector<32x128xf32> -> vector<32x128xf32>
    %c0_3 = arith.constant 0 : index
    %c0_4 = arith.constant 0 : index
    %3 = vector.load %arg3[%c0_3, %c0_4] : memref<1x128xf32, #tpu.memory_space<vmem>>, vector<1x128xf32>
    %4 = vector.broadcast %3 : vector<1x128xf32> to vector<32x128xf32>
    %5 = arith.addf %2, %4 : vector<32x128xf32>
    %cst_5 = arith.constant 0.000000e+00 : f32
    %6 = vector.broadcast %cst_5 : f32 to vector<32x128xf32>
    %7 = arith.maximumf %5, %6 : vector<32x128xf32>
    %c0_6 = arith.constant 0 : index
    %c0_7 = arith.constant 0 : index
    %8 = vector.load %arg4[%c0_6, %c0_7] : memref<32x128xf32, #tpu.memory_space<vmem>>, vector<32x128xf32>
    tpu.vector_store %arg4[%c0_6, %c0_7], %7 {strides = array<i32>} : memref<32x128xf32, #tpu.memory_space<vmem>>, vector<32x128xf32>,
    return
  }
  func.func @transform_0(%arg0: i32) -> (i32, i32) {
    %c0_i32 = arith.constant 0 : i32
    %c0_i32_0 = arith.constant 0 : i32
    return %arg0, %c0_i32 : i32, i32
  }
  func.func @transform_1(%arg0: i32) -> (i32, i32) {
    %c0_i32 = arith.constant 0 : i32
    %c0_i32_0 = arith.constant 0 : i32
    %c0_i32_1 = arith.constant 0 : i32
    return %c0_i32, %c0_i32_0 : i32, i32
  }
  func.func @transform_2(%arg0: i32) -> (i32, i32) {
    %c0_i32 = arith.constant 0 : i32
    %c0_i32_0 = arith.constant 0 : i32
    %c0_i32_1 = arith.constant 0 : i32
    return %c0_i32, %c0_i32_0 : i32, i32
  }
  func.func @transform_3(%arg0: i32) -> (i32, i32) {
    %c0_i32 = arith.constant 0 : i32
    %c0_i32_0 = arith.constant 0 : i32
    return %arg0, %c0_i32 : i32, i32
  }
}

module attributes {stable_mosaic.version = 11 : i64} {
  func.func @_pool_fc_kernel(%arg0: memref<2x16x40xf32, #tpu.memory_space<vmem>>, %arg1: memref<40x32xbf16, #tpu.memory_space<vmem>>, %arg2: memref<1x32xf32, #tpu.memory_space<vmem>>, %arg3: memref<2x32xf32, #tpu.memory_space<vmem>>) attributes {dimension_semantics = [], scalar_prefetch = 0 : i64, scratch_operands = 0 : i64, tpu.core_type = #tpu.core_type<tc>} {
    %c0 = arith.constant 0 : index
    %c0_0 = arith.constant 0 : index
    %c0_1 = arith.constant 0 : index
    %0 = vector.load %arg0[%c0, %c0_0, %c0_1] : memref<2x16x40xf32, #tpu.memory_space<vmem>>, vector<2x16x40xf32>
    %cst = arith.constant dense<0.000000e+00> : vector<2x40xf32>
    %1 = vector.multi_reduction <add>, %0, %cst [1] : vector<2x16x40xf32> to vector<2x40xf32>
    %cst_2 = arith.constant 1.600000e+01 : f32
    %2 = vector.broadcast %cst_2 : f32 to vector<2x40xf32>
    %3 = arith.divf %1, %2 : vector<2x40xf32>
    %4 = arith.truncf %3 : vector<2x40xf32> to vector<2x40xbf16>
    %c0_3 = arith.constant 0 : index
    %c0_4 = arith.constant 0 : index
    %5 = vector.load %arg1[%c0_3, %c0_4] : memref<40x32xbf16, #tpu.memory_space<vmem>>, vector<40x32xbf16>
    %cst_5 = arith.constant dense<0.000000e+00> : vector<2x32xf32>
    %6 = tpu.matmul %4, %5, %cst_5 {dimension_numbers = #tpu.dot_dimension_numbers<[1], [0], [0], [1], [0, 0, 1, 1], [], []>} : vector<2x40xbf16>, vector<40x32xbf16>, vector<2x32xf32> -> vector<2x32xf32>
    %c0_6 = arith.constant 0 : index
    %c0_7 = arith.constant 0 : index
    %7 = vector.load %arg2[%c0_6, %c0_7] : memref<1x32xf32, #tpu.memory_space<vmem>>, vector<1x32xf32>
    %8 = vector.broadcast %7 : vector<1x32xf32> to vector<2x32xf32>
    %9 = arith.addf %6, %8 : vector<2x32xf32>
    %cst_8 = arith.constant 0.000000e+00 : f32
    %10 = vector.broadcast %cst_8 : f32 to vector<2x32xf32>
    %11 = arith.maximumf %9, %10 : vector<2x32xf32>
    %c0_9 = arith.constant 0 : index
    %c0_10 = arith.constant 0 : index
    %12 = vector.load %arg3[%c0_9, %c0_10] : memref<2x32xf32, #tpu.memory_space<vmem>>, vector<2x32xf32>
    tpu.vector_store %arg3[%c0_9, %c0_10], %11 {strides = array<i32>} : memref<2x32xf32, #tpu.memory_space<vmem>>, vector<2x32xf32>,
    return
  }
}

module attributes {stable_mosaic.version = 11 : i64} {
  func.func @_matmul_kernel(%arg0: i32, %arg1: memref<32x160xbf16, #tpu.memory_space<vmem>>, %arg2: memref<160x32xbf16, #tpu.memory_space<vmem>>, %arg3: memref<1x32xf32, #tpu.memory_space<vmem>>, %arg4: memref<32x32xf32, #tpu.memory_space<vmem>>) attributes {dimension_semantics = [#tpu.dimension_semantics<parallel>], iteration_bounds = array<i64: 1>, scalar_prefetch = 0 : i64, scratch_operands = 0 : i64, tpu.core_type = #tpu.core_type<tc>, window_params = [{transform_indices = @transform_0, window_bounds = array<i64: 32, 160>}, {pipeline_mode = #tpu.pipeline_mode<synchronous>, transform_indices = @transform_1, window_bounds = array<i64: 160, 32>}, {pipeline_mode = #tpu.pipeline_mode<synchronous>, transform_indices = @transform_2, window_bounds = array<i64: 1, 32>}, {transform_indices = @transform_3, window_bounds = array<i64: 32, 32>}]} {
    %c0 = arith.constant 0 : index
    %c0_0 = arith.constant 0 : index
    %0 = vector.load %arg1[%c0, %c0_0] : memref<32x160xbf16, #tpu.memory_space<vmem>>, vector<32x160xbf16>
    %c0_1 = arith.constant 0 : index
    %c0_2 = arith.constant 0 : index
    %1 = vector.load %arg2[%c0_1, %c0_2] : memref<160x32xbf16, #tpu.memory_space<vmem>>, vector<160x32xbf16>
    %cst = arith.constant dense<0.000000e+00> : vector<32x32xf32>
    %2 = tpu.matmul %0, %1, %cst {dimension_numbers = #tpu.dot_dimension_numbers<[1], [0], [0], [1], [0, 0, 1, 1], [], []>} : vector<32x160xbf16>, vector<160x32xbf16>, vector<32x32xf32> -> vector<32x32xf32>
    %c0_3 = arith.constant 0 : index
    %c0_4 = arith.constant 0 : index
    %3 = vector.load %arg3[%c0_3, %c0_4] : memref<1x32xf32, #tpu.memory_space<vmem>>, vector<1x32xf32>
    %4 = vector.broadcast %3 : vector<1x32xf32> to vector<32x32xf32>
    %5 = arith.addf %2, %4 : vector<32x32xf32>
    %cst_5 = arith.constant 0.000000e+00 : f32
    %6 = vector.broadcast %cst_5 : f32 to vector<32x32xf32>
    %7 = arith.maximumf %5, %6 : vector<32x32xf32>
    %c0_6 = arith.constant 0 : index
    %c0_7 = arith.constant 0 : index
    %8 = vector.load %arg4[%c0_6, %c0_7] : memref<32x32xf32, #tpu.memory_space<vmem>>, vector<32x32xf32>
    tpu.vector_store %arg4[%c0_6, %c0_7], %7 {strides = array<i32>} : memref<32x32xf32, #tpu.memory_space<vmem>>, vector<32x32xf32>,
    return
  }
  func.func @transform_0(%arg0: i32) -> (i32, i32) {
    %c0_i32 = arith.constant 0 : i32
    %c0_i32_0 = arith.constant 0 : i32
    return %arg0, %c0_i32 : i32, i32
  }
  func.func @transform_1(%arg0: i32) -> (i32, i32) {
    %c0_i32 = arith.constant 0 : i32
    %c0_i32_0 = arith.constant 0 : i32
    %c0_i32_1 = arith.constant 0 : i32
    return %c0_i32, %c0_i32_0 : i32, i32
  }
  func.func @transform_2(%arg0: i32) -> (i32, i32) {
    %c0_i32 = arith.constant 0 : i32
    %c0_i32_0 = arith.constant 0 : i32
    %c0_i32_1 = arith.constant 0 : i32
    return %c0_i32, %c0_i32_0 : i32, i32
  }
  func.func @transform_3(%arg0: i32) -> (i32, i32) {
    %c0_i32 = arith.constant 0 : i32
    %c0_i32_0 = arith.constant 0 : i32
    return %arg0, %c0_i32 : i32, i32
  }
}

module attributes {stable_mosaic.version = 11 : i64} {
  func.func @_matmul_kernel(%arg0: i32, %arg1: memref<32x288xbf16, #tpu.memory_space<vmem>>, %arg2: memref<288x32xbf16, #tpu.memory_space<vmem>>, %arg3: memref<1x32xf32, #tpu.memory_space<vmem>>, %arg4: memref<32x32xf32, #tpu.memory_space<vmem>>) attributes {dimension_semantics = [#tpu.dimension_semantics<parallel>], iteration_bounds = array<i64: 1>, scalar_prefetch = 0 : i64, scratch_operands = 0 : i64, tpu.core_type = #tpu.core_type<tc>, window_params = [{transform_indices = @transform_0, window_bounds = array<i64: 32, 288>}, {pipeline_mode = #tpu.pipeline_mode<synchronous>, transform_indices = @transform_1, window_bounds = array<i64: 288, 32>}, {pipeline_mode = #tpu.pipeline_mode<synchronous>, transform_indices = @transform_2, window_bounds = array<i64: 1, 32>}, {transform_indices = @transform_3, window_bounds = array<i64: 32, 32>}]} {
    %c0 = arith.constant 0 : index
    %c0_0 = arith.constant 0 : index
    %0 = vector.load %arg1[%c0, %c0_0] : memref<32x288xbf16, #tpu.memory_space<vmem>>, vector<32x288xbf16>
    %c0_1 = arith.constant 0 : index
    %c0_2 = arith.constant 0 : index
    %1 = vector.load %arg2[%c0_1, %c0_2] : memref<288x32xbf16, #tpu.memory_space<vmem>>, vector<288x32xbf16>
    %cst = arith.constant dense<0.000000e+00> : vector<32x32xf32>
    %2 = tpu.matmul %0, %1, %cst {dimension_numbers = #tpu.dot_dimension_numbers<[1], [0], [0], [1], [0, 0, 1, 1], [], []>} : vector<32x288xbf16>, vector<288x32xbf16>, vector<32x32xf32> -> vector<32x32xf32>
    %c0_3 = arith.constant 0 : index
    %c0_4 = arith.constant 0 : index
    %3 = vector.load %arg3[%c0_3, %c0_4] : memref<1x32xf32, #tpu.memory_space<vmem>>, vector<1x32xf32>
    %4 = vector.broadcast %3 : vector<1x32xf32> to vector<32x32xf32>
    %5 = arith.addf %2, %4 : vector<32x32xf32>
    %cst_5 = arith.constant 0.000000e+00 : f32
    %6 = vector.broadcast %cst_5 : f32 to vector<32x32xf32>
    %7 = arith.maximumf %5, %6 : vector<32x32xf32>
    %c0_6 = arith.constant 0 : index
    %c0_7 = arith.constant 0 : index
    %8 = vector.load %arg4[%c0_6, %c0_7] : memref<32x32xf32, #tpu.memory_space<vmem>>, vector<32x32xf32>
    tpu.vector_store %arg4[%c0_6, %c0_7], %7 {strides = array<i32>} : memref<32x32xf32, #tpu.memory_space<vmem>>, vector<32x32xf32>,
    return
  }
  func.func @transform_0(%arg0: i32) -> (i32, i32) {
    %c0_i32 = arith.constant 0 : i32
    %c0_i32_0 = arith.constant 0 : i32
    return %arg0, %c0_i32 : i32, i32
  }
  func.func @transform_1(%arg0: i32) -> (i32, i32) {
    %c0_i32 = arith.constant 0 : i32
    %c0_i32_0 = arith.constant 0 : i32
    %c0_i32_1 = arith.constant 0 : i32
    return %c0_i32, %c0_i32_0 : i32, i32
  }
  func.func @transform_2(%arg0: i32) -> (i32, i32) {
    %c0_i32 = arith.constant 0 : i32
    %c0_i32_0 = arith.constant 0 : i32
    %c0_i32_1 = arith.constant 0 : i32
    return %c0_i32, %c0_i32_0 : i32, i32
  }
  func.func @transform_3(%arg0: i32) -> (i32, i32) {
    %c0_i32 = arith.constant 0 : i32
    %c0_i32_0 = arith.constant 0 : i32
    return %arg0, %c0_i32 : i32, i32
  }
}

module attributes {stable_mosaic.version = 11 : i64} {
  func.func @_matmul_kernel(%arg0: i32, %arg1: memref<32x32xbf16, #tpu.memory_space<vmem>>, %arg2: memref<32x7xbf16, #tpu.memory_space<vmem>>, %arg3: memref<1x7xf32, #tpu.memory_space<vmem>>, %arg4: memref<32x7xf32, #tpu.memory_space<vmem>>) attributes {dimension_semantics = [#tpu.dimension_semantics<parallel>], iteration_bounds = array<i64: 1>, scalar_prefetch = 0 : i64, scratch_operands = 0 : i64, tpu.core_type = #tpu.core_type<tc>, window_params = [{transform_indices = @transform_0, window_bounds = array<i64: 32, 32>}, {pipeline_mode = #tpu.pipeline_mode<synchronous>, transform_indices = @transform_1, window_bounds = array<i64: 32, 7>}, {pipeline_mode = #tpu.pipeline_mode<synchronous>, transform_indices = @transform_2, window_bounds = array<i64: 1, 7>}, {transform_indices = @transform_3, window_bounds = array<i64: 32, 7>}]} {
    %c0 = arith.constant 0 : index
    %c0_0 = arith.constant 0 : index
    %0 = vector.load %arg1[%c0, %c0_0] : memref<32x32xbf16, #tpu.memory_space<vmem>>, vector<32x32xbf16>
    %c0_1 = arith.constant 0 : index
    %c0_2 = arith.constant 0 : index
    %1 = vector.load %arg2[%c0_1, %c0_2] : memref<32x7xbf16, #tpu.memory_space<vmem>>, vector<32x7xbf16>
    %cst = arith.constant dense<0.000000e+00> : vector<32x7xf32>
    %2 = tpu.matmul %0, %1, %cst {dimension_numbers = #tpu.dot_dimension_numbers<[1], [0], [0], [1], [0, 0, 1, 1], [], []>} : vector<32x32xbf16>, vector<32x7xbf16>, vector<32x7xf32> -> vector<32x7xf32>
    %c0_3 = arith.constant 0 : index
    %c0_4 = arith.constant 0 : index
    %3 = vector.load %arg3[%c0_3, %c0_4] : memref<1x7xf32, #tpu.memory_space<vmem>>, vector<1x7xf32>
    %4 = vector.broadcast %3 : vector<1x7xf32> to vector<32x7xf32>
    %5 = arith.addf %2, %4 : vector<32x7xf32>
    %c0_5 = arith.constant 0 : index
    %c0_6 = arith.constant 0 : index
    %6 = vector.load %arg4[%c0_5, %c0_6] : memref<32x7xf32, #tpu.memory_space<vmem>>, vector<32x7xf32>
    tpu.vector_store %arg4[%c0_5, %c0_6], %5 {strides = array<i32>} : memref<32x7xf32, #tpu.memory_space<vmem>>, vector<32x7xf32>,
    return
  }
  func.func @transform_0(%arg0: i32) -> (i32, i32) {
    %c0_i32 = arith.constant 0 : i32
    %c0_i32_0 = arith.constant 0 : i32
    return %arg0, %c0_i32 : i32, i32
  }
  func.func @transform_1(%arg0: i32) -> (i32, i32) {
    %c0_i32 = arith.constant 0 : i32
    %c0_i32_0 = arith.constant 0 : i32
    %c0_i32_1 = arith.constant 0 : i32
    return %c0_i32, %c0_i32_0 : i32, i32
  }
  func.func @transform_2(%arg0: i32) -> (i32, i32) {
    %c0_i32 = arith.constant 0 : i32
    %c0_i32_0 = arith.constant 0 : i32
    %c0_i32_1 = arith.constant 0 : i32
    return %c0_i32, %c0_i32_0 : i32, i32
  }
  func.func @transform_3(%arg0: i32) -> (i32, i32) {
    %c0_i32 = arith.constant 0 : i32
    %c0_i32_0 = arith.constant 0 : i32
    return %arg0, %c0_i32 : i32, i32
  }
}

module attributes {stable_mosaic.version = 11 : i64} {
  func.func @_matmul_kernel(%arg0: i32, %arg1: memref<32x4xbf16, #tpu.memory_space<vmem>>, %arg2: memref<4x56xbf16, #tpu.memory_space<vmem>>, %arg3: memref<1x56xf32, #tpu.memory_space<vmem>>, %arg4: memref<32x56xf32, #tpu.memory_space<vmem>>) attributes {dimension_semantics = [#tpu.dimension_semantics<parallel>], iteration_bounds = array<i64: 1>, scalar_prefetch = 0 : i64, scratch_operands = 0 : i64, tpu.core_type = #tpu.core_type<tc>, window_params = [{transform_indices = @transform_0, window_bounds = array<i64: 32, 4>}, {pipeline_mode = #tpu.pipeline_mode<synchronous>, transform_indices = @transform_1, window_bounds = array<i64: 4, 56>}, {pipeline_mode = #tpu.pipeline_mode<synchronous>, transform_indices = @transform_2, window_bounds = array<i64: 1, 56>}, {transform_indices = @transform_3, window_bounds = array<i64: 32, 56>}]} {
    %c0 = arith.constant 0 : index
    %c0_0 = arith.constant 0 : index
    %0 = vector.load %arg1[%c0, %c0_0] : memref<32x4xbf16, #tpu.memory_space<vmem>>, vector<32x4xbf16>
    %c0_1 = arith.constant 0 : index
    %c0_2 = arith.constant 0 : index
    %1 = vector.load %arg2[%c0_1, %c0_2] : memref<4x56xbf16, #tpu.memory_space<vmem>>, vector<4x56xbf16>
    %cst = arith.constant dense<0.000000e+00> : vector<32x56xf32>
    %2 = tpu.matmul %0, %1, %cst {dimension_numbers = #tpu.dot_dimension_numbers<[1], [0], [0], [1], [0, 0, 1, 1], [], []>} : vector<32x4xbf16>, vector<4x56xbf16>, vector<32x56xf32> -> vector<32x56xf32>
    %c0_3 = arith.constant 0 : index
    %c0_4 = arith.constant 0 : index
    %3 = vector.load %arg3[%c0_3, %c0_4] : memref<1x56xf32, #tpu.memory_space<vmem>>, vector<1x56xf32>
    %4 = vector.broadcast %3 : vector<1x56xf32> to vector<32x56xf32>
    %5 = arith.addf %2, %4 : vector<32x56xf32>
    %c0_5 = arith.constant 0 : index
    %c0_6 = arith.constant 0 : index
    %6 = vector.load %arg4[%c0_5, %c0_6] : memref<32x56xf32, #tpu.memory_space<vmem>>, vector<32x56xf32>
    tpu.vector_store %arg4[%c0_5, %c0_6], %5 {strides = array<i32>} : memref<32x56xf32, #tpu.memory_space<vmem>>, vector<32x56xf32>,
    return
  }
  func.func @transform_0(%arg0: i32) -> (i32, i32) {
    %c0_i32 = arith.constant 0 : i32
    %c0_i32_0 = arith.constant 0 : i32
    return %arg0, %c0_i32 : i32, i32
  }
  func.func @transform_1(%arg0: i32) -> (i32, i32) {
    %c0_i32 = arith.constant 0 : i32
    %c0_i32_0 = arith.constant 0 : i32
    %c0_i32_1 = arith.constant 0 : i32
    return %c0_i32, %c0_i32_0 : i32, i32
  }
  func.func @transform_2(%arg0: i32) -> (i32, i32) {
    %c0_i32 = arith.constant 0 : i32
    %c0_i32_0 = arith.constant 0 : i32
    %c0_i32_1 = arith.constant 0 : i32
    return %c0_i32, %c0_i32_0 : i32, i32
  }
  func.func @transform_3(%arg0: i32) -> (i32, i32) {
    %c0_i32 = arith.constant 0 : i32
    %c0_i32_0 = arith.constant 0 : i32
    return %arg0, %c0_i32 : i32, i32
  }
}

module attributes {stable_mosaic.version = 11 : i64} {
  func.func @_matmul_kernel(%arg0: i32, %arg1: memref<32x4xbf16, #tpu.memory_space<vmem>>, %arg2: memref<4x448xbf16, #tpu.memory_space<vmem>>, %arg3: memref<1x448xf32, #tpu.memory_space<vmem>>, %arg4: memref<32x448xf32, #tpu.memory_space<vmem>>) attributes {dimension_semantics = [#tpu.dimension_semantics<parallel>], iteration_bounds = array<i64: 1>, scalar_prefetch = 0 : i64, scratch_operands = 0 : i64, tpu.core_type = #tpu.core_type<tc>, window_params = [{transform_indices = @transform_0, window_bounds = array<i64: 32, 4>}, {pipeline_mode = #tpu.pipeline_mode<synchronous>, transform_indices = @transform_1, window_bounds = array<i64: 4, 448>}, {pipeline_mode = #tpu.pipeline_mode<synchronous>, transform_indices = @transform_2, window_bounds = array<i64: 1, 448>}, {transform_indices = @transform_3, window_bounds = array<i64: 32, 448>}]} {
    %c0 = arith.constant 0 : index
    %c0_0 = arith.constant 0 : index
    %0 = vector.load %arg1[%c0, %c0_0] : memref<32x4xbf16, #tpu.memory_space<vmem>>, vector<32x4xbf16>
    %c0_1 = arith.constant 0 : index
    %c0_2 = arith.constant 0 : index
    %1 = vector.load %arg2[%c0_1, %c0_2] : memref<4x448xbf16, #tpu.memory_space<vmem>>, vector<4x448xbf16>
    %cst = arith.constant dense<0.000000e+00> : vector<32x448xf32>
    %2 = tpu.matmul %0, %1, %cst {dimension_numbers = #tpu.dot_dimension_numbers<[1], [0], [0], [1], [0, 0, 1, 1], [], []>} : vector<32x4xbf16>, vector<4x448xbf16>, vector<32x448xf32> -> vector<32x448xf32>
    %c0_3 = arith.constant 0 : index
    %c0_4 = arith.constant 0 : index
    %3 = vector.load %arg3[%c0_3, %c0_4] : memref<1x448xf32, #tpu.memory_space<vmem>>, vector<1x448xf32>
    %4 = vector.broadcast %3 : vector<1x448xf32> to vector<32x448xf32>
    %5 = arith.addf %2, %4 : vector<32x448xf32>
    %c0_5 = arith.constant 0 : index
    %c0_6 = arith.constant 0 : index
    %6 = vector.load %arg4[%c0_5, %c0_6] : memref<32x448xf32, #tpu.memory_space<vmem>>, vector<32x448xf32>
    tpu.vector_store %arg4[%c0_5, %c0_6], %5 {strides = array<i32>} : memref<32x448xf32, #tpu.memory_space<vmem>>, vector<32x448xf32>,
    return
  }
  func.func @transform_0(%arg0: i32) -> (i32, i32) {
    %c0_i32 = arith.constant 0 : i32
    %c0_i32_0 = arith.constant 0 : i32
    return %arg0, %c0_i32 : i32, i32
  }
  func.func @transform_1(%arg0: i32) -> (i32, i32) {
    %c0_i32 = arith.constant 0 : i32
    %c0_i32_0 = arith.constant 0 : i32
    %c0_i32_1 = arith.constant 0 : i32
    return %c0_i32, %c0_i32_0 : i32, i32
  }
  func.func @transform_2(%arg0: i32) -> (i32, i32) {
    %c0_i32 = arith.constant 0 : i32
    %c0_i32_0 = arith.constant 0 : i32
    %c0_i32_1 = arith.constant 0 : i32
    return %c0_i32, %c0_i32_0 : i32, i32
  }
  func.func @transform_3(%arg0: i32) -> (i32, i32) {
    %c0_i32 = arith.constant 0 : i32
    %c0_i32_0 = arith.constant 0 : i32
    return %arg0, %c0_i32 : i32, i32
  }
}

</mosaic_0001>

<llo_original>
// kernel: deeplabv3_forward.19
$region0: #{deeplabv3_forward.19}
  #allocation0 [shape = 'u32[]', space=smem, size = 0x4, offset = 0x4, fixed_abs, tag = 'smem constant byte address 0x4 - core index']
  #allocation1 [shape = 'u32[144,128]{1,0:T(1,128)}', space=vmem, size = 0x12000, scoped, tag = 'internal scratch']
  %s0 = inlined_call_operand.vmem [shape: bf16[512,27], index: 0, kind: input, shape index: {}]
  %s1 = inlined_call_operand.vmem [shape: bf16[27,16], index: 1, kind: input, shape index: {}]
  %s2 = inlined_call_operand.vmem [shape: f32[1,16], index: 2, kind: input, shape index: {}]
  %s3 = inlined_call_operand.vmem [shape: f32[512,16], index: 3, kind: output, shape index: {}]
  %s4 = sld [smem:[#allocation0]]
  $region45: #{deeplabv3_forward.19} parent=0
    _
  %s6 = ssub.s32 1, %s4
  %s7 = scalar_select 0, %s6, %s4
  loop: start=0, step=1, limit=4
  $region2: #{deeplabv3_forward.19} parent=0 // loop_pre_header
    _
  $region3: #{deeplabv3_forward.19} parent=0 // loop_header
    %s9 = sphi 0, %s13
    %p10 = scmp.ge.s32.totalorder %s9, 4
    %s19 = sphi 0, %s21
    %s22 = sphi 0, %s19
    %s23 = sphi 0, %s22
    %s39 = sphi 0, %s23
    %s43 = sphi 0, %s43
    %s45 = sphi 0, %s43
    %s46 = sphi 0, %s45
    %s60 = sphi 0, %s46
    %s64 = sphi 0, %s64
    %s66 = sphi 0, %s64
    %s67 = sphi 0, %s66
    %s81 = sphi 0, %s67
    %s87 = sphi 0, %s89
    %s90 = sphi 0, %s87
    %s91 = sphi 0, %s90
    %s107 = sphi 0, %s91
  $region4: #{deeplabv3_forward.19} parent=0 // loop_header_branch
    %12 = sbr.rel (%p10) target = $region8
  $region5: #{deeplabv3_forward.19} parent=0 // loop_body
    %s14 = ssub.s32 %s9, 1
    %s15 = ssub.s32 %s9, 2
    %s16 = sadd.s32 %s9, 1
    %s17 = ssub.s32 %s9, %s16
    %p18 = scmp.eq.s32.totalorder %s17, 0
    %s20 = sadd.s32 %s19, 1
    %s21 = scalar_select %p18, %s19, %s20
    %p24 = pneg %p18
    %p25 = scmp.eq.s32.totalorder %s9, 1
    %p26 = por %p24, %p25
    %p27 = scmp.ne.s32.totalorder %s19, %s22
    %p28 = scmp.eq.s32.totalorder %s9, 0
    %p29 = por %p27, %p28
    %p30 = scmp.ne.s32.totalorder %s19, %s22
    %p31 = scmp.eq.s32.totalorder %s14, 1
    %p32 = por %p30, %p31
    %p33 = scmp.ne.s32.totalorder %s22, %s23
    %p34 = scmp.eq.s32.totalorder %s14, 0
    %p35 = por %p33, %p34
    %p36 = scmp.ne.s32.totalorder %s22, %s23
    %p37 = scmp.eq.s32.totalorder %s15, 1
    %p38 = por %p36, %p37
    %p40 = scmp.ne.s32.totalorder %s23, %s39
    %p41 = scmp.eq.s32.totalorder %s15, 0
    %p42 = por %p40, %p41
    %s44 = sadd.s32 %s43, 1
    %p47 = scmp.eq.s32.totalorder %s9, 1
    %p48 = scmp.ne.s32.totalorder %s43, %s45
    %p49 = scmp.eq.s32.totalorder %s9, 0
    %p50 = por %p48, %p49
    %p51 = scmp.ne.s32.totalorder %s43, %s45
    %p52 = scmp.eq.s32.totalorder %s14, 1
    %p53 = por %p51, %p52
    %p54 = scmp.ne.s32.totalorder %s45, %s46
    %p55 = scmp.eq.s32.totalorder %s14, 0
    %p56 = por %p54, %p55
    %p57 = scmp.ne.s32.totalorder %s45, %s46
    %p58 = scmp.eq.s32.totalorder %s15, 1
    %p59 = por %p57, %p58
    %p61 = scmp.ne.s32.totalorder %s46, %s60
    %p62 = scmp.eq.s32.totalorder %s15, 0
    %p63 = por %p61, %p62
    %s65 = sadd.s32 %s64, 1
    %p68 = scmp.eq.s32.totalorder %s9, 1
    %p69 = scmp.ne.s32.totalorder %s64, %s66
    %p70 = scmp.eq.s32.totalorder %s9, 0
    %p71 = por %p69, %p70
    %p72 = scmp.ne.s32.totalorder %s64, %s66
    %p73 = scmp.eq.s32.totalorder %s14, 1
    %p74 = por %p72, %p73
    %p75 = scmp.ne.s32.totalorder %s66, %s67
    %p76 = scmp.eq.s32.totalorder %s14, 0
    %p77 = por %p75, %p76
    %p78 = scmp.ne.s32.totalorder %s66, %s67
    %p79 = scmp.eq.s32.totalorder %s15, 1
    %p80 = por %p78, %p79
    %p82 = scmp.ne.s32.totalorder %s67, %s81
    %p83 = scmp.eq.s32.totalorder %s15, 0
    %p84 = por %p82, %p83
    %s85 = ssub.s32 %s9, %s16
    %p86 = scmp.eq.s32.totalorder %s85, 0
    %s88 = sadd.s32 %s87, 1
    %s89 = scalar_select %p86, %s87, %s88
    %p92 = pneg %p86
    %p93 = scmp.eq.s32.totalorder %s9, 1
    %p94 = por %p92, %p93
    %p95 = scmp.ne.s32.totalorder %s87, %s90
    %p96 = scmp.eq.s32.totalorder %s9, 0
    %p97 = por %p95, %p96
    %p98 = scmp.ne.s32.totalorder %s87, %s90
    %p99 = scmp.eq.s32.totalorder %s14, 1
    %p100 = por %p98, %p99
    %p101 = scmp.ne.s32.totalorder %s90, %s91
    %p102 = scmp.eq.s32.totalorder %s14, 0
    %p103 = por %p101, %p102
    %p104 = scmp.ne.s32.totalorder %s90, %s91
    %p105 = scmp.eq.s32.totalorder %s15, 1
    %p106 = por %p104, %p105
    %p108 = scmp.ne.s32.totalorder %s91, %s107
    %p109 = scmp.eq.s32.totalorder %s15, 0
    %p110 = por %p108, %p109
    %p111 = scmp.le.s32.totalorder 1, %s9
    %p112 = scmp.lt.s32.totalorder %s9, 3
    %p113 = pnand %p111, %p112
    %p114 = pneg %p113
    // Predicated region
    $region9: #{deeplabv3_forward.19} parent=5 // pred_check
      _
    $region10: #{deeplabv3_forward.19} parent=5 // pred_check_branch
      %116 = sbr.rel (%p113) target = $region12
    $region11: #{deeplabv3_forward.19} parent=5 // pred_region
      %s117 = ssub.s32 %s9, 1
      // Predicated region
      $region13: #{deeplabv3_forward.19} parent=11 // pred_check
        %p118 = pneg %p56
      $region14: #{deeplabv3_forward.19} parent=11 // pred_check_branch
        %120 = sbr.rel (%p118) target = $region16
      $region15: #{deeplabv3_forward.19} parent=11 // pred_region
        _
      $region16: #{deeplabv3_forward.19} parent=11 // pred_fallthru
        _
      // Predicated region
      $region17: #{deeplabv3_forward.19} parent=11 // pred_check
        %p121 = pneg %p77
      $region18: #{deeplabv3_forward.19} parent=11 // pred_check_branch
        %123 = sbr.rel (%p121) target = $region20
      $region19: #{deeplabv3_forward.19} parent=11 // pred_region
        _
      $region20: #{deeplabv3_forward.19} parent=11 // pred_fallthru
        _
    $region12: #{deeplabv3_forward.19} parent=5 // pred_fallthru
      _
    %p124 = scmp.lt.s32.totalorder %s9, 2
    // Predicated region
    $region21: #{deeplabv3_forward.19} parent=5 // pred_check
      %p125 = pneg %p124
    $region22: #{deeplabv3_forward.19} parent=5 // pred_check_branch
      %127 = sbr.rel (%p125) target = $region24
    $region23: #{deeplabv3_forward.19} parent=5 // pred_region
      // Predicated region
      $region25: #{deeplabv3_forward.19} parent=23 // pred_check
        %p128 = pneg %p29
      $region26: #{deeplabv3_forward.19} parent=23 // pred_check_branch
        %130 = sbr.rel (%p128) target = $region28
      $region27: #{deeplabv3_forward.19} parent=23 // pred_region
        %s131 = smul.u32 32, %s9
        %p132 = scmp.lt.s32.totalorder %s131, 63
        %s133 = scalar_select %p132, %s131, 63
        %s134 = smul.addr %s133, 4
        %s135 = scalar_lea.vmem %s0, %s134
        %s136 = smul.u32 32, %s9
      $region28: #{deeplabv3_forward.19} parent=23 // pred_fallthru
        _
    $region24: #{deeplabv3_forward.19} parent=5 // pred_fallthru
      _
    %p137 = scmp.le.s32.totalorder 1, %s9
    %p138 = scmp.lt.s32.totalorder %s9, 3
    %p139 = pnand %p137, %p138
    %p140 = pneg %p139
    // Predicated region
    $region29: #{deeplabv3_forward.19} parent=5 // pred_check
      _
    $region30: #{deeplabv3_forward.19} parent=5 // pred_check_branch
      %142 = sbr.rel (%p139) target = $region32
    $region31: #{deeplabv3_forward.19} parent=5 // pred_region
      %s143 = ssub.s32 %s9, 1
      %s144 = smul.u32 32, %s14
      %p145 = scmp.lt.s32.totalorder %s144, 63
      %s146 = scalar_select %p145, %s144, 63
      %s147 = smul.addr %s146, 4
      %s148 = scalar_lea.vmem %s0, %s147
      %p149 = pneg %p35
      %p150 = pneg %p32
      %p151 = pneg %p56
      %p152 = pneg %p53
      %p153 = pneg %p77
      %p154 = pneg %p74
      %p155 = pneg %p103
      %p156 = pneg %p100
      %s157 = smul.u32 32, %s14
      %p158 = scmp.lt.s32.totalorder %s157, 63
      %s159 = scalar_select %p158, %s157, 63
      %s160 = smul.addr %s159, 8
      %s161 = scalar_lea.vmem %s3, %s160
      %s162 = smul.u32 32, %s14
      %p163 = scmp.lt.s32.totalorder %s162, 63
      %s164 = scalar_select %p163, %s162, 63
      %s165 = smul.addr %s164, 4
      %s166 = scalar_lea.vmem %s0, %s165
      %s167 = smul.u32 32, %s14
      %s168 = smul.u32 32, %s14
      %p169 = scmp.lt.s32.totalorder %s168, 63
      %s170 = scalar_select %p169, %s168, 63
      %s171 = smul.addr %s170, 8
      %s172 = scalar_lea.vmem %s3, %s171
      %s173 = smul.u32 32, %s14
      %v175 = vld [vmem:[%s166] sm:$0xf]
      %v176 = vld [vmem:[%s166 + $0x4] sm:$0xf]
      %v177 = vld [vmem:[%s166 + $0x8] sm:$0xf]
      %v178 = vld [vmem:[%s166 + $0xc] sm:$0xf]
      %v179 = vld [vmem:[%s166 + $0x10] sm:$0xf]
      %v180 = vld [vmem:[%s166 + $0x14] sm:$0xf]
      %v181 = vld [vmem:[%s166 + $0x18] sm:$0xf]
      %v182 = vld [vmem:[%s166 + $0x1c] sm:$0xf]
      %v183 = vld [vmem:[%s166 + $0x20] sm:$0xf]
      %v184 = vld [vmem:[%s166 + $0x24] sm:$0xf]
      %v185 = vld [vmem:[%s166 + $0x28] sm:$0xf]
      %v186 = vld [vmem:[%s166 + $0x2c] sm:$0xf]
      %v187 = vld [vmem:[%s166 + $0x30] sm:$0xf]
      %v188 = vld [vmem:[%s166 + $0x34] sm:$0xf]
      %v189 = vld [vmem:[%s166 + $0x38] sm:$0xf]
      %v190 = vld [vmem:[%s166 + $0x3c] sm:$0xf]
      %v191 = vld [vmem:[%s166 + $0x40] sm:$0xf]
      %v192 = vld [vmem:[%s166 + $0x44] sm:$0xf]
      %v193 = vld [vmem:[%s166 + $0x48] sm:$0xf]
      %v194 = vld [vmem:[%s166 + $0x4c] sm:$0xf]
      %v195 = vld [vmem:[%s166 + $0x50] sm:$0xf]
      %v196 = vld [vmem:[%s166 + $0x54] sm:$0xf]
      %v197 = vld [vmem:[%s166 + $0x58] sm:$0xf]
      %v198 = vld [vmem:[%s166 + $0x5c] sm:$0xf]
      %v199 = vld [vmem:[%s166 + $0x60] sm:$0xf]
      %v200 = vld [vmem:[%s166 + $0x64] sm:$0xf]
      %v201 = vld [vmem:[%s166 + $0x68] sm:$0xf]
      %v202 = vld [vmem:[%s166 + $0x6c] sm:$0xf]
      %v203 = vld [vmem:[%s166 + $0x70] sm:$0xf]
      %v204 = vld [vmem:[%s166 + $0x74] sm:$0xf]
      %v205 = vld [vmem:[%s166 + $0x78] sm:$0xf]
      %v206 = vld [vmem:[%s166 + $0x7c] sm:$0xf]
      %v207 = vld [vmem:[%s1] sm:$0xf]
      %v208 = vld [vmem:[%s1 + $0x4] sm:$0xf]
      %v209 = vld [vmem:[%s1 + $0x8] sm:$0xf]
      %v210 = vld [vmem:[%s1 + $0xc] sm:$0x3]
      %v211 = vld [vmem:[%s2] sm:$0x1]
      %v213 = vlaneseq
      %v214 = vshrl.u32 %v213, 7
      %v215 = vsub.s32 0, %v214
      %v216 = vrot.slane %v211, %v215
      %v250 = vunpack.c.l.b16 %v175
      %v251 = vunpack.c.l.b16 %v176
      %v252 = vunpack.c.l.b16 %v177
      %v253 = vunpack.c.l.b16 %v178
      %v254 = vunpack.c.l.b16 %v179
      %v255 = vunpack.c.l.b16 %v180
      %v256 = vunpack.c.l.b16 %v181
      %v257 = vunpack.c.l.b16 %v182
      %v258 = vunpack.c.l.b16 %v183
      %v259 = vunpack.c.l.b16 %v184
      %v260 = vunpack.c.l.b16 %v185
      %v261 = vunpack.c.l.b16 %v186
      %v262 = vunpack.c.l.b16 %v187
      %v263 = vunpack.c.l.b16 %v188
      %v264 = vunpack.c.l.b16 %v189
      %v265 = vunpack.c.l.b16 %v190
      %v266 = vunpack.c.l.b16 %v191
      %v267 = vunpack.c.l.b16 %v192
      %v268 = vunpack.c.l.b16 %v193
      %v269 = vunpack.c.l.b16 %v194
      %v270 = vunpack.c.l.b16 %v195
      %v271 = vunpack.c.l.b16 %v196
      %v272 = vunpack.c.l.b16 %v197
      %v273 = vunpack.c.l.b16 %v198
      %v274 = vunpack.c.l.b16 %v199
      %v275 = vunpack.c.l.b16 %v200
      %v276 = vunpack.c.l.b16 %v201
      %v277 = vunpack.c.l.b16 %v202
      %v278 = vunpack.c.l.b16 %v203
      %v279 = vunpack.c.l.b16 %v204
      %v280 = vunpack.c.l.b16 %v205
      %v281 = vunpack.c.l.b16 %v206
      %v282 = vpack.c.b16 %v251, %v250
      %v283 = vpack.c.b16 %v253, %v252
      %v284 = vpack.c.b16 %v255, %v254
      %v285 = vpack.c.b16 %v257, %v256
      %v286 = vpack.c.b16 %v259, %v258
      %v287 = vpack.c.b16 %v261, %v260
      %v288 = vpack.c.b16 %v263, %v262
      %v289 = vpack.c.b16 %v265, %v264
      %v290 = vpack.c.b16 %v267, %v266
      %v291 = vpack.c.b16 %v269, %v268
      %v292 = vpack.c.b16 %v271, %v270
      %v293 = vpack.c.b16 %v273, %v272
      %v294 = vpack.c.b16 %v275, %v274
      %v295 = vpack.c.b16 %v277, %v276
      %v296 = vpack.c.b16 %v279, %v278
      %v297 = vpack.c.b16 %v281, %v280
      %v302 = vunpack.c.l.b16 %v207
      %v303 = vunpack.c.l.b16 %v208
      %v304 = vunpack.c.l.b16 %v209
      %v305 = vunpack.c.l.b16 %v210
      %v306 = vpack.c.b16 %v303, %v302
      %v307 = vpack.c.b16 %v305, %v304
      %vm309 = vcmask 220160
      %v311 = vsel %vm309, %v282, 0
      %v314 = vsel %vm309, %v283, 0
      %v317 = vsel %vm309, %v284, 0
      %v320 = vsel %vm309, %v285, 0
      %v323 = vsel %vm309, %v286, 0
      %v326 = vsel %vm309, %v287, 0
      %v329 = vsel %vm309, %v288, 0
      %v332 = vsel %vm309, %v289, 0
      %v335 = vsel %vm309, %v290, 0
      %v338 = vsel %vm309, %v291, 0
      %v341 = vsel %vm309, %v292, 0
      %v344 = vsel %vm309, %v293, 0
      %v347 = vsel %vm309, %v294, 0
      %v350 = vsel %vm309, %v295, 0
      %v353 = vsel %vm309, %v296, 0
      %v356 = vsel %vm309, %v297, 0
      %vm358 = vcmask 1044480
      %vm359 = vcmask 1045504
      %v360 = vsel %vm358, 4294967295, 65535
      %v361 = vsel %vm359, %v360, 0
      %v363 = vand.u32 %v307, %v361
      %365 = vmatprep.subr.bf16.mxu0 0
      %366 = vmatpush1.bf16.msra.mxu0 0
      %367 = vmatprep.subr.bf16.mxu0 0
      %368 = vmatpush1.bf16.msra.mxu0 0
      %369 = vmatprep.subr.bf16.mxu0 0
      %370 = vmatpush1.bf16.msra.mxu0 0
      %371 = vmatprep.subr.bf16.mxu0 0
      %372 = vmatpush1.bf16.msra.mxu0 0
      %373 = vmatprep.subr.bf16.mxu0 0
      %374 = vmatpush1.bf16.msra.mxu0 0
      %375 = vmatprep.subr.bf16.mxu0 0
      %376 = vmatpush1.bf16.msra.mxu0 0
      %377 = vmatprep.subr.bf16.mxu0 0
      %378 = vmatpush1.bf16.msra.mxu0 %v363
      %379 = vmatprep.subr.bf16.mxu0 0
      %380 = vmatpush1.bf16.msra.mxu0 %v306
      %381 = vmatprep.subr.bf16.mxu0 0
      %382 = vmatpush2.bf16.msra.mxu0 0
      %383 = vmatprep.subr.bf16.mxu0 0
      %384 = vmatpush2.bf16.msra.mxu0 0
      %385 = vmatprep.subr.bf16.mxu0 0
      %386 = vmatpush2.bf16.msra.mxu0 0
      %387 = vmatprep.subr.bf16.mxu0 0
      %388 = vmatpush2.bf16.msra.mxu0 0
      %389 = vmatprep.subr.bf16.mxu0 0
      %390 = vmatpush2.bf16.msra.mxu0 0
      %391 = vmatprep.subr.bf16.mxu0 0
      %392 = vmatpush2.bf16.msra.mxu0 0
      %393 = vmatprep.subr.bf16.mxu0 0
      %394 = vmatpush2.bf16.msra.mxu0 0
      %395 = vmatprep.subr.bf16.mxu0 0
      %396 = vmatpush2.bf16.msra.mxu0 0
      %397 = vmatprep.mubr.bf16.mxu0 0
      %398 = vmatmul.mubr.bf16.gmra.mxu0 %v311
      %v399 = vpop.f32.mrf.mxu0
      %v400 = vadd.f32 %v216, %v399
      %v401 = vpop.f32.mrf.mxu0
      %v402 = vpop.f32.mrf.mxu0
      %v403 = vadd.f32 %v216, %v402
      %v404 = vpop.f32.mrf.mxu0
      %405 = vmatprep.mubr.bf16.mxu0 0
      %406 = vmatmul.mubr.bf16.gmra.mxu0 %v314
      %v407 = vpop.f32.mrf.mxu0
      %v408 = vadd.f32 %v216, %v407
      %v409 = vpop.f32.mrf.mxu0
      %v410 = vpop.f32.mrf.mxu0
      %v411 = vadd.f32 %v216, %v410
      %v412 = vpop.f32.mrf.mxu0
      %413 = vmatprep.mubr.bf16.mxu0 0
      %414 = vmatmul.mubr.bf16.gmra.mxu0 %v317
      %v415 = vpop.f32.mrf.mxu0
      %v416 = vadd.f32 %v216, %v415
      %v417 = vpop.f32.mrf.mxu0
      %v418 = vpop.f32.mrf.mxu0
      %v419 = vadd.f32 %v216, %v418
      %v420 = vpop.f32.mrf.mxu0
      %421 = vmatprep.mubr.bf16.mxu0 0
      %422 = vmatmul.mubr.bf16.gmra.mxu0 %v320
      %v423 = vpop.f32.mrf.mxu0
      %v424 = vadd.f32 %v216, %v423
      %v425 = vpop.f32.mrf.mxu0
      %v426 = vpop.f32.mrf.mxu0
      %v427 = vadd.f32 %v216, %v426
      %v428 = vpop.f32.mrf.mxu0
      %429 = vmatprep.mubr.bf16.mxu0 0
      %430 = vmatmul.mubr.bf16.gmra.mxu0 %v323
      %v431 = vpop.f32.mrf.mxu0
      %v432 = vadd.f32 %v216, %v431
      %v433 = vpop.f32.mrf.mxu0
      %v434 = vpop.f32.mrf.mxu0
      %v435 = vadd.f32 %v216, %v434
      %v436 = vpop.f32.mrf.mxu0
      %437 = vmatprep.mubr.bf16.mxu0 0
      %438 = vmatmul.mubr.bf16.gmra.mxu0 %v326
      %v439 = vpop.f32.mrf.mxu0
      %v440 = vadd.f32 %v216, %v439
      %v441 = vpop.f32.mrf.mxu0
      %v442 = vpop.f32.mrf.mxu0
      %v443 = vadd.f32 %v216, %v442
      %v444 = vpop.f32.mrf.mxu0
      %445 = vmatprep.mubr.bf16.mxu0 0
      %446 = vmatmul.mubr.bf16.gmra.mxu0 %v329
      %v447 = vpop.f32.mrf.mxu0
      %v448 = vadd.f32 %v216, %v447
      %v449 = vpop.f32.mrf.mxu0
      %v450 = vpop.f32.mrf.mxu0
      %v451 = vadd.f32 %v216, %v450
      %v452 = vpop.f32.mrf.mxu0
      %453 = vmatprep.mubr.bf16.mxu0 0
      %454 = vmatmul.mubr.bf16.gmra.mxu0 %v332
      %v455 = vpop.f32.mrf.mxu0
      %v456 = vadd.f32 %v216, %v455
      %v457 = vpop.f32.mrf.mxu0
      %v458 = vpop.f32.mrf.mxu0
      %v459 = vadd.f32 %v216, %v458
      %v460 = vpop.f32.mrf.mxu0
      %461 = vmatprep.mubr.bf16.mxu0 0
      %462 = vmatmul.mubr.bf16.gmra.mxu0 %v335
      %v463 = vpop.f32.mrf.mxu0
      %v464 = vadd.f32 %v216, %v463
      %v465 = vpop.f32.mrf.mxu0
      %v466 = vpop.f32.mrf.mxu0
      %v467 = vadd.f32 %v216, %v466
      %v468 = vpop.f32.mrf.mxu0
      %469 = vmatprep.mubr.bf16.mxu0 0
      %470 = vmatmul.mubr.bf16.gmra.mxu0 %v338
      %v471 = vpop.f32.mrf.mxu0
      %v472 = vadd.f32 %v216, %v471
      %v473 = vpop.f32.mrf.mxu0
      %v474 = vpop.f32.mrf.mxu0
      %v475 = vadd.f32 %v216, %v474
      %v476 = vpop.f32.mrf.mxu0
      %477 = vmatprep.mubr.bf16.mxu0 0
      %478 = vmatmul.mubr.bf16.gmra.mxu0 %v341
      %v479 = vpop.f32.mrf.mxu0
      %v480 = vadd.f32 %v216, %v479
      %v481 = vpop.f32.mrf.mxu0
      %v482 = vpop.f32.mrf.mxu0
      %v483 = vadd.f32 %v216, %v482
      %v484 = vpop.f32.mrf.mxu0
      %485 = vmatprep.mubr.bf16.mxu0 0
      %486 = vmatmul.mubr.bf16.gmra.mxu0 %v344
      %v487 = vpop.f32.mrf.mxu0
      %v488 = vadd.f32 %v216, %v487
      %v489 = vpop.f32.mrf.mxu0
      %v490 = vpop.f32.mrf.mxu0
      %v491 = vadd.f32 %v216, %v490
      %v492 = vpop.f32.mrf.mxu0
      %493 = vmatprep.mubr.bf16.mxu0 0
      %494 = vmatmul.mubr.bf16.gmra.mxu0 %v347
      %v495 = vpop.f32.mrf.mxu0
      %v496 = vadd.f32 %v216, %v495
      %v497 = vpop.f32.mrf.mxu0
      %v498 = vpop.f32.mrf.mxu0
      %v499 = vadd.f32 %v216, %v498
      %v500 = vpop.f32.mrf.mxu0
      %501 = vmatprep.mubr.bf16.mxu0 0
      %502 = vmatmul.mubr.bf16.gmra.mxu0 %v350
      %v503 = vpop.f32.mrf.mxu0
      %v504 = vadd.f32 %v216, %v503
      %v505 = vpop.f32.mrf.mxu0
      %v506 = vpop.f32.mrf.mxu0
      %v507 = vadd.f32 %v216, %v506
      %v508 = vpop.f32.mrf.mxu0
      %509 = vmatprep.mubr.bf16.mxu0 0
      %510 = vmatmul.mubr.bf16.gmra.mxu0 %v353
      %v511 = vpop.f32.mrf.mxu0
      %v512 = vadd.f32 %v216, %v511
      %v513 = vpop.f32.mrf.mxu0
      %v514 = vpop.f32.mrf.mxu0
      %v515 = vadd.f32 %v216, %v514
      %v516 = vpop.f32.mrf.mxu0
      %517 = vmatprep.mubr.bf16.mxu0 0
      %518 = vmatmul.mubr.bf16.gmra.mxu0 %v356
      %v519 = vpop.f32.mrf.mxu0
      %v520 = vadd.f32 %v216, %v519
      %v521 = vpop.f32.mrf.mxu0
      %v522 = vpop.f32.mrf.mxu0
      %v523 = vadd.f32 %v216, %v522
      %v524 = vpop.f32.mrf.mxu0
      %525 = vdwg.mxu0
      %v526 = vadd.f32 %v400, 3.0
      %v527 = vadd.f32 %v403, 3.0
      %v528 = vadd.f32 %v408, 3.0
      %v529 = vadd.f32 %v411, 3.0
      %v530 = vadd.f32 %v416, 3.0
      %v531 = vadd.f32 %v419, 3.0
      %v532 = vadd.f32 %v424, 3.0
      %v533 = vadd.f32 %v427, 3.0
      %v534 = vadd.f32 %v432, 3.0
      %v535 = vadd.f32 %v435, 3.0
      %v536 = vadd.f32 %v440, 3.0
      %v537 = vadd.f32 %v443, 3.0
      %v538 = vadd.f32 %v448, 3.0
      %v539 = vadd.f32 %v451, 3.0
      %v540 = vadd.f32 %v456, 3.0
      %v541 = vadd.f32 %v459, 3.0
      %v542 = vadd.f32 %v464, 3.0
      %v543 = vadd.f32 %v467, 3.0
      %v544 = vadd.f32 %v472, 3.0
      %v545 = vadd.f32 %v475, 3.0
      %v546 = vadd.f32 %v480, 3.0
      %v547 = vadd.f32 %v483, 3.0
      %v548 = vadd.f32 %v488, 3.0
      %v549 = vadd.f32 %v491, 3.0
      %v550 = vadd.f32 %v496, 3.0
      %v551 = vadd.f32 %v499, 3.0
      %v552 = vadd.f32 %v504, 3.0
      %v553 = vadd.f32 %v507, 3.0
      %v554 = vadd.f32 %v512, 3.0
      %v555 = vadd.f32 %v515, 3.0
      %v556 = vadd.f32 %v520, 3.0
      %v557 = vadd.f32 %v523, 3.0
      %v558 = vmax.f32 %v526, 0.0
      %v559 = vmax.f32 %v527, 0.0
      %v560 = vmax.f32 %v528, 0.0
      %v561 = vmax.f32 %v529, 0.0
      %v562 = vmax.f32 %v530, 0.0
      %v563 = vmax.f32 %v531, 0.0
      %v564 = vmax.f32 %v532, 0.0
      %v565 = vmax.f32 %v533, 0.0
      %v566 = vmax.f32 %v534, 0.0
      %v567 = vmax.f32 %v535, 0.0
      %v568 = vmax.f32 %v536, 0.0
      %v569 = vmax.f32 %v537, 0.0
      %v570 = vmax.f32 %v538, 0.0
      %v571 = vmax.f32 %v539, 0.0
      %v572 = vmax.f32 %v540, 0.0
      %v573 = vmax.f32 %v541, 0.0
      %v574 = vmax.f32 %v542, 0.0
      %v575 = vmax.f32 %v543, 0.0
      %v576 = vmax.f32 %v544, 0.0
      %v577 = vmax.f32 %v545, 0.0
      %v578 = vmax.f32 %v546, 0.0
      %v579 = vmax.f32 %v547, 0.0
      %v580 = vmax.f32 %v548, 0.0
      %v581 = vmax.f32 %v549, 0.0
      %v582 = vmax.f32 %v550, 0.0
      %v583 = vmax.f32 %v551, 0.0
      %v584 = vmax.f32 %v552, 0.0
      %v585 = vmax.f32 %v553, 0.0
      %v586 = vmax.f32 %v554, 0.0
      %v587 = vmax.f32 %v555, 0.0
      %v588 = vmax.f32 %v556, 0.0
      %v589 = vmax.f32 %v557, 0.0
      %v590 = vmin.f32 %v558, 6.0
      %v591 = vmin.f32 %v559, 6.0
      %v592 = vmin.f32 %v560, 6.0
      %v593 = vmin.f32 %v561, 6.0
      %v594 = vmin.f32 %v562, 6.0
      %v595 = vmin.f32 %v563, 6.0
      %v596 = vmin.f32 %v564, 6.0
      %v597 = vmin.f32 %v565, 6.0
      %v598 = vmin.f32 %v566, 6.0
      %v599 = vmin.f32 %v567, 6.0
      %v600 = vmin.f32 %v568, 6.0
      %v601 = vmin.f32 %v569, 6.0
      %v602 = vmin.f32 %v570, 6.0
      %v603 = vmin.f32 %v571, 6.0
      %v604 = vmin.f32 %v572, 6.0
      %v605 = vmin.f32 %v573, 6.0
      %v606 = vmin.f32 %v574, 6.0
      %v607 = vmin.f32 %v575, 6.0
      %v608 = vmin.f32 %v576, 6.0
      %v609 = vmin.f32 %v577, 6.0
      %v610 = vmin.f32 %v578, 6.0
      %v611 = vmin.f32 %v579, 6.0
      %v612 = vmin.f32 %v580, 6.0
      %v613 = vmin.f32 %v581, 6.0
      %v614 = vmin.f32 %v582, 6.0
      %v615 = vmin.f32 %v583, 6.0
      %v616 = vmin.f32 %v584, 6.0
      %v617 = vmin.f32 %v585, 6.0
      %v618 = vmin.f32 %v586, 6.0
      %v619 = vmin.f32 %v587, 6.0
      %v620 = vmin.f32 %v588, 6.0
      %v621 = vmin.f32 %v589, 6.0
      %v622 = vmul.f32 %v400, %v590
      %v623 = vmul.f32 %v403, %v591
      %v624 = vmul.f32 %v408, %v592
      %v625 = vmul.f32 %v411, %v593
      %v626 = vmul.f32 %v416, %v594
      %v627 = vmul.f32 %v419, %v595
      %v628 = vmul.f32 %v424, %v596
      %v629 = vmul.f32 %v427, %v597
      %v630 = vmul.f32 %v432, %v598
      %v631 = vmul.f32 %v435, %v599
      %v632 = vmul.f32 %v440, %v600
      %v633 = vmul.f32 %v443, %v601
      %v634 = vmul.f32 %v448, %v602
      %v635 = vmul.f32 %v451, %v603
      %v636 = vmul.f32 %v456, %v604
      %v637 = vmul.f32 %v459, %v605
      %v638 = vmul.f32 %v464, %v606
      %v639 = vmul.f32 %v467, %v607
      %v640 = vmul.f32 %v472, %v608
      %v641 = vmul.f32 %v475, %v609
      %v642 = vmul.f32 %v480, %v610
      %v643 = vmul.f32 %v483, %v611
      %v644 = vmul.f32 %v488, %v612
      %v645 = vmul.f32 %v491, %v613
      %v646 = vmul.f32 %v496, %v614
      %v647 = vmul.f32 %v499, %v615
      %v648 = vmul.f32 %v504, %v616
      %v649 = vmul.f32 %v507, %v617
      %v650 = vmul.f32 %v512, %v618
      %v651 = vmul.f32 %v515, %v619
      %v652 = vmul.f32 %v520, %v620
      %v653 = vmul.f32 %v523, %v621
      %v654 = vmul.f32 %v622, 0.16666667
      %v655 = vmul.f32 %v623, 0.16666667
      %v656 = vmul.f32 %v624, 0.16666667
      %v657 = vmul.f32 %v625, 0.16666667
      %v658 = vmul.f32 %v626, 0.16666667
      %v659 = vmul.f32 %v627, 0.16666667
      %v660 = vmul.f32 %v628, 0.16666667
      %v661 = vmul.f32 %v629, 0.16666667
      %v662 = vmul.f32 %v630, 0.16666667
      %v663 = vmul.f32 %v631, 0.16666667
      %v664 = vmul.f32 %v632, 0.16666667
      %v665 = vmul.f32 %v633, 0.16666667
      %v666 = vmul.f32 %v634, 0.16666667
      %v667 = vmul.f32 %v635, 0.16666667
      %v668 = vmul.f32 %v636, 0.16666667
      %v669 = vmul.f32 %v637, 0.16666667
      %v670 = vmul.f32 %v638, 0.16666667
      %v671 = vmul.f32 %v639, 0.16666667
      %v672 = vmul.f32 %v640, 0.16666667
      %v673 = vmul.f32 %v641, 0.16666667
      %v674 = vmul.f32 %v642, 0.16666667
      %v675 = vmul.f32 %v643, 0.16666667
      %v676 = vmul.f32 %v644, 0.16666667
      %v677 = vmul.f32 %v645, 0.16666667
      %v678 = vmul.f32 %v646, 0.16666667
      %v679 = vmul.f32 %v647, 0.16666667
      %v680 = vmul.f32 %v648, 0.16666667
      %v681 = vmul.f32 %v649, 0.16666667
      %v682 = vmul.f32 %v650, 0.16666667
      %v683 = vmul.f32 %v651, 0.16666667
      %v684 = vmul.f32 %v652, 0.16666667
      %v685 = vmul.f32 %v653, 0.16666667
      %vm686 = vcmask 130048
      %687 = vst.msk [vmem:[%s172] sm:$0xff] %vm686, %v654
      %688 = vst.msk [vmem:[%s172 + $0x8] sm:$0xff] %vm686, %v655
      %689 = vst.msk [vmem:[%s172 + $0x10] sm:$0xff] %vm686, %v656
      %690 = vst.msk [vmem:[%s172 + $0x18] sm:$0xff] %vm686, %v657
      %691 = vst.msk [vmem:[%s172 + $0x20] sm:$0xff] %vm686, %v658
      %692 = vst.msk [vmem:[%s172 + $0x28] sm:$0xff] %vm686, %v659
      %693 = vst.msk [vmem:[%s172 + $0x30] sm:$0xff] %vm686, %v660
      %694 = vst.msk [vmem:[%s172 + $0x38] sm:$0xff] %vm686, %v661
      %695 = vst.msk [vmem:[%s172 + $0x40] sm:$0xff] %vm686, %v662
      %696 = vst.msk [vmem:[%s172 + $0x48] sm:$0xff] %vm686, %v663
      %697 = vst.msk [vmem:[%s172 + $0x50] sm:$0xff] %vm686, %v664
      %698 = vst.msk [vmem:[%s172 + $0x58] sm:$0xff] %vm686, %v665
      %699 = vst.msk [vmem:[%s172 + $0x60] sm:$0xff] %vm686, %v666
      %700 = vst.msk [vmem:[%s172 + $0x68] sm:$0xff] %vm686, %v667
      %701 = vst.msk [vmem:[%s172 + $0x70] sm:$0xff] %vm686, %v668
      %702 = vst.msk [vmem:[%s172 + $0x78] sm:$0xff] %vm686, %v669
      %703 = vst.msk [vmem:[%s172 + $0x80] sm:$0xff] %vm686, %v670
      %704 = vst.msk [vmem:[%s172 + $0x88] sm:$0xff] %vm686, %v671
      %705 = vst.msk [vmem:[%s172 + $0x90] sm:$0xff] %vm686, %v672
      %706 = vst.msk [vmem:[%s172 + $0x98] sm:$0xff] %vm686, %v673
      %707 = vst.msk [vmem:[%s172 + $0xa0] sm:$0xff] %vm686, %v674
      %708 = vst.msk [vmem:[%s172 + $0xa8] sm:$0xff] %vm686, %v675
      %709 = vst.msk [vmem:[%s172 + $0xb0] sm:$0xff] %vm686, %v676
      %710 = vst.msk [vmem:[%s172 + $0xb8] sm:$0xff] %vm686, %v677
      %711 = vst.msk [vmem:[%s172 + $0xc0] sm:$0xff] %vm686, %v678
      %712 = vst.msk [vmem:[%s172 + $0xc8] sm:$0xff] %vm686, %v679
      %713 = vst.msk [vmem:[%s172 + $0xd0] sm:$0xff] %vm686, %v680
      %714 = vst.msk [vmem:[%s172 + $0xd8] sm:$0xff] %vm686, %v681
      %715 = vst.msk [vmem:[%s172 + $0xe0] sm:$0xff] %vm686, %v682
      %716 = vst.msk [vmem:[%s172 + $0xe8] sm:$0xff] %vm686, %v683
      %717 = vst.msk [vmem:[%s172 + $0xf0] sm:$0xff] %vm686, %v684
      %718 = vst.msk [vmem:[%s172 + $0xf8] sm:$0xff] %vm686, %v685
      %s719 = smul.u32 32, %s14
      %p720 = scmp.lt.s32.totalorder %s719, 63
      %s721 = scalar_select %p720, %s719, 63
      %s722 = smul.addr %s721, 8
      %s723 = scalar_lea.vmem %s3, %s722
      // Predicated region
      $region33: #{deeplabv3_forward.19} parent=31 // pred_check
        %p724 = pneg %p100
      $region34: #{deeplabv3_forward.19} parent=31 // pred_check_branch
        %726 = sbr.rel (%p724) target = $region36
      $region35: #{deeplabv3_forward.19} parent=31 // pred_region
        %s727 = smul.u32 32, %s14
      $region36: #{deeplabv3_forward.19} parent=31 // pred_fallthru
        _
    $region32: #{deeplabv3_forward.19} parent=5 // pred_fallthru
      _
    %p728 = scmp.le.s32.totalorder 2, %s9
    // Predicated region
    $region37: #{deeplabv3_forward.19} parent=5 // pred_check
      %p729 = pneg %p728
    $region38: #{deeplabv3_forward.19} parent=5 // pred_check_branch
      %731 = sbr.rel (%p729) target = $region40
    $region39: #{deeplabv3_forward.19} parent=5 // pred_region
      %s732 = ssub.s32 %s9, 2
      // Predicated region
      $region41: #{deeplabv3_forward.19} parent=39 // pred_check
        %p733 = pneg %p106
      $region42: #{deeplabv3_forward.19} parent=39 // pred_check_branch
        %735 = sbr.rel (%p733) target = $region44
      $region43: #{deeplabv3_forward.19} parent=39 // pred_region
        %s736 = smul.u32 32, %s15
        %p737 = scmp.lt.s32.totalorder %s736, 63
        %s738 = scalar_select %p737, %s736, 63
        %s739 = smul.addr %s738, 8
        %s740 = scalar_lea.vmem %s3, %s739
      $region44: #{deeplabv3_forward.19} parent=39 // pred_fallthru
        _
    $region40: #{deeplabv3_forward.19} parent=5 // pred_fallthru
      _
  $region6: #{deeplabv3_forward.19} parent=0 // loop_footer
    %s13 = sadd.s32 1, %s9
  $region7: #{deeplabv3_forward.19} parent=0 // loop_footer_branch
    %8 = sbr.rel target = $region3
  $region8: #{deeplabv3_forward.19} parent=0 // loop_exit
    _

// kernel: deeplabv3_forward.20
$region0: #{deeplabv3_forward.20}
  #allocation0 [shape = 'u32[]', space=smem, size = 0x4, offset = 0x4, fixed_abs, tag = 'smem constant byte address 0x4 - core index']
  #allocation1 [shape = 'u32[144,128]{1,0:T(1,128)}', space=vmem, size = 0x12000, scoped, tag = 'internal scratch']
  %s0 = inlined_call_operand.vmem [shape: bf16[512,16], index: 0, kind: input, shape index: {}]
  %s1 = inlined_call_operand.vmem [shape: bf16[16,32], index: 1, kind: input, shape index: {}]
  %s2 = inlined_call_operand.vmem [shape: f32[1,32], index: 2, kind: input, shape index: {}]
  %s3 = inlined_call_operand.vmem [shape: f32[512,32], index: 3, kind: output, shape index: {}]
  %s4 = sld [smem:[#allocation0]]
  $region45: #{deeplabv3_forward.20} parent=0
    _
  %s6 = ssub.s32 1, %s4
  %s7 = scalar_select 0, %s6, %s4
  loop: start=0, step=1, limit=4
  $region2: #{deeplabv3_forward.20} parent=0 // loop_pre_header
    _
  $region3: #{deeplabv3_forward.20} parent=0 // loop_header
    %s9 = sphi 0, %s13
    %p10 = scmp.ge.s32.totalorder %s9, 4
    %s19 = sphi 0, %s21
    %s22 = sphi 0, %s19
    %s23 = sphi 0, %s22
    %s39 = sphi 0, %s23
    %s43 = sphi 0, %s43
    %s45 = sphi 0, %s43
    %s46 = sphi 0, %s45
    %s60 = sphi 0, %s46
    %s64 = sphi 0, %s64
    %s66 = sphi 0, %s64
    %s67 = sphi 0, %s66
    %s81 = sphi 0, %s67
    %s87 = sphi 0, %s89
    %s90 = sphi 0, %s87
    %s91 = sphi 0, %s90
    %s107 = sphi 0, %s91
  $region4: #{deeplabv3_forward.20} parent=0 // loop_header_branch
    %12 = sbr.rel (%p10) target = $region8
  $region5: #{deeplabv3_forward.20} parent=0 // loop_body
    %s14 = ssub.s32 %s9, 1
    %s15 = ssub.s32 %s9, 2
    %s16 = sadd.s32 %s9, 1
    %s17 = ssub.s32 %s9, %s16
    %p18 = scmp.eq.s32.totalorder %s17, 0
    %s20 = sadd.s32 %s19, 1
    %s21 = scalar_select %p18, %s19, %s20
    %p24 = pneg %p18
    %p25 = scmp.eq.s32.totalorder %s9, 1
    %p26 = por %p24, %p25
    %p27 = scmp.ne.s32.totalorder %s19, %s22
    %p28 = scmp.eq.s32.totalorder %s9, 0
    %p29 = por %p27, %p28
    %p30 = scmp.ne.s32.totalorder %s19, %s22
    %p31 = scmp.eq.s32.totalorder %s14, 1
    %p32 = por %p30, %p31
    %p33 = scmp.ne.s32.totalorder %s22, %s23
    %p34 = scmp.eq.s32.totalorder %s14, 0
    %p35 = por %p33, %p34
    %p36 = scmp.ne.s32.totalorder %s22, %s23
    %p37 = scmp.eq.s32.totalorder %s15, 1
    %p38 = por %p36, %p37
    %p40 = scmp.ne.s32.totalorder %s23, %s39
    %p41 = scmp.eq.s32.totalorder %s15, 0
    %p42 = por %p40, %p41
    %s44 = sadd.s32 %s43, 1
    %p47 = scmp.eq.s32.totalorder %s9, 1
    %p48 = scmp.ne.s32.totalorder %s43, %s45
    %p49 = scmp.eq.s32.totalorder %s9, 0
    %p50 = por %p48, %p49
    %p51 = scmp.ne.s32.totalorder %s43, %s45
    %p52 = scmp.eq.s32.totalorder %s14, 1
    %p53 = por %p51, %p52
    %p54 = scmp.ne.s32.totalorder %s45, %s46
    %p55 = scmp.eq.s32.totalorder %s14, 0
    %p56 = por %p54, %p55
    %p57 = scmp.ne.s32.totalorder %s45, %s46
    %p58 = scmp.eq.s32.totalorder %s15, 1
    %p59 = por %p57, %p58
    %p61 = scmp.ne.s32.totalorder %s46, %s60
    %p62 = scmp.eq.s32.totalorder %s15, 0
    %p63 = por %p61, %p62
    %s65 = sadd.s32 %s64, 1
    %p68 = scmp.eq.s32.totalorder %s9, 1
    %p69 = scmp.ne.s32.totalorder %s64, %s66
    %p70 = scmp.eq.s32.totalorder %s9, 0
    %p71 = por %p69, %p70
    %p72 = scmp.ne.s32.totalorder %s64, %s66
    %p73 = scmp.eq.s32.totalorder %s14, 1
    %p74 = por %p72, %p73
    %p75 = scmp.ne.s32.totalorder %s66, %s67
    %p76 = scmp.eq.s32.totalorder %s14, 0
    %p77 = por %p75, %p76
    %p78 = scmp.ne.s32.totalorder %s66, %s67
    %p79 = scmp.eq.s32.totalorder %s15, 1
    %p80 = por %p78, %p79
    %p82 = scmp.ne.s32.totalorder %s67, %s81
    %p83 = scmp.eq.s32.totalorder %s15, 0
    %p84 = por %p82, %p83
    %s85 = ssub.s32 %s9, %s16
    %p86 = scmp.eq.s32.totalorder %s85, 0
    %s88 = sadd.s32 %s87, 1
    %s89 = scalar_select %p86, %s87, %s88
    %p92 = pneg %p86
    %p93 = scmp.eq.s32.totalorder %s9, 1
    %p94 = por %p92, %p93
    %p95 = scmp.ne.s32.totalorder %s87, %s90
    %p96 = scmp.eq.s32.totalorder %s9, 0
    %p97 = por %p95, %p96
    %p98 = scmp.ne.s32.totalorder %s87, %s90
    %p99 = scmp.eq.s32.totalorder %s14, 1
    %p100 = por %p98, %p99
    %p101 = scmp.ne.s32.totalorder %s90, %s91
    %p102 = scmp.eq.s32.totalorder %s14, 0
    %p103 = por %p101, %p102
    %p104 = scmp.ne.s32.totalorder %s90, %s91
    %p105 = scmp.eq.s32.totalorder %s15, 1
    %p106 = por %p104, %p105
    %p108 = scmp.ne.s32.totalorder %s91, %s107
    %p109 = scmp.eq.s32.totalorder %s15, 0
    %p110 = por %p108, %p109
    %p111 = scmp.le.s32.totalorder 1, %s9
    %p112 = scmp.lt.s32.totalorder %s9, 3
    %p113 = pnand %p111, %p112
    %p114 = pneg %p113
    // Predicated region
    $region9: #{deeplabv3_forward.20} parent=5 // pred_check
      _
    $region10: #{deeplabv3_forward.20} parent=5 // pred_check_branch
      %116 = sbr.rel (%p113) target = $region12
    $region11: #{deeplabv3_forward.20} parent=5 // pred_region
      %s117 = ssub.s32 %s9, 1
      // Predicated region
      $region13: #{deeplabv3_forward.20} parent=11 // pred_check
        %p118 = pneg %p56
      $region14: #{deeplabv3_forward.20} parent=11 // pred_check_branch
        %120 = sbr.rel (%p118) target = $region16
      $region15: #{deeplabv3_forward.20} parent=11 // pred_region
        _
      $region16: #{deeplabv3_forward.20} parent=11 // pred_fallthru
        _
      // Predicated region
      $region17: #{deeplabv3_forward.20} parent=11 // pred_check
        %p121 = pneg %p77
      $region18: #{deeplabv3_forward.20} parent=11 // pred_check_branch
        %123 = sbr.rel (%p121) target = $region20
      $region19: #{deeplabv3_forward.20} parent=11 // pred_region
        _
      $region20: #{deeplabv3_forward.20} parent=11 // pred_fallthru
        _
    $region12: #{deeplabv3_forward.20} parent=5 // pred_fallthru
      _
    %p124 = scmp.lt.s32.totalorder %s9, 2
    // Predicated region
    $region21: #{deeplabv3_forward.20} parent=5 // pred_check
      %p125 = pneg %p124
    $region22: #{deeplabv3_forward.20} parent=5 // pred_check_branch
      %127 = sbr.rel (%p125) target = $region24
    $region23: #{deeplabv3_forward.20} parent=5 // pred_region
      // Predicated region
      $region25: #{deeplabv3_forward.20} parent=23 // pred_check
        %p128 = pneg %p29
      $region26: #{deeplabv3_forward.20} parent=23 // pred_check_branch
        %130 = sbr.rel (%p128) target = $region28
      $region27: #{deeplabv3_forward.20} parent=23 // pred_region
        %s131 = smul.u32 32, %s9
        %p132 = scmp.lt.s32.totalorder %s131, 63
        %s133 = scalar_select %p132, %s131, 63
        %s134 = smul.addr %s133, 4
        %s135 = scalar_lea.vmem %s0, %s134
        %s136 = smul.u32 32, %s9
      $region28: #{deeplabv3_forward.20} parent=23 // pred_fallthru
        _
    $region24: #{deeplabv3_forward.20} parent=5 // pred_fallthru
      _
    %p137 = scmp.le.s32.totalorder 1, %s9
    %p138 = scmp.lt.s32.totalorder %s9, 3
    %p139 = pnand %p137, %p138
    %p140 = pneg %p139
    // Predicated region
    $region29: #{deeplabv3_forward.20} parent=5 // pred_check
      _
    $region30: #{deeplabv3_forward.20} parent=5 // pred_check_branch
      %142 = sbr.rel (%p139) target = $region32
    $region31: #{deeplabv3_forward.20} parent=5 // pred_region
      %s143 = ssub.s32 %s9, 1
      %s144 = smul.u32 32, %s14
      %p145 = scmp.lt.s32.totalorder %s144, 63
      %s146 = scalar_select %p145, %s144, 63
      %s147 = smul.addr %s146, 4
      %s148 = scalar_lea.vmem %s0, %s147
      %p149 = pneg %p35
      %p150 = pneg %p32
      %p151 = pneg %p56
      %p152 = pneg %p53
      %p153 = pneg %p77
      %p154 = pneg %p74
      %p155 = pneg %p103
      %p156 = pneg %p100
      %s157 = smul.u32 32, %s14
      %p158 = scmp.lt.s32.totalorder %s157, 63
      %s159 = scalar_select %p158, %s157, 63
      %s160 = smul.addr %s159, 8
      %s161 = scalar_lea.vmem %s3, %s160
      %s162 = smul.u32 32, %s14
      %p163 = scmp.lt.s32.totalorder %s162, 63
      %s164 = scalar_select %p163, %s162, 63
      %s165 = smul.addr %s164, 4
      %s166 = scalar_lea.vmem %s0, %s165
      %s167 = smul.u32 32, %s14
      %s168 = smul.u32 32, %s14
      %p169 = scmp.lt.s32.totalorder %s168, 63
      %s170 = scalar_select %p169, %s168, 63
      %s171 = smul.addr %s170, 8
      %s172 = scalar_lea.vmem %s3, %s171
      %s173 = smul.u32 32, %s14
      %v175 = vld [vmem:[%s166] sm:$0xf]
      %v176 = vld [vmem:[%s166 + $0x4] sm:$0xf]
      %v177 = vld [vmem:[%s166 + $0x8] sm:$0xf]
      %v178 = vld [vmem:[%s166 + $0xc] sm:$0xf]
      %v179 = vld [vmem:[%s166 + $0x10] sm:$0xf]
      %v180 = vld [vmem:[%s166 + $0x14] sm:$0xf]
      %v181 = vld [vmem:[%s166 + $0x18] sm:$0xf]
      %v182 = vld [vmem:[%s166 + $0x1c] sm:$0xf]
      %v183 = vld [vmem:[%s166 + $0x20] sm:$0xf]
      %v184 = vld [vmem:[%s166 + $0x24] sm:$0xf]
      %v185 = vld [vmem:[%s166 + $0x28] sm:$0xf]
      %v186 = vld [vmem:[%s166 + $0x2c] sm:$0xf]
      %v187 = vld [vmem:[%s166 + $0x30] sm:$0xf]
      %v188 = vld [vmem:[%s166 + $0x34] sm:$0xf]
      %v189 = vld [vmem:[%s166 + $0x38] sm:$0xf]
      %v190 = vld [vmem:[%s166 + $0x3c] sm:$0xf]
      %v191 = vld [vmem:[%s166 + $0x40] sm:$0xf]
      %v192 = vld [vmem:[%s166 + $0x44] sm:$0xf]
      %v193 = vld [vmem:[%s166 + $0x48] sm:$0xf]
      %v194 = vld [vmem:[%s166 + $0x4c] sm:$0xf]
      %v195 = vld [vmem:[%s166 + $0x50] sm:$0xf]
      %v196 = vld [vmem:[%s166 + $0x54] sm:$0xf]
      %v197 = vld [vmem:[%s166 + $0x58] sm:$0xf]
      %v198 = vld [vmem:[%s166 + $0x5c] sm:$0xf]
      %v199 = vld [vmem:[%s166 + $0x60] sm:$0xf]
      %v200 = vld [vmem:[%s166 + $0x64] sm:$0xf]
      %v201 = vld [vmem:[%s166 + $0x68] sm:$0xf]
      %v202 = vld [vmem:[%s166 + $0x6c] sm:$0xf]
      %v203 = vld [vmem:[%s166 + $0x70] sm:$0xf]
      %v204 = vld [vmem:[%s166 + $0x74] sm:$0xf]
      %v205 = vld [vmem:[%s166 + $0x78] sm:$0xf]
      %v206 = vld [vmem:[%s166 + $0x7c] sm:$0xf]
      %v207 = vld [vmem:[%s1] sm:$0xf]
      %v208 = vld [vmem:[%s1 + $0x4] sm:$0xf]
      %v209 = vld [vmem:[%s2] sm:$0x1]
      %v211 = vlaneseq
      %v212 = vshrl.u32 %v211, 7
      %v213 = vsub.s32 0, %v212
      %v214 = vrot.slane %v209, %v213
      %v248 = vunpack.c.l.b16 %v175
      %v249 = vunpack.c.l.b16 %v176
      %v250 = vunpack.c.l.b16 %v177
      %v251 = vunpack.c.l.b16 %v178
      %v252 = vunpack.c.l.b16 %v179
      %v253 = vunpack.c.l.b16 %v180
      %v254 = vunpack.c.l.b16 %v181
      %v255 = vunpack.c.l.b16 %v182
      %v256 = vunpack.c.l.b16 %v183
      %v257 = vunpack.c.l.b16 %v184
      %v258 = vunpack.c.l.b16 %v185
      %v259 = vunpack.c.l.b16 %v186
      %v260 = vunpack.c.l.b16 %v187
      %v261 = vunpack.c.l.b16 %v188
      %v262 = vunpack.c.l.b16 %v189
      %v263 = vunpack.c.l.b16 %v190
      %v264 = vunpack.c.l.b16 %v191
      %v265 = vunpack.c.l.b16 %v192
      %v266 = vunpack.c.l.b16 %v193
      %v267 = vunpack.c.l.b16 %v194
      %v268 = vunpack.c.l.b16 %v195
      %v269 = vunpack.c.l.b16 %v196
      %v270 = vunpack.c.l.b16 %v197
      %v271 = vunpack.c.l.b16 %v198
      %v272 = vunpack.c.l.b16 %v199
      %v273 = vunpack.c.l.b16 %v200
      %v274 = vunpack.c.l.b16 %v201
      %v275 = vunpack.c.l.b16 %v202
      %v276 = vunpack.c.l.b16 %v203
      %v277 = vunpack.c.l.b16 %v204
      %v278 = vunpack.c.l.b16 %v205
      %v279 = vunpack.c.l.b16 %v206
      %v280 = vpack.c.b16 %v249, %v248
      %v281 = vpack.c.b16 %v251, %v250
      %v282 = vpack.c.b16 %v253, %v252
      %v283 = vpack.c.b16 %v255, %v254
      %v284 = vpack.c.b16 %v257, %v256
      %v285 = vpack.c.b16 %v259, %v258
      %v286 = vpack.c.b16 %v261, %v260
      %v287 = vpack.c.b16 %v263, %v262
      %v288 = vpack.c.b16 %v265, %v264
      %v289 = vpack.c.b16 %v267, %v266
      %v290 = vpack.c.b16 %v269, %v268
      %v291 = vpack.c.b16 %v271, %v270
      %v292 = vpack.c.b16 %v273, %v272
      %v293 = vpack.c.b16 %v275, %v274
      %v294 = vpack.c.b16 %v277, %v276
      %v295 = vpack.c.b16 %v279, %v278
      %v298 = vunpack.c.l.b16 %v207
      %v299 = vunpack.c.l.b16 %v208
      %v300 = vpack.c.b16 %v299, %v298
      %vm302 = vcmask 130048
      %v304 = vsel %vm302, %v280, 0
      %v307 = vsel %vm302, %v281, 0
      %v310 = vsel %vm302, %v282, 0
      %v313 = vsel %vm302, %v283, 0
      %v316 = vsel %vm302, %v284, 0
      %v319 = vsel %vm302, %v285, 0
      %v322 = vsel %vm302, %v286, 0
      %v325 = vsel %vm302, %v287, 0
      %v328 = vsel %vm302, %v288, 0
      %v331 = vsel %vm302, %v289, 0
      %v334 = vsel %vm302, %v290, 0
      %v337 = vsel %vm302, %v291, 0
      %v340 = vsel %vm302, %v292, 0
      %v343 = vsel %vm302, %v293, 0
      %v346 = vsel %vm302, %v294, 0
      %v349 = vsel %vm302, %v295, 0
      %351 = vmatprep.subr.bf16.mxu0 0
      %352 = vmatpush1.bf16.msra.mxu0 0
      %353 = vmatprep.subr.bf16.mxu0 0
      %354 = vmatpush1.bf16.msra.mxu0 0
      %355 = vmatprep.subr.bf16.mxu0 0
      %356 = vmatpush1.bf16.msra.mxu0 0
      %357 = vmatprep.subr.bf16.mxu0 0
      %358 = vmatpush1.bf16.msra.mxu0 0
      %359 = vmatprep.subr.bf16.mxu0 0
      %360 = vmatpush1.bf16.msra.mxu0 0
      %361 = vmatprep.subr.bf16.mxu0 0
      %362 = vmatpush1.bf16.msra.mxu0 0
      %363 = vmatprep.subr.bf16.mxu0 0
      %364 = vmatpush1.bf16.msra.mxu0 0
      %365 = vmatprep.subr.bf16.mxu0 0
      %366 = vmatpush1.bf16.msra.mxu0 %v300
      %367 = vmatprep.subr.bf16.mxu0 0
      %368 = vmatpush2.bf16.msra.mxu0 0
      %369 = vmatprep.subr.bf16.mxu0 0
      %370 = vmatpush2.bf16.msra.mxu0 0
      %371 = vmatprep.subr.bf16.mxu0 0
      %372 = vmatpush2.bf16.msra.mxu0 0
      %373 = vmatprep.subr.bf16.mxu0 0
      %374 = vmatpush2.bf16.msra.mxu0 0
      %375 = vmatprep.subr.bf16.mxu0 0
      %376 = vmatpush2.bf16.msra.mxu0 0
      %377 = vmatprep.subr.bf16.mxu0 0
      %378 = vmatpush2.bf16.msra.mxu0 0
      %379 = vmatprep.subr.bf16.mxu0 0
      %380 = vmatpush2.bf16.msra.mxu0 0
      %381 = vmatprep.subr.bf16.mxu0 0
      %382 = vmatpush2.bf16.msra.mxu0 0
      %383 = vmatprep.mubr.bf16.mxu0 0
      %384 = vmatmul.mubr.bf16.gmra.mxu0 %v304
      %v385 = vpop.f32.mrf.mxu0
      %v386 = vadd.f32 %v214, %v385
      %v387 = vpop.f32.mrf.mxu0
      %v388 = vpop.f32.mrf.mxu0
      %v389 = vadd.f32 %v214, %v388
      %v390 = vpop.f32.mrf.mxu0
      %391 = vmatprep.mubr.bf16.mxu0 0
      %392 = vmatmul.mubr.bf16.gmra.mxu0 %v307
      %v393 = vpop.f32.mrf.mxu0
      %v394 = vadd.f32 %v214, %v393
      %v395 = vpop.f32.mrf.mxu0
      %v396 = vpop.f32.mrf.mxu0
      %v397 = vadd.f32 %v214, %v396
      %v398 = vpop.f32.mrf.mxu0
      %399 = vmatprep.mubr.bf16.mxu0 0
      %400 = vmatmul.mubr.bf16.gmra.mxu0 %v310
      %v401 = vpop.f32.mrf.mxu0
      %v402 = vadd.f32 %v214, %v401
      %v403 = vpop.f32.mrf.mxu0
      %v404 = vpop.f32.mrf.mxu0
      %v405 = vadd.f32 %v214, %v404
      %v406 = vpop.f32.mrf.mxu0
      %407 = vmatprep.mubr.bf16.mxu0 0
      %408 = vmatmul.mubr.bf16.gmra.mxu0 %v313
      %v409 = vpop.f32.mrf.mxu0
      %v410 = vadd.f32 %v214, %v409
      %v411 = vpop.f32.mrf.mxu0
      %v412 = vpop.f32.mrf.mxu0
      %v413 = vadd.f32 %v214, %v412
      %v414 = vpop.f32.mrf.mxu0
      %415 = vmatprep.mubr.bf16.mxu0 0
      %416 = vmatmul.mubr.bf16.gmra.mxu0 %v316
      %v417 = vpop.f32.mrf.mxu0
      %v418 = vadd.f32 %v214, %v417
      %v419 = vpop.f32.mrf.mxu0
      %v420 = vpop.f32.mrf.mxu0
      %v421 = vadd.f32 %v214, %v420
      %v422 = vpop.f32.mrf.mxu0
      %423 = vmatprep.mubr.bf16.mxu0 0
      %424 = vmatmul.mubr.bf16.gmra.mxu0 %v319
      %v425 = vpop.f32.mrf.mxu0
      %v426 = vadd.f32 %v214, %v425
      %v427 = vpop.f32.mrf.mxu0
      %v428 = vpop.f32.mrf.mxu0
      %v429 = vadd.f32 %v214, %v428
      %v430 = vpop.f32.mrf.mxu0
      %431 = vmatprep.mubr.bf16.mxu0 0
      %432 = vmatmul.mubr.bf16.gmra.mxu0 %v322
      %v433 = vpop.f32.mrf.mxu0
      %v434 = vadd.f32 %v214, %v433
      %v435 = vpop.f32.mrf.mxu0
      %v436 = vpop.f32.mrf.mxu0
      %v437 = vadd.f32 %v214, %v436
      %v438 = vpop.f32.mrf.mxu0
      %439 = vmatprep.mubr.bf16.mxu0 0
      %440 = vmatmul.mubr.bf16.gmra.mxu0 %v325
      %v441 = vpop.f32.mrf.mxu0
      %v442 = vadd.f32 %v214, %v441
      %v443 = vpop.f32.mrf.mxu0
      %v444 = vpop.f32.mrf.mxu0
      %v445 = vadd.f32 %v214, %v444
      %v446 = vpop.f32.mrf.mxu0
      %447 = vmatprep.mubr.bf16.mxu0 0
      %448 = vmatmul.mubr.bf16.gmra.mxu0 %v328
      %v449 = vpop.f32.mrf.mxu0
      %v450 = vadd.f32 %v214, %v449
      %v451 = vpop.f32.mrf.mxu0
      %v452 = vpop.f32.mrf.mxu0
      %v453 = vadd.f32 %v214, %v452
      %v454 = vpop.f32.mrf.mxu0
      %455 = vmatprep.mubr.bf16.mxu0 0
      %456 = vmatmul.mubr.bf16.gmra.mxu0 %v331
      %v457 = vpop.f32.mrf.mxu0
      %v458 = vadd.f32 %v214, %v457
      %v459 = vpop.f32.mrf.mxu0
      %v460 = vpop.f32.mrf.mxu0
      %v461 = vadd.f32 %v214, %v460
      %v462 = vpop.f32.mrf.mxu0
      %463 = vmatprep.mubr.bf16.mxu0 0
      %464 = vmatmul.mubr.bf16.gmra.mxu0 %v334
      %v465 = vpop.f32.mrf.mxu0
      %v466 = vadd.f32 %v214, %v465
      %v467 = vpop.f32.mrf.mxu0
      %v468 = vpop.f32.mrf.mxu0
      %v469 = vadd.f32 %v214, %v468
      %v470 = vpop.f32.mrf.mxu0
      %471 = vmatprep.mubr.bf16.mxu0 0
      %472 = vmatmul.mubr.bf16.gmra.mxu0 %v337
      %v473 = vpop.f32.mrf.mxu0
      %v474 = vadd.f32 %v214, %v473
      %v475 = vpop.f32.mrf.mxu0
      %v476 = vpop.f32.mrf.mxu0
      %v477 = vadd.f32 %v214, %v476
      %v478 = vpop.f32.mrf.mxu0
      %479 = vmatprep.mubr.bf16.mxu0 0
      %480 = vmatmul.mubr.bf16.gmra.mxu0 %v340
      %v481 = vpop.f32.mrf.mxu0
      %v482 = vadd.f32 %v214, %v481
      %v483 = vpop.f32.mrf.mxu0
      %v484 = vpop.f32.mrf.mxu0
      %v485 = vadd.f32 %v214, %v484
      %v486 = vpop.f32.mrf.mxu0
      %487 = vmatprep.mubr.bf16.mxu0 0
      %488 = vmatmul.mubr.bf16.gmra.mxu0 %v343
      %v489 = vpop.f32.mrf.mxu0
      %v490 = vadd.f32 %v214, %v489
      %v491 = vpop.f32.mrf.mxu0
      %v492 = vpop.f32.mrf.mxu0
      %v493 = vadd.f32 %v214, %v492
      %v494 = vpop.f32.mrf.mxu0
      %495 = vmatprep.mubr.bf16.mxu0 0
      %496 = vmatmul.mubr.bf16.gmra.mxu0 %v346
      %v497 = vpop.f32.mrf.mxu0
      %v498 = vadd.f32 %v214, %v497
      %v499 = vpop.f32.mrf.mxu0
      %v500 = vpop.f32.mrf.mxu0
      %v501 = vadd.f32 %v214, %v500
      %v502 = vpop.f32.mrf.mxu0
      %503 = vmatprep.mubr.bf16.mxu0 0
      %504 = vmatmul.mubr.bf16.gmra.mxu0 %v349
      %v505 = vpop.f32.mrf.mxu0
      %v506 = vadd.f32 %v214, %v505
      %v507 = vpop.f32.mrf.mxu0
      %v508 = vpop.f32.mrf.mxu0
      %v509 = vadd.f32 %v214, %v508
      %v510 = vpop.f32.mrf.mxu0
      %511 = vdwg.mxu0
      %v512 = vmax.f32 %v386, 0.0
      %v513 = vmax.f32 %v389, 0.0
      %v514 = vmax.f32 %v394, 0.0
      %v515 = vmax.f32 %v397, 0.0
      %v516 = vmax.f32 %v402, 0.0
      %v517 = vmax.f32 %v405, 0.0
      %v518 = vmax.f32 %v410, 0.0
      %v519 = vmax.f32 %v413, 0.0
      %v520 = vmax.f32 %v418, 0.0
      %v521 = vmax.f32 %v421, 0.0
      %v522 = vmax.f32 %v426, 0.0
      %v523 = vmax.f32 %v429, 0.0
      %v524 = vmax.f32 %v434, 0.0
      %v525 = vmax.f32 %v437, 0.0
      %v526 = vmax.f32 %v442, 0.0
      %v527 = vmax.f32 %v445, 0.0
      %v528 = vmax.f32 %v450, 0.0
      %v529 = vmax.f32 %v453, 0.0
      %v530 = vmax.f32 %v458, 0.0
      %v531 = vmax.f32 %v461, 0.0
      %v532 = vmax.f32 %v466, 0.0
      %v533 = vmax.f32 %v469, 0.0
      %v534 = vmax.f32 %v474, 0.0
      %v535 = vmax.f32 %v477, 0.0
      %v536 = vmax.f32 %v482, 0.0
      %v537 = vmax.f32 %v485, 0.0
      %v538 = vmax.f32 %v490, 0.0
      %v539 = vmax.f32 %v493, 0.0
      %v540 = vmax.f32 %v498, 0.0
      %v541 = vmax.f32 %v501, 0.0
      %v542 = vmax.f32 %v506, 0.0
      %v543 = vmax.f32 %v509, 0.0
      %vm544 = vcmask 261120
      %545 = vst.msk [vmem:[%s172] sm:$0xff] %vm544, %v512
      %546 = vst.msk [vmem:[%s172 + $0x8] sm:$0xff] %vm544, %v513
      %547 = vst.msk [vmem:[%s172 + $0x10] sm:$0xff] %vm544, %v514
      %548 = vst.msk [vmem:[%s172 + $0x18] sm:$0xff] %vm544, %v515
      %549 = vst.msk [vmem:[%s172 + $0x20] sm:$0xff] %vm544, %v516
      %550 = vst.msk [vmem:[%s172 + $0x28] sm:$0xff] %vm544, %v517
      %551 = vst.msk [vmem:[%s172 + $0x30] sm:$0xff] %vm544, %v518
      %552 = vst.msk [vmem:[%s172 + $0x38] sm:$0xff] %vm544, %v519
      %553 = vst.msk [vmem:[%s172 + $0x40] sm:$0xff] %vm544, %v520
      %554 = vst.msk [vmem:[%s172 + $0x48] sm:$0xff] %vm544, %v521
      %555 = vst.msk [vmem:[%s172 + $0x50] sm:$0xff] %vm544, %v522
      %556 = vst.msk [vmem:[%s172 + $0x58] sm:$0xff] %vm544, %v523
      %557 = vst.msk [vmem:[%s172 + $0x60] sm:$0xff] %vm544, %v524
      %558 = vst.msk [vmem:[%s172 + $0x68] sm:$0xff] %vm544, %v525
      %559 = vst.msk [vmem:[%s172 + $0x70] sm:$0xff] %vm544, %v526
      %560 = vst.msk [vmem:[%s172 + $0x78] sm:$0xff] %vm544, %v527
      %561 = vst.msk [vmem:[%s172 + $0x80] sm:$0xff] %vm544, %v528
      %562 = vst.msk [vmem:[%s172 + $0x88] sm:$0xff] %vm544, %v529
      %563 = vst.msk [vmem:[%s172 + $0x90] sm:$0xff] %vm544, %v530
      %564 = vst.msk [vmem:[%s172 + $0x98] sm:$0xff] %vm544, %v531
      %565 = vst.msk [vmem:[%s172 + $0xa0] sm:$0xff] %vm544, %v532
      %566 = vst.msk [vmem:[%s172 + $0xa8] sm:$0xff] %vm544, %v533
      %567 = vst.msk [vmem:[%s172 + $0xb0] sm:$0xff] %vm544, %v534
      %568 = vst.msk [vmem:[%s172 + $0xb8] sm:$0xff] %vm544, %v535
      %569 = vst.msk [vmem:[%s172 + $0xc0] sm:$0xff] %vm544, %v536
      %570 = vst.msk [vmem:[%s172 + $0xc8] sm:$0xff] %vm544, %v537
      %571 = vst.msk [vmem:[%s172 + $0xd0] sm:$0xff] %vm544, %v538
      %572 = vst.msk [vmem:[%s172 + $0xd8] sm:$0xff] %vm544, %v539
      %573 = vst.msk [vmem:[%s172 + $0xe0] sm:$0xff] %vm544, %v540
      %574 = vst.msk [vmem:[%s172 + $0xe8] sm:$0xff] %vm544, %v541
      %575 = vst.msk [vmem:[%s172 + $0xf0] sm:$0xff] %vm544, %v542
      %576 = vst.msk [vmem:[%s172 + $0xf8] sm:$0xff] %vm544, %v543
      %s577 = smul.u32 32, %s14
      %p578 = scmp.lt.s32.totalorder %s577, 63
      %s579 = scalar_select %p578, %s577, 63
      %s580 = smul.addr %s579, 8
      %s581 = scalar_lea.vmem %s3, %s580
      // Predicated region
      $region33: #{deeplabv3_forward.20} parent=31 // pred_check
        %p582 = pneg %p100
      $region34: #{deeplabv3_forward.20} parent=31 // pred_check_branch
        %584 = sbr.rel (%p582) target = $region36
      $region35: #{deeplabv3_forward.20} parent=31 // pred_region
        %s585 = smul.u32 32, %s14
      $region36: #{deeplabv3_forward.20} parent=31 // pred_fallthru
        _
    $region32: #{deeplabv3_forward.20} parent=5 // pred_fallthru
      _
    %p586 = scmp.le.s32.totalorder 2, %s9
    // Predicated region
    $region37: #{deeplabv3_forward.20} parent=5 // pred_check
      %p587 = pneg %p586
    $region38: #{deeplabv3_forward.20} parent=5 // pred_check_branch
      %589 = sbr.rel (%p587) target = $region40
    $region39: #{deeplabv3_forward.20} parent=5 // pred_region
      %s590 = ssub.s32 %s9, 2
      // Predicated region
      $region41: #{deeplabv3_forward.20} parent=39 // pred_check
        %p591 = pneg %p106
      $region42: #{deeplabv3_forward.20} parent=39 // pred_check_branch
        %593 = sbr.rel (%p591) target = $region44
      $region43: #{deeplabv3_forward.20} parent=39 // pred_region
        %s594 = smul.u32 32, %s15
        %p595 = scmp.lt.s32.totalorder %s594, 63
        %s596 = scalar_select %p595, %s594, 63
        %s597 = smul.addr %s596, 8
        %s598 = scalar_lea.vmem %s3, %s597
      $region44: #{deeplabv3_forward.20} parent=39 // pred_fallthru
        _
    $region40: #{deeplabv3_forward.20} parent=5 // pred_fallthru
      _
  $region6: #{deeplabv3_forward.20} parent=0 // loop_footer
    %s13 = sadd.s32 1, %s9
  $region7: #{deeplabv3_forward.20} parent=0 // loop_footer_branch
    %8 = sbr.rel target = $region3
  $region8: #{deeplabv3_forward.20} parent=0 // loop_exit
    _

// kernel: deeplabv3_forward.22
$region0: #{deeplabv3_forward.22}
  #allocation0 [shape = 'u32[]', space=smem, size = 0x4, offset = 0x4, fixed_abs, tag = 'smem constant byte address 0x4 - core index']
  #allocation1 [shape = 'u32[144,128]{1,0:T(1,128)}', space=vmem, size = 0x12000, scoped, tag = 'internal scratch']
  %s0 = inlined_call_operand.vmem [shape: bf16[128,32], index: 0, kind: input, shape index: {}]
  %s1 = inlined_call_operand.vmem [shape: bf16[32,24], index: 1, kind: input, shape index: {}]
  %s2 = inlined_call_operand.vmem [shape: f32[1,24], index: 2, kind: input, shape index: {}]
  %s3 = inlined_call_operand.vmem [shape: f32[128,24], index: 3, kind: output, shape index: {}]
  %s4 = sld [smem:[#allocation0]]
  $region22: #{deeplabv3_forward.22} parent=0
    _
  %s6 = ssub.s32 1, %s4
  %s7 = scalar_select 0, %s6, %s4
  // Predicated region
  $region2: #{deeplabv3_forward.22} parent=0 // pred_check
    _
  $region3: #{deeplabv3_forward.22} parent=0 // pred_check_branch
    %9 = sbr.rel (0) target = $region5
  $region4: #{deeplabv3_forward.22} parent=0 // pred_region
    _
  $region5: #{deeplabv3_forward.22} parent=0 // pred_fallthru
    _
  // Predicated region
  $region6: #{deeplabv3_forward.22} parent=0 // pred_check
    _
  $region7: #{deeplabv3_forward.22} parent=0 // pred_check_branch
    %11 = sbr.rel (0) target = $region9
  $region8: #{deeplabv3_forward.22} parent=0 // pred_region
    _
  $region9: #{deeplabv3_forward.22} parent=0 // pred_fallthru
    _
  // Predicated region
  $region10: #{deeplabv3_forward.22} parent=0 // pred_check
    _
  $region11: #{deeplabv3_forward.22} parent=0 // pred_check_branch
    %13 = sbr.rel (0) target = $region13
  $region12: #{deeplabv3_forward.22} parent=0 // pred_region
    _
  $region13: #{deeplabv3_forward.22} parent=0 // pred_fallthru
    _
  %v15 = vld [vmem:[%s0] sm:$0xf]
  %v16 = vld [vmem:[%s0 + $0x4] sm:$0xf]
  %v17 = vld [vmem:[%s0 + $0x8] sm:$0xf]
  %v18 = vld [vmem:[%s0 + $0xc] sm:$0xf]
  %v19 = vld [vmem:[%s0 + $0x10] sm:$0xf]
  %v20 = vld [vmem:[%s0 + $0x14] sm:$0xf]
  %v21 = vld [vmem:[%s0 + $0x18] sm:$0xf]
  %v22 = vld [vmem:[%s0 + $0x1c] sm:$0xf]
  %v23 = vld [vmem:[%s0 + $0x20] sm:$0xf]
  %v24 = vld [vmem:[%s0 + $0x24] sm:$0xf]
  %v25 = vld [vmem:[%s0 + $0x28] sm:$0xf]
  %v26 = vld [vmem:[%s0 + $0x2c] sm:$0xf]
  %v27 = vld [vmem:[%s0 + $0x30] sm:$0xf]
  %v28 = vld [vmem:[%s0 + $0x34] sm:$0xf]
  %v29 = vld [vmem:[%s0 + $0x38] sm:$0xf]
  %v30 = vld [vmem:[%s0 + $0x3c] sm:$0xf]
  %v31 = vld [vmem:[%s1] sm:$0xf]
  %v32 = vld [vmem:[%s1 + $0x4] sm:$0xf]
  %v33 = vld [vmem:[%s1 + $0x8] sm:$0xf]
  %v34 = vld [vmem:[%s1 + $0xc] sm:$0xf]
  %v35 = vld [vmem:[%s2] sm:$0x1]
  %v37 = vlaneseq
  %v38 = vshrl.u32 %v37, 7
  %v39 = vsub.s32 0, %v38
  %v40 = vrot.slane %v35, %v39
  %v58 = vunpack.c.l.b16 %v15
  %v59 = vunpack.c.l.b16 %v16
  %v60 = vunpack.c.l.b16 %v17
  %v61 = vunpack.c.l.b16 %v18
  %v62 = vunpack.c.l.b16 %v19
  %v63 = vunpack.c.l.b16 %v20
  %v64 = vunpack.c.l.b16 %v21
  %v65 = vunpack.c.l.b16 %v22
  %v66 = vunpack.c.l.b16 %v23
  %v67 = vunpack.c.l.b16 %v24
  %v68 = vunpack.c.l.b16 %v25
  %v69 = vunpack.c.l.b16 %v26
  %v70 = vunpack.c.l.b16 %v27
  %v71 = vunpack.c.l.b16 %v28
  %v72 = vunpack.c.l.b16 %v29
  %v73 = vunpack.c.l.b16 %v30
  %v74 = vpack.c.b16 %v59, %v58
  %v75 = vpack.c.b16 %v61, %v60
  %v76 = vpack.c.b16 %v63, %v62
  %v77 = vpack.c.b16 %v65, %v64
  %v78 = vpack.c.b16 %v67, %v66
  %v79 = vpack.c.b16 %v69, %v68
  %v80 = vpack.c.b16 %v71, %v70
  %v81 = vpack.c.b16 %v73, %v72
  %v86 = vunpack.c.l.b16 %v31
  %v87 = vunpack.c.l.b16 %v32
  %v88 = vunpack.c.l.b16 %v33
  %v89 = vunpack.c.l.b16 %v34
  %v90 = vpack.c.b16 %v87, %v86
  %v91 = vpack.c.b16 %v89, %v88
  %vm94 = vcmask 261120
  %v96 = vsel %vm94, %v74, 0
  %v99 = vsel %vm94, %v75, 0
  %v102 = vsel %vm94, %v76, 0
  %v105 = vsel %vm94, %v77, 0
  %v108 = vsel %vm94, %v78, 0
  %v111 = vsel %vm94, %v79, 0
  %v114 = vsel %vm94, %v80, 0
  %v117 = vsel %vm94, %v81, 0
  %119 = vmatprep.subr.bf16.mxu0 0
  %120 = vmatpush1.bf16.msra.mxu0 0
  %121 = vmatprep.subr.bf16.mxu0 0
  %122 = vmatpush1.bf16.msra.mxu0 0
  %123 = vmatprep.subr.bf16.mxu0 0
  %124 = vmatpush1.bf16.msra.mxu0 0
  %125 = vmatprep.subr.bf16.mxu0 0
  %126 = vmatpush1.bf16.msra.mxu0 0
  %127 = vmatprep.subr.bf16.mxu0 0
  %128 = vmatpush1.bf16.msra.mxu0 0
  %129 = vmatprep.subr.bf16.mxu0 0
  %130 = vmatpush1.bf16.msra.mxu0 0
  %131 = vmatprep.subr.bf16.mxu0 0
  %132 = vmatpush1.bf16.msra.mxu0 %v91
  %133 = vmatprep.subr.bf16.mxu0 0
  %134 = vmatpush1.bf16.msra.mxu0 %v90
  %135 = vmatprep.subr.bf16.mxu0 0
  %136 = vmatpush2.bf16.msra.mxu0 0
  %137 = vmatprep.subr.bf16.mxu0 0
  %138 = vmatpush2.bf16.msra.mxu0 0
  %139 = vmatprep.subr.bf16.mxu0 0
  %140 = vmatpush2.bf16.msra.mxu0 0
  %141 = vmatprep.subr.bf16.mxu0 0
  %142 = vmatpush2.bf16.msra.mxu0 0
  %143 = vmatprep.subr.bf16.mxu0 0
  %144 = vmatpush2.bf16.msra.mxu0 0
  %145 = vmatprep.subr.bf16.mxu0 0
  %146 = vmatpush2.bf16.msra.mxu0 0
  %147 = vmatprep.subr.bf16.mxu0 0
  %148 = vmatpush2.bf16.msra.mxu0 0
  %149 = vmatprep.subr.bf16.mxu0 0
  %150 = vmatpush2.bf16.msra.mxu0 0
  %151 = vmatprep.mubr.bf16.mxu0 0
  %152 = vmatmul.mubr.bf16.gmra.mxu0 %v96
  %v153 = vpop.f32.mrf.mxu0
  %v154 = vadd.f32 %v40, %v153
  %v155 = vpop.f32.mrf.mxu0
  %v156 = vpop.f32.mrf.mxu0
  %v157 = vadd.f32 %v40, %v156
  %v158 = vpop.f32.mrf.mxu0
  %159 = vmatprep.mubr.bf16.mxu0 0
  %160 = vmatmul.mubr.bf16.gmra.mxu0 %v99
  %v161 = vpop.f32.mrf.mxu0
  %v162 = vadd.f32 %v40, %v161
  %v163 = vpop.f32.mrf.mxu0
  %v164 = vpop.f32.mrf.mxu0
  %v165 = vadd.f32 %v40, %v164
  %v166 = vpop.f32.mrf.mxu0
  %167 = vmatprep.mubr.bf16.mxu0 0
  %168 = vmatmul.mubr.bf16.gmra.mxu0 %v102
  %v169 = vpop.f32.mrf.mxu0
  %v170 = vadd.f32 %v40, %v169
  %v171 = vpop.f32.mrf.mxu0
  %v172 = vpop.f32.mrf.mxu0
  %v173 = vadd.f32 %v40, %v172
  %v174 = vpop.f32.mrf.mxu0
  %175 = vmatprep.mubr.bf16.mxu0 0
  %176 = vmatmul.mubr.bf16.gmra.mxu0 %v105
  %v177 = vpop.f32.mrf.mxu0
  %v178 = vadd.f32 %v40, %v177
  %v179 = vpop.f32.mrf.mxu0
  %v180 = vpop.f32.mrf.mxu0
  %v181 = vadd.f32 %v40, %v180
  %v182 = vpop.f32.mrf.mxu0
  %183 = vmatprep.mubr.bf16.mxu0 0
  %184 = vmatmul.mubr.bf16.gmra.mxu0 %v108
  %v185 = vpop.f32.mrf.mxu0
  %v186 = vadd.f32 %v40, %v185
  %v187 = vpop.f32.mrf.mxu0
  %v188 = vpop.f32.mrf.mxu0
  %v189 = vadd.f32 %v40, %v188
  %v190 = vpop.f32.mrf.mxu0
  %191 = vmatprep.mubr.bf16.mxu0 0
  %192 = vmatmul.mubr.bf16.gmra.mxu0 %v111
  %v193 = vpop.f32.mrf.mxu0
  %v194 = vadd.f32 %v40, %v193
  %v195 = vpop.f32.mrf.mxu0
  %v196 = vpop.f32.mrf.mxu0
  %v197 = vadd.f32 %v40, %v196
  %v198 = vpop.f32.mrf.mxu0
  %199 = vmatprep.mubr.bf16.mxu0 0
  %200 = vmatmul.mubr.bf16.gmra.mxu0 %v114
  %v201 = vpop.f32.mrf.mxu0
  %v202 = vadd.f32 %v40, %v201
  %v203 = vpop.f32.mrf.mxu0
  %v204 = vpop.f32.mrf.mxu0
  %v205 = vadd.f32 %v40, %v204
  %v206 = vpop.f32.mrf.mxu0
  %207 = vmatprep.mubr.bf16.mxu0 0
  %208 = vmatmul.mubr.bf16.gmra.mxu0 %v117
  %v209 = vpop.f32.mrf.mxu0
  %v210 = vadd.f32 %v40, %v209
  %v211 = vpop.f32.mrf.mxu0
  %v212 = vpop.f32.mrf.mxu0
  %v213 = vadd.f32 %v40, %v212
  %v214 = vpop.f32.mrf.mxu0
  %215 = vdwg.mxu0
  %vm216 = vcmask 195584
  %217 = vst.msk [vmem:[%s3] sm:$0xff] %vm216, %v154
  %218 = vst.msk [vmem:[%s3 + $0x8] sm:$0xff] %vm216, %v157
  %219 = vst.msk [vmem:[%s3 + $0x10] sm:$0xff] %vm216, %v162
  %220 = vst.msk [vmem:[%s3 + $0x18] sm:$0xff] %vm216, %v165
  %221 = vst.msk [vmem:[%s3 + $0x20] sm:$0xff] %vm216, %v170
  %222 = vst.msk [vmem:[%s3 + $0x28] sm:$0xff] %vm216, %v173
  %223 = vst.msk [vmem:[%s3 + $0x30] sm:$0xff] %vm216, %v178
  %224 = vst.msk [vmem:[%s3 + $0x38] sm:$0xff] %vm216, %v181
  %225 = vst.msk [vmem:[%s3 + $0x40] sm:$0xff] %vm216, %v186
  %226 = vst.msk [vmem:[%s3 + $0x48] sm:$0xff] %vm216, %v189
  %227 = vst.msk [vmem:[%s3 + $0x50] sm:$0xff] %vm216, %v194
  %228 = vst.msk [vmem:[%s3 + $0x58] sm:$0xff] %vm216, %v197
  %229 = vst.msk [vmem:[%s3 + $0x60] sm:$0xff] %vm216, %v202
  %230 = vst.msk [vmem:[%s3 + $0x68] sm:$0xff] %vm216, %v205
  %231 = vst.msk [vmem:[%s3 + $0x70] sm:$0xff] %vm216, %v210
  %232 = vst.msk [vmem:[%s3 + $0x78] sm:$0xff] %vm216, %v213
  // Predicated region
  $region14: #{deeplabv3_forward.22} parent=0 // pred_check
    _
  $region15: #{deeplabv3_forward.22} parent=0 // pred_check_branch
    %234 = sbr.rel (0) target = $region17
  $region16: #{deeplabv3_forward.22} parent=0 // pred_region
    _
  $region17: #{deeplabv3_forward.22} parent=0 // pred_fallthru
    _
  // Predicated region
  $region18: #{deeplabv3_forward.22} parent=0 // pred_check
    _
  $region19: #{deeplabv3_forward.22} parent=0 // pred_check_branch
    %236 = sbr.rel (0) target = $region21
  $region20: #{deeplabv3_forward.22} parent=0 // pred_region
    _
  $region21: #{deeplabv3_forward.22} parent=0 // pred_fallthru
    _

// kernel: deeplabv3_forward.23
$region0: #{deeplabv3_forward.23}
  #allocation0 [shape = 'u32[]', space=smem, size = 0x4, offset = 0x4, fixed_abs, tag = 'smem constant byte address 0x4 - core index']
  #allocation1 [shape = 'u32[144,128]{1,0:T(1,128)}', space=vmem, size = 0x12000, scoped, tag = 'internal scratch']
  %s0 = inlined_call_operand.vmem [shape: bf16[128,24], index: 0, kind: input, shape index: {}]
  %s1 = inlined_call_operand.vmem [shape: bf16[24,48], index: 1, kind: input, shape index: {}]
  %s2 = inlined_call_operand.vmem [shape: f32[1,48], index: 2, kind: input, shape index: {}]
  %s3 = inlined_call_operand.vmem [shape: f32[128,48], index: 3, kind: output, shape index: {}]
  %s4 = sld [smem:[#allocation0]]
  $region22: #{deeplabv3_forward.23} parent=0
    _
  %s6 = ssub.s32 1, %s4
  %s7 = scalar_select 0, %s6, %s4
  // Predicated region
  $region2: #{deeplabv3_forward.23} parent=0 // pred_check
    _
  $region3: #{deeplabv3_forward.23} parent=0 // pred_check_branch
    %9 = sbr.rel (0) target = $region5
  $region4: #{deeplabv3_forward.23} parent=0 // pred_region
    _
  $region5: #{deeplabv3_forward.23} parent=0 // pred_fallthru
    _
  // Predicated region
  $region6: #{deeplabv3_forward.23} parent=0 // pred_check
    _
  $region7: #{deeplabv3_forward.23} parent=0 // pred_check_branch
    %11 = sbr.rel (0) target = $region9
  $region8: #{deeplabv3_forward.23} parent=0 // pred_region
    _
  $region9: #{deeplabv3_forward.23} parent=0 // pred_fallthru
    _
  // Predicated region
  $region10: #{deeplabv3_forward.23} parent=0 // pred_check
    _
  $region11: #{deeplabv3_forward.23} parent=0 // pred_check_branch
    %13 = sbr.rel (0) target = $region13
  $region12: #{deeplabv3_forward.23} parent=0 // pred_region
    _
  $region13: #{deeplabv3_forward.23} parent=0 // pred_fallthru
    _
  %v15 = vld [vmem:[%s0] sm:$0xf]
  %v16 = vld [vmem:[%s0 + $0x4] sm:$0xf]
  %v17 = vld [vmem:[%s0 + $0x8] sm:$0xf]
  %v18 = vld [vmem:[%s0 + $0xc] sm:$0xf]
  %v19 = vld [vmem:[%s0 + $0x10] sm:$0xf]
  %v20 = vld [vmem:[%s0 + $0x14] sm:$0xf]
  %v21 = vld [vmem:[%s0 + $0x18] sm:$0xf]
  %v22 = vld [vmem:[%s0 + $0x1c] sm:$0xf]
  %v23 = vld [vmem:[%s0 + $0x20] sm:$0xf]
  %v24 = vld [vmem:[%s0 + $0x24] sm:$0xf]
  %v25 = vld [vmem:[%s0 + $0x28] sm:$0xf]
  %v26 = vld [vmem:[%s0 + $0x2c] sm:$0xf]
  %v27 = vld [vmem:[%s0 + $0x30] sm:$0xf]
  %v28 = vld [vmem:[%s0 + $0x34] sm:$0xf]
  %v29 = vld [vmem:[%s0 + $0x38] sm:$0xf]
  %v30 = vld [vmem:[%s0 + $0x3c] sm:$0xf]
  %v31 = vld [vmem:[%s1] sm:$0xf]
  %v32 = vld [vmem:[%s1 + $0x4] sm:$0xf]
  %v33 = vld [vmem:[%s1 + $0x8] sm:$0xf]
  %v34 = vld [vmem:[%s2] sm:$0x1]
  %v36 = vlaneseq
  %v37 = vshrl.u32 %v36, 7
  %v38 = vsub.s32 0, %v37
  %v39 = vrot.slane %v34, %v38
  %v57 = vunpack.c.l.b16 %v15
  %v58 = vunpack.c.l.b16 %v16
  %v59 = vunpack.c.l.b16 %v17
  %v60 = vunpack.c.l.b16 %v18
  %v61 = vunpack.c.l.b16 %v19
  %v62 = vunpack.c.l.b16 %v20
  %v63 = vunpack.c.l.b16 %v21
  %v64 = vunpack.c.l.b16 %v22
  %v65 = vunpack.c.l.b16 %v23
  %v66 = vunpack.c.l.b16 %v24
  %v67 = vunpack.c.l.b16 %v25
  %v68 = vunpack.c.l.b16 %v26
  %v69 = vunpack.c.l.b16 %v27
  %v70 = vunpack.c.l.b16 %v28
  %v71 = vunpack.c.l.b16 %v29
  %v72 = vunpack.c.l.b16 %v30
  %v73 = vpack.c.b16 %v58, %v57
  %v74 = vpack.c.b16 %v60, %v59
  %v75 = vpack.c.b16 %v62, %v61
  %v76 = vpack.c.b16 %v64, %v63
  %v77 = vpack.c.b16 %v66, %v65
  %v78 = vpack.c.b16 %v68, %v67
  %v79 = vpack.c.b16 %v70, %v69
  %v80 = vpack.c.b16 %v72, %v71
  %v84 = vunpack.c.l.b16 %v31
  %v85 = vunpack.c.l.b16 %v32
  %v86 = vunpack.c.l.b16 %v33
  %v87 = vpack.c.b16 %v85, %v84
  %v88 = vpack.c.b16 %v86, %v86
  %vm90 = vcmask 195584
  %v92 = vsel %vm90, %v73, 0
  %v95 = vsel %vm90, %v74, 0
  %v98 = vsel %vm90, %v75, 0
  %v101 = vsel %vm90, %v76, 0
  %v104 = vsel %vm90, %v77, 0
  %v107 = vsel %vm90, %v78, 0
  %v110 = vsel %vm90, %v79, 0
  %v113 = vsel %vm90, %v80, 0
  %vm115 = vcmask 1043456
  %v117 = vsel %vm115, %v88, 0
  %119 = vmatprep.subr.bf16.mxu0 0
  %120 = vmatpush1.bf16.msra.mxu0 0
  %121 = vmatprep.subr.bf16.mxu0 0
  %122 = vmatpush1.bf16.msra.mxu0 0
  %123 = vmatprep.subr.bf16.mxu0 0
  %124 = vmatpush1.bf16.msra.mxu0 0
  %125 = vmatprep.subr.bf16.mxu0 0
  %126 = vmatpush1.bf16.msra.mxu0 0
  %127 = vmatprep.subr.bf16.mxu0 0
  %128 = vmatpush1.bf16.msra.mxu0 0
  %129 = vmatprep.subr.bf16.mxu0 0
  %130 = vmatpush1.bf16.msra.mxu0 0
  %131 = vmatprep.subr.bf16.mxu0 0
  %132 = vmatpush1.bf16.msra.mxu0 %v117
  %133 = vmatprep.subr.bf16.mxu0 0
  %134 = vmatpush1.bf16.msra.mxu0 %v87
  %135 = vmatprep.subr.bf16.mxu0 0
  %136 = vmatpush2.bf16.msra.mxu0 0
  %137 = vmatprep.subr.bf16.mxu0 0
  %138 = vmatpush2.bf16.msra.mxu0 0
  %139 = vmatprep.subr.bf16.mxu0 0
  %140 = vmatpush2.bf16.msra.mxu0 0
  %141 = vmatprep.subr.bf16.mxu0 0
  %142 = vmatpush2.bf16.msra.mxu0 0
  %143 = vmatprep.subr.bf16.mxu0 0
  %144 = vmatpush2.bf16.msra.mxu0 0
  %145 = vmatprep.subr.bf16.mxu0 0
  %146 = vmatpush2.bf16.msra.mxu0 0
  %147 = vmatprep.subr.bf16.mxu0 0
  %148 = vmatpush2.bf16.msra.mxu0 0
  %149 = vmatprep.subr.bf16.mxu0 0
  %150 = vmatpush2.bf16.msra.mxu0 0
  %151 = vmatprep.mubr.bf16.mxu0 0
  %152 = vmatmul.mubr.bf16.gmra.mxu0 %v92
  %v153 = vpop.f32.mrf.mxu0
  %v154 = vadd.f32 %v39, %v153
  %v155 = vpop.f32.mrf.mxu0
  %v156 = vpop.f32.mrf.mxu0
  %v157 = vadd.f32 %v39, %v156
  %v158 = vpop.f32.mrf.mxu0
  %159 = vmatprep.mubr.bf16.mxu0 0
  %160 = vmatmul.mubr.bf16.gmra.mxu0 %v95
  %v161 = vpop.f32.mrf.mxu0
  %v162 = vadd.f32 %v39, %v161
  %v163 = vpop.f32.mrf.mxu0
  %v164 = vpop.f32.mrf.mxu0
  %v165 = vadd.f32 %v39, %v164
  %v166 = vpop.f32.mrf.mxu0
  %167 = vmatprep.mubr.bf16.mxu0 0
  %168 = vmatmul.mubr.bf16.gmra.mxu0 %v98
  %v169 = vpop.f32.mrf.mxu0
  %v170 = vadd.f32 %v39, %v169
  %v171 = vpop.f32.mrf.mxu0
  %v172 = vpop.f32.mrf.mxu0
  %v173 = vadd.f32 %v39, %v172
  %v174 = vpop.f32.mrf.mxu0
  %175 = vmatprep.mubr.bf16.mxu0 0
  %176 = vmatmul.mubr.bf16.gmra.mxu0 %v101
  %v177 = vpop.f32.mrf.mxu0
  %v178 = vadd.f32 %v39, %v177
  %v179 = vpop.f32.mrf.mxu0
  %v180 = vpop.f32.mrf.mxu0
  %v181 = vadd.f32 %v39, %v180
  %v182 = vpop.f32.mrf.mxu0
  %183 = vmatprep.mubr.bf16.mxu0 0
  %184 = vmatmul.mubr.bf16.gmra.mxu0 %v104
  %v185 = vpop.f32.mrf.mxu0
  %v186 = vadd.f32 %v39, %v185
  %v187 = vpop.f32.mrf.mxu0
  %v188 = vpop.f32.mrf.mxu0
  %v189 = vadd.f32 %v39, %v188
  %v190 = vpop.f32.mrf.mxu0
  %191 = vmatprep.mubr.bf16.mxu0 0
  %192 = vmatmul.mubr.bf16.gmra.mxu0 %v107
  %v193 = vpop.f32.mrf.mxu0
  %v194 = vadd.f32 %v39, %v193
  %v195 = vpop.f32.mrf.mxu0
  %v196 = vpop.f32.mrf.mxu0
  %v197 = vadd.f32 %v39, %v196
  %v198 = vpop.f32.mrf.mxu0
  %199 = vmatprep.mubr.bf16.mxu0 0
  %200 = vmatmul.mubr.bf16.gmra.mxu0 %v110
  %v201 = vpop.f32.mrf.mxu0
  %v202 = vadd.f32 %v39, %v201
  %v203 = vpop.f32.mrf.mxu0
  %v204 = vpop.f32.mrf.mxu0
  %v205 = vadd.f32 %v39, %v204
  %v206 = vpop.f32.mrf.mxu0
  %207 = vmatprep.mubr.bf16.mxu0 0
  %208 = vmatmul.mubr.bf16.gmra.mxu0 %v113
  %v209 = vpop.f32.mrf.mxu0
  %v210 = vadd.f32 %v39, %v209
  %v211 = vpop.f32.mrf.mxu0
  %v212 = vpop.f32.mrf.mxu0
  %v213 = vadd.f32 %v39, %v212
  %v214 = vpop.f32.mrf.mxu0
  %215 = vdwg.mxu0
  %v216 = vmax.f32 %v154, 0.0
  %v217 = vmax.f32 %v157, 0.0
  %v218 = vmax.f32 %v162, 0.0
  %v219 = vmax.f32 %v165, 0.0
  %v220 = vmax.f32 %v170, 0.0
  %v221 = vmax.f32 %v173, 0.0
  %v222 = vmax.f32 %v178, 0.0
  %v223 = vmax.f32 %v181, 0.0
  %v224 = vmax.f32 %v186, 0.0
  %v225 = vmax.f32 %v189, 0.0
  %v226 = vmax.f32 %v194, 0.0
  %v227 = vmax.f32 %v197, 0.0
  %v228 = vmax.f32 %v202, 0.0
  %v229 = vmax.f32 %v205, 0.0
  %v230 = vmax.f32 %v210, 0.0
  %v231 = vmax.f32 %v213, 0.0
  %vm232 = vcmask 392192
  %233 = vst.msk [vmem:[%s3] sm:$0xff] %vm232, %v216
  %234 = vst.msk [vmem:[%s3 + $0x8] sm:$0xff] %vm232, %v217
  %235 = vst.msk [vmem:[%s3 + $0x10] sm:$0xff] %vm232, %v218
  %236 = vst.msk [vmem:[%s3 + $0x18] sm:$0xff] %vm232, %v219
  %237 = vst.msk [vmem:[%s3 + $0x20] sm:$0xff] %vm232, %v220
  %238 = vst.msk [vmem:[%s3 + $0x28] sm:$0xff] %vm232, %v221
  %239 = vst.msk [vmem:[%s3 + $0x30] sm:$0xff] %vm232, %v222
  %240 = vst.msk [vmem:[%s3 + $0x38] sm:$0xff] %vm232, %v223
  %241 = vst.msk [vmem:[%s3 + $0x40] sm:$0xff] %vm232, %v224
  %242 = vst.msk [vmem:[%s3 + $0x48] sm:$0xff] %vm232, %v225
  %243 = vst.msk [vmem:[%s3 + $0x50] sm:$0xff] %vm232, %v226
  %244 = vst.msk [vmem:[%s3 + $0x58] sm:$0xff] %vm232, %v227
  %245 = vst.msk [vmem:[%s3 + $0x60] sm:$0xff] %vm232, %v228
  %246 = vst.msk [vmem:[%s3 + $0x68] sm:$0xff] %vm232, %v229
  %247 = vst.msk [vmem:[%s3 + $0x70] sm:$0xff] %vm232, %v230
  %248 = vst.msk [vmem:[%s3 + $0x78] sm:$0xff] %vm232, %v231
  // Predicated region
  $region14: #{deeplabv3_forward.23} parent=0 // pred_check
    _
  $region15: #{deeplabv3_forward.23} parent=0 // pred_check_branch
    %250 = sbr.rel (0) target = $region17
  $region16: #{deeplabv3_forward.23} parent=0 // pred_region
    _
  $region17: #{deeplabv3_forward.23} parent=0 // pred_fallthru
    _
  // Predicated region
  $region18: #{deeplabv3_forward.23} parent=0 // pred_check
    _
  $region19: #{deeplabv3_forward.23} parent=0 // pred_check_branch
    %252 = sbr.rel (0) target = $region21
  $region20: #{deeplabv3_forward.23} parent=0 // pred_region
    _
  $region21: #{deeplabv3_forward.23} parent=0 // pred_fallthru
    _

// kernel: deeplabv3_forward.21
$region0: #{deeplabv3_forward.21}
  #allocation0 [shape = 'u32[]', space=smem, size = 0x4, offset = 0x4, fixed_abs, tag = 'smem constant byte address 0x4 - core index']
  #allocation1 [shape = 'u32[144,128]{1,0:T(1,128)}', space=vmem, size = 0x12000, scoped, tag = 'internal scratch']
  %s0 = inlined_call_operand.vmem [shape: bf16[2,18,18,32], index: 0, kind: input, shape index: {}]
  %s1 = inlined_call_operand.vmem [shape: f32[9,1,1,32], index: 1, kind: input, shape index: {}]
  %s2 = inlined_call_operand.vmem [shape: f32[1,1,1,32], index: 2, kind: input, shape index: {}]
  %s3 = inlined_call_operand.vmem [shape: f32[2,16,16,32], index: 3, kind: output, shape index: {}]
  %s4 = sld [smem:[#allocation0]]
  $region45: #{deeplabv3_forward.21} parent=0
    _
  %s6 = ssub.s32 1, %s4
  %s7 = scalar_select 0, %s6, %s4
  loop: start=0, step=1, limit=4
  $region2: #{deeplabv3_forward.21} parent=0 // loop_pre_header
    _
  $region3: #{deeplabv3_forward.21} parent=0 // loop_header
    %s9 = sphi 0, %s13
    %p10 = scmp.ge.s32.totalorder %s9, 4
    %s19 = sphi 0, %s21
    %s22 = sphi 0, %s19
    %s23 = sphi 0, %s22
    %s39 = sphi 0, %s23
    %s43 = sphi 0, %s43
    %s45 = sphi 0, %s43
    %s46 = sphi 0, %s45
    %s60 = sphi 0, %s46
    %s64 = sphi 0, %s64
    %s66 = sphi 0, %s64
    %s67 = sphi 0, %s66
    %s81 = sphi 0, %s67
    %s87 = sphi 0, %s89
    %s90 = sphi 0, %s87
    %s91 = sphi 0, %s90
    %s107 = sphi 0, %s91
  $region4: #{deeplabv3_forward.21} parent=0 // loop_header_branch
    %12 = sbr.rel (%p10) target = $region8
  $region5: #{deeplabv3_forward.21} parent=0 // loop_body
    %s14 = ssub.s32 %s9, 1
    %s15 = ssub.s32 %s9, 2
    %s16 = sadd.s32 %s9, 1
    %s17 = ssub.s32 %s9, %s16
    %p18 = scmp.eq.s32.totalorder %s17, 0
    %s20 = sadd.s32 %s19, 1
    %s21 = scalar_select %p18, %s19, %s20
    %p24 = pneg %p18
    %p25 = scmp.eq.s32.totalorder %s9, 1
    %p26 = por %p24, %p25
    %p27 = scmp.ne.s32.totalorder %s19, %s22
    %p28 = scmp.eq.s32.totalorder %s9, 0
    %p29 = por %p27, %p28
    %p30 = scmp.ne.s32.totalorder %s19, %s22
    %p31 = scmp.eq.s32.totalorder %s14, 1
    %p32 = por %p30, %p31
    %p33 = scmp.ne.s32.totalorder %s22, %s23
    %p34 = scmp.eq.s32.totalorder %s14, 0
    %p35 = por %p33, %p34
    %p36 = scmp.ne.s32.totalorder %s22, %s23
    %p37 = scmp.eq.s32.totalorder %s15, 1
    %p38 = por %p36, %p37
    %p40 = scmp.ne.s32.totalorder %s23, %s39
    %p41 = scmp.eq.s32.totalorder %s15, 0
    %p42 = por %p40, %p41
    %s44 = sadd.s32 %s43, 1
    %p47 = scmp.eq.s32.totalorder %s9, 1
    %p48 = scmp.ne.s32.totalorder %s43, %s45
    %p49 = scmp.eq.s32.totalorder %s9, 0
    %p50 = por %p48, %p49
    %p51 = scmp.ne.s32.totalorder %s43, %s45
    %p52 = scmp.eq.s32.totalorder %s14, 1
    %p53 = por %p51, %p52
    %p54 = scmp.ne.s32.totalorder %s45, %s46
    %p55 = scmp.eq.s32.totalorder %s14, 0
    %p56 = por %p54, %p55
    %p57 = scmp.ne.s32.totalorder %s45, %s46
    %p58 = scmp.eq.s32.totalorder %s15, 1
    %p59 = por %p57, %p58
    %p61 = scmp.ne.s32.totalorder %s46, %s60
    %p62 = scmp.eq.s32.totalorder %s15, 0
    %p63 = por %p61, %p62
    %s65 = sadd.s32 %s64, 1
    %p68 = scmp.eq.s32.totalorder %s9, 1
    %p69 = scmp.ne.s32.totalorder %s64, %s66
    %p70 = scmp.eq.s32.totalorder %s9, 0
    %p71 = por %p69, %p70
    %p72 = scmp.ne.s32.totalorder %s64, %s66
    %p73 = scmp.eq.s32.totalorder %s14, 1
    %p74 = por %p72, %p73
    %p75 = scmp.ne.s32.totalorder %s66, %s67
    %p76 = scmp.eq.s32.totalorder %s14, 0
    %p77 = por %p75, %p76
    %p78 = scmp.ne.s32.totalorder %s66, %s67
    %p79 = scmp.eq.s32.totalorder %s15, 1
    %p80 = por %p78, %p79
    %p82 = scmp.ne.s32.totalorder %s67, %s81
    %p83 = scmp.eq.s32.totalorder %s15, 0
    %p84 = por %p82, %p83
    %s85 = ssub.s32 %s9, %s16
    %p86 = scmp.eq.s32.totalorder %s85, 0
    %s88 = sadd.s32 %s87, 1
    %s89 = scalar_select %p86, %s87, %s88
    %p92 = pneg %p86
    %p93 = scmp.eq.s32.totalorder %s9, 1
    %p94 = por %p92, %p93
    %p95 = scmp.ne.s32.totalorder %s87, %s90
    %p96 = scmp.eq.s32.totalorder %s9, 0
    %p97 = por %p95, %p96
    %p98 = scmp.ne.s32.totalorder %s87, %s90
    %p99 = scmp.eq.s32.totalorder %s14, 1
    %p100 = por %p98, %p99
    %p101 = scmp.ne.s32.totalorder %s90, %s91
    %p102 = scmp.eq.s32.totalorder %s14, 0
    %p103 = por %p101, %p102
    %p104 = scmp.ne.s32.totalorder %s90, %s91
    %p105 = scmp.eq.s32.totalorder %s15, 1
    %p106 = por %p104, %p105
    %p108 = scmp.ne.s32.totalorder %s91, %s107
    %p109 = scmp.eq.s32.totalorder %s15, 0
    %p110 = por %p108, %p109
    %p111 = scmp.le.s32.totalorder 1, %s9
    %p112 = scmp.lt.s32.totalorder %s9, 3
    %p113 = pnand %p111, %p112
    %p114 = pneg %p113
    // Predicated region
    $region9: #{deeplabv3_forward.21} parent=5 // pred_check
      _
    $region10: #{deeplabv3_forward.21} parent=5 // pred_check_branch
      %116 = sbr.rel (%p113) target = $region12
    $region11: #{deeplabv3_forward.21} parent=5 // pred_region
      %s117 = ssub.s32 %s9, 1
      // Predicated region
      $region13: #{deeplabv3_forward.21} parent=11 // pred_check
        %p118 = pneg %p56
      $region14: #{deeplabv3_forward.21} parent=11 // pred_check_branch
        %120 = sbr.rel (%p118) target = $region16
      $region15: #{deeplabv3_forward.21} parent=11 // pred_region
        _
      $region16: #{deeplabv3_forward.21} parent=11 // pred_fallthru
        _
      // Predicated region
      $region17: #{deeplabv3_forward.21} parent=11 // pred_check
        %p121 = pneg %p77
      $region18: #{deeplabv3_forward.21} parent=11 // pred_check_branch
        %123 = sbr.rel (%p121) target = $region20
      $region19: #{deeplabv3_forward.21} parent=11 // pred_region
        _
      $region20: #{deeplabv3_forward.21} parent=11 // pred_fallthru
        _
    $region12: #{deeplabv3_forward.21} parent=5 // pred_fallthru
      _
    %p124 = scmp.lt.s32.totalorder %s9, 2
    // Predicated region
    $region21: #{deeplabv3_forward.21} parent=5 // pred_check
      %p125 = pneg %p124
    $region22: #{deeplabv3_forward.21} parent=5 // pred_check_branch
      %127 = sbr.rel (%p125) target = $region24
    $region23: #{deeplabv3_forward.21} parent=5 // pred_region
      // Predicated region
      $region25: #{deeplabv3_forward.21} parent=23 // pred_check
        %p128 = pneg %p29
      $region26: #{deeplabv3_forward.21} parent=23 // pred_check_branch
        %130 = sbr.rel (%p128) target = $region28
      $region27: #{deeplabv3_forward.21} parent=23 // pred_region
        %p131 = scmp.lt.s32.totalorder %s9, 1
        %s132 = scalar_select %p131, %s9, 1
        %s133 = smul.addr %s132, 54
        %s134 = smul.addr %s133, 4
        %s135 = scalar_lea.vmem %s0, %s134
      $region28: #{deeplabv3_forward.21} parent=23 // pred_fallthru
        _
    $region24: #{deeplabv3_forward.21} parent=5 // pred_fallthru
      _
    %p136 = scmp.le.s32.totalorder 1, %s9
    %p137 = scmp.lt.s32.totalorder %s9, 3
    %p138 = pnand %p136, %p137
    %p139 = pneg %p138
    // Predicated region
    $region29: #{deeplabv3_forward.21} parent=5 // pred_check
      _
    $region30: #{deeplabv3_forward.21} parent=5 // pred_check_branch
      %141 = sbr.rel (%p138) target = $region32
    $region31: #{deeplabv3_forward.21} parent=5 // pred_region
      %s142 = ssub.s32 %s9, 1
      %p143 = scmp.lt.s32.totalorder %s14, 1
      %s144 = scalar_select %p143, %s14, 1
      %s145 = smul.addr %s144, 54
      %s146 = smul.addr %s145, 4
      %s147 = scalar_lea.vmem %s0, %s146
      %p148 = pneg %p35
      %p149 = pneg %p32
      %p150 = pneg %p56
      %p151 = pneg %p53
      %p152 = pneg %p77
      %p153 = pneg %p74
      %p154 = pneg %p103
      %p155 = pneg %p100
      %p156 = scmp.lt.s32.totalorder %s14, 1
      %s157 = scalar_select %p156, %s14, 1
      %s158 = smul.addr %s157, 32
      %s159 = smul.addr %s158, 8
      %s160 = scalar_lea.vmem %s3, %s159
      %p161 = scmp.lt.s32.totalorder %s14, 1
      %s162 = scalar_select %p161, %s14, 1
      %s163 = smul.addr %s162, 54
      %s164 = smul.addr %s163, 4
      %s165 = scalar_lea.vmem %s0, %s164
      %p166 = scmp.lt.s32.totalorder %s14, 1
      %s167 = scalar_select %p166, %s14, 1
      %s168 = smul.addr %s167, 32
      %s169 = smul.addr %s168, 8
      %s170 = scalar_lea.vmem %s3, %s169
      %v171 = vld [vmem:[%s165] sm:$0xf]
      %v172 = vld [vmem:[%s165 + $0x4] sm:$0xf]
      %v173 = vld [vmem:[%s165 + $0x8] sm:$0x1]
      %v174 = vld [vmem:[%s165 + $0xc] sm:$0xf]
      %v175 = vld [vmem:[%s165 + $0x10] sm:$0xf]
      %v176 = vld [vmem:[%s165 + $0x14] sm:$0x1]
      %v177 = vld [vmem:[%s165 + $0x18] sm:$0xf]
      %v178 = vld [vmem:[%s165 + $0x1c] sm:$0xf]
      %v179 = vld [vmem:[%s165 + $0x20] sm:$0x1]
      %v180 = vld [vmem:[%s165 + $0x24] sm:$0xf]
      %v181 = vld [vmem:[%s165 + $0x28] sm:$0xf]
      %v182 = vld [vmem:[%s165 + $0x2c] sm:$0x1]
      %v183 = vld [vmem:[%s165 + $0x30] sm:$0xf]
      %v184 = vld [vmem:[%s165 + $0x34] sm:$0xf]
      %v185 = vld [vmem:[%s165 + $0x38] sm:$0x1]
      %v186 = vld [vmem:[%s165 + $0x3c] sm:$0xf]
      %v187 = vld [vmem:[%s165 + $0x40] sm:$0xf]
      %v188 = vld [vmem:[%s165 + $0x44] sm:$0x1]
      %v189 = vld [vmem:[%s165 + $0x48] sm:$0xf]
      %v190 = vld [vmem:[%s165 + $0x4c] sm:$0xf]
      %v191 = vld [vmem:[%s165 + $0x50] sm:$0x1]
      %v192 = vld [vmem:[%s165 + $0x54] sm:$0xf]
      %v193 = vld [vmem:[%s165 + $0x58] sm:$0xf]
      %v194 = vld [vmem:[%s165 + $0x5c] sm:$0x1]
      %v195 = vld [vmem:[%s165 + $0x60] sm:$0xf]
      %v196 = vld [vmem:[%s165 + $0x64] sm:$0xf]
      %v197 = vld [vmem:[%s165 + $0x68] sm:$0x1]
      %v198 = vld [vmem:[%s165 + $0x6c] sm:$0xf]
      %v199 = vld [vmem:[%s165 + $0x70] sm:$0xf]
      %v200 = vld [vmem:[%s165 + $0x74] sm:$0x1]
      %v201 = vld [vmem:[%s165 + $0x78] sm:$0xf]
      %v202 = vld [vmem:[%s165 + $0x7c] sm:$0xf]
      %v203 = vld [vmem:[%s165 + $0x80] sm:$0x1]
      %v204 = vld [vmem:[%s165 + $0x84] sm:$0xf]
      %v205 = vld [vmem:[%s165 + $0x88] sm:$0xf]
      %v206 = vld [vmem:[%s165 + $0x8c] sm:$0x1]
      %v207 = vld [vmem:[%s165 + $0x90] sm:$0xf]
      %v208 = vld [vmem:[%s165 + $0x94] sm:$0xf]
      %v209 = vld [vmem:[%s165 + $0x98] sm:$0x1]
      %v210 = vld [vmem:[%s165 + $0x9c] sm:$0xf]
      %v211 = vld [vmem:[%s165 + $0xa0] sm:$0xf]
      %v212 = vld [vmem:[%s165 + $0xa4] sm:$0x1]
      %v213 = vld [vmem:[%s165 + $0xa8] sm:$0xf]
      %v214 = vld [vmem:[%s165 + $0xac] sm:$0xf]
      %v215 = vld [vmem:[%s165 + $0xb0] sm:$0x1]
      %v216 = vld [vmem:[%s165 + $0xb4] sm:$0xf]
      %v217 = vld [vmem:[%s165 + $0xb8] sm:$0xf]
      %v218 = vld [vmem:[%s165 + $0xbc] sm:$0x1]
      %v219 = vld [vmem:[%s165 + $0xc0] sm:$0xf]
      %v220 = vld [vmem:[%s165 + $0xc4] sm:$0xf]
      %v221 = vld [vmem:[%s165 + $0xc8] sm:$0x1]
      %v222 = vld [vmem:[%s165 + $0xcc] sm:$0xf]
      %v223 = vld [vmem:[%s165 + $0xd0] sm:$0xf]
      %v224 = vld [vmem:[%s165 + $0xd4] sm:$0x1]
      %v225 = vunpack.c.l.bf16 %v171
      %v226 = vunpack.c.l.bf16 %v172
      %v227 = vunpack.c.l.bf16 %v173
      %v228 = vunpack.c.l.bf16 %v174
      %v229 = vunpack.c.l.bf16 %v175
      %v230 = vunpack.c.l.bf16 %v176
      %v231 = vunpack.c.l.bf16 %v177
      %v232 = vunpack.c.l.bf16 %v178
      %v233 = vunpack.c.l.bf16 %v179
      %v234 = vunpack.c.l.bf16 %v180
      %v235 = vunpack.c.l.bf16 %v181
      %v236 = vunpack.c.l.bf16 %v182
      %v237 = vunpack.c.l.bf16 %v183
      %v238 = vunpack.c.l.bf16 %v184
      %v239 = vunpack.c.l.bf16 %v185
      %v240 = vunpack.c.l.bf16 %v186
      %v241 = vunpack.c.l.bf16 %v187
      %v242 = vunpack.c.l.bf16 %v188
      %v243 = vunpack.c.l.bf16 %v189
      %v244 = vunpack.c.l.bf16 %v190
      %v245 = vunpack.c.l.bf16 %v191
      %v246 = vunpack.c.l.bf16 %v192
      %v247 = vunpack.c.l.bf16 %v193
      %v248 = vunpack.c.l.bf16 %v194
      %v249 = vunpack.c.l.bf16 %v195
      %v250 = vunpack.c.l.bf16 %v196
      %v251 = vunpack.c.l.bf16 %v197
      %v252 = vunpack.c.l.bf16 %v198
      %v253 = vunpack.c.l.bf16 %v199
      %v254 = vunpack.c.l.bf16 %v200
      %v255 = vunpack.c.l.bf16 %v201
      %v256 = vunpack.c.l.bf16 %v202
      %v257 = vunpack.c.l.bf16 %v203
      %v258 = vunpack.c.l.bf16 %v204
      %v259 = vunpack.c.l.bf16 %v205
      %v260 = vunpack.c.l.bf16 %v206
      %v261 = vunpack.c.l.bf16 %v207
      %v262 = vunpack.c.l.bf16 %v208
      %v263 = vunpack.c.l.bf16 %v209
      %v264 = vunpack.c.l.bf16 %v210
      %v265 = vunpack.c.l.bf16 %v211
      %v266 = vunpack.c.l.bf16 %v212
      %v267 = vunpack.c.l.bf16 %v213
      %v268 = vunpack.c.l.bf16 %v214
      %v269 = vunpack.c.l.bf16 %v215
      %v270 = vunpack.c.l.bf16 %v216
      %v271 = vunpack.c.l.bf16 %v217
      %v272 = vunpack.c.l.bf16 %v218
      %v273 = vunpack.c.l.bf16 %v219
      %v274 = vunpack.c.l.bf16 %v220
      %v275 = vunpack.c.l.bf16 %v221
      %v276 = vunpack.c.l.bf16 %v222
      %v277 = vunpack.c.l.bf16 %v223
      %v278 = vunpack.c.l.bf16 %v224
      %v279 = vld [vmem:[%s1] sm:$0x1]
      %v280 = vld [vmem:[%s1 + $0x1] sm:$0x1]
      %v281 = vld [vmem:[%s1 + $0x2] sm:$0x1]
      %v282 = vld [vmem:[%s1 + $0x3] sm:$0x1]
      %v283 = vld [vmem:[%s1 + $0x4] sm:$0x1]
      %v284 = vld [vmem:[%s1 + $0x5] sm:$0x1]
      %v285 = vld [vmem:[%s1 + $0x6] sm:$0x1]
      %v286 = vld [vmem:[%s1 + $0x7] sm:$0x1]
      %v287 = vld [vmem:[%s1 + $0x8] sm:$0x1]
      %v289 = vlaneseq
      %v290 = vshrl.u32 %v289, 7
      %v291 = vsub.s32 0, %v290
      %v292 = vrot.slane %v279, %v291
      %v294 = vmul.f32 %v225, %v292
      %v295 = vmul.f32 %v226, %v292
      %v296 = vmul.f32 %v228, %v292
      %v297 = vmul.f32 %v229, %v292
      %v298 = vmul.f32 %v231, %v292
      %v299 = vmul.f32 %v232, %v292
      %v300 = vmul.f32 %v234, %v292
      %v301 = vmul.f32 %v235, %v292
      %v302 = vmul.f32 %v237, %v292
      %v303 = vmul.f32 %v238, %v292
      %v304 = vmul.f32 %v240, %v292
      %v305 = vmul.f32 %v241, %v292
      %v306 = vmul.f32 %v243, %v292
      %v307 = vmul.f32 %v244, %v292
      %v308 = vmul.f32 %v246, %v292
      %v309 = vmul.f32 %v247, %v292
      %v310 = vmul.f32 %v249, %v292
      %v311 = vmul.f32 %v250, %v292
      %v312 = vmul.f32 %v252, %v292
      %v313 = vmul.f32 %v253, %v292
      %v314 = vmul.f32 %v255, %v292
      %v315 = vmul.f32 %v256, %v292
      %v316 = vmul.f32 %v258, %v292
      %v317 = vmul.f32 %v259, %v292
      %v318 = vmul.f32 %v261, %v292
      %v319 = vmul.f32 %v262, %v292
      %v320 = vmul.f32 %v264, %v292
      %v321 = vmul.f32 %v265, %v292
      %v322 = vmul.f32 %v267, %v292
      %v323 = vmul.f32 %v268, %v292
      %v324 = vmul.f32 %v270, %v292
      %v325 = vmul.f32 %v271, %v292
      %v327 = vlaneseq
      %v328 = vshrl.u32 %v327, 7
      %v329 = vsub.s32 0, %v328
      %v330 = vrot.slane %v280, %v329
      %v332 = vmul.f32 %v225, %v330
      %v333 = vmul.f32 %v226, %v330
      %v334 = vmul.f32 %v227, %v330
      %v335 = vmul.f32 %v228, %v330
      %v336 = vmul.f32 %v229, %v330
      %v337 = vmul.f32 %v230, %v330
      %v338 = vmul.f32 %v231, %v330
      %v339 = vmul.f32 %v232, %v330
      %v340 = vmul.f32 %v233, %v330
      %v341 = vmul.f32 %v234, %v330
      %v342 = vmul.f32 %v235, %v330
      %v343 = vmul.f32 %v236, %v330
      %v344 = vmul.f32 %v237, %v330
      %v345 = vmul.f32 %v238, %v330
      %v346 = vmul.f32 %v239, %v330
      %v347 = vmul.f32 %v240, %v330
      %v348 = vmul.f32 %v241, %v330
      %v349 = vmul.f32 %v242, %v330
      %v350 = vmul.f32 %v243, %v330
      %v351 = vmul.f32 %v244, %v330
      %v352 = vmul.f32 %v245, %v330
      %v353 = vmul.f32 %v246, %v330
      %v354 = vmul.f32 %v247, %v330
      %v355 = vmul.f32 %v248, %v330
      %v356 = vmul.f32 %v249, %v330
      %v357 = vmul.f32 %v250, %v330
      %v358 = vmul.f32 %v251, %v330
      %v359 = vmul.f32 %v252, %v330
      %v360 = vmul.f32 %v253, %v330
      %v361 = vmul.f32 %v254, %v330
      %v362 = vmul.f32 %v255, %v330
      %v363 = vmul.f32 %v256, %v330
      %v364 = vmul.f32 %v257, %v330
      %v365 = vmul.f32 %v258, %v330
      %v366 = vmul.f32 %v259, %v330
      %v367 = vmul.f32 %v260, %v330
      %v368 = vmul.f32 %v261, %v330
      %v369 = vmul.f32 %v262, %v330
      %v370 = vmul.f32 %v263, %v330
      %v371 = vmul.f32 %v264, %v330
      %v372 = vmul.f32 %v265, %v330
      %v373 = vmul.f32 %v266, %v330
      %v374 = vmul.f32 %v267, %v330
      %v375 = vmul.f32 %v268, %v330
      %v376 = vmul.f32 %v269, %v330
      %v377 = vmul.f32 %v270, %v330
      %v378 = vmul.f32 %v271, %v330
      %v379 = vmul.f32 %v272, %v330
      %vm428 = vcmask 1046528
      %v429 = vrot.slane %v332, 1
      %v430 = vrot.slane %v333, 1
      %v431 = vsel %vm428, %v429, %v430
      %v432 = vrot.slane %v334, 1
      %v433 = vsel %vm428, %v430, %v432
      %v434 = vrot.slane %v335, 1
      %v435 = vrot.slane %v336, 1
      %v436 = vsel %vm428, %v434, %v435
      %v437 = vrot.slane %v337, 1
      %v438 = vsel %vm428, %v435, %v437
      %v439 = vrot.slane %v338, 1
      %v440 = vrot.slane %v339, 1
      %v441 = vsel %vm428, %v439, %v440
      %v442 = vrot.slane %v340, 1
      %v443 = vsel %vm428, %v440, %v442
      %v444 = vrot.slane %v341, 1
      %v445 = vrot.slane %v342, 1
      %v446 = vsel %vm428, %v444, %v445
      %v447 = vrot.slane %v343, 1
      %v448 = vsel %vm428, %v445, %v447
      %v449 = vrot.slane %v344, 1
      %v450 = vrot.slane %v345, 1
      %v451 = vsel %vm428, %v449, %v450
      %v452 = vrot.slane %v346, 1
      %v453 = vsel %vm428, %v450, %v452
      %v454 = vrot.slane %v347, 1
      %v455 = vrot.slane %v348, 1
      %v456 = vsel %vm428, %v454, %v455
      %v457 = vrot.slane %v349, 1
      %v458 = vsel %vm428, %v455, %v457
      %v459 = vrot.slane %v350, 1
      %v460 = vrot.slane %v351, 1
      %v461 = vsel %vm428, %v459, %v460
      %v462 = vrot.slane %v352, 1
      %v463 = vsel %vm428, %v460, %v462
      %v464 = vrot.slane %v353, 1
      %v465 = vrot.slane %v354, 1
      %v466 = vsel %vm428, %v464, %v465
      %v467 = vrot.slane %v355, 1
      %v468 = vsel %vm428, %v465, %v467
      %v469 = vrot.slane %v356, 1
      %v470 = vrot.slane %v357, 1
      %v471 = vsel %vm428, %v469, %v470
      %v472 = vrot.slane %v358, 1
      %v473 = vsel %vm428, %v470, %v472
      %v474 = vrot.slane %v359, 1
      %v475 = vrot.slane %v360, 1
      %v476 = vsel %vm428, %v474, %v475
      %v477 = vrot.slane %v361, 1
      %v478 = vsel %vm428, %v475, %v477
      %v479 = vrot.slane %v362, 1
      %v480 = vrot.slane %v363, 1
      %v481 = vsel %vm428, %v479, %v480
      %v482 = vrot.slane %v364, 1
      %v483 = vsel %vm428, %v480, %v482
      %v484 = vrot.slane %v365, 1
      %v485 = vrot.slane %v366, 1
      %v486 = vsel %vm428, %v484, %v485
      %v487 = vrot.slane %v367, 1
      %v488 = vsel %vm428, %v485, %v487
      %v489 = vrot.slane %v368, 1
      %v490 = vrot.slane %v369, 1
      %v491 = vsel %vm428, %v489, %v490
      %v492 = vrot.slane %v370, 1
      %v493 = vsel %vm428, %v490, %v492
      %v494 = vrot.slane %v371, 1
      %v495 = vrot.slane %v372, 1
      %v496 = vsel %vm428, %v494, %v495
      %v497 = vrot.slane %v373, 1
      %v498 = vsel %vm428, %v495, %v497
      %v499 = vrot.slane %v374, 1
      %v500 = vrot.slane %v375, 1
      %v501 = vsel %vm428, %v499, %v500
      %v502 = vrot.slane %v376, 1
      %v503 = vsel %vm428, %v500, %v502
      %v504 = vrot.slane %v377, 1
      %v505 = vrot.slane %v378, 1
      %v506 = vsel %vm428, %v504, %v505
      %v507 = vrot.slane %v379, 1
      %v508 = vsel %vm428, %v505, %v507
      %v541 = vadd.f32 %v294, %v431
      %v542 = vadd.f32 %v295, %v433
      %v543 = vadd.f32 %v296, %v436
      %v544 = vadd.f32 %v297, %v438
      %v545 = vadd.f32 %v298, %v441
      %v546 = vadd.f32 %v299, %v443
      %v547 = vadd.f32 %v300, %v446
      %v548 = vadd.f32 %v301, %v448
      %v549 = vadd.f32 %v302, %v451
      %v550 = vadd.f32 %v303, %v453
      %v551 = vadd.f32 %v304, %v456
      %v552 = vadd.f32 %v305, %v458
      %v553 = vadd.f32 %v306, %v461
      %v554 = vadd.f32 %v307, %v463
      %v555 = vadd.f32 %v308, %v466
      %v556 = vadd.f32 %v309, %v468
      %v557 = vadd.f32 %v310, %v471
      %v558 = vadd.f32 %v311, %v473
      %v559 = vadd.f32 %v312, %v476
      %v560 = vadd.f32 %v313, %v478
      %v561 = vadd.f32 %v314, %v481
      %v562 = vadd.f32 %v315, %v483
      %v563 = vadd.f32 %v316, %v486
      %v564 = vadd.f32 %v317, %v488
      %v565 = vadd.f32 %v318, %v491
      %v566 = vadd.f32 %v319, %v493
      %v567 = vadd.f32 %v320, %v496
      %v568 = vadd.f32 %v321, %v498
      %v569 = vadd.f32 %v322, %v501
      %v570 = vadd.f32 %v323, %v503
      %v571 = vadd.f32 %v324, %v506
      %v572 = vadd.f32 %v325, %v508
      %v574 = vlaneseq
      %v575 = vshrl.u32 %v574, 7
      %v576 = vsub.s32 0, %v575
      %v577 = vrot.slane %v281, %v576
      %v579 = vmul.f32 %v225, %v577
      %v580 = vmul.f32 %v226, %v577
      %v581 = vmul.f32 %v227, %v577
      %v582 = vmul.f32 %v228, %v577
      %v583 = vmul.f32 %v229, %v577
      %v584 = vmul.f32 %v230, %v577
      %v585 = vmul.f32 %v231, %v577
      %v586 = vmul.f32 %v232, %v577
      %v587 = vmul.f32 %v233, %v577
      %v588 = vmul.f32 %v234, %v577
      %v589 = vmul.f32 %v235, %v577
      %v590 = vmul.f32 %v236, %v577
      %v591 = vmul.f32 %v237, %v577
      %v592 = vmul.f32 %v238, %v577
      %v593 = vmul.f32 %v239, %v577
      %v594 = vmul.f32 %v240, %v577
      %v595 = vmul.f32 %v241, %v577
      %v596 = vmul.f32 %v242, %v577
      %v597 = vmul.f32 %v243, %v577
      %v598 = vmul.f32 %v244, %v577
      %v599 = vmul.f32 %v245, %v577
      %v600 = vmul.f32 %v246, %v577
      %v601 = vmul.f32 %v247, %v577
      %v602 = vmul.f32 %v248, %v577
      %v603 = vmul.f32 %v249, %v577
      %v604 = vmul.f32 %v250, %v577
      %v605 = vmul.f32 %v251, %v577
      %v606 = vmul.f32 %v252, %v577
      %v607 = vmul.f32 %v253, %v577
      %v608 = vmul.f32 %v254, %v577
      %v609 = vmul.f32 %v255, %v577
      %v610 = vmul.f32 %v256, %v577
      %v611 = vmul.f32 %v257, %v577
      %v612 = vmul.f32 %v258, %v577
      %v613 = vmul.f32 %v259, %v577
      %v614 = vmul.f32 %v260, %v577
      %v615 = vmul.f32 %v261, %v577
      %v616 = vmul.f32 %v262, %v577
      %v617 = vmul.f32 %v263, %v577
      %v618 = vmul.f32 %v264, %v577
      %v619 = vmul.f32 %v265, %v577
      %v620 = vmul.f32 %v266, %v577
      %v621 = vmul.f32 %v267, %v577
      %v622 = vmul.f32 %v268, %v577
      %v623 = vmul.f32 %v269, %v577
      %v624 = vmul.f32 %v270, %v577
      %v625 = vmul.f32 %v271, %v577
      %v626 = vmul.f32 %v272, %v577
      %vm675 = vcmask 1045504
      %v676 = vrot.slane %v579, 2
      %v677 = vrot.slane %v580, 2
      %v678 = vsel %vm675, %v676, %v677
      %v679 = vrot.slane %v581, 2
      %v680 = vsel %vm675, %v677, %v679
      %v681 = vrot.slane %v582, 2
      %v682 = vrot.slane %v583, 2
      %v683 = vsel %vm675, %v681, %v682
      %v684 = vrot.slane %v584, 2
      %v685 = vsel %vm675, %v682, %v684
      %v686 = vrot.slane %v585, 2
      %v687 = vrot.slane %v586, 2
      %v688 = vsel %vm675, %v686, %v687
      %v689 = vrot.slane %v587, 2
      %v690 = vsel %vm675, %v687, %v689
      %v691 = vrot.slane %v588, 2
      %v692 = vrot.slane %v589, 2
      %v693 = vsel %vm675, %v691, %v692
      %v694 = vrot.slane %v590, 2
      %v695 = vsel %vm675, %v692, %v694
      %v696 = vrot.slane %v591, 2
      %v697 = vrot.slane %v592, 2
      %v698 = vsel %vm675, %v696, %v697
      %v699 = vrot.slane %v593, 2
      %v700 = vsel %vm675, %v697, %v699
      %v701 = vrot.slane %v594, 2
      %v702 = vrot.slane %v595, 2
      %v703 = vsel %vm675, %v701, %v702
      %v704 = vrot.slane %v596, 2
      %v705 = vsel %vm675, %v702, %v704
      %v706 = vrot.slane %v597, 2
      %v707 = vrot.slane %v598, 2
      %v708 = vsel %vm675, %v706, %v707
      %v709 = vrot.slane %v599, 2
      %v710 = vsel %vm675, %v707, %v709
      %v711 = vrot.slane %v600, 2
      %v712 = vrot.slane %v601, 2
      %v713 = vsel %vm675, %v711, %v712
      %v714 = vrot.slane %v602, 2
      %v715 = vsel %vm675, %v712, %v714
      %v716 = vrot.slane %v603, 2
      %v717 = vrot.slane %v604, 2
      %v718 = vsel %vm675, %v716, %v717
      %v719 = vrot.slane %v605, 2
      %v720 = vsel %vm675, %v717, %v719
      %v721 = vrot.slane %v606, 2
      %v722 = vrot.slane %v607, 2
      %v723 = vsel %vm675, %v721, %v722
      %v724 = vrot.slane %v608, 2
      %v725 = vsel %vm675, %v722, %v724
      %v726 = vrot.slane %v609, 2
      %v727 = vrot.slane %v610, 2
      %v728 = vsel %vm675, %v726, %v727
      %v729 = vrot.slane %v611, 2
      %v730 = vsel %vm675, %v727, %v729
      %v731 = vrot.slane %v612, 2
      %v732 = vrot.slane %v613, 2
      %v733 = vsel %vm675, %v731, %v732
      %v734 = vrot.slane %v614, 2
      %v735 = vsel %vm675, %v732, %v734
      %v736 = vrot.slane %v615, 2
      %v737 = vrot.slane %v616, 2
      %v738 = vsel %vm675, %v736, %v737
      %v739 = vrot.slane %v617, 2
      %v740 = vsel %vm675, %v737, %v739
      %v741 = vrot.slane %v618, 2
      %v742 = vrot.slane %v619, 2
      %v743 = vsel %vm675, %v741, %v742
      %v744 = vrot.slane %v620, 2
      %v745 = vsel %vm675, %v742, %v744
      %v746 = vrot.slane %v621, 2
      %v747 = vrot.slane %v622, 2
      %v748 = vsel %vm675, %v746, %v747
      %v749 = vrot.slane %v623, 2
      %v750 = vsel %vm675, %v747, %v749
      %v751 = vrot.slane %v624, 2
      %v752 = vrot.slane %v625, 2
      %v753 = vsel %vm675, %v751, %v752
      %v754 = vrot.slane %v626, 2
      %v755 = vsel %vm675, %v752, %v754
      %v788 = vadd.f32 %v541, %v678
      %v789 = vadd.f32 %v542, %v680
      %v790 = vadd.f32 %v543, %v683
      %v791 = vadd.f32 %v544, %v685
      %v792 = vadd.f32 %v545, %v688
      %v793 = vadd.f32 %v546, %v690
      %v794 = vadd.f32 %v547, %v693
      %v795 = vadd.f32 %v548, %v695
      %v796 = vadd.f32 %v549, %v698
      %v797 = vadd.f32 %v550, %v700
      %v798 = vadd.f32 %v551, %v703
      %v799 = vadd.f32 %v552, %v705
      %v800 = vadd.f32 %v553, %v708
      %v801 = vadd.f32 %v554, %v710
      %v802 = vadd.f32 %v555, %v713
      %v803 = vadd.f32 %v556, %v715
      %v804 = vadd.f32 %v557, %v718
      %v805 = vadd.f32 %v558, %v720
      %v806 = vadd.f32 %v559, %v723
      %v807 = vadd.f32 %v560, %v725
      %v808 = vadd.f32 %v561, %v728
      %v809 = vadd.f32 %v562, %v730
      %v810 = vadd.f32 %v563, %v733
      %v811 = vadd.f32 %v564, %v735
      %v812 = vadd.f32 %v565, %v738
      %v813 = vadd.f32 %v566, %v740
      %v814 = vadd.f32 %v567, %v743
      %v815 = vadd.f32 %v568, %v745
      %v816 = vadd.f32 %v569, %v748
      %v817 = vadd.f32 %v570, %v750
      %v818 = vadd.f32 %v571, %v753
      %v819 = vadd.f32 %v572, %v755
      %v821 = vlaneseq
      %v822 = vshrl.u32 %v821, 7
      %v823 = vsub.s32 0, %v822
      %v824 = vrot.slane %v282, %v823
      %v826 = vmul.f32 %v228, %v824
      %v827 = vmul.f32 %v229, %v824
      %v828 = vmul.f32 %v231, %v824
      %v829 = vmul.f32 %v232, %v824
      %v830 = vmul.f32 %v234, %v824
      %v831 = vmul.f32 %v235, %v824
      %v832 = vmul.f32 %v237, %v824
      %v833 = vmul.f32 %v238, %v824
      %v834 = vmul.f32 %v240, %v824
      %v835 = vmul.f32 %v241, %v824
      %v836 = vmul.f32 %v243, %v824
      %v837 = vmul.f32 %v244, %v824
      %v838 = vmul.f32 %v246, %v824
      %v839 = vmul.f32 %v247, %v824
      %v840 = vmul.f32 %v249, %v824
      %v841 = vmul.f32 %v250, %v824
      %v842 = vmul.f32 %v252, %v824
      %v843 = vmul.f32 %v253, %v824
      %v844 = vmul.f32 %v255, %v824
      %v845 = vmul.f32 %v256, %v824
      %v846 = vmul.f32 %v258, %v824
      %v847 = vmul.f32 %v259, %v824
      %v848 = vmul.f32 %v261, %v824
      %v849 = vmul.f32 %v262, %v824
      %v850 = vmul.f32 %v264, %v824
      %v851 = vmul.f32 %v265, %v824
      %v852 = vmul.f32 %v267, %v824
      %v853 = vmul.f32 %v268, %v824
      %v854 = vmul.f32 %v270, %v824
      %v855 = vmul.f32 %v271, %v824
      %v856 = vmul.f32 %v273, %v824
      %v857 = vmul.f32 %v274, %v824
      %v858 = vadd.f32 %v788, %v826
      %v859 = vadd.f32 %v789, %v827
      %v860 = vadd.f32 %v790, %v828
      %v861 = vadd.f32 %v791, %v829
      %v862 = vadd.f32 %v792, %v830
      %v863 = vadd.f32 %v793, %v831
      %v864 = vadd.f32 %v794, %v832
      %v865 = vadd.f32 %v795, %v833
      %v866 = vadd.f32 %v796, %v834
      %v867 = vadd.f32 %v797, %v835
      %v868 = vadd.f32 %v798, %v836
      %v869 = vadd.f32 %v799, %v837
      %v870 = vadd.f32 %v800, %v838
      %v871 = vadd.f32 %v801, %v839
      %v872 = vadd.f32 %v802, %v840
      %v873 = vadd.f32 %v803, %v841
      %v874 = vadd.f32 %v804, %v842
      %v875 = vadd.f32 %v805, %v843
      %v876 = vadd.f32 %v806, %v844
      %v877 = vadd.f32 %v807, %v845
      %v878 = vadd.f32 %v808, %v846
      %v879 = vadd.f32 %v809, %v847
      %v880 = vadd.f32 %v810, %v848
      %v881 = vadd.f32 %v811, %v849
      %v882 = vadd.f32 %v812, %v850
      %v883 = vadd.f32 %v813, %v851
      %v884 = vadd.f32 %v814, %v852
      %v885 = vadd.f32 %v815, %v853
      %v886 = vadd.f32 %v816, %v854
      %v887 = vadd.f32 %v817, %v855
      %v888 = vadd.f32 %v818, %v856
      %v889 = vadd.f32 %v819, %v857
      %v891 = vlaneseq
      %v892 = vshrl.u32 %v891, 7
      %v893 = vsub.s32 0, %v892
      %v894 = vrot.slane %v283, %v893
      %v896 = vmul.f32 %v228, %v894
      %v897 = vmul.f32 %v229, %v894
      %v898 = vmul.f32 %v230, %v894
      %v899 = vmul.f32 %v231, %v894
      %v900 = vmul.f32 %v232, %v894
      %v901 = vmul.f32 %v233, %v894
      %v902 = vmul.f32 %v234, %v894
      %v903 = vmul.f32 %v235, %v894
      %v904 = vmul.f32 %v236, %v894
      %v905 = vmul.f32 %v237, %v894
      %v906 = vmul.f32 %v238, %v894
      %v907 = vmul.f32 %v239, %v894
      %v908 = vmul.f32 %v240, %v894
      %v909 = vmul.f32 %v241, %v894
      %v910 = vmul.f32 %v242, %v894
      %v911 = vmul.f32 %v243, %v894
      %v912 = vmul.f32 %v244, %v894
      %v913 = vmul.f32 %v245, %v894
      %v914 = vmul.f32 %v246, %v894
      %v915 = vmul.f32 %v247, %v894
      %v916 = vmul.f32 %v248, %v894
      %v917 = vmul.f32 %v249, %v894
      %v918 = vmul.f32 %v250, %v894
      %v919 = vmul.f32 %v251, %v894
      %v920 = vmul.f32 %v252, %v894
      %v921 = vmul.f32 %v253, %v894
      %v922 = vmul.f32 %v254, %v894
      %v923 = vmul.f32 %v255, %v894
      %v924 = vmul.f32 %v256, %v894
      %v925 = vmul.f32 %v257, %v894
      %v926 = vmul.f32 %v258, %v894
      %v927 = vmul.f32 %v259, %v894
      %v928 = vmul.f32 %v260, %v894
      %v929 = vmul.f32 %v261, %v894
      %v930 = vmul.f32 %v262, %v894
      %v931 = vmul.f32 %v263, %v894
      %v932 = vmul.f32 %v264, %v894
      %v933 = vmul.f32 %v265, %v894
      %v934 = vmul.f32 %v266, %v894
      %v935 = vmul.f32 %v267, %v894
      %v936 = vmul.f32 %v268, %v894
      %v937 = vmul.f32 %v269, %v894
      %v938 = vmul.f32 %v270, %v894
      %v939 = vmul.f32 %v271, %v894
      %v940 = vmul.f32 %v272, %v894
      %v941 = vmul.f32 %v273, %v894
      %v942 = vmul.f32 %v274, %v894
      %v943 = vmul.f32 %v275, %v894
      %v992 = vrot.slane %v896, 1
      %v993 = vrot.slane %v897, 1
      %v994 = vsel %vm428, %v992, %v993
      %v995 = vrot.slane %v898, 1
      %v996 = vsel %vm428, %v993, %v995
      %v997 = vrot.slane %v899, 1
      %v998 = vrot.slane %v900, 1
      %v999 = vsel %vm428, %v997, %v998
      %v1000 = vrot.slane %v901, 1
      %v1001 = vsel %vm428, %v998, %v1000
      %v1002 = vrot.slane %v902, 1
      %v1003 = vrot.slane %v903, 1
      %v1004 = vsel %vm428, %v1002, %v1003
      %v1005 = vrot.slane %v904, 1
      %v1006 = vsel %vm428, %v1003, %v1005
      %v1007 = vrot.slane %v905, 1
      %v1008 = vrot.slane %v906, 1
      %v1009 = vsel %vm428, %v1007, %v1008
      %v1010 = vrot.slane %v907, 1
      %v1011 = vsel %vm428, %v1008, %v1010
      %v1012 = vrot.slane %v908, 1
      %v1013 = vrot.slane %v909, 1
      %v1014 = vsel %vm428, %v1012, %v1013
      %v1015 = vrot.slane %v910, 1
      %v1016 = vsel %vm428, %v1013, %v1015
      %v1017 = vrot.slane %v911, 1
      %v1018 = vrot.slane %v912, 1
      %v1019 = vsel %vm428, %v1017, %v1018
      %v1020 = vrot.slane %v913, 1
      %v1021 = vsel %vm428, %v1018, %v1020
      %v1022 = vrot.slane %v914, 1
      %v1023 = vrot.slane %v915, 1
      %v1024 = vsel %vm428, %v1022, %v1023
      %v1025 = vrot.slane %v916, 1
      %v1026 = vsel %vm428, %v1023, %v1025
      %v1027 = vrot.slane %v917, 1
      %v1028 = vrot.slane %v918, 1
      %v1029 = vsel %vm428, %v1027, %v1028
      %v1030 = vrot.slane %v919, 1
      %v1031 = vsel %vm428, %v1028, %v1030
      %v1032 = vrot.slane %v920, 1
      %v1033 = vrot.slane %v921, 1
      %v1034 = vsel %vm428, %v1032, %v1033
      %v1035 = vrot.slane %v922, 1
      %v1036 = vsel %vm428, %v1033, %v1035
      %v1037 = vrot.slane %v923, 1
      %v1038 = vrot.slane %v924, 1
      %v1039 = vsel %vm428, %v1037, %v1038
      %v1040 = vrot.slane %v925, 1
      %v1041 = vsel %vm428, %v1038, %v1040
      %v1042 = vrot.slane %v926, 1
      %v1043 = vrot.slane %v927, 1
      %v1044 = vsel %vm428, %v1042, %v1043
      %v1045 = vrot.slane %v928, 1
      %v1046 = vsel %vm428, %v1043, %v1045
      %v1047 = vrot.slane %v929, 1
      %v1048 = vrot.slane %v930, 1
      %v1049 = vsel %vm428, %v1047, %v1048
      %v1050 = vrot.slane %v931, 1
      %v1051 = vsel %vm428, %v1048, %v1050
      %v1052 = vrot.slane %v932, 1
      %v1053 = vrot.slane %v933, 1
      %v1054 = vsel %vm428, %v1052, %v1053
      %v1055 = vrot.slane %v934, 1
      %v1056 = vsel %vm428, %v1053, %v1055
      %v1057 = vrot.slane %v935, 1
      %v1058 = vrot.slane %v936, 1
      %v1059 = vsel %vm428, %v1057, %v1058
      %v1060 = vrot.slane %v937, 1
      %v1061 = vsel %vm428, %v1058, %v1060
      %v1062 = vrot.slane %v938, 1
      %v1063 = vrot.slane %v939, 1
      %v1064 = vsel %vm428, %v1062, %v1063
      %v1065 = vrot.slane %v940, 1
      %v1066 = vsel %vm428, %v1063, %v1065
      %v1067 = vrot.slane %v941, 1
      %v1068 = vrot.slane %v942, 1
      %v1069 = vsel %vm428, %v1067, %v1068
      %v1070 = vrot.slane %v943, 1
      %v1071 = vsel %vm428, %v1068, %v1070
      %v1104 = vadd.f32 %v858, %v994
      %v1105 = vadd.f32 %v859, %v996
      %v1106 = vadd.f32 %v860, %v999
      %v1107 = vadd.f32 %v861, %v1001
      %v1108 = vadd.f32 %v862, %v1004
      %v1109 = vadd.f32 %v863, %v1006
      %v1110 = vadd.f32 %v864, %v1009
      %v1111 = vadd.f32 %v865, %v1011
      %v1112 = vadd.f32 %v866, %v1014
      %v1113 = vadd.f32 %v867, %v1016
      %v1114 = vadd.f32 %v868, %v1019
      %v1115 = vadd.f32 %v869, %v1021
      %v1116 = vadd.f32 %v870, %v1024
      %v1117 = vadd.f32 %v871, %v1026
      %v1118 = vadd.f32 %v872, %v1029
      %v1119 = vadd.f32 %v873, %v1031
      %v1120 = vadd.f32 %v874, %v1034
      %v1121 = vadd.f32 %v875, %v1036
      %v1122 = vadd.f32 %v876, %v1039
      %v1123 = vadd.f32 %v877, %v1041
      %v1124 = vadd.f32 %v878, %v1044
      %v1125 = vadd.f32 %v879, %v1046
      %v1126 = vadd.f32 %v880, %v1049
      %v1127 = vadd.f32 %v881, %v1051
      %v1128 = vadd.f32 %v882, %v1054
      %v1129 = vadd.f32 %v883, %v1056
      %v1130 = vadd.f32 %v884, %v1059
      %v1131 = vadd.f32 %v885, %v1061
      %v1132 = vadd.f32 %v886, %v1064
      %v1133 = vadd.f32 %v887, %v1066
      %v1134 = vadd.f32 %v888, %v1069
      %v1135 = vadd.f32 %v889, %v1071
      %v1137 = vlaneseq
      %v1138 = vshrl.u32 %v1137, 7
      %v1139 = vsub.s32 0, %v1138
      %v1140 = vrot.slane %v284, %v1139
      %v1142 = vmul.f32 %v228, %v1140
      %v1143 = vmul.f32 %v229, %v1140
      %v1144 = vmul.f32 %v230, %v1140
      %v1145 = vmul.f32 %v231, %v1140
      %v1146 = vmul.f32 %v232, %v1140
      %v1147 = vmul.f32 %v233, %v1140
      %v1148 = vmul.f32 %v234, %v1140
      %v1149 = vmul.f32 %v235, %v1140
      %v1150 = vmul.f32 %v236, %v1140
      %v1151 = vmul.f32 %v237, %v1140
      %v1152 = vmul.f32 %v238, %v1140
      %v1153 = vmul.f32 %v239, %v1140
      %v1154 = vmul.f32 %v240, %v1140
      %v1155 = vmul.f32 %v241, %v1140
      %v1156 = vmul.f32 %v242, %v1140
      %v1157 = vmul.f32 %v243, %v1140
      %v1158 = vmul.f32 %v244, %v1140
      %v1159 = vmul.f32 %v245, %v1140
      %v1160 = vmul.f32 %v246, %v1140
      %v1161 = vmul.f32 %v247, %v1140
      %v1162 = vmul.f32 %v248, %v1140
      %v1163 = vmul.f32 %v249, %v1140
      %v1164 = vmul.f32 %v250, %v1140
      %v1165 = vmul.f32 %v251, %v1140
      %v1166 = vmul.f32 %v252, %v1140
      %v1167 = vmul.f32 %v253, %v1140
      %v1168 = vmul.f32 %v254, %v1140
      %v1169 = vmul.f32 %v255, %v1140
      %v1170 = vmul.f32 %v256, %v1140
      %v1171 = vmul.f32 %v257, %v1140
      %v1172 = vmul.f32 %v258, %v1140
      %v1173 = vmul.f32 %v259, %v1140
      %v1174 = vmul.f32 %v260, %v1140
      %v1175 = vmul.f32 %v261, %v1140
      %v1176 = vmul.f32 %v262, %v1140
      %v1177 = vmul.f32 %v263, %v1140
      %v1178 = vmul.f32 %v264, %v1140
      %v1179 = vmul.f32 %v265, %v1140
      %v1180 = vmul.f32 %v266, %v1140
      %v1181 = vmul.f32 %v267, %v1140
      %v1182 = vmul.f32 %v268, %v1140
      %v1183 = vmul.f32 %v269, %v1140
      %v1184 = vmul.f32 %v270, %v1140
      %v1185 = vmul.f32 %v271, %v1140
      %v1186 = vmul.f32 %v272, %v1140
      %v1187 = vmul.f32 %v273, %v1140
      %v1188 = vmul.f32 %v274, %v1140
      %v1189 = vmul.f32 %v275, %v1140
      %v1238 = vrot.slane %v1142, 2
      %v1239 = vrot.slane %v1143, 2
      %v1240 = vsel %vm675, %v1238, %v1239
      %v1241 = vrot.slane %v1144, 2
      %v1242 = vsel %vm675, %v1239, %v1241
      %v1243 = vrot.slane %v1145, 2
      %v1244 = vrot.slane %v1146, 2
      %v1245 = vsel %vm675, %v1243, %v1244
      %v1246 = vrot.slane %v1147, 2
      %v1247 = vsel %vm675, %v1244, %v1246
      %v1248 = vrot.slane %v1148, 2
      %v1249 = vrot.slane %v1149, 2
      %v1250 = vsel %vm675, %v1248, %v1249
      %v1251 = vrot.slane %v1150, 2
      %v1252 = vsel %vm675, %v1249, %v1251
      %v1253 = vrot.slane %v1151, 2
      %v1254 = vrot.slane %v1152, 2
      %v1255 = vsel %vm675, %v1253, %v1254
      %v1256 = vrot.slane %v1153, 2
      %v1257 = vsel %vm675, %v1254, %v1256
      %v1258 = vrot.slane %v1154, 2
      %v1259 = vrot.slane %v1155, 2
      %v1260 = vsel %vm675, %v1258, %v1259
      %v1261 = vrot.slane %v1156, 2
      %v1262 = vsel %vm675, %v1259, %v1261
      %v1263 = vrot.slane %v1157, 2
      %v1264 = vrot.slane %v1158, 2
      %v1265 = vsel %vm675, %v1263, %v1264
      %v1266 = vrot.slane %v1159, 2
      %v1267 = vsel %vm675, %v1264, %v1266
      %v1268 = vrot.slane %v1160, 2
      %v1269 = vrot.slane %v1161, 2
      %v1270 = vsel %vm675, %v1268, %v1269
      %v1271 = vrot.slane %v1162, 2
      %v1272 = vsel %vm675, %v1269, %v1271
      %v1273 = vrot.slane %v1163, 2
      %v1274 = vrot.slane %v1164, 2
      %v1275 = vsel %vm675, %v1273, %v1274
      %v1276 = vrot.slane %v1165, 2
      %v1277 = vsel %vm675, %v1274, %v1276
      %v1278 = vrot.slane %v1166, 2
      %v1279 = vrot.slane %v1167, 2
      %v1280 = vsel %vm675, %v1278, %v1279
      %v1281 = vrot.slane %v1168, 2
      %v1282 = vsel %vm675, %v1279, %v1281
      %v1283 = vrot.slane %v1169, 2
      %v1284 = vrot.slane %v1170, 2
      %v1285 = vsel %vm675, %v1283, %v1284
      %v1286 = vrot.slane %v1171, 2
      %v1287 = vsel %vm675, %v1284, %v1286
      %v1288 = vrot.slane %v1172, 2
      %v1289 = vrot.slane %v1173, 2
      %v1290 = vsel %vm675, %v1288, %v1289
      %v1291 = vrot.slane %v1174, 2
      %v1292 = vsel %vm675, %v1289, %v1291
      %v1293 = vrot.slane %v1175, 2
      %v1294 = vrot.slane %v1176, 2
      %v1295 = vsel %vm675, %v1293, %v1294
      %v1296 = vrot.slane %v1177, 2
      %v1297 = vsel %vm675, %v1294, %v1296
      %v1298 = vrot.slane %v1178, 2
      %v1299 = vrot.slane %v1179, 2
      %v1300 = vsel %vm675, %v1298, %v1299
      %v1301 = vrot.slane %v1180, 2
      %v1302 = vsel %vm675, %v1299, %v1301
      %v1303 = vrot.slane %v1181, 2
      %v1304 = vrot.slane %v1182, 2
      %v1305 = vsel %vm675, %v1303, %v1304
      %v1306 = vrot.slane %v1183, 2
      %v1307 = vsel %vm675, %v1304, %v1306
      %v1308 = vrot.slane %v1184, 2
      %v1309 = vrot.slane %v1185, 2
      %v1310 = vsel %vm675, %v1308, %v1309
      %v1311 = vrot.slane %v1186, 2
      %v1312 = vsel %vm675, %v1309, %v1311
      %v1313 = vrot.slane %v1187, 2
      %v1314 = vrot.slane %v1188, 2
      %v1315 = vsel %vm675, %v1313, %v1314
      %v1316 = vrot.slane %v1189, 2
      %v1317 = vsel %vm675, %v1314, %v1316
      %v1350 = vadd.f32 %v1104, %v1240
      %v1351 = vadd.f32 %v1105, %v1242
      %v1352 = vadd.f32 %v1106, %v1245
      %v1353 = vadd.f32 %v1107, %v1247
      %v1354 = vadd.f32 %v1108, %v1250
      %v1355 = vadd.f32 %v1109, %v1252
      %v1356 = vadd.f32 %v1110, %v1255
      %v1357 = vadd.f32 %v1111, %v1257
      %v1358 = vadd.f32 %v1112, %v1260
      %v1359 = vadd.f32 %v1113, %v1262
      %v1360 = vadd.f32 %v1114, %v1265
      %v1361 = vadd.f32 %v1115, %v1267
      %v1362 = vadd.f32 %v1116, %v1270
      %v1363 = vadd.f32 %v1117, %v1272
      %v1364 = vadd.f32 %v1118, %v1275
      %v1365 = vadd.f32 %v1119, %v1277
      %v1366 = vadd.f32 %v1120, %v1280
      %v1367 = vadd.f32 %v1121, %v1282
      %v1368 = vadd.f32 %v1122, %v1285
      %v1369 = vadd.f32 %v1123, %v1287
      %v1370 = vadd.f32 %v1124, %v1290
      %v1371 = vadd.f32 %v1125, %v1292
      %v1372 = vadd.f32 %v1126, %v1295
      %v1373 = vadd.f32 %v1127, %v1297
      %v1374 = vadd.f32 %v1128, %v1300
      %v1375 = vadd.f32 %v1129, %v1302
      %v1376 = vadd.f32 %v1130, %v1305
      %v1377 = vadd.f32 %v1131, %v1307
      %v1378 = vadd.f32 %v1132, %v1310
      %v1379 = vadd.f32 %v1133, %v1312
      %v1380 = vadd.f32 %v1134, %v1315
      %v1381 = vadd.f32 %v1135, %v1317
      %v1383 = vlaneseq
      %v1384 = vshrl.u32 %v1383, 7
      %v1385 = vsub.s32 0, %v1384
      %v1386 = vrot.slane %v285, %v1385
      %v1388 = vmul.f32 %v231, %v1386
      %v1389 = vmul.f32 %v232, %v1386
      %v1390 = vmul.f32 %v234, %v1386
      %v1391 = vmul.f32 %v235, %v1386
      %v1392 = vmul.f32 %v237, %v1386
      %v1393 = vmul.f32 %v238, %v1386
      %v1394 = vmul.f32 %v240, %v1386
      %v1395 = vmul.f32 %v241, %v1386
      %v1396 = vmul.f32 %v243, %v1386
      %v1397 = vmul.f32 %v244, %v1386
      %v1398 = vmul.f32 %v246, %v1386
      %v1399 = vmul.f32 %v247, %v1386
      %v1400 = vmul.f32 %v249, %v1386
      %v1401 = vmul.f32 %v250, %v1386
      %v1402 = vmul.f32 %v252, %v1386
      %v1403 = vmul.f32 %v253, %v1386
      %v1404 = vmul.f32 %v255, %v1386
      %v1405 = vmul.f32 %v256, %v1386
      %v1406 = vmul.f32 %v258, %v1386
      %v1407 = vmul.f32 %v259, %v1386
      %v1408 = vmul.f32 %v261, %v1386
      %v1409 = vmul.f32 %v262, %v1386
      %v1410 = vmul.f32 %v264, %v1386
      %v1411 = vmul.f32 %v265, %v1386
      %v1412 = vmul.f32 %v267, %v1386
      %v1413 = vmul.f32 %v268, %v1386
      %v1414 = vmul.f32 %v270, %v1386
      %v1415 = vmul.f32 %v271, %v1386
      %v1416 = vmul.f32 %v273, %v1386
      %v1417 = vmul.f32 %v274, %v1386
      %v1418 = vmul.f32 %v276, %v1386
      %v1419 = vmul.f32 %v277, %v1386
      %v1420 = vadd.f32 %v1350, %v1388
      %v1421 = vadd.f32 %v1351, %v1389
      %v1422 = vadd.f32 %v1352, %v1390
      %v1423 = vadd.f32 %v1353, %v1391
      %v1424 = vadd.f32 %v1354, %v1392
      %v1425 = vadd.f32 %v1355, %v1393
      %v1426 = vadd.f32 %v1356, %v1394
      %v1427 = vadd.f32 %v1357, %v1395
      %v1428 = vadd.f32 %v1358, %v1396
      %v1429 = vadd.f32 %v1359, %v1397
      %v1430 = vadd.f32 %v1360, %v1398
      %v1431 = vadd.f32 %v1361, %v1399
      %v1432 = vadd.f32 %v1362, %v1400
      %v1433 = vadd.f32 %v1363, %v1401
      %v1434 = vadd.f32 %v1364, %v1402
      %v1435 = vadd.f32 %v1365, %v1403
      %v1436 = vadd.f32 %v1366, %v1404
      %v1437 = vadd.f32 %v1367, %v1405
      %v1438 = vadd.f32 %v1368, %v1406
      %v1439 = vadd.f32 %v1369, %v1407
      %v1440 = vadd.f32 %v1370, %v1408
      %v1441 = vadd.f32 %v1371, %v1409
      %v1442 = vadd.f32 %v1372, %v1410
      %v1443 = vadd.f32 %v1373, %v1411
      %v1444 = vadd.f32 %v1374, %v1412
      %v1445 = vadd.f32 %v1375, %v1413
      %v1446 = vadd.f32 %v1376, %v1414
      %v1447 = vadd.f32 %v1377, %v1415
      %v1448 = vadd.f32 %v1378, %v1416
      %v1449 = vadd.f32 %v1379, %v1417
      %v1450 = vadd.f32 %v1380, %v1418
      %v1451 = vadd.f32 %v1381, %v1419
      %v1453 = vlaneseq
      %v1454 = vshrl.u32 %v1453, 7
      %v1455 = vsub.s32 0, %v1454
      %v1456 = vrot.slane %v286, %v1455
      %v1458 = vmul.f32 %v231, %v1456
      %v1459 = vmul.f32 %v232, %v1456
      %v1460 = vmul.f32 %v233, %v1456
      %v1461 = vmul.f32 %v234, %v1456
      %v1462 = vmul.f32 %v235, %v1456
      %v1463 = vmul.f32 %v236, %v1456
      %v1464 = vmul.f32 %v237, %v1456
      %v1465 = vmul.f32 %v238, %v1456
      %v1466 = vmul.f32 %v239, %v1456
      %v1467 = vmul.f32 %v240, %v1456
      %v1468 = vmul.f32 %v241, %v1456
      %v1469 = vmul.f32 %v242, %v1456
      %v1470 = vmul.f32 %v243, %v1456
      %v1471 = vmul.f32 %v244, %v1456
      %v1472 = vmul.f32 %v245, %v1456
      %v1473 = vmul.f32 %v246, %v1456
      %v1474 = vmul.f32 %v247, %v1456
      %v1475 = vmul.f32 %v248, %v1456
      %v1476 = vmul.f32 %v249, %v1456
      %v1477 = vmul.f32 %v250, %v1456
      %v1478 = vmul.f32 %v251, %v1456
      %v1479 = vmul.f32 %v252, %v1456
      %v1480 = vmul.f32 %v253, %v1456
      %v1481 = vmul.f32 %v254, %v1456
      %v1482 = vmul.f32 %v255, %v1456
      %v1483 = vmul.f32 %v256, %v1456
      %v1484 = vmul.f32 %v257, %v1456
      %v1485 = vmul.f32 %v258, %v1456
      %v1486 = vmul.f32 %v259, %v1456
      %v1487 = vmul.f32 %v260, %v1456
      %v1488 = vmul.f32 %v261, %v1456
      %v1489 = vmul.f32 %v262, %v1456
      %v1490 = vmul.f32 %v263, %v1456
      %v1491 = vmul.f32 %v264, %v1456
      %v1492 = vmul.f32 %v265, %v1456
      %v1493 = vmul.f32 %v266, %v1456
      %v1494 = vmul.f32 %v267, %v1456
      %v1495 = vmul.f32 %v268, %v1456
      %v1496 = vmul.f32 %v269, %v1456
      %v1497 = vmul.f32 %v270, %v1456
      %v1498 = vmul.f32 %v271, %v1456
      %v1499 = vmul.f32 %v272, %v1456
      %v1500 = vmul.f32 %v273, %v1456
      %v1501 = vmul.f32 %v274, %v1456
      %v1502 = vmul.f32 %v275, %v1456
      %v1503 = vmul.f32 %v276, %v1456
      %v1504 = vmul.f32 %v277, %v1456
      %v1505 = vmul.f32 %v278, %v1456
      %v1554 = vrot.slane %v1458, 1
      %v1555 = vrot.slane %v1459, 1
      %v1556 = vsel %vm428, %v1554, %v1555
      %v1557 = vrot.slane %v1460, 1
      %v1558 = vsel %vm428, %v1555, %v1557
      %v1559 = vrot.slane %v1461, 1
      %v1560 = vrot.slane %v1462, 1
      %v1561 = vsel %vm428, %v1559, %v1560
      %v1562 = vrot.slane %v1463, 1
      %v1563 = vsel %vm428, %v1560, %v1562
      %v1564 = vrot.slane %v1464, 1
      %v1565 = vrot.slane %v1465, 1
      %v1566 = vsel %vm428, %v1564, %v1565
      %v1567 = vrot.slane %v1466, 1
      %v1568 = vsel %vm428, %v1565, %v1567
      %v1569 = vrot.slane %v1467, 1
      %v1570 = vrot.slane %v1468, 1
      %v1571 = vsel %vm428, %v1569, %v1570
      %v1572 = vrot.slane %v1469, 1
      %v1573 = vsel %vm428, %v1570, %v1572
      %v1574 = vrot.slane %v1470, 1
      %v1575 = vrot.slane %v1471, 1
      %v1576 = vsel %vm428, %v1574, %v1575
      %v1577 = vrot.slane %v1472, 1
      %v1578 = vsel %vm428, %v1575, %v1577
      %v1579 = vrot.slane %v1473, 1
      %v1580 = vrot.slane %v1474, 1
      %v1581 = vsel %vm428, %v1579, %v1580
      %v1582 = vrot.slane %v1475, 1
      %v1583 = vsel %vm428, %v1580, %v1582
      %v1584 = vrot.slane %v1476, 1
      %v1585 = vrot.slane %v1477, 1
      %v1586 = vsel %vm428, %v1584, %v1585
      %v1587 = vrot.slane %v1478, 1
      %v1588 = vsel %vm428, %v1585, %v1587
      %v1589 = vrot.slane %v1479, 1
      %v1590 = vrot.slane %v1480, 1
      %v1591 = vsel %vm428, %v1589, %v1590
      %v1592 = vrot.slane %v1481, 1
      %v1593 = vsel %vm428, %v1590, %v1592
      %v1594 = vrot.slane %v1482, 1
      %v1595 = vrot.slane %v1483, 1
      %v1596 = vsel %vm428, %v1594, %v1595
      %v1597 = vrot.slane %v1484, 1
      %v1598 = vsel %vm428, %v1595, %v1597
      %v1599 = vrot.slane %v1485, 1
      %v1600 = vrot.slane %v1486, 1
      %v1601 = vsel %vm428, %v1599, %v1600
      %v1602 = vrot.slane %v1487, 1
      %v1603 = vsel %vm428, %v1600, %v1602
      %v1604 = vrot.slane %v1488, 1
      %v1605 = vrot.slane %v1489, 1
      %v1606 = vsel %vm428, %v1604, %v1605
      %v1607 = vrot.slane %v1490, 1
      %v1608 = vsel %vm428, %v1605, %v1607
      %v1609 = vrot.slane %v1491, 1
      %v1610 = vrot.slane %v1492, 1
      %v1611 = vsel %vm428, %v1609, %v1610
      %v1612 = vrot.slane %v1493, 1
      %v1613 = vsel %vm428, %v1610, %v1612
      %v1614 = vrot.slane %v1494, 1
      %v1615 = vrot.slane %v1495, 1
      %v1616 = vsel %vm428, %v1614, %v1615
      %v1617 = vrot.slane %v1496, 1
      %v1618 = vsel %vm428, %v1615, %v1617
      %v1619 = vrot.slane %v1497, 1
      %v1620 = vrot.slane %v1498, 1
      %v1621 = vsel %vm428, %v1619, %v1620
      %v1622 = vrot.slane %v1499, 1
      %v1623 = vsel %vm428, %v1620, %v1622
      %v1624 = vrot.slane %v1500, 1
      %v1625 = vrot.slane %v1501, 1
      %v1626 = vsel %vm428, %v1624, %v1625
      %v1627 = vrot.slane %v1502, 1
      %v1628 = vsel %vm428, %v1625, %v1627
      %v1629 = vrot.slane %v1503, 1
      %v1630 = vrot.slane %v1504, 1
      %v1631 = vsel %vm428, %v1629, %v1630
      %v1632 = vrot.slane %v1505, 1
      %v1633 = vsel %vm428, %v1630, %v1632
      %v1666 = vadd.f32 %v1420, %v1556
      %v1667 = vadd.f32 %v1421, %v1558
      %v1668 = vadd.f32 %v1422, %v1561
      %v1669 = vadd.f32 %v1423, %v1563
      %v1670 = vadd.f32 %v1424, %v1566
      %v1671 = vadd.f32 %v1425, %v1568
      %v1672 = vadd.f32 %v1426, %v1571
      %v1673 = vadd.f32 %v1427, %v1573
      %v1674 = vadd.f32 %v1428, %v1576
      %v1675 = vadd.f32 %v1429, %v1578
      %v1676 = vadd.f32 %v1430, %v1581
      %v1677 = vadd.f32 %v1431, %v1583
      %v1678 = vadd.f32 %v1432, %v1586
      %v1679 = vadd.f32 %v1433, %v1588
      %v1680 = vadd.f32 %v1434, %v1591
      %v1681 = vadd.f32 %v1435, %v1593
      %v1682 = vadd.f32 %v1436, %v1596
      %v1683 = vadd.f32 %v1437, %v1598
      %v1684 = vadd.f32 %v1438, %v1601
      %v1685 = vadd.f32 %v1439, %v1603
      %v1686 = vadd.f32 %v1440, %v1606
      %v1687 = vadd.f32 %v1441, %v1608
      %v1688 = vadd.f32 %v1442, %v1611
      %v1689 = vadd.f32 %v1443, %v1613
      %v1690 = vadd.f32 %v1444, %v1616
      %v1691 = vadd.f32 %v1445, %v1618
      %v1692 = vadd.f32 %v1446, %v1621
      %v1693 = vadd.f32 %v1447, %v1623
      %v1694 = vadd.f32 %v1448, %v1626
      %v1695 = vadd.f32 %v1449, %v1628
      %v1696 = vadd.f32 %v1450, %v1631
      %v1697 = vadd.f32 %v1451, %v1633
      %v1699 = vlaneseq
      %v1700 = vshrl.u32 %v1699, 7
      %v1701 = vsub.s32 0, %v1700
      %v1702 = vrot.slane %v287, %v1701
      %v1704 = vmul.f32 %v231, %v1702
      %v1705 = vmul.f32 %v232, %v1702
      %v1706 = vmul.f32 %v233, %v1702
      %v1707 = vmul.f32 %v234, %v1702
      %v1708 = vmul.f32 %v235, %v1702
      %v1709 = vmul.f32 %v236, %v1702
      %v1710 = vmul.f32 %v237, %v1702
      %v1711 = vmul.f32 %v238, %v1702
      %v1712 = vmul.f32 %v239, %v1702
      %v1713 = vmul.f32 %v240, %v1702
      %v1714 = vmul.f32 %v241, %v1702
      %v1715 = vmul.f32 %v242, %v1702
      %v1716 = vmul.f32 %v243, %v1702
      %v1717 = vmul.f32 %v244, %v1702
      %v1718 = vmul.f32 %v245, %v1702
      %v1719 = vmul.f32 %v246, %v1702
      %v1720 = vmul.f32 %v247, %v1702
      %v1721 = vmul.f32 %v248, %v1702
      %v1722 = vmul.f32 %v249, %v1702
      %v1723 = vmul.f32 %v250, %v1702
      %v1724 = vmul.f32 %v251, %v1702
      %v1725 = vmul.f32 %v252, %v1702
      %v1726 = vmul.f32 %v253, %v1702
      %v1727 = vmul.f32 %v254, %v1702
      %v1728 = vmul.f32 %v255, %v1702
      %v1729 = vmul.f32 %v256, %v1702
      %v1730 = vmul.f32 %v257, %v1702
      %v1731 = vmul.f32 %v258, %v1702
      %v1732 = vmul.f32 %v259, %v1702
      %v1733 = vmul.f32 %v260, %v1702
      %v1734 = vmul.f32 %v261, %v1702
      %v1735 = vmul.f32 %v262, %v1702
      %v1736 = vmul.f32 %v263, %v1702
      %v1737 = vmul.f32 %v264, %v1702
      %v1738 = vmul.f32 %v265, %v1702
      %v1739 = vmul.f32 %v266, %v1702
      %v1740 = vmul.f32 %v267, %v1702
      %v1741 = vmul.f32 %v268, %v1702
      %v1742 = vmul.f32 %v269, %v1702
      %v1743 = vmul.f32 %v270, %v1702
      %v1744 = vmul.f32 %v271, %v1702
      %v1745 = vmul.f32 %v272, %v1702
      %v1746 = vmul.f32 %v273, %v1702
      %v1747 = vmul.f32 %v274, %v1702
      %v1748 = vmul.f32 %v275, %v1702
      %v1749 = vmul.f32 %v276, %v1702
      %v1750 = vmul.f32 %v277, %v1702
      %v1751 = vmul.f32 %v278, %v1702
      %v1800 = vrot.slane %v1704, 2
      %v1801 = vrot.slane %v1705, 2
      %v1802 = vsel %vm675, %v1800, %v1801
      %v1803 = vrot.slane %v1706, 2
      %v1804 = vsel %vm675, %v1801, %v1803
      %v1805 = vrot.slane %v1707, 2
      %v1806 = vrot.slane %v1708, 2
      %v1807 = vsel %vm675, %v1805, %v1806
      %v1808 = vrot.slane %v1709, 2
      %v1809 = vsel %vm675, %v1806, %v1808
      %v1810 = vrot.slane %v1710, 2
      %v1811 = vrot.slane %v1711, 2
      %v1812 = vsel %vm675, %v1810, %v1811
      %v1813 = vrot.slane %v1712, 2
      %v1814 = vsel %vm675, %v1811, %v1813
      %v1815 = vrot.slane %v1713, 2
      %v1816 = vrot.slane %v1714, 2
      %v1817 = vsel %vm675, %v1815, %v1816
      %v1818 = vrot.slane %v1715, 2
      %v1819 = vsel %vm675, %v1816, %v1818
      %v1820 = vrot.slane %v1716, 2
      %v1821 = vrot.slane %v1717, 2
      %v1822 = vsel %vm675, %v1820, %v1821
      %v1823 = vrot.slane %v1718, 2
      %v1824 = vsel %vm675, %v1821, %v1823
      %v1825 = vrot.slane %v1719, 2
      %v1826 = vrot.slane %v1720, 2
      %v1827 = vsel %vm675, %v1825, %v1826
      %v1828 = vrot.slane %v1721, 2
      %v1829 = vsel %vm675, %v1826, %v1828
      %v1830 = vrot.slane %v1722, 2
      %v1831 = vrot.slane %v1723, 2
      %v1832 = vsel %vm675, %v1830, %v1831
      %v1833 = vrot.slane %v1724, 2
      %v1834 = vsel %vm675, %v1831, %v1833
      %v1835 = vrot.slane %v1725, 2
      %v1836 = vrot.slane %v1726, 2
      %v1837 = vsel %vm675, %v1835, %v1836
      %v1838 = vrot.slane %v1727, 2
      %v1839 = vsel %vm675, %v1836, %v1838
      %v1840 = vrot.slane %v1728, 2
      %v1841 = vrot.slane %v1729, 2
      %v1842 = vsel %vm675, %v1840, %v1841
      %v1843 = vrot.slane %v1730, 2
      %v1844 = vsel %vm675, %v1841, %v1843
      %v1845 = vrot.slane %v1731, 2
      %v1846 = vrot.slane %v1732, 2
      %v1847 = vsel %vm675, %v1845, %v1846
      %v1848 = vrot.slane %v1733, 2
      %v1849 = vsel %vm675, %v1846, %v1848
      %v1850 = vrot.slane %v1734, 2
      %v1851 = vrot.slane %v1735, 2
      %v1852 = vsel %vm675, %v1850, %v1851
      %v1853 = vrot.slane %v1736, 2
      %v1854 = vsel %vm675, %v1851, %v1853
      %v1855 = vrot.slane %v1737, 2
      %v1856 = vrot.slane %v1738, 2
      %v1857 = vsel %vm675, %v1855, %v1856
      %v1858 = vrot.slane %v1739, 2
      %v1859 = vsel %vm675, %v1856, %v1858
      %v1860 = vrot.slane %v1740, 2
      %v1861 = vrot.slane %v1741, 2
      %v1862 = vsel %vm675, %v1860, %v1861
      %v1863 = vrot.slane %v1742, 2
      %v1864 = vsel %vm675, %v1861, %v1863
      %v1865 = vrot.slane %v1743, 2
      %v1866 = vrot.slane %v1744, 2
      %v1867 = vsel %vm675, %v1865, %v1866
      %v1868 = vrot.slane %v1745, 2
      %v1869 = vsel %vm675, %v1866, %v1868
      %v1870 = vrot.slane %v1746, 2
      %v1871 = vrot.slane %v1747, 2
      %v1872 = vsel %vm675, %v1870, %v1871
      %v1873 = vrot.slane %v1748, 2
      %v1874 = vsel %vm675, %v1871, %v1873
      %v1875 = vrot.slane %v1749, 2
      %v1876 = vrot.slane %v1750, 2
      %v1877 = vsel %vm675, %v1875, %v1876
      %v1878 = vrot.slane %v1751, 2
      %v1879 = vsel %vm675, %v1876, %v1878
      %v1912 = vadd.f32 %v1666, %v1802
      %v1913 = vadd.f32 %v1667, %v1804
      %v1914 = vadd.f32 %v1668, %v1807
      %v1915 = vadd.f32 %v1669, %v1809
      %v1916 = vadd.f32 %v1670, %v1812
      %v1917 = vadd.f32 %v1671, %v1814
      %v1918 = vadd.f32 %v1672, %v1817
      %v1919 = vadd.f32 %v1673, %v1819
      %v1920 = vadd.f32 %v1674, %v1822
      %v1921 = vadd.f32 %v1675, %v1824
      %v1922 = vadd.f32 %v1676, %v1827
      %v1923 = vadd.f32 %v1677, %v1829
      %v1924 = vadd.f32 %v1678, %v1832
      %v1925 = vadd.f32 %v1679, %v1834
      %v1926 = vadd.f32 %v1680, %v1837
      %v1927 = vadd.f32 %v1681, %v1839
      %v1928 = vadd.f32 %v1682, %v1842
      %v1929 = vadd.f32 %v1683, %v1844
      %v1930 = vadd.f32 %v1684, %v1847
      %v1931 = vadd.f32 %v1685, %v1849
      %v1932 = vadd.f32 %v1686, %v1852
      %v1933 = vadd.f32 %v1687, %v1854
      %v1934 = vadd.f32 %v1688, %v1857
      %v1935 = vadd.f32 %v1689, %v1859
      %v1936 = vadd.f32 %v1690, %v1862
      %v1937 = vadd.f32 %v1691, %v1864
      %v1938 = vadd.f32 %v1692, %v1867
      %v1939 = vadd.f32 %v1693, %v1869
      %v1940 = vadd.f32 %v1694, %v1872
      %v1941 = vadd.f32 %v1695, %v1874
      %v1942 = vadd.f32 %v1696, %v1877
      %v1943 = vadd.f32 %v1697, %v1879
      %v1944 = vld [vmem:[%s2] sm:$0x1]
      %v1946 = vlaneseq
      %v1947 = vshrl.u32 %v1946, 7
      %v1948 = vsub.s32 0, %v1947
      %v1949 = vrot.slane %v1944, %v1948
      %v1951 = vadd.f32 %v1912, %v1949
      %v1952 = vadd.f32 %v1913, %v1949
      %v1953 = vadd.f32 %v1914, %v1949
      %v1954 = vadd.f32 %v1915, %v1949
      %v1955 = vadd.f32 %v1916, %v1949
      %v1956 = vadd.f32 %v1917, %v1949
      %v1957 = vadd.f32 %v1918, %v1949
      %v1958 = vadd.f32 %v1919, %v1949
      %v1959 = vadd.f32 %v1920, %v1949
      %v1960 = vadd.f32 %v1921, %v1949
      %v1961 = vadd.f32 %v1922, %v1949
      %v1962 = vadd.f32 %v1923, %v1949
      %v1963 = vadd.f32 %v1924, %v1949
      %v1964 = vadd.f32 %v1925, %v1949
      %v1965 = vadd.f32 %v1926, %v1949
      %v1966 = vadd.f32 %v1927, %v1949
      %v1967 = vadd.f32 %v1928, %v1949
      %v1968 = vadd.f32 %v1929, %v1949
      %v1969 = vadd.f32 %v1930, %v1949
      %v1970 = vadd.f32 %v1931, %v1949
      %v1971 = vadd.f32 %v1932, %v1949
      %v1972 = vadd.f32 %v1933, %v1949
      %v1973 = vadd.f32 %v1934, %v1949
      %v1974 = vadd.f32 %v1935, %v1949
      %v1975 = vadd.f32 %v1936, %v1949
      %v1976 = vadd.f32 %v1937, %v1949
      %v1977 = vadd.f32 %v1938, %v1949
      %v1978 = vadd.f32 %v1939, %v1949
      %v1979 = vadd.f32 %v1940, %v1949
      %v1980 = vadd.f32 %v1941, %v1949
      %v1981 = vadd.f32 %v1942, %v1949
      %v1982 = vadd.f32 %v1943, %v1949
      %v1983 = vmax.f32 %v1951, 0.0
      %v1984 = vmax.f32 %v1952, 0.0
      %v1985 = vmax.f32 %v1953, 0.0
      %v1986 = vmax.f32 %v1954, 0.0
      %v1987 = vmax.f32 %v1955, 0.0
      %v1988 = vmax.f32 %v1956, 0.0
      %v1989 = vmax.f32 %v1957, 0.0
      %v1990 = vmax.f32 %v1958, 0.0
      %v1991 = vmax.f32 %v1959, 0.0
      %v1992 = vmax.f32 %v1960, 0.0
      %v1993 = vmax.f32 %v1961, 0.0
      %v1994 = vmax.f32 %v1962, 0.0
      %v1995 = vmax.f32 %v1963, 0.0
      %v1996 = vmax.f32 %v1964, 0.0
      %v1997 = vmax.f32 %v1965, 0.0
      %v1998 = vmax.f32 %v1966, 0.0
      %v1999 = vmax.f32 %v1967, 0.0
      %v2000 = vmax.f32 %v1968, 0.0
      %v2001 = vmax.f32 %v1969, 0.0
      %v2002 = vmax.f32 %v1970, 0.0
      %v2003 = vmax.f32 %v1971, 0.0
      %v2004 = vmax.f32 %v1972, 0.0
      %v2005 = vmax.f32 %v1973, 0.0
      %v2006 = vmax.f32 %v1974, 0.0
      %v2007 = vmax.f32 %v1975, 0.0
      %v2008 = vmax.f32 %v1976, 0.0
      %v2009 = vmax.f32 %v1977, 0.0
      %v2010 = vmax.f32 %v1978, 0.0
      %v2011 = vmax.f32 %v1979, 0.0
      %v2012 = vmax.f32 %v1980, 0.0
      %v2013 = vmax.f32 %v1981, 0.0
      %v2014 = vmax.f32 %v1982, 0.0
      %vm2015 = vcmask 261120
      %2016 = vst.msk [vmem:[%s170] sm:$0xff] %vm2015, %v1983
      %2017 = vst.msk [vmem:[%s170 + $0x8] sm:$0xff] %vm2015, %v1984
      %2018 = vst.msk [vmem:[%s170 + $0x10] sm:$0xff] %vm2015, %v1985
      %2019 = vst.msk [vmem:[%s170 + $0x18] sm:$0xff] %vm2015, %v1986
      %2020 = vst.msk [vmem:[%s170 + $0x20] sm:$0xff] %vm2015, %v1987
      %2021 = vst.msk [vmem:[%s170 + $0x28] sm:$0xff] %vm2015, %v1988
      %2022 = vst.msk [vmem:[%s170 + $0x30] sm:$0xff] %vm2015, %v1989
      %2023 = vst.msk [vmem:[%s170 + $0x38] sm:$0xff] %vm2015, %v1990
      %2024 = vst.msk [vmem:[%s170 + $0x40] sm:$0xff] %vm2015, %v1991
      %2025 = vst.msk [vmem:[%s170 + $0x48] sm:$0xff] %vm2015, %v1992
      %2026 = vst.msk [vmem:[%s170 + $0x50] sm:$0xff] %vm2015, %v1993
      %2027 = vst.msk [vmem:[%s170 + $0x58] sm:$0xff] %vm2015, %v1994
      %2028 = vst.msk [vmem:[%s170 + $0x60] sm:$0xff] %vm2015, %v1995
      %2029 = vst.msk [vmem:[%s170 + $0x68] sm:$0xff] %vm2015, %v1996
      %2030 = vst.msk [vmem:[%s170 + $0x70] sm:$0xff] %vm2015, %v1997
      %2031 = vst.msk [vmem:[%s170 + $0x78] sm:$0xff] %vm2015, %v1998
      %2032 = vst.msk [vmem:[%s170 + $0x80] sm:$0xff] %vm2015, %v1999
      %2033 = vst.msk [vmem:[%s170 + $0x88] sm:$0xff] %vm2015, %v2000
      %2034 = vst.msk [vmem:[%s170 + $0x90] sm:$0xff] %vm2015, %v2001
      %2035 = vst.msk [vmem:[%s170 + $0x98] sm:$0xff] %vm2015, %v2002
      %2036 = vst.msk [vmem:[%s170 + $0xa0] sm:$0xff] %vm2015, %v2003
      %2037 = vst.msk [vmem:[%s170 + $0xa8] sm:$0xff] %vm2015, %v2004
      %2038 = vst.msk [vmem:[%s170 + $0xb0] sm:$0xff] %vm2015, %v2005
      %2039 = vst.msk [vmem:[%s170 + $0xb8] sm:$0xff] %vm2015, %v2006
      %2040 = vst.msk [vmem:[%s170 + $0xc0] sm:$0xff] %vm2015, %v2007
      %2041 = vst.msk [vmem:[%s170 + $0xc8] sm:$0xff] %vm2015, %v2008
      %2042 = vst.msk [vmem:[%s170 + $0xd0] sm:$0xff] %vm2015, %v2009
      %2043 = vst.msk [vmem:[%s170 + $0xd8] sm:$0xff] %vm2015, %v2010
      %2044 = vst.msk [vmem:[%s170 + $0xe0] sm:$0xff] %vm2015, %v2011
      %2045 = vst.msk [vmem:[%s170 + $0xe8] sm:$0xff] %vm2015, %v2012
      %2046 = vst.msk [vmem:[%s170 + $0xf0] sm:$0xff] %vm2015, %v2013
      %2047 = vst.msk [vmem:[%s170 + $0xf8] sm:$0xff] %vm2015, %v2014
      %p2048 = scmp.lt.s32.totalorder %s14, 1
      %s2049 = scalar_select %p2048, %s14, 1
      %s2050 = smul.addr %s2049, 32
      %s2051 = smul.addr %s2050, 8
      %s2052 = scalar_lea.vmem %s3, %s2051
      // Predicated region
      $region33: #{deeplabv3_forward.21} parent=31 // pred_check
        %p2053 = pneg %p100
      $region34: #{deeplabv3_forward.21} parent=31 // pred_check_branch
        %2055 = sbr.rel (%p2053) target = $region36
      $region35: #{deeplabv3_forward.21} parent=31 // pred_region
        _
      $region36: #{deeplabv3_forward.21} parent=31 // pred_fallthru
        _
    $region32: #{deeplabv3_forward.21} parent=5 // pred_fallthru
      _
    %p2056 = scmp.le.s32.totalorder 2, %s9
    // Predicated region
    $region37: #{deeplabv3_forward.21} parent=5 // pred_check
      %p2057 = pneg %p2056
    $region38: #{deeplabv3_forward.21} parent=5 // pred_check_branch
      %2059 = sbr.rel (%p2057) target = $region40
    $region39: #{deeplabv3_forward.21} parent=5 // pred_region
      %s2060 = ssub.s32 %s9, 2
      // Predicated region
      $region41: #{deeplabv3_forward.21} parent=39 // pred_check
        %p2061 = pneg %p106
      $region42: #{deeplabv3_forward.21} parent=39 // pred_check_branch
        %2063 = sbr.rel (%p2061) target = $region44
      $region43: #{deeplabv3_forward.21} parent=39 // pred_region
        %p2064 = scmp.lt.s32.totalorder %s15, 1
        %s2065 = scalar_select %p2064, %s15, 1
        %s2066 = smul.addr %s2065, 32
        %s2067 = smul.addr %s2066, 8
        %s2068 = scalar_lea.vmem %s3, %s2067
      $region44: #{deeplabv3_forward.21} parent=39 // pred_fallthru
        _
    $region40: #{deeplabv3_forward.21} parent=5 // pred_fallthru
      _
  $region6: #{deeplabv3_forward.21} parent=0 // loop_footer
    %s13 = sadd.s32 1, %s9
  $region7: #{deeplabv3_forward.21} parent=0 // loop_footer_branch
    %8 = sbr.rel target = $region3
  $region8: #{deeplabv3_forward.21} parent=0 // loop_exit
    _

// kernel: deeplabv3_forward.25
$region0: #{deeplabv3_forward.25}
  #allocation0 [shape = 'u32[]', space=smem, size = 0x4, offset = 0x4, fixed_abs, tag = 'smem constant byte address 0x4 - core index']
  #allocation1 [shape = 'u32[144,128]{1,0:T(1,128)}', space=vmem, size = 0x12000, scoped, tag = 'internal scratch']
  %s0 = inlined_call_operand.vmem [shape: f32[2,16,48], index: 0, kind: input, shape index: {}]
  %s1 = inlined_call_operand.vmem [shape: f32[48,12], index: 1, kind: input, shape index: {}]
  %s2 = inlined_call_operand.vmem [shape: f32[1,12], index: 2, kind: input, shape index: {}]
  %s3 = inlined_call_operand.vmem [shape: f32[12,48], index: 3, kind: input, shape index: {}]
  %s4 = inlined_call_operand.vmem [shape: f32[1,48], index: 4, kind: input, shape index: {}]
  %s5 = inlined_call_operand.vmem [shape: f32[2,16,48], index: 5, kind: output, shape index: {}]
  %s6 = sld [smem:[#allocation0]]
  $region30: #{deeplabv3_forward.25} parent=0
    _
  %s8 = ssub.s32 1, %s6
  %s9 = scalar_select 0, %s8, %s6
  // Predicated region
  $region2: #{deeplabv3_forward.25} parent=0 // pred_check
    _
  $region3: #{deeplabv3_forward.25} parent=0 // pred_check_branch
    %11 = sbr.rel (0) target = $region5
  $region4: #{deeplabv3_forward.25} parent=0 // pred_region
    _
  $region5: #{deeplabv3_forward.25} parent=0 // pred_fallthru
    _
  // Predicated region
  $region6: #{deeplabv3_forward.25} parent=0 // pred_check
    _
  $region7: #{deeplabv3_forward.25} parent=0 // pred_check_branch
    %13 = sbr.rel (0) target = $region9
  $region8: #{deeplabv3_forward.25} parent=0 // pred_region
    _
  $region9: #{deeplabv3_forward.25} parent=0 // pred_fallthru
    _
  // Predicated region
  $region10: #{deeplabv3_forward.25} parent=0 // pred_check
    _
  $region11: #{deeplabv3_forward.25} parent=0 // pred_check_branch
    %15 = sbr.rel (0) target = $region13
  $region12: #{deeplabv3_forward.25} parent=0 // pred_region
    _
  $region13: #{deeplabv3_forward.25} parent=0 // pred_fallthru
    _
  // Predicated region
  $region14: #{deeplabv3_forward.25} parent=0 // pred_check
    _
  $region15: #{deeplabv3_forward.25} parent=0 // pred_check_branch
    %17 = sbr.rel (0) target = $region17
  $region16: #{deeplabv3_forward.25} parent=0 // pred_region
    _
  $region17: #{deeplabv3_forward.25} parent=0 // pred_fallthru
    _
  // Predicated region
  $region18: #{deeplabv3_forward.25} parent=0 // pred_check
    _
  $region19: #{deeplabv3_forward.25} parent=0 // pred_check_branch
    %19 = sbr.rel (0) target = $region21
  $region20: #{deeplabv3_forward.25} parent=0 // pred_region
    _
  $region21: #{deeplabv3_forward.25} parent=0 // pred_fallthru
    _
  %v20 = vld [vmem:[%s0] sm:$0xff]
  %v21 = vld [vmem:[%s0 + $0x8] sm:$0xff]
  %v22 = vld [vmem:[%s0 + $0x10] sm:$0xff]
  %v23 = vld [vmem:[%s0 + $0x18] sm:$0xff]
  %vm24 = vcmask 392192
  %v25 = vsel %vm24, %v20, 0.0
  %v26 = vsel %vm24, %v21, 0.0
  %v27 = vadd.f32 %v25, %v26
  %v28 = vrot.slane %v27, 4
  %v29 = vadd.f32 %v27, %v28
  %v30 = vrot.slane %v29, 2
  %v31 = vadd.f32 %v29, %v30
  %v32 = vrot.slane %v31, 1
  %v33 = vadd.f32 %v31, %v32
  %v34 = vsel %vm24, %v22, 0.0
  %v35 = vsel %vm24, %v23, 0.0
  %v36 = vadd.f32 %v34, %v35
  %v37 = vrot.slane %v36, 4
  %v38 = vadd.f32 %v36, %v37
  %v39 = vrot.slane %v38, 2
  %v40 = vadd.f32 %v38, %v39
  %v41 = vrot.slane %v40, 1
  %v42 = vadd.f32 %v40, %v41
  %v43 = vrcp.pop 16.0
  %v44 = vmul.f32 %v33, %v43
  %v45 = vmul.f32 %v42, %v43
  %v46 = vld [vmem:[%s1] sm:$0xff]
  %v47 = vld [vmem:[%s1 + $0x8] sm:$0xff]
  %v48 = vld [vmem:[%s1 + $0x10] sm:$0xff]
  %v49 = vld [vmem:[%s1 + $0x18] sm:$0xff]
  %v50 = vld [vmem:[%s1 + $0x20] sm:$0xff]
  %v51 = vld [vmem:[%s1 + $0x28] sm:$0xff]
  %v52 = vld [vmem:[%s2] sm:$0x1]
  %v54 = vlaneseq
  %v55 = vshrl.u32 %v54, 7
  %v56 = vsub.s32 0, %v55
  %v57 = vrot.slane %v52, %v56
  %vm61 = vcmask 1041409
  %v62 = vsel %vm61, %v45, %v44
  %v63 = vsel %vm24, %v62, 0
  %65 = vmatprep.subr.mxu0 0.0
  %66 = vmatpush1.msra.mxu0 0.0
  %67 = vmatprep.subr.mxu0 0.0
  %68 = vmatpush1.msra.mxu0 0.0
  %69 = vmatprep.subr.mxu0 0.0
  %70 = vmatpush1.msra.mxu0 0.0
  %71 = vmatprep.subr.mxu0 0.0
  %72 = vmatpush1.msra.mxu0 0.0
  %73 = vmatprep.subr.mxu0 0.0
  %74 = vmatpush1.msra.mxu0 0.0
  %75 = vmatprep.subr.mxu0 0.0
  %76 = vmatpush1.msra.mxu0 0.0
  %77 = vmatprep.subr.mxu0 0.0
  %78 = vmatpush1.msra.mxu0 0.0
  %79 = vmatprep.subr.mxu0 0.0
  %80 = vmatpush1.msra.mxu0 0.0
  %81 = vmatprep.subr.mxu0 0.0
  %82 = vmatpush1.msra.mxu0 0.0
  %83 = vmatprep.subr.mxu0 0.0
  %84 = vmatpush1.msra.mxu0 0.0
  %85 = vmatprep.subr.mxu0 0.0
  %86 = vmatpush1.msra.mxu0 %v51
  %87 = vmatprep.subr.mxu0 0.0
  %88 = vmatpush1.msra.mxu0 %v50
  %89 = vmatprep.subr.mxu0 0.0
  %90 = vmatpush1.msra.mxu0 %v49
  %91 = vmatprep.subr.mxu0 0.0
  %92 = vmatpush1.msra.mxu0 %v48
  %93 = vmatprep.subr.mxu0 0.0
  %94 = vmatpush1.msra.mxu0 %v47
  %95 = vmatprep.subr.mxu0 0.0
  %96 = vmatpush1.msra.mxu0 %v46
  %97 = vmatprep.subr.mxu0 0.0
  %98 = vmatpush2.msra.mxu0 0.0
  %99 = vmatprep.subr.mxu0 0.0
  %100 = vmatpush2.msra.mxu0 0.0
  %101 = vmatprep.subr.mxu0 0.0
  %102 = vmatpush2.msra.mxu0 0.0
  %103 = vmatprep.subr.mxu0 0.0
  %104 = vmatpush2.msra.mxu0 0.0
  %105 = vmatprep.subr.mxu0 0.0
  %106 = vmatpush2.msra.mxu0 0.0
  %107 = vmatprep.subr.mxu0 0.0
  %108 = vmatpush2.msra.mxu0 0.0
  %109 = vmatprep.subr.mxu0 0.0
  %110 = vmatpush2.msra.mxu0 0.0
  %111 = vmatprep.subr.mxu0 0.0
  %112 = vmatpush2.msra.mxu0 0.0
  %113 = vmatprep.subr.mxu0 0.0
  %114 = vmatpush2.msra.mxu0 0.0
  %115 = vmatprep.subr.mxu0 0.0
  %116 = vmatpush2.msra.mxu0 0.0
  %117 = vmatprep.subr.mxu0 0.0
  %118 = vmatpush2.msra.mxu0 0.0
  %119 = vmatprep.subr.mxu0 0.0
  %120 = vmatpush2.msra.mxu0 0.0
  %121 = vmatprep.subr.mxu0 0.0
  %122 = vmatpush2.msra.mxu0 0.0
  %123 = vmatprep.subr.mxu0 0.0
  %124 = vmatpush2.msra.mxu0 0.0
  %125 = vmatprep.subr.mxu0 0.0
  %126 = vmatpush2.msra.mxu0 0.0
  %127 = vmatprep.subr.mxu0 0.0
  %128 = vmatpush2.msra.mxu0 0.0
  %129 = vmatprep.mubr.f32.mxu0 0.0
  %130 = vmatmul.mubr.f32.gmra.mxu0 %v63
  %v131 = vpop.f32.mrf.mxu0
  %v132 = vadd.f32 %v57, %v131
  %v133 = vpop.f32.mrf.mxu0
  %134 = vdwg.mxu0
  %v135 = vmax.f32 %v132, 0.0
  %v136 = vld [vmem:[%s3] sm:$0xff]
  %v137 = vld [vmem:[%s3 + $0x8] sm:$0xf]
  %v138 = vld [vmem:[%s4] sm:$0x1]
  %v140 = vlaneseq
  %v141 = vshrl.u32 %v140, 7
  %v142 = vsub.s32 0, %v141
  %v143 = vrot.slane %v138, %v142
  %vm145 = vcmask 97280
  %v147 = vsel %vm145, %v135, 0
  %vm149 = vcmask 1043456
  %v151 = vsel %vm149, %v137, 0
  %153 = vmatprep.subr.mxu0 0.0
  %154 = vmatpush1.msra.mxu0 0.0
  %155 = vmatprep.subr.mxu0 0.0
  %156 = vmatpush1.msra.mxu0 0.0
  %157 = vmatprep.subr.mxu0 0.0
  %158 = vmatpush1.msra.mxu0 0.0
  %159 = vmatprep.subr.mxu0 0.0
  %160 = vmatpush1.msra.mxu0 0.0
  %161 = vmatprep.subr.mxu0 0.0
  %162 = vmatpush1.msra.mxu0 0.0
  %163 = vmatprep.subr.mxu0 0.0
  %164 = vmatpush1.msra.mxu0 0.0
  %165 = vmatprep.subr.mxu0 0.0
  %166 = vmatpush1.msra.mxu0 0.0
  %167 = vmatprep.subr.mxu0 0.0
  %168 = vmatpush1.msra.mxu0 0.0
  %169 = vmatprep.subr.mxu0 0.0
  %170 = vmatpush1.msra.mxu0 0.0
  %171 = vmatprep.subr.mxu0 0.0
  %172 = vmatpush1.msra.mxu0 0.0
  %173 = vmatprep.subr.mxu0 0.0
  %174 = vmatpush1.msra.mxu0 0.0
  %175 = vmatprep.subr.mxu0 0.0
  %176 = vmatpush1.msra.mxu0 0.0
  %177 = vmatprep.subr.mxu0 0.0
  %178 = vmatpush1.msra.mxu0 0.0
  %179 = vmatprep.subr.mxu0 0.0
  %180 = vmatpush1.msra.mxu0 0.0
  %181 = vmatprep.subr.mxu0 0.0
  %182 = vmatpush1.msra.mxu0 %v151
  %183 = vmatprep.subr.mxu0 0.0
  %184 = vmatpush1.msra.mxu0 %v136
  %185 = vmatprep.subr.mxu0 0.0
  %186 = vmatpush2.msra.mxu0 0.0
  %187 = vmatprep.subr.mxu0 0.0
  %188 = vmatpush2.msra.mxu0 0.0
  %189 = vmatprep.subr.mxu0 0.0
  %190 = vmatpush2.msra.mxu0 0.0
  %191 = vmatprep.subr.mxu0 0.0
  %192 = vmatpush2.msra.mxu0 0.0
  %193 = vmatprep.subr.mxu0 0.0
  %194 = vmatpush2.msra.mxu0 0.0
  %195 = vmatprep.subr.mxu0 0.0
  %196 = vmatpush2.msra.mxu0 0.0
  %197 = vmatprep.subr.mxu0 0.0
  %198 = vmatpush2.msra.mxu0 0.0
  %199 = vmatprep.subr.mxu0 0.0
  %200 = vmatpush2.msra.mxu0 0.0
  %201 = vmatprep.subr.mxu0 0.0
  %202 = vmatpush2.msra.mxu0 0.0
  %203 = vmatprep.subr.mxu0 0.0
  %204 = vmatpush2.msra.mxu0 0.0
  %205 = vmatprep.subr.mxu0 0.0
  %206 = vmatpush2.msra.mxu0 0.0
  %207 = vmatprep.subr.mxu0 0.0
  %208 = vmatpush2.msra.mxu0 0.0
  %209 = vmatprep.subr.mxu0 0.0
  %210 = vmatpush2.msra.mxu0 0.0
  %211 = vmatprep.subr.mxu0 0.0
  %212 = vmatpush2.msra.mxu0 0.0
  %213 = vmatprep.subr.mxu0 0.0
  %214 = vmatpush2.msra.mxu0 0.0
  %215 = vmatprep.subr.mxu0 0.0
  %216 = vmatpush2.msra.mxu0 0.0
  %217 = vmatprep.mubr.f32.mxu0 0.0
  %218 = vmatmul.mubr.f32.gmra.mxu0 %v147
  %v219 = vpop.f32.mrf.mxu0
  %v220 = vadd.f32 %v143, %v219
  %v221 = vpop.f32.mrf.mxu0
  %222 = vdwg.mxu0
  %v223 = vadd.f32 %v220, 3.0
  %v224 = vmax.f32 %v223, 0.0
  %v225 = vmin.f32 %v224, 6.0
  %v226 = vmul.f32 %v225, 0.16666667
  %v229 = vunpack.c.l.s4 1966171168
  %v230 = vunpack.c.0.s8 %v229
  %v231 = vlaneseq
  %v232 = vshrl.u32 %v231, 7
  %v233 = vsub.s32 %v230, %v232
  %v234 = vrot.slane %v226, %v233
  %v235 = vcombine.high %v234, %v234
  %v237 = vunpack.c.l.s4 1966171168
  %v238 = vunpack.c.0.s8 %v237
  %v239 = vlaneseq
  %v240 = vshrl.u32 %v239, 7
  %v241 = vsub.s32 %v238, %v240
  %v242 = vrot.slane %v234, %v241
  %v244 = vunpack.c.l.s4 1966171168
  %v245 = vunpack.c.0.s8 %v244
  %v246 = vlaneseq
  %v247 = vshrl.u32 %v246, 7
  %v248 = vsub.s32 %v245, %v247
  %v249 = vrot.slane %v235, %v248
  %v250 = vlaneseq
  %v251 = vshrl.u32 %v250, 7
  %v252 = vsub.s32 0, %v251
  %v253 = vrot.slane %v242, %v252
  %v254 = vlaneseq
  %v255 = vshrl.u32 %v254, 7
  %v256 = vsub.s32 0, %v255
  %v257 = vrot.slane %v249, %v256
  %v260 = vmul.f32 %v20, %v253
  %v261 = vmul.f32 %v21, %v253
  %v262 = vmul.f32 %v22, %v257
  %v263 = vmul.f32 %v23, %v257
  %264 = vst.msk [vmem:[%s5] sm:$0xff] %vm24, %v260
  %265 = vst.msk [vmem:[%s5 + $0x8] sm:$0xff] %vm24, %v261
  %266 = vst.msk [vmem:[%s5 + $0x10] sm:$0xff] %vm24, %v262
  %267 = vst.msk [vmem:[%s5 + $0x18] sm:$0xff] %vm24, %v263
  // Predicated region
  $region22: #{deeplabv3_forward.25} parent=0 // pred_check
    _
  $region23: #{deeplabv3_forward.25} parent=0 // pred_check_branch
    %269 = sbr.rel (0) target = $region25
  $region24: #{deeplabv3_forward.25} parent=0 // pred_region
    _
  $region25: #{deeplabv3_forward.25} parent=0 // pred_fallthru
    _
  // Predicated region
  $region26: #{deeplabv3_forward.25} parent=0 // pred_check
    _
  $region27: #{deeplabv3_forward.25} parent=0 // pred_check_branch
    %271 = sbr.rel (0) target = $region29
  $region28: #{deeplabv3_forward.25} parent=0 // pred_region
    _
  $region29: #{deeplabv3_forward.25} parent=0 // pred_fallthru
    _

// kernel: deeplabv3_forward.26
$region0: #{deeplabv3_forward.26}
  #allocation0 [shape = 'u32[]', space=smem, size = 0x4, offset = 0x4, fixed_abs, tag = 'smem constant byte address 0x4 - core index']
  #allocation1 [shape = 'u32[144,128]{1,0:T(1,128)}', space=vmem, size = 0x12000, scoped, tag = 'internal scratch']
  %s0 = inlined_call_operand.vmem [shape: bf16[32,48], index: 0, kind: input, shape index: {}]
  %s1 = inlined_call_operand.vmem [shape: bf16[48,40], index: 1, kind: input, shape index: {}]
  %s2 = inlined_call_operand.vmem [shape: f32[1,40], index: 2, kind: input, shape index: {}]
  %s3 = inlined_call_operand.vmem [shape: f32[32,40], index: 3, kind: output, shape index: {}]
  %s4 = sld [smem:[#allocation0]]
  $region22: #{deeplabv3_forward.26} parent=0
    _
  %s6 = ssub.s32 1, %s4
  %s7 = scalar_select 0, %s6, %s4
  // Predicated region
  $region2: #{deeplabv3_forward.26} parent=0 // pred_check
    _
  $region3: #{deeplabv3_forward.26} parent=0 // pred_check_branch
    %9 = sbr.rel (0) target = $region5
  $region4: #{deeplabv3_forward.26} parent=0 // pred_region
    _
  $region5: #{deeplabv3_forward.26} parent=0 // pred_fallthru
    _
  // Predicated region
  $region6: #{deeplabv3_forward.26} parent=0 // pred_check
    _
  $region7: #{deeplabv3_forward.26} parent=0 // pred_check_branch
    %11 = sbr.rel (0) target = $region9
  $region8: #{deeplabv3_forward.26} parent=0 // pred_region
    _
  $region9: #{deeplabv3_forward.26} parent=0 // pred_fallthru
    _
  // Predicated region
  $region10: #{deeplabv3_forward.26} parent=0 // pred_check
    _
  $region11: #{deeplabv3_forward.26} parent=0 // pred_check_branch
    %13 = sbr.rel (0) target = $region13
  $region12: #{deeplabv3_forward.26} parent=0 // pred_region
    _
  $region13: #{deeplabv3_forward.26} parent=0 // pred_fallthru
    _
  %v15 = vld [vmem:[%s0] sm:$0xf]
  %v16 = vld [vmem:[%s0 + $0x4] sm:$0xf]
  %v17 = vld [vmem:[%s0 + $0x8] sm:$0xf]
  %v18 = vld [vmem:[%s0 + $0xc] sm:$0xf]
  %v19 = vld [vmem:[%s1] sm:$0xf]
  %v20 = vld [vmem:[%s1 + $0x4] sm:$0xf]
  %v21 = vld [vmem:[%s1 + $0x8] sm:$0xf]
  %v22 = vld [vmem:[%s1 + $0xc] sm:$0xf]
  %v23 = vld [vmem:[%s1 + $0x10] sm:$0xf]
  %v24 = vld [vmem:[%s1 + $0x14] sm:$0xf]
  %v25 = vld [vmem:[%s2] sm:$0x1]
  %v27 = vlaneseq
  %v28 = vshrl.u32 %v27, 7
  %v29 = vsub.s32 0, %v28
  %v30 = vrot.slane %v25, %v29
  %v36 = vunpack.c.l.b16 %v15
  %v37 = vunpack.c.l.b16 %v16
  %v38 = vunpack.c.l.b16 %v17
  %v39 = vunpack.c.l.b16 %v18
  %v40 = vpack.c.b16 %v37, %v36
  %v41 = vpack.c.b16 %v39, %v38
  %v48 = vunpack.c.l.b16 %v19
  %v49 = vunpack.c.l.b16 %v20
  %v50 = vunpack.c.l.b16 %v21
  %v51 = vunpack.c.l.b16 %v22
  %v52 = vunpack.c.l.b16 %v23
  %v53 = vunpack.c.l.b16 %v24
  %v54 = vpack.c.b16 %v49, %v48
  %v55 = vpack.c.b16 %v51, %v50
  %v56 = vpack.c.b16 %v53, %v52
  %vm60 = vcmask 392192
  %v62 = vsel %vm60, %v40, 0
  %v65 = vsel %vm60, %v41, 0
  %67 = vmatprep.subr.bf16.mxu0 0
  %68 = vmatpush1.bf16.msra.mxu0 0
  %69 = vmatprep.subr.bf16.mxu0 0
  %70 = vmatpush1.bf16.msra.mxu0 0
  %71 = vmatprep.subr.bf16.mxu0 0
  %72 = vmatpush1.bf16.msra.mxu0 0
  %73 = vmatprep.subr.bf16.mxu0 0
  %74 = vmatpush1.bf16.msra.mxu0 0
  %75 = vmatprep.subr.bf16.mxu0 0
  %76 = vmatpush1.bf16.msra.mxu0 0
  %77 = vmatprep.subr.bf16.mxu0 0
  %78 = vmatpush1.bf16.msra.mxu0 %v56
  %79 = vmatprep.subr.bf16.mxu0 0
  %80 = vmatpush1.bf16.msra.mxu0 %v55
  %81 = vmatprep.subr.bf16.mxu0 0
  %82 = vmatpush1.bf16.msra.mxu0 %v54
  %83 = vmatprep.subr.bf16.mxu0 0
  %84 = vmatpush2.bf16.msra.mxu0 0
  %85 = vmatprep.subr.bf16.mxu0 0
  %86 = vmatpush2.bf16.msra.mxu0 0
  %87 = vmatprep.subr.bf16.mxu0 0
  %88 = vmatpush2.bf16.msra.mxu0 0
  %89 = vmatprep.subr.bf16.mxu0 0
  %90 = vmatpush2.bf16.msra.mxu0 0
  %91 = vmatprep.subr.bf16.mxu0 0
  %92 = vmatpush2.bf16.msra.mxu0 0
  %93 = vmatprep.subr.bf16.mxu0 0
  %94 = vmatpush2.bf16.msra.mxu0 0
  %95 = vmatprep.subr.bf16.mxu0 0
  %96 = vmatpush2.bf16.msra.mxu0 0
  %97 = vmatprep.subr.bf16.mxu0 0
  %98 = vmatpush2.bf16.msra.mxu0 0
  %99 = vmatprep.mubr.bf16.mxu0 0
  %100 = vmatmul.mubr.bf16.gmra.mxu0 %v62
  %v101 = vpop.f32.mrf.mxu0
  %v102 = vadd.f32 %v30, %v101
  %v103 = vpop.f32.mrf.mxu0
  %v104 = vpop.f32.mrf.mxu0
  %v105 = vadd.f32 %v30, %v104
  %v106 = vpop.f32.mrf.mxu0
  %107 = vmatprep.mubr.bf16.mxu0 0
  %108 = vmatmul.mubr.bf16.gmra.mxu0 %v65
  %v109 = vpop.f32.mrf.mxu0
  %v110 = vadd.f32 %v30, %v109
  %v111 = vpop.f32.mrf.mxu0
  %v112 = vpop.f32.mrf.mxu0
  %v113 = vadd.f32 %v30, %v112
  %v114 = vpop.f32.mrf.mxu0
  %115 = vdwg.mxu0
  %vm116 = vcmask 326656
  %117 = vst.msk [vmem:[%s3] sm:$0xff] %vm116, %v102
  %118 = vst.msk [vmem:[%s3 + $0x8] sm:$0xff] %vm116, %v105
  %119 = vst.msk [vmem:[%s3 + $0x10] sm:$0xff] %vm116, %v110
  %120 = vst.msk [vmem:[%s3 + $0x18] sm:$0xff] %vm116, %v113
  // Predicated region
  $region14: #{deeplabv3_forward.26} parent=0 // pred_check
    _
  $region15: #{deeplabv3_forward.26} parent=0 // pred_check_branch
    %122 = sbr.rel (0) target = $region17
  $region16: #{deeplabv3_forward.26} parent=0 // pred_region
    _
  $region17: #{deeplabv3_forward.26} parent=0 // pred_fallthru
    _
  // Predicated region
  $region18: #{deeplabv3_forward.26} parent=0 // pred_check
    _
  $region19: #{deeplabv3_forward.26} parent=0 // pred_check_branch
    %124 = sbr.rel (0) target = $region21
  $region20: #{deeplabv3_forward.26} parent=0 // pred_region
    _
  $region21: #{deeplabv3_forward.26} parent=0 // pred_fallthru
    _

// kernel: deeplabv3_forward.24
$region0: #{deeplabv3_forward.24}
  #allocation0 [shape = 'u32[]', space=smem, size = 0x4, offset = 0x4, fixed_abs, tag = 'smem constant byte address 0x4 - core index']
  #allocation1 [shape = 'u32[144,128]{1,0:T(1,128)}', space=vmem, size = 0x12000, scoped, tag = 'internal scratch']
  %s0 = inlined_call_operand.vmem [shape: bf16[2,10,10,48], index: 0, kind: input, shape index: {}]
  %s1 = inlined_call_operand.vmem [shape: f32[9,1,1,48], index: 1, kind: input, shape index: {}]
  %s2 = inlined_call_operand.vmem [shape: f32[1,1,1,48], index: 2, kind: input, shape index: {}]
  %s3 = inlined_call_operand.vmem [shape: f32[2,8,8,48], index: 3, kind: output, shape index: {}]
  %s4 = sld [smem:[#allocation0]]
  $region45: #{deeplabv3_forward.24} parent=0
    _
  %s6 = ssub.s32 1, %s4
  %s7 = scalar_select 0, %s6, %s4
  loop: start=0, step=1, limit=4
  $region2: #{deeplabv3_forward.24} parent=0 // loop_pre_header
    _
  $region3: #{deeplabv3_forward.24} parent=0 // loop_header
    %s9 = sphi 0, %s13
    %p10 = scmp.ge.s32.totalorder %s9, 4
    %s19 = sphi 0, %s21
    %s22 = sphi 0, %s19
    %s23 = sphi 0, %s22
    %s39 = sphi 0, %s23
    %s43 = sphi 0, %s43
    %s45 = sphi 0, %s43
    %s46 = sphi 0, %s45
    %s60 = sphi 0, %s46
    %s64 = sphi 0, %s64
    %s66 = sphi 0, %s64
    %s67 = sphi 0, %s66
    %s81 = sphi 0, %s67
    %s87 = sphi 0, %s89
    %s90 = sphi 0, %s87
    %s91 = sphi 0, %s90
    %s107 = sphi 0, %s91
  $region4: #{deeplabv3_forward.24} parent=0 // loop_header_branch
    %12 = sbr.rel (%p10) target = $region8
  $region5: #{deeplabv3_forward.24} parent=0 // loop_body
    %s14 = ssub.s32 %s9, 1
    %s15 = ssub.s32 %s9, 2
    %s16 = sadd.s32 %s9, 1
    %s17 = ssub.s32 %s9, %s16
    %p18 = scmp.eq.s32.totalorder %s17, 0
    %s20 = sadd.s32 %s19, 1
    %s21 = scalar_select %p18, %s19, %s20
    %p24 = pneg %p18
    %p25 = scmp.eq.s32.totalorder %s9, 1
    %p26 = por %p24, %p25
    %p27 = scmp.ne.s32.totalorder %s19, %s22
    %p28 = scmp.eq.s32.totalorder %s9, 0
    %p29 = por %p27, %p28
    %p30 = scmp.ne.s32.totalorder %s19, %s22
    %p31 = scmp.eq.s32.totalorder %s14, 1
    %p32 = por %p30, %p31
    %p33 = scmp.ne.s32.totalorder %s22, %s23
    %p34 = scmp.eq.s32.totalorder %s14, 0
    %p35 = por %p33, %p34
    %p36 = scmp.ne.s32.totalorder %s22, %s23
    %p37 = scmp.eq.s32.totalorder %s15, 1
    %p38 = por %p36, %p37
    %p40 = scmp.ne.s32.totalorder %s23, %s39
    %p41 = scmp.eq.s32.totalorder %s15, 0
    %p42 = por %p40, %p41
    %s44 = sadd.s32 %s43, 1
    %p47 = scmp.eq.s32.totalorder %s9, 1
    %p48 = scmp.ne.s32.totalorder %s43, %s45
    %p49 = scmp.eq.s32.totalorder %s9, 0
    %p50 = por %p48, %p49
    %p51 = scmp.ne.s32.totalorder %s43, %s45
    %p52 = scmp.eq.s32.totalorder %s14, 1
    %p53 = por %p51, %p52
    %p54 = scmp.ne.s32.totalorder %s45, %s46
    %p55 = scmp.eq.s32.totalorder %s14, 0
    %p56 = por %p54, %p55
    %p57 = scmp.ne.s32.totalorder %s45, %s46
    %p58 = scmp.eq.s32.totalorder %s15, 1
    %p59 = por %p57, %p58
    %p61 = scmp.ne.s32.totalorder %s46, %s60
    %p62 = scmp.eq.s32.totalorder %s15, 0
    %p63 = por %p61, %p62
    %s65 = sadd.s32 %s64, 1
    %p68 = scmp.eq.s32.totalorder %s9, 1
    %p69 = scmp.ne.s32.totalorder %s64, %s66
    %p70 = scmp.eq.s32.totalorder %s9, 0
    %p71 = por %p69, %p70
    %p72 = scmp.ne.s32.totalorder %s64, %s66
    %p73 = scmp.eq.s32.totalorder %s14, 1
    %p74 = por %p72, %p73
    %p75 = scmp.ne.s32.totalorder %s66, %s67
    %p76 = scmp.eq.s32.totalorder %s14, 0
    %p77 = por %p75, %p76
    %p78 = scmp.ne.s32.totalorder %s66, %s67
    %p79 = scmp.eq.s32.totalorder %s15, 1
    %p80 = por %p78, %p79
    %p82 = scmp.ne.s32.totalorder %s67, %s81
    %p83 = scmp.eq.s32.totalorder %s15, 0
    %p84 = por %p82, %p83
    %s85 = ssub.s32 %s9, %s16
    %p86 = scmp.eq.s32.totalorder %s85, 0
    %s88 = sadd.s32 %s87, 1
    %s89 = scalar_select %p86, %s87, %s88
    %p92 = pneg %p86
    %p93 = scmp.eq.s32.totalorder %s9, 1
    %p94 = por %p92, %p93
    %p95 = scmp.ne.s32.totalorder %s87, %s90
    %p96 = scmp.eq.s32.totalorder %s9, 0
    %p97 = por %p95, %p96
    %p98 = scmp.ne.s32.totalorder %s87, %s90
    %p99 = scmp.eq.s32.totalorder %s14, 1
    %p100 = por %p98, %p99
    %p101 = scmp.ne.s32.totalorder %s90, %s91
    %p102 = scmp.eq.s32.totalorder %s14, 0
    %p103 = por %p101, %p102
    %p104 = scmp.ne.s32.totalorder %s90, %s91
    %p105 = scmp.eq.s32.totalorder %s15, 1
    %p106 = por %p104, %p105
    %p108 = scmp.ne.s32.totalorder %s91, %s107
    %p109 = scmp.eq.s32.totalorder %s15, 0
    %p110 = por %p108, %p109
    %p111 = scmp.le.s32.totalorder 1, %s9
    %p112 = scmp.lt.s32.totalorder %s9, 3
    %p113 = pnand %p111, %p112
    %p114 = pneg %p113
    // Predicated region
    $region9: #{deeplabv3_forward.24} parent=5 // pred_check
      _
    $region10: #{deeplabv3_forward.24} parent=5 // pred_check_branch
      %116 = sbr.rel (%p113) target = $region12
    $region11: #{deeplabv3_forward.24} parent=5 // pred_region
      %s117 = ssub.s32 %s9, 1
      // Predicated region
      $region13: #{deeplabv3_forward.24} parent=11 // pred_check
        %p118 = pneg %p56
      $region14: #{deeplabv3_forward.24} parent=11 // pred_check_branch
        %120 = sbr.rel (%p118) target = $region16
      $region15: #{deeplabv3_forward.24} parent=11 // pred_region
        _
      $region16: #{deeplabv3_forward.24} parent=11 // pred_fallthru
        _
      // Predicated region
      $region17: #{deeplabv3_forward.24} parent=11 // pred_check
        %p121 = pneg %p77
      $region18: #{deeplabv3_forward.24} parent=11 // pred_check_branch
        %123 = sbr.rel (%p121) target = $region20
      $region19: #{deeplabv3_forward.24} parent=11 // pred_region
        _
      $region20: #{deeplabv3_forward.24} parent=11 // pred_fallthru
        _
    $region12: #{deeplabv3_forward.24} parent=5 // pred_fallthru
      _
    %p124 = scmp.lt.s32.totalorder %s9, 2
    // Predicated region
    $region21: #{deeplabv3_forward.24} parent=5 // pred_check
      %p125 = pneg %p124
    $region22: #{deeplabv3_forward.24} parent=5 // pred_check_branch
      %127 = sbr.rel (%p125) target = $region24
    $region23: #{deeplabv3_forward.24} parent=5 // pred_region
      // Predicated region
      $region25: #{deeplabv3_forward.24} parent=23 // pred_check
        %p128 = pneg %p29
      $region26: #{deeplabv3_forward.24} parent=23 // pred_check_branch
        %130 = sbr.rel (%p128) target = $region28
      $region27: #{deeplabv3_forward.24} parent=23 // pred_region
        %p131 = scmp.lt.s32.totalorder %s9, 1
        %s132 = scalar_select %p131, %s9, 1
        %s133 = smul.addr %s132, 20
        %s134 = smul.addr %s133, 4
        %s135 = scalar_lea.vmem %s0, %s134
      $region28: #{deeplabv3_forward.24} parent=23 // pred_fallthru
        _
    $region24: #{deeplabv3_forward.24} parent=5 // pred_fallthru
      _
    %p136 = scmp.le.s32.totalorder 1, %s9
    %p137 = scmp.lt.s32.totalorder %s9, 3
    %p138 = pnand %p136, %p137
    %p139 = pneg %p138
    // Predicated region
    $region29: #{deeplabv3_forward.24} parent=5 // pred_check
      _
    $region30: #{deeplabv3_forward.24} parent=5 // pred_check_branch
      %141 = sbr.rel (%p138) target = $region32
    $region31: #{deeplabv3_forward.24} parent=5 // pred_region
      %s142 = ssub.s32 %s9, 1
      %p143 = scmp.lt.s32.totalorder %s14, 1
      %s144 = scalar_select %p143, %s14, 1
      %s145 = smul.addr %s144, 20
      %s146 = smul.addr %s145, 4
      %s147 = scalar_lea.vmem %s0, %s146
      %p148 = pneg %p35
      %p149 = pneg %p32
      %p150 = pneg %p56
      %p151 = pneg %p53
      %p152 = pneg %p77
      %p153 = pneg %p74
      %p154 = pneg %p103
      %p155 = pneg %p100
      %p156 = scmp.lt.s32.totalorder %s14, 1
      %s157 = scalar_select %p156, %s14, 1
      %s158 = smul.addr %s157, 8
      %s159 = smul.addr %s158, 8
      %s160 = scalar_lea.vmem %s3, %s159
      %p161 = scmp.lt.s32.totalorder %s14, 1
      %s162 = scalar_select %p161, %s14, 1
      %s163 = smul.addr %s162, 20
      %s164 = smul.addr %s163, 4
      %s165 = scalar_lea.vmem %s0, %s164
      %p166 = scmp.lt.s32.totalorder %s14, 1
      %s167 = scalar_select %p166, %s14, 1
      %s168 = smul.addr %s167, 8
      %s169 = smul.addr %s168, 8
      %s170 = scalar_lea.vmem %s3, %s169
      %v171 = vld [vmem:[%s165] sm:$0xf]
      %v172 = vld [vmem:[%s165 + $0x4] sm:$0x1]
      %v173 = vld [vmem:[%s165 + $0x8] sm:$0xf]
      %v174 = vld [vmem:[%s165 + $0xc] sm:$0x1]
      %v175 = vld [vmem:[%s165 + $0x10] sm:$0xf]
      %v176 = vld [vmem:[%s165 + $0x14] sm:$0x1]
      %v177 = vld [vmem:[%s165 + $0x18] sm:$0xf]
      %v178 = vld [vmem:[%s165 + $0x1c] sm:$0x1]
      %v179 = vld [vmem:[%s165 + $0x20] sm:$0xf]
      %v180 = vld [vmem:[%s165 + $0x24] sm:$0x1]
      %v181 = vld [vmem:[%s165 + $0x28] sm:$0xf]
      %v182 = vld [vmem:[%s165 + $0x2c] sm:$0x1]
      %v183 = vld [vmem:[%s165 + $0x30] sm:$0xf]
      %v184 = vld [vmem:[%s165 + $0x34] sm:$0x1]
      %v185 = vld [vmem:[%s165 + $0x38] sm:$0xf]
      %v186 = vld [vmem:[%s165 + $0x3c] sm:$0x1]
      %v187 = vld [vmem:[%s165 + $0x40] sm:$0xf]
      %v188 = vld [vmem:[%s165 + $0x44] sm:$0x1]
      %v189 = vld [vmem:[%s165 + $0x48] sm:$0xf]
      %v190 = vld [vmem:[%s165 + $0x4c] sm:$0x1]
      %v191 = vunpack.c.l.bf16 %v171
      %v192 = vunpack.c.l.bf16 %v172
      %v193 = vunpack.c.l.bf16 %v173
      %v194 = vunpack.c.l.bf16 %v174
      %v195 = vunpack.c.l.bf16 %v175
      %v196 = vunpack.c.l.bf16 %v176
      %v197 = vunpack.c.l.bf16 %v177
      %v198 = vunpack.c.l.bf16 %v178
      %v199 = vunpack.c.l.bf16 %v179
      %v200 = vunpack.c.l.bf16 %v180
      %v201 = vunpack.c.l.bf16 %v181
      %v202 = vunpack.c.l.bf16 %v182
      %v203 = vunpack.c.l.bf16 %v183
      %v204 = vunpack.c.l.bf16 %v184
      %v205 = vunpack.c.l.bf16 %v185
      %v206 = vunpack.c.l.bf16 %v186
      %v207 = vunpack.c.l.bf16 %v187
      %v208 = vunpack.c.l.bf16 %v188
      %v209 = vunpack.c.l.bf16 %v189
      %v210 = vunpack.c.l.bf16 %v190
      %v211 = vld [vmem:[%s1] sm:$0x1]
      %v212 = vld [vmem:[%s1 + $0x1] sm:$0x1]
      %v213 = vld [vmem:[%s1 + $0x2] sm:$0x1]
      %v214 = vld [vmem:[%s1 + $0x3] sm:$0x1]
      %v215 = vld [vmem:[%s1 + $0x4] sm:$0x1]
      %v216 = vld [vmem:[%s1 + $0x5] sm:$0x1]
      %v217 = vld [vmem:[%s1 + $0x6] sm:$0x1]
      %v218 = vld [vmem:[%s1 + $0x7] sm:$0x1]
      %v219 = vld [vmem:[%s1 + $0x8] sm:$0x1]
      %v221 = vlaneseq
      %v222 = vshrl.u32 %v221, 7
      %v223 = vsub.s32 0, %v222
      %v224 = vrot.slane %v211, %v223
      %v226 = vmul.f32 %v191, %v224
      %v227 = vmul.f32 %v193, %v224
      %v228 = vmul.f32 %v195, %v224
      %v229 = vmul.f32 %v197, %v224
      %v230 = vmul.f32 %v199, %v224
      %v231 = vmul.f32 %v201, %v224
      %v232 = vmul.f32 %v203, %v224
      %v233 = vmul.f32 %v205, %v224
      %v235 = vlaneseq
      %v236 = vshrl.u32 %v235, 7
      %v237 = vsub.s32 0, %v236
      %v238 = vrot.slane %v212, %v237
      %v240 = vmul.f32 %v191, %v238
      %v241 = vmul.f32 %v192, %v238
      %v242 = vmul.f32 %v193, %v238
      %v243 = vmul.f32 %v194, %v238
      %v244 = vmul.f32 %v195, %v238
      %v245 = vmul.f32 %v196, %v238
      %v246 = vmul.f32 %v197, %v238
      %v247 = vmul.f32 %v198, %v238
      %v248 = vmul.f32 %v199, %v238
      %v249 = vmul.f32 %v200, %v238
      %v250 = vmul.f32 %v201, %v238
      %v251 = vmul.f32 %v202, %v238
      %v252 = vmul.f32 %v203, %v238
      %v253 = vmul.f32 %v204, %v238
      %v254 = vmul.f32 %v205, %v238
      %v255 = vmul.f32 %v206, %v238
      %vm272 = vcmask 1046528
      %v273 = vrot.slane %v240, 1
      %v274 = vrot.slane %v241, 1
      %v275 = vsel %vm272, %v273, %v274
      %v276 = vrot.slane %v242, 1
      %v277 = vrot.slane %v243, 1
      %v278 = vsel %vm272, %v276, %v277
      %v279 = vrot.slane %v244, 1
      %v280 = vrot.slane %v245, 1
      %v281 = vsel %vm272, %v279, %v280
      %v282 = vrot.slane %v246, 1
      %v283 = vrot.slane %v247, 1
      %v284 = vsel %vm272, %v282, %v283
      %v285 = vrot.slane %v248, 1
      %v286 = vrot.slane %v249, 1
      %v287 = vsel %vm272, %v285, %v286
      %v288 = vrot.slane %v250, 1
      %v289 = vrot.slane %v251, 1
      %v290 = vsel %vm272, %v288, %v289
      %v291 = vrot.slane %v252, 1
      %v292 = vrot.slane %v253, 1
      %v293 = vsel %vm272, %v291, %v292
      %v294 = vrot.slane %v254, 1
      %v295 = vrot.slane %v255, 1
      %v296 = vsel %vm272, %v294, %v295
      %v305 = vadd.f32 %v226, %v275
      %v306 = vadd.f32 %v227, %v278
      %v307 = vadd.f32 %v228, %v281
      %v308 = vadd.f32 %v229, %v284
      %v309 = vadd.f32 %v230, %v287
      %v310 = vadd.f32 %v231, %v290
      %v311 = vadd.f32 %v232, %v293
      %v312 = vadd.f32 %v233, %v296
      %v314 = vlaneseq
      %v315 = vshrl.u32 %v314, 7
      %v316 = vsub.s32 0, %v315
      %v317 = vrot.slane %v213, %v316
      %v319 = vmul.f32 %v191, %v317
      %v320 = vmul.f32 %v192, %v317
      %v321 = vmul.f32 %v193, %v317
      %v322 = vmul.f32 %v194, %v317
      %v323 = vmul.f32 %v195, %v317
      %v324 = vmul.f32 %v196, %v317
      %v325 = vmul.f32 %v197, %v317
      %v326 = vmul.f32 %v198, %v317
      %v327 = vmul.f32 %v199, %v317
      %v328 = vmul.f32 %v200, %v317
      %v329 = vmul.f32 %v201, %v317
      %v330 = vmul.f32 %v202, %v317
      %v331 = vmul.f32 %v203, %v317
      %v332 = vmul.f32 %v204, %v317
      %v333 = vmul.f32 %v205, %v317
      %v334 = vmul.f32 %v206, %v317
      %vm351 = vcmask 1045504
      %v352 = vrot.slane %v319, 2
      %v353 = vrot.slane %v320, 2
      %v354 = vsel %vm351, %v352, %v353
      %v355 = vrot.slane %v321, 2
      %v356 = vrot.slane %v322, 2
      %v357 = vsel %vm351, %v355, %v356
      %v358 = vrot.slane %v323, 2
      %v359 = vrot.slane %v324, 2
      %v360 = vsel %vm351, %v358, %v359
      %v361 = vrot.slane %v325, 2
      %v362 = vrot.slane %v326, 2
      %v363 = vsel %vm351, %v361, %v362
      %v364 = vrot.slane %v327, 2
      %v365 = vrot.slane %v328, 2
      %v366 = vsel %vm351, %v364, %v365
      %v367 = vrot.slane %v329, 2
      %v368 = vrot.slane %v330, 2
      %v369 = vsel %vm351, %v367, %v368
      %v370 = vrot.slane %v331, 2
      %v371 = vrot.slane %v332, 2
      %v372 = vsel %vm351, %v370, %v371
      %v373 = vrot.slane %v333, 2
      %v374 = vrot.slane %v334, 2
      %v375 = vsel %vm351, %v373, %v374
      %v384 = vadd.f32 %v305, %v354
      %v385 = vadd.f32 %v306, %v357
      %v386 = vadd.f32 %v307, %v360
      %v387 = vadd.f32 %v308, %v363
      %v388 = vadd.f32 %v309, %v366
      %v389 = vadd.f32 %v310, %v369
      %v390 = vadd.f32 %v311, %v372
      %v391 = vadd.f32 %v312, %v375
      %v393 = vlaneseq
      %v394 = vshrl.u32 %v393, 7
      %v395 = vsub.s32 0, %v394
      %v396 = vrot.slane %v214, %v395
      %v398 = vmul.f32 %v193, %v396
      %v399 = vmul.f32 %v195, %v396
      %v400 = vmul.f32 %v197, %v396
      %v401 = vmul.f32 %v199, %v396
      %v402 = vmul.f32 %v201, %v396
      %v403 = vmul.f32 %v203, %v396
      %v404 = vmul.f32 %v205, %v396
      %v405 = vmul.f32 %v207, %v396
      %v406 = vadd.f32 %v384, %v398
      %v407 = vadd.f32 %v385, %v399
      %v408 = vadd.f32 %v386, %v400
      %v409 = vadd.f32 %v387, %v401
      %v410 = vadd.f32 %v388, %v402
      %v411 = vadd.f32 %v389, %v403
      %v412 = vadd.f32 %v390, %v404
      %v413 = vadd.f32 %v391, %v405
      %v415 = vlaneseq
      %v416 = vshrl.u32 %v415, 7
      %v417 = vsub.s32 0, %v416
      %v418 = vrot.slane %v215, %v417
      %v420 = vmul.f32 %v193, %v418
      %v421 = vmul.f32 %v194, %v418
      %v422 = vmul.f32 %v195, %v418
      %v423 = vmul.f32 %v196, %v418
      %v424 = vmul.f32 %v197, %v418
      %v425 = vmul.f32 %v198, %v418
      %v426 = vmul.f32 %v199, %v418
      %v427 = vmul.f32 %v200, %v418
      %v428 = vmul.f32 %v201, %v418
      %v429 = vmul.f32 %v202, %v418
      %v430 = vmul.f32 %v203, %v418
      %v431 = vmul.f32 %v204, %v418
      %v432 = vmul.f32 %v205, %v418
      %v433 = vmul.f32 %v206, %v418
      %v434 = vmul.f32 %v207, %v418
      %v435 = vmul.f32 %v208, %v418
      %v452 = vrot.slane %v420, 1
      %v453 = vrot.slane %v421, 1
      %v454 = vsel %vm272, %v452, %v453
      %v455 = vrot.slane %v422, 1
      %v456 = vrot.slane %v423, 1
      %v457 = vsel %vm272, %v455, %v456
      %v458 = vrot.slane %v424, 1
      %v459 = vrot.slane %v425, 1
      %v460 = vsel %vm272, %v458, %v459
      %v461 = vrot.slane %v426, 1
      %v462 = vrot.slane %v427, 1
      %v463 = vsel %vm272, %v461, %v462
      %v464 = vrot.slane %v428, 1
      %v465 = vrot.slane %v429, 1
      %v466 = vsel %vm272, %v464, %v465
      %v467 = vrot.slane %v430, 1
      %v468 = vrot.slane %v431, 1
      %v469 = vsel %vm272, %v467, %v468
      %v470 = vrot.slane %v432, 1
      %v471 = vrot.slane %v433, 1
      %v472 = vsel %vm272, %v470, %v471
      %v473 = vrot.slane %v434, 1
      %v474 = vrot.slane %v435, 1
      %v475 = vsel %vm272, %v473, %v474
      %v484 = vadd.f32 %v406, %v454
      %v485 = vadd.f32 %v407, %v457
      %v486 = vadd.f32 %v408, %v460
      %v487 = vadd.f32 %v409, %v463
      %v488 = vadd.f32 %v410, %v466
      %v489 = vadd.f32 %v411, %v469
      %v490 = vadd.f32 %v412, %v472
      %v491 = vadd.f32 %v413, %v475
      %v493 = vlaneseq
      %v494 = vshrl.u32 %v493, 7
      %v495 = vsub.s32 0, %v494
      %v496 = vrot.slane %v216, %v495
      %v498 = vmul.f32 %v193, %v496
      %v499 = vmul.f32 %v194, %v496
      %v500 = vmul.f32 %v195, %v496
      %v501 = vmul.f32 %v196, %v496
      %v502 = vmul.f32 %v197, %v496
      %v503 = vmul.f32 %v198, %v496
      %v504 = vmul.f32 %v199, %v496
      %v505 = vmul.f32 %v200, %v496
      %v506 = vmul.f32 %v201, %v496
      %v507 = vmul.f32 %v202, %v496
      %v508 = vmul.f32 %v203, %v496
      %v509 = vmul.f32 %v204, %v496
      %v510 = vmul.f32 %v205, %v496
      %v511 = vmul.f32 %v206, %v496
      %v512 = vmul.f32 %v207, %v496
      %v513 = vmul.f32 %v208, %v496
      %v530 = vrot.slane %v498, 2
      %v531 = vrot.slane %v499, 2
      %v532 = vsel %vm351, %v530, %v531
      %v533 = vrot.slane %v500, 2
      %v534 = vrot.slane %v501, 2
      %v535 = vsel %vm351, %v533, %v534
      %v536 = vrot.slane %v502, 2
      %v537 = vrot.slane %v503, 2
      %v538 = vsel %vm351, %v536, %v537
      %v539 = vrot.slane %v504, 2
      %v540 = vrot.slane %v505, 2
      %v541 = vsel %vm351, %v539, %v540
      %v542 = vrot.slane %v506, 2
      %v543 = vrot.slane %v507, 2
      %v544 = vsel %vm351, %v542, %v543
      %v545 = vrot.slane %v508, 2
      %v546 = vrot.slane %v509, 2
      %v547 = vsel %vm351, %v545, %v546
      %v548 = vrot.slane %v510, 2
      %v549 = vrot.slane %v511, 2
      %v550 = vsel %vm351, %v548, %v549
      %v551 = vrot.slane %v512, 2
      %v552 = vrot.slane %v513, 2
      %v553 = vsel %vm351, %v551, %v552
      %v562 = vadd.f32 %v484, %v532
      %v563 = vadd.f32 %v485, %v535
      %v564 = vadd.f32 %v486, %v538
      %v565 = vadd.f32 %v487, %v541
      %v566 = vadd.f32 %v488, %v544
      %v567 = vadd.f32 %v489, %v547
      %v568 = vadd.f32 %v490, %v550
      %v569 = vadd.f32 %v491, %v553
      %v571 = vlaneseq
      %v572 = vshrl.u32 %v571, 7
      %v573 = vsub.s32 0, %v572
      %v574 = vrot.slane %v217, %v573
      %v576 = vmul.f32 %v195, %v574
      %v577 = vmul.f32 %v197, %v574
      %v578 = vmul.f32 %v199, %v574
      %v579 = vmul.f32 %v201, %v574
      %v580 = vmul.f32 %v203, %v574
      %v581 = vmul.f32 %v205, %v574
      %v582 = vmul.f32 %v207, %v574
      %v583 = vmul.f32 %v209, %v574
      %v584 = vadd.f32 %v562, %v576
      %v585 = vadd.f32 %v563, %v577
      %v586 = vadd.f32 %v564, %v578
      %v587 = vadd.f32 %v565, %v579
      %v588 = vadd.f32 %v566, %v580
      %v589 = vadd.f32 %v567, %v581
      %v590 = vadd.f32 %v568, %v582
      %v591 = vadd.f32 %v569, %v583
      %v593 = vlaneseq
      %v594 = vshrl.u32 %v593, 7
      %v595 = vsub.s32 0, %v594
      %v596 = vrot.slane %v218, %v595
      %v598 = vmul.f32 %v195, %v596
      %v599 = vmul.f32 %v196, %v596
      %v600 = vmul.f32 %v197, %v596
      %v601 = vmul.f32 %v198, %v596
      %v602 = vmul.f32 %v199, %v596
      %v603 = vmul.f32 %v200, %v596
      %v604 = vmul.f32 %v201, %v596
      %v605 = vmul.f32 %v202, %v596
      %v606 = vmul.f32 %v203, %v596
      %v607 = vmul.f32 %v204, %v596
      %v608 = vmul.f32 %v205, %v596
      %v609 = vmul.f32 %v206, %v596
      %v610 = vmul.f32 %v207, %v596
      %v611 = vmul.f32 %v208, %v596
      %v612 = vmul.f32 %v209, %v596
      %v613 = vmul.f32 %v210, %v596
      %v630 = vrot.slane %v598, 1
      %v631 = vrot.slane %v599, 1
      %v632 = vsel %vm272, %v630, %v631
      %v633 = vrot.slane %v600, 1
      %v634 = vrot.slane %v601, 1
      %v635 = vsel %vm272, %v633, %v634
      %v636 = vrot.slane %v602, 1
      %v637 = vrot.slane %v603, 1
      %v638 = vsel %vm272, %v636, %v637
      %v639 = vrot.slane %v604, 1
      %v640 = vrot.slane %v605, 1
      %v641 = vsel %vm272, %v639, %v640
      %v642 = vrot.slane %v606, 1
      %v643 = vrot.slane %v607, 1
      %v644 = vsel %vm272, %v642, %v643
      %v645 = vrot.slane %v608, 1
      %v646 = vrot.slane %v609, 1
      %v647 = vsel %vm272, %v645, %v646
      %v648 = vrot.slane %v610, 1
      %v649 = vrot.slane %v611, 1
      %v650 = vsel %vm272, %v648, %v649
      %v651 = vrot.slane %v612, 1
      %v652 = vrot.slane %v613, 1
      %v653 = vsel %vm272, %v651, %v652
      %v662 = vadd.f32 %v584, %v632
      %v663 = vadd.f32 %v585, %v635
      %v664 = vadd.f32 %v586, %v638
      %v665 = vadd.f32 %v587, %v641
      %v666 = vadd.f32 %v588, %v644
      %v667 = vadd.f32 %v589, %v647
      %v668 = vadd.f32 %v590, %v650
      %v669 = vadd.f32 %v591, %v653
      %v671 = vlaneseq
      %v672 = vshrl.u32 %v671, 7
      %v673 = vsub.s32 0, %v672
      %v674 = vrot.slane %v219, %v673
      %v676 = vmul.f32 %v195, %v674
      %v677 = vmul.f32 %v196, %v674
      %v678 = vmul.f32 %v197, %v674
      %v679 = vmul.f32 %v198, %v674
      %v680 = vmul.f32 %v199, %v674
      %v681 = vmul.f32 %v200, %v674
      %v682 = vmul.f32 %v201, %v674
      %v683 = vmul.f32 %v202, %v674
      %v684 = vmul.f32 %v203, %v674
      %v685 = vmul.f32 %v204, %v674
      %v686 = vmul.f32 %v205, %v674
      %v687 = vmul.f32 %v206, %v674
      %v688 = vmul.f32 %v207, %v674
      %v689 = vmul.f32 %v208, %v674
      %v690 = vmul.f32 %v209, %v674
      %v691 = vmul.f32 %v210, %v674
      %v708 = vrot.slane %v676, 2
      %v709 = vrot.slane %v677, 2
      %v710 = vsel %vm351, %v708, %v709
      %v711 = vrot.slane %v678, 2
      %v712 = vrot.slane %v679, 2
      %v713 = vsel %vm351, %v711, %v712
      %v714 = vrot.slane %v680, 2
      %v715 = vrot.slane %v681, 2
      %v716 = vsel %vm351, %v714, %v715
      %v717 = vrot.slane %v682, 2
      %v718 = vrot.slane %v683, 2
      %v719 = vsel %vm351, %v717, %v718
      %v720 = vrot.slane %v684, 2
      %v721 = vrot.slane %v685, 2
      %v722 = vsel %vm351, %v720, %v721
      %v723 = vrot.slane %v686, 2
      %v724 = vrot.slane %v687, 2
      %v725 = vsel %vm351, %v723, %v724
      %v726 = vrot.slane %v688, 2
      %v727 = vrot.slane %v689, 2
      %v728 = vsel %vm351, %v726, %v727
      %v729 = vrot.slane %v690, 2
      %v730 = vrot.slane %v691, 2
      %v731 = vsel %vm351, %v729, %v730
      %v740 = vadd.f32 %v662, %v710
      %v741 = vadd.f32 %v663, %v713
      %v742 = vadd.f32 %v664, %v716
      %v743 = vadd.f32 %v665, %v719
      %v744 = vadd.f32 %v666, %v722
      %v745 = vadd.f32 %v667, %v725
      %v746 = vadd.f32 %v668, %v728
      %v747 = vadd.f32 %v669, %v731
      %v748 = vld [vmem:[%s2] sm:$0x1]
      %v750 = vlaneseq
      %v751 = vshrl.u32 %v750, 7
      %v752 = vsub.s32 0, %v751
      %v753 = vrot.slane %v748, %v752
      %v755 = vadd.f32 %v740, %v753
      %v756 = vadd.f32 %v741, %v753
      %v757 = vadd.f32 %v742, %v753
      %v758 = vadd.f32 %v743, %v753
      %v759 = vadd.f32 %v744, %v753
      %v760 = vadd.f32 %v745, %v753
      %v761 = vadd.f32 %v746, %v753
      %v762 = vadd.f32 %v747, %v753
      %v763 = vmax.f32 %v755, 0.0
      %v764 = vmax.f32 %v756, 0.0
      %v765 = vmax.f32 %v757, 0.0
      %v766 = vmax.f32 %v758, 0.0
      %v767 = vmax.f32 %v759, 0.0
      %v768 = vmax.f32 %v760, 0.0
      %v769 = vmax.f32 %v761, 0.0
      %v770 = vmax.f32 %v762, 0.0
      %vm771 = vcmask 392192
      %772 = vst.msk [vmem:[%s170] sm:$0xff] %vm771, %v763
      %773 = vst.msk [vmem:[%s170 + $0x8] sm:$0xff] %vm771, %v764
      %774 = vst.msk [vmem:[%s170 + $0x10] sm:$0xff] %vm771, %v765
      %775 = vst.msk [vmem:[%s170 + $0x18] sm:$0xff] %vm771, %v766
      %776 = vst.msk [vmem:[%s170 + $0x20] sm:$0xff] %vm771, %v767
      %777 = vst.msk [vmem:[%s170 + $0x28] sm:$0xff] %vm771, %v768
      %778 = vst.msk [vmem:[%s170 + $0x30] sm:$0xff] %vm771, %v769
      %779 = vst.msk [vmem:[%s170 + $0x38] sm:$0xff] %vm771, %v770
      %p780 = scmp.lt.s32.totalorder %s14, 1
      %s781 = scalar_select %p780, %s14, 1
      %s782 = smul.addr %s781, 8
      %s783 = smul.addr %s782, 8
      %s784 = scalar_lea.vmem %s3, %s783
      // Predicated region
      $region33: #{deeplabv3_forward.24} parent=31 // pred_check
        %p785 = pneg %p100
      $region34: #{deeplabv3_forward.24} parent=31 // pred_check_branch
        %787 = sbr.rel (%p785) target = $region36
      $region35: #{deeplabv3_forward.24} parent=31 // pred_region
        _
      $region36: #{deeplabv3_forward.24} parent=31 // pred_fallthru
        _
    $region32: #{deeplabv3_forward.24} parent=5 // pred_fallthru
      _
    %p788 = scmp.le.s32.totalorder 2, %s9
    // Predicated region
    $region37: #{deeplabv3_forward.24} parent=5 // pred_check
      %p789 = pneg %p788
    $region38: #{deeplabv3_forward.24} parent=5 // pred_check_branch
      %791 = sbr.rel (%p789) target = $region40
    $region39: #{deeplabv3_forward.24} parent=5 // pred_region
      %s792 = ssub.s32 %s9, 2
      // Predicated region
      $region41: #{deeplabv3_forward.24} parent=39 // pred_check
        %p793 = pneg %p106
      $region42: #{deeplabv3_forward.24} parent=39 // pred_check_branch
        %795 = sbr.rel (%p793) target = $region44
      $region43: #{deeplabv3_forward.24} parent=39 // pred_region
        %p796 = scmp.lt.s32.totalorder %s15, 1
        %s797 = scalar_select %p796, %s15, 1
        %s798 = smul.addr %s797, 8
        %s799 = smul.addr %s798, 8
        %s800 = scalar_lea.vmem %s3, %s799
      $region44: #{deeplabv3_forward.24} parent=39 // pred_fallthru
        _
    $region40: #{deeplabv3_forward.24} parent=5 // pred_fallthru
      _
  $region6: #{deeplabv3_forward.24} parent=0 // loop_footer
    %s13 = sadd.s32 1, %s9
  $region7: #{deeplabv3_forward.24} parent=0 // loop_footer_branch
    %8 = sbr.rel target = $region3
  $region8: #{deeplabv3_forward.24} parent=0 // loop_exit
    _

// kernel: deeplabv3_forward.27
$region0: #{deeplabv3_forward.27}
  #allocation0 [shape = 'u32[]', space=smem, size = 0x4, offset = 0x4, fixed_abs, tag = 'smem constant byte address 0x4 - core index']
  #allocation1 [shape = 'u32[144,128]{1,0:T(1,128)}', space=vmem, size = 0x12000, scoped, tag = 'internal scratch']
  %s0 = inlined_call_operand.vmem [shape: bf16[32,40], index: 0, kind: input, shape index: {}]
  %s1 = inlined_call_operand.vmem [shape: bf16[40,80], index: 1, kind: input, shape index: {}]
  %s2 = inlined_call_operand.vmem [shape: f32[1,80], index: 2, kind: input, shape index: {}]
  %s3 = inlined_call_operand.vmem [shape: f32[32,80], index: 3, kind: output, shape index: {}]
  %s4 = sld [smem:[#allocation0]]
  $region22: #{deeplabv3_forward.27} parent=0
    _
  %s6 = ssub.s32 1, %s4
  %s7 = scalar_select 0, %s6, %s4
  // Predicated region
  $region2: #{deeplabv3_forward.27} parent=0 // pred_check
    _
  $region3: #{deeplabv3_forward.27} parent=0 // pred_check_branch
    %9 = sbr.rel (0) target = $region5
  $region4: #{deeplabv3_forward.27} parent=0 // pred_region
    _
  $region5: #{deeplabv3_forward.27} parent=0 // pred_fallthru
    _
  // Predicated region
  $region6: #{deeplabv3_forward.27} parent=0 // pred_check
    _
  $region7: #{deeplabv3_forward.27} parent=0 // pred_check_branch
    %11 = sbr.rel (0) target = $region9
  $region8: #{deeplabv3_forward.27} parent=0 // pred_region
    _
  $region9: #{deeplabv3_forward.27} parent=0 // pred_fallthru
    _
  // Predicated region
  $region10: #{deeplabv3_forward.27} parent=0 // pred_check
    _
  $region11: #{deeplabv3_forward.27} parent=0 // pred_check_branch
    %13 = sbr.rel (0) target = $region13
  $region12: #{deeplabv3_forward.27} parent=0 // pred_region
    _
  $region13: #{deeplabv3_forward.27} parent=0 // pred_fallthru
    _
  %v15 = vld [vmem:[%s0] sm:$0xf]
  %v16 = vld [vmem:[%s0 + $0x4] sm:$0xf]
  %v17 = vld [vmem:[%s0 + $0x8] sm:$0xf]
  %v18 = vld [vmem:[%s0 + $0xc] sm:$0xf]
  %v19 = vld [vmem:[%s1] sm:$0xf]
  %v20 = vld [vmem:[%s1 + $0x4] sm:$0xf]
  %v21 = vld [vmem:[%s1 + $0x8] sm:$0xf]
  %v22 = vld [vmem:[%s1 + $0xc] sm:$0xf]
  %v23 = vld [vmem:[%s1 + $0x10] sm:$0xf]
  %v24 = vld [vmem:[%s2] sm:$0x1]
  %v26 = vlaneseq
  %v27 = vshrl.u32 %v26, 7
  %v28 = vsub.s32 0, %v27
  %v29 = vrot.slane %v24, %v28
  %v35 = vunpack.c.l.b16 %v15
  %v36 = vunpack.c.l.b16 %v16
  %v37 = vunpack.c.l.b16 %v17
  %v38 = vunpack.c.l.b16 %v18
  %v39 = vpack.c.b16 %v36, %v35
  %v40 = vpack.c.b16 %v38, %v37
  %v46 = vunpack.c.l.b16 %v19
  %v47 = vunpack.c.l.b16 %v20
  %v48 = vunpack.c.l.b16 %v21
  %v49 = vunpack.c.l.b16 %v22
  %v50 = vunpack.c.l.b16 %v23
  %v51 = vpack.c.b16 %v47, %v46
  %v52 = vpack.c.b16 %v49, %v48
  %v53 = vpack.c.b16 %v50, %v50
  %vm56 = vcmask 326656
  %v58 = vsel %vm56, %v39, 0
  %v61 = vsel %vm56, %v40, 0
  %vm63 = vcmask 1043456
  %v65 = vsel %vm63, %v53, 0
  %67 = vmatprep.subr.bf16.mxu0 0
  %68 = vmatpush1.bf16.msra.mxu0 0
  %69 = vmatprep.subr.bf16.mxu0 0
  %70 = vmatpush1.bf16.msra.mxu0 0
  %71 = vmatprep.subr.bf16.mxu0 0
  %72 = vmatpush1.bf16.msra.mxu0 0
  %73 = vmatprep.subr.bf16.mxu0 0
  %74 = vmatpush1.bf16.msra.mxu0 0
  %75 = vmatprep.subr.bf16.mxu0 0
  %76 = vmatpush1.bf16.msra.mxu0 0
  %77 = vmatprep.subr.bf16.mxu0 0
  %78 = vmatpush1.bf16.msra.mxu0 %v65
  %79 = vmatprep.subr.bf16.mxu0 0
  %80 = vmatpush1.bf16.msra.mxu0 %v52
  %81 = vmatprep.subr.bf16.mxu0 0
  %82 = vmatpush1.bf16.msra.mxu0 %v51
  %83 = vmatprep.subr.bf16.mxu0 0
  %84 = vmatpush2.bf16.msra.mxu0 0
  %85 = vmatprep.subr.bf16.mxu0 0
  %86 = vmatpush2.bf16.msra.mxu0 0
  %87 = vmatprep.subr.bf16.mxu0 0
  %88 = vmatpush2.bf16.msra.mxu0 0
  %89 = vmatprep.subr.bf16.mxu0 0
  %90 = vmatpush2.bf16.msra.mxu0 0
  %91 = vmatprep.subr.bf16.mxu0 0
  %92 = vmatpush2.bf16.msra.mxu0 0
  %93 = vmatprep.subr.bf16.mxu0 0
  %94 = vmatpush2.bf16.msra.mxu0 0
  %95 = vmatprep.subr.bf16.mxu0 0
  %96 = vmatpush2.bf16.msra.mxu0 0
  %97 = vmatprep.subr.bf16.mxu0 0
  %98 = vmatpush2.bf16.msra.mxu0 0
  %99 = vmatprep.mubr.bf16.mxu0 0
  %100 = vmatmul.mubr.bf16.gmra.mxu0 %v58
  %v101 = vpop.f32.mrf.mxu0
  %v102 = vadd.f32 %v29, %v101
  %v103 = vpop.f32.mrf.mxu0
  %v104 = vpop.f32.mrf.mxu0
  %v105 = vadd.f32 %v29, %v104
  %v106 = vpop.f32.mrf.mxu0
  %107 = vmatprep.mubr.bf16.mxu0 0
  %108 = vmatmul.mubr.bf16.gmra.mxu0 %v61
  %v109 = vpop.f32.mrf.mxu0
  %v110 = vadd.f32 %v29, %v109
  %v111 = vpop.f32.mrf.mxu0
  %v112 = vpop.f32.mrf.mxu0
  %v113 = vadd.f32 %v29, %v112
  %v114 = vpop.f32.mrf.mxu0
  %115 = vdwg.mxu0
  %v116 = vadd.f32 %v102, 3.0
  %v117 = vadd.f32 %v105, 3.0
  %v118 = vadd.f32 %v110, 3.0
  %v119 = vadd.f32 %v113, 3.0
  %v120 = vmax.f32 %v116, 0.0
  %v121 = vmax.f32 %v117, 0.0
  %v122 = vmax.f32 %v118, 0.0
  %v123 = vmax.f32 %v119, 0.0
  %v124 = vmin.f32 %v120, 6.0
  %v125 = vmin.f32 %v121, 6.0
  %v126 = vmin.f32 %v122, 6.0
  %v127 = vmin.f32 %v123, 6.0
  %v128 = vmul.f32 %v102, %v124
  %v129 = vmul.f32 %v105, %v125
  %v130 = vmul.f32 %v110, %v126
  %v131 = vmul.f32 %v113, %v127
  %v132 = vmul.f32 %v128, 0.16666667
  %v133 = vmul.f32 %v129, 0.16666667
  %v134 = vmul.f32 %v130, 0.16666667
  %v135 = vmul.f32 %v131, 0.16666667
  %vm136 = vcmask 654336
  %137 = vst.msk [vmem:[%s3] sm:$0xff] %vm136, %v132
  %138 = vst.msk [vmem:[%s3 + $0x8] sm:$0xff] %vm136, %v133
  %139 = vst.msk [vmem:[%s3 + $0x10] sm:$0xff] %vm136, %v134
  %140 = vst.msk [vmem:[%s3 + $0x18] sm:$0xff] %vm136, %v135
  // Predicated region
  $region14: #{deeplabv3_forward.27} parent=0 // pred_check
    _
  $region15: #{deeplabv3_forward.27} parent=0 // pred_check_branch
    %142 = sbr.rel (0) target = $region17
  $region16: #{deeplabv3_forward.27} parent=0 // pred_region
    _
  $region17: #{deeplabv3_forward.27} parent=0 // pred_fallthru
    _
  // Predicated region
  $region18: #{deeplabv3_forward.27} parent=0 // pred_check
    _
  $region19: #{deeplabv3_forward.27} parent=0 // pred_check_branch
    %144 = sbr.rel (0) target = $region21
  $region20: #{deeplabv3_forward.27} parent=0 // pred_region
    _
  $region21: #{deeplabv3_forward.27} parent=0 // pred_fallthru
    _

// kernel: deeplabv3_forward.29
$region0: #{deeplabv3_forward.29}
  #allocation0 [shape = 'u32[]', space=smem, size = 0x4, offset = 0x4, fixed_abs, tag = 'smem constant byte address 0x4 - core index']
  #allocation1 [shape = 'u32[144,128]{1,0:T(1,128)}', space=vmem, size = 0x12000, scoped, tag = 'internal scratch']
  %s0 = inlined_call_operand.vmem [shape: f32[2,16,80], index: 0, kind: input, shape index: {}]
  %s1 = inlined_call_operand.vmem [shape: f32[80,20], index: 1, kind: input, shape index: {}]
  %s2 = inlined_call_operand.vmem [shape: f32[1,20], index: 2, kind: input, shape index: {}]
  %s3 = inlined_call_operand.vmem [shape: f32[20,80], index: 3, kind: input, shape index: {}]
  %s4 = inlined_call_operand.vmem [shape: f32[1,80], index: 4, kind: input, shape index: {}]
  %s5 = inlined_call_operand.vmem [shape: f32[2,16,80], index: 5, kind: output, shape index: {}]
  %s6 = sld [smem:[#allocation0]]
  $region30: #{deeplabv3_forward.29} parent=0
    _
  %s8 = ssub.s32 1, %s6
  %s9 = scalar_select 0, %s8, %s6
  // Predicated region
  $region2: #{deeplabv3_forward.29} parent=0 // pred_check
    _
  $region3: #{deeplabv3_forward.29} parent=0 // pred_check_branch
    %11 = sbr.rel (0) target = $region5
  $region4: #{deeplabv3_forward.29} parent=0 // pred_region
    _
  $region5: #{deeplabv3_forward.29} parent=0 // pred_fallthru
    _
  // Predicated region
  $region6: #{deeplabv3_forward.29} parent=0 // pred_check
    _
  $region7: #{deeplabv3_forward.29} parent=0 // pred_check_branch
    %13 = sbr.rel (0) target = $region9
  $region8: #{deeplabv3_forward.29} parent=0 // pred_region
    _
  $region9: #{deeplabv3_forward.29} parent=0 // pred_fallthru
    _
  // Predicated region
  $region10: #{deeplabv3_forward.29} parent=0 // pred_check
    _
  $region11: #{deeplabv3_forward.29} parent=0 // pred_check_branch
    %15 = sbr.rel (0) target = $region13
  $region12: #{deeplabv3_forward.29} parent=0 // pred_region
    _
  $region13: #{deeplabv3_forward.29} parent=0 // pred_fallthru
    _
  // Predicated region
  $region14: #{deeplabv3_forward.29} parent=0 // pred_check
    _
  $region15: #{deeplabv3_forward.29} parent=0 // pred_check_branch
    %17 = sbr.rel (0) target = $region17
  $region16: #{deeplabv3_forward.29} parent=0 // pred_region
    _
  $region17: #{deeplabv3_forward.29} parent=0 // pred_fallthru
    _
  // Predicated region
  $region18: #{deeplabv3_forward.29} parent=0 // pred_check
    _
  $region19: #{deeplabv3_forward.29} parent=0 // pred_check_branch
    %19 = sbr.rel (0) target = $region21
  $region20: #{deeplabv3_forward.29} parent=0 // pred_region
    _
  $region21: #{deeplabv3_forward.29} parent=0 // pred_fallthru
    _
  %v20 = vld [vmem:[%s0] sm:$0xff]
  %v21 = vld [vmem:[%s0 + $0x8] sm:$0xff]
  %v22 = vld [vmem:[%s0 + $0x10] sm:$0xff]
  %v23 = vld [vmem:[%s0 + $0x18] sm:$0xff]
  %vm24 = vcmask 654336
  %v25 = vsel %vm24, %v20, 0.0
  %v26 = vsel %vm24, %v21, 0.0
  %v27 = vadd.f32 %v25, %v26
  %v28 = vrot.slane %v27, 4
  %v29 = vadd.f32 %v27, %v28
  %v30 = vrot.slane %v29, 2
  %v31 = vadd.f32 %v29, %v30
  %v32 = vrot.slane %v31, 1
  %v33 = vadd.f32 %v31, %v32
  %v34 = vsel %vm24, %v22, 0.0
  %v35 = vsel %vm24, %v23, 0.0
  %v36 = vadd.f32 %v34, %v35
  %v37 = vrot.slane %v36, 4
  %v38 = vadd.f32 %v36, %v37
  %v39 = vrot.slane %v38, 2
  %v40 = vadd.f32 %v38, %v39
  %v41 = vrot.slane %v40, 1
  %v42 = vadd.f32 %v40, %v41
  %v43 = vrcp.pop 16.0
  %v44 = vmul.f32 %v33, %v43
  %v45 = vmul.f32 %v42, %v43
  %v46 = vld [vmem:[%s1] sm:$0xff]
  %v47 = vld [vmem:[%s1 + $0x8] sm:$0xff]
  %v48 = vld [vmem:[%s1 + $0x10] sm:$0xff]
  %v49 = vld [vmem:[%s1 + $0x18] sm:$0xff]
  %v50 = vld [vmem:[%s1 + $0x20] sm:$0xff]
  %v51 = vld [vmem:[%s1 + $0x28] sm:$0xff]
  %v52 = vld [vmem:[%s1 + $0x30] sm:$0xff]
  %v53 = vld [vmem:[%s1 + $0x38] sm:$0xff]
  %v54 = vld [vmem:[%s1 + $0x40] sm:$0xff]
  %v55 = vld [vmem:[%s1 + $0x48] sm:$0xff]
  %v56 = vld [vmem:[%s2] sm:$0x1]
  %v58 = vlaneseq
  %v59 = vshrl.u32 %v58, 7
  %v60 = vsub.s32 0, %v59
  %v61 = vrot.slane %v56, %v60
  %vm65 = vcmask 1041409
  %v66 = vsel %vm65, %v45, %v44
  %v67 = vsel %vm24, %v66, 0
  %69 = vmatprep.subr.mxu0 0.0
  %70 = vmatpush1.msra.mxu0 0.0
  %71 = vmatprep.subr.mxu0 0.0
  %72 = vmatpush1.msra.mxu0 0.0
  %73 = vmatprep.subr.mxu0 0.0
  %74 = vmatpush1.msra.mxu0 0.0
  %75 = vmatprep.subr.mxu0 0.0
  %76 = vmatpush1.msra.mxu0 0.0
  %77 = vmatprep.subr.mxu0 0.0
  %78 = vmatpush1.msra.mxu0 0.0
  %79 = vmatprep.subr.mxu0 0.0
  %80 = vmatpush1.msra.mxu0 0.0
  %81 = vmatprep.subr.mxu0 0.0
  %82 = vmatpush1.msra.mxu0 %v55
  %83 = vmatprep.subr.mxu0 0.0
  %84 = vmatpush1.msra.mxu0 %v54
  %85 = vmatprep.subr.mxu0 0.0
  %86 = vmatpush1.msra.mxu0 %v53
  %87 = vmatprep.subr.mxu0 0.0
  %88 = vmatpush1.msra.mxu0 %v52
  %89 = vmatprep.subr.mxu0 0.0
  %90 = vmatpush1.msra.mxu0 %v51
  %91 = vmatprep.subr.mxu0 0.0
  %92 = vmatpush1.msra.mxu0 %v50
  %93 = vmatprep.subr.mxu0 0.0
  %94 = vmatpush1.msra.mxu0 %v49
  %95 = vmatprep.subr.mxu0 0.0
  %96 = vmatpush1.msra.mxu0 %v48
  %97 = vmatprep.subr.mxu0 0.0
  %98 = vmatpush1.msra.mxu0 %v47
  %99 = vmatprep.subr.mxu0 0.0
  %100 = vmatpush1.msra.mxu0 %v46
  %101 = vmatprep.subr.mxu0 0.0
  %102 = vmatpush2.msra.mxu0 0.0
  %103 = vmatprep.subr.mxu0 0.0
  %104 = vmatpush2.msra.mxu0 0.0
  %105 = vmatprep.subr.mxu0 0.0
  %106 = vmatpush2.msra.mxu0 0.0
  %107 = vmatprep.subr.mxu0 0.0
  %108 = vmatpush2.msra.mxu0 0.0
  %109 = vmatprep.subr.mxu0 0.0
  %110 = vmatpush2.msra.mxu0 0.0
  %111 = vmatprep.subr.mxu0 0.0
  %112 = vmatpush2.msra.mxu0 0.0
  %113 = vmatprep.subr.mxu0 0.0
  %114 = vmatpush2.msra.mxu0 0.0
  %115 = vmatprep.subr.mxu0 0.0
  %116 = vmatpush2.msra.mxu0 0.0
  %117 = vmatprep.subr.mxu0 0.0
  %118 = vmatpush2.msra.mxu0 0.0
  %119 = vmatprep.subr.mxu0 0.0
  %120 = vmatpush2.msra.mxu0 0.0
  %121 = vmatprep.subr.mxu0 0.0
  %122 = vmatpush2.msra.mxu0 0.0
  %123 = vmatprep.subr.mxu0 0.0
  %124 = vmatpush2.msra.mxu0 0.0
  %125 = vmatprep.subr.mxu0 0.0
  %126 = vmatpush2.msra.mxu0 0.0
  %127 = vmatprep.subr.mxu0 0.0
  %128 = vmatpush2.msra.mxu0 0.0
  %129 = vmatprep.subr.mxu0 0.0
  %130 = vmatpush2.msra.mxu0 0.0
  %131 = vmatprep.subr.mxu0 0.0
  %132 = vmatpush2.msra.mxu0 0.0
  %133 = vmatprep.mubr.f32.mxu0 0.0
  %134 = vmatmul.mubr.f32.gmra.mxu0 %v67
  %v135 = vpop.f32.mrf.mxu0
  %v136 = vadd.f32 %v61, %v135
  %v137 = vpop.f32.mrf.mxu0
  %138 = vdwg.mxu0
  %v139 = vmax.f32 %v136, 0.0
  %v140 = vld [vmem:[%s3] sm:$0xff]
  %v141 = vld [vmem:[%s3 + $0x8] sm:$0xff]
  %v142 = vld [vmem:[%s3 + $0x10] sm:$0xf]
  %v143 = vld [vmem:[%s4] sm:$0x1]
  %v145 = vlaneseq
  %v146 = vshrl.u32 %v145, 7
  %v147 = vsub.s32 0, %v146
  %v148 = vrot.slane %v143, %v147
  %vm150 = vcmask 162816
  %v152 = vsel %vm150, %v139, 0
  %vm154 = vcmask 1043456
  %v156 = vsel %vm154, %v142, 0
  %158 = vmatprep.subr.mxu0 0.0
  %159 = vmatpush1.msra.mxu0 0.0
  %160 = vmatprep.subr.mxu0 0.0
  %161 = vmatpush1.msra.mxu0 0.0
  %162 = vmatprep.subr.mxu0 0.0
  %163 = vmatpush1.msra.mxu0 0.0
  %164 = vmatprep.subr.mxu0 0.0
  %165 = vmatpush1.msra.mxu0 0.0
  %166 = vmatprep.subr.mxu0 0.0
  %167 = vmatpush1.msra.mxu0 0.0
  %168 = vmatprep.subr.mxu0 0.0
  %169 = vmatpush1.msra.mxu0 0.0
  %170 = vmatprep.subr.mxu0 0.0
  %171 = vmatpush1.msra.mxu0 0.0
  %172 = vmatprep.subr.mxu0 0.0
  %173 = vmatpush1.msra.mxu0 0.0
  %174 = vmatprep.subr.mxu0 0.0
  %175 = vmatpush1.msra.mxu0 0.0
  %176 = vmatprep.subr.mxu0 0.0
  %177 = vmatpush1.msra.mxu0 0.0
  %178 = vmatprep.subr.mxu0 0.0
  %179 = vmatpush1.msra.mxu0 0.0
  %180 = vmatprep.subr.mxu0 0.0
  %181 = vmatpush1.msra.mxu0 0.0
  %182 = vmatprep.subr.mxu0 0.0
  %183 = vmatpush1.msra.mxu0 0.0
  %184 = vmatprep.subr.mxu0 0.0
  %185 = vmatpush1.msra.mxu0 %v156
  %186 = vmatprep.subr.mxu0 0.0
  %187 = vmatpush1.msra.mxu0 %v141
  %188 = vmatprep.subr.mxu0 0.0
  %189 = vmatpush1.msra.mxu0 %v140
  %190 = vmatprep.subr.mxu0 0.0
  %191 = vmatpush2.msra.mxu0 0.0
  %192 = vmatprep.subr.mxu0 0.0
  %193 = vmatpush2.msra.mxu0 0.0
  %194 = vmatprep.subr.mxu0 0.0
  %195 = vmatpush2.msra.mxu0 0.0
  %196 = vmatprep.subr.mxu0 0.0
  %197 = vmatpush2.msra.mxu0 0.0
  %198 = vmatprep.subr.mxu0 0.0
  %199 = vmatpush2.msra.mxu0 0.0
  %200 = vmatprep.subr.mxu0 0.0
  %201 = vmatpush2.msra.mxu0 0.0
  %202 = vmatprep.subr.mxu0 0.0
  %203 = vmatpush2.msra.mxu0 0.0
  %204 = vmatprep.subr.mxu0 0.0
  %205 = vmatpush2.msra.mxu0 0.0
  %206 = vmatprep.subr.mxu0 0.0
  %207 = vmatpush2.msra.mxu0 0.0
  %208 = vmatprep.subr.mxu0 0.0
  %209 = vmatpush2.msra.mxu0 0.0
  %210 = vmatprep.subr.mxu0 0.0
  %211 = vmatpush2.msra.mxu0 0.0
  %212 = vmatprep.subr.mxu0 0.0
  %213 = vmatpush2.msra.mxu0 0.0
  %214 = vmatprep.subr.mxu0 0.0
  %215 = vmatpush2.msra.mxu0 0.0
  %216 = vmatprep.subr.mxu0 0.0
  %217 = vmatpush2.msra.mxu0 0.0
  %218 = vmatprep.subr.mxu0 0.0
  %219 = vmatpush2.msra.mxu0 0.0
  %220 = vmatprep.subr.mxu0 0.0
  %221 = vmatpush2.msra.mxu0 0.0
  %222 = vmatprep.mubr.f32.mxu0 0.0
  %223 = vmatmul.mubr.f32.gmra.mxu0 %v152
  %v224 = vpop.f32.mrf.mxu0
  %v225 = vadd.f32 %v148, %v224
  %v226 = vpop.f32.mrf.mxu0
  %227 = vdwg.mxu0
  %v228 = vadd.f32 %v225, 3.0
  %v229 = vmax.f32 %v228, 0.0
  %v230 = vmin.f32 %v229, 6.0
  %v231 = vmul.f32 %v230, 0.16666667
  %v234 = vunpack.c.l.s4 1966171168
  %v235 = vunpack.c.0.s8 %v234
  %v236 = vlaneseq
  %v237 = vshrl.u32 %v236, 7
  %v238 = vsub.s32 %v235, %v237
  %v239 = vrot.slane %v231, %v238
  %v240 = vcombine.high %v239, %v239
  %v242 = vunpack.c.l.s4 1966171168
  %v243 = vunpack.c.0.s8 %v242
  %v244 = vlaneseq
  %v245 = vshrl.u32 %v244, 7
  %v246 = vsub.s32 %v243, %v245
  %v247 = vrot.slane %v239, %v246
  %v249 = vunpack.c.l.s4 1966171168
  %v250 = vunpack.c.0.s8 %v249
  %v251 = vlaneseq
  %v252 = vshrl.u32 %v251, 7
  %v253 = vsub.s32 %v250, %v252
  %v254 = vrot.slane %v240, %v253
  %v255 = vlaneseq
  %v256 = vshrl.u32 %v255, 7
  %v257 = vsub.s32 0, %v256
  %v258 = vrot.slane %v247, %v257
  %v259 = vlaneseq
  %v260 = vshrl.u32 %v259, 7
  %v261 = vsub.s32 0, %v260
  %v262 = vrot.slane %v254, %v261
  %v265 = vmul.f32 %v20, %v258
  %v266 = vmul.f32 %v21, %v258
  %v267 = vmul.f32 %v22, %v262
  %v268 = vmul.f32 %v23, %v262
  %269 = vst.msk [vmem:[%s5] sm:$0xff] %vm24, %v265
  %270 = vst.msk [vmem:[%s5 + $0x8] sm:$0xff] %vm24, %v266
  %271 = vst.msk [vmem:[%s5 + $0x10] sm:$0xff] %vm24, %v267
  %272 = vst.msk [vmem:[%s5 + $0x18] sm:$0xff] %vm24, %v268
  // Predicated region
  $region22: #{deeplabv3_forward.29} parent=0 // pred_check
    _
  $region23: #{deeplabv3_forward.29} parent=0 // pred_check_branch
    %274 = sbr.rel (0) target = $region25
  $region24: #{deeplabv3_forward.29} parent=0 // pred_region
    _
  $region25: #{deeplabv3_forward.29} parent=0 // pred_fallthru
    _
  // Predicated region
  $region26: #{deeplabv3_forward.29} parent=0 // pred_check
    _
  $region27: #{deeplabv3_forward.29} parent=0 // pred_check_branch
    %276 = sbr.rel (0) target = $region29
  $region28: #{deeplabv3_forward.29} parent=0 // pred_region
    _
  $region29: #{deeplabv3_forward.29} parent=0 // pred_fallthru
    _

// kernel: deeplabv3_forward.28
$region0: #{deeplabv3_forward.28}
  #allocation0 [shape = 'u32[]', space=smem, size = 0x4, offset = 0x4, fixed_abs, tag = 'smem constant byte address 0x4 - core index']
  #allocation1 [shape = 'u32[144,128]{1,0:T(1,128)}', space=vmem, size = 0x12000, scoped, tag = 'internal scratch']
  %s0 = inlined_call_operand.vmem [shape: bf16[2,8,8,80], index: 0, kind: input, shape index: {}]
  %s1 = inlined_call_operand.vmem [shape: f32[9,1,1,80], index: 1, kind: input, shape index: {}]
  %s2 = inlined_call_operand.vmem [shape: f32[1,1,1,80], index: 2, kind: input, shape index: {}]
  %s3 = inlined_call_operand.vmem [shape: f32[2,4,4,80], index: 3, kind: output, shape index: {}]
  %s4 = sld [smem:[#allocation0]]
  $region45: #{deeplabv3_forward.28} parent=0
    _
  %s6 = ssub.s32 1, %s4
  %s7 = scalar_select 0, %s6, %s4
  loop: start=0, step=1, limit=4
  $region2: #{deeplabv3_forward.28} parent=0 // loop_pre_header
    _
  $region3: #{deeplabv3_forward.28} parent=0 // loop_header
    %s9 = sphi 0, %s13
    %p10 = scmp.ge.s32.totalorder %s9, 4
    %s19 = sphi 0, %s21
    %s22 = sphi 0, %s19
    %s23 = sphi 0, %s22
    %s39 = sphi 0, %s23
    %s43 = sphi 0, %s43
    %s45 = sphi 0, %s43
    %s46 = sphi 0, %s45
    %s60 = sphi 0, %s46
    %s64 = sphi 0, %s64
    %s66 = sphi 0, %s64
    %s67 = sphi 0, %s66
    %s81 = sphi 0, %s67
    %s87 = sphi 0, %s89
    %s90 = sphi 0, %s87
    %s91 = sphi 0, %s90
    %s107 = sphi 0, %s91
  $region4: #{deeplabv3_forward.28} parent=0 // loop_header_branch
    %12 = sbr.rel (%p10) target = $region8
  $region5: #{deeplabv3_forward.28} parent=0 // loop_body
    %s14 = ssub.s32 %s9, 1
    %s15 = ssub.s32 %s9, 2
    %s16 = sadd.s32 %s9, 1
    %s17 = ssub.s32 %s9, %s16
    %p18 = scmp.eq.s32.totalorder %s17, 0
    %s20 = sadd.s32 %s19, 1
    %s21 = scalar_select %p18, %s19, %s20
    %p24 = pneg %p18
    %p25 = scmp.eq.s32.totalorder %s9, 1
    %p26 = por %p24, %p25
    %p27 = scmp.ne.s32.totalorder %s19, %s22
    %p28 = scmp.eq.s32.totalorder %s9, 0
    %p29 = por %p27, %p28
    %p30 = scmp.ne.s32.totalorder %s19, %s22
    %p31 = scmp.eq.s32.totalorder %s14, 1
    %p32 = por %p30, %p31
    %p33 = scmp.ne.s32.totalorder %s22, %s23
    %p34 = scmp.eq.s32.totalorder %s14, 0
    %p35 = por %p33, %p34
    %p36 = scmp.ne.s32.totalorder %s22, %s23
    %p37 = scmp.eq.s32.totalorder %s15, 1
    %p38 = por %p36, %p37
    %p40 = scmp.ne.s32.totalorder %s23, %s39
    %p41 = scmp.eq.s32.totalorder %s15, 0
    %p42 = por %p40, %p41
    %s44 = sadd.s32 %s43, 1
    %p47 = scmp.eq.s32.totalorder %s9, 1
    %p48 = scmp.ne.s32.totalorder %s43, %s45
    %p49 = scmp.eq.s32.totalorder %s9, 0
    %p50 = por %p48, %p49
    %p51 = scmp.ne.s32.totalorder %s43, %s45
    %p52 = scmp.eq.s32.totalorder %s14, 1
    %p53 = por %p51, %p52
    %p54 = scmp.ne.s32.totalorder %s45, %s46
    %p55 = scmp.eq.s32.totalorder %s14, 0
    %p56 = por %p54, %p55
    %p57 = scmp.ne.s32.totalorder %s45, %s46
    %p58 = scmp.eq.s32.totalorder %s15, 1
    %p59 = por %p57, %p58
    %p61 = scmp.ne.s32.totalorder %s46, %s60
    %p62 = scmp.eq.s32.totalorder %s15, 0
    %p63 = por %p61, %p62
    %s65 = sadd.s32 %s64, 1
    %p68 = scmp.eq.s32.totalorder %s9, 1
    %p69 = scmp.ne.s32.totalorder %s64, %s66
    %p70 = scmp.eq.s32.totalorder %s9, 0
    %p71 = por %p69, %p70
    %p72 = scmp.ne.s32.totalorder %s64, %s66
    %p73 = scmp.eq.s32.totalorder %s14, 1
    %p74 = por %p72, %p73
    %p75 = scmp.ne.s32.totalorder %s66, %s67
    %p76 = scmp.eq.s32.totalorder %s14, 0
    %p77 = por %p75, %p76
    %p78 = scmp.ne.s32.totalorder %s66, %s67
    %p79 = scmp.eq.s32.totalorder %s15, 1
    %p80 = por %p78, %p79
    %p82 = scmp.ne.s32.totalorder %s67, %s81
    %p83 = scmp.eq.s32.totalorder %s15, 0
    %p84 = por %p82, %p83
    %s85 = ssub.s32 %s9, %s16
    %p86 = scmp.eq.s32.totalorder %s85, 0
    %s88 = sadd.s32 %s87, 1
    %s89 = scalar_select %p86, %s87, %s88
    %p92 = pneg %p86
    %p93 = scmp.eq.s32.totalorder %s9, 1
    %p94 = por %p92, %p93
    %p95 = scmp.ne.s32.totalorder %s87, %s90
    %p96 = scmp.eq.s32.totalorder %s9, 0
    %p97 = por %p95, %p96
    %p98 = scmp.ne.s32.totalorder %s87, %s90
    %p99 = scmp.eq.s32.totalorder %s14, 1
    %p100 = por %p98, %p99
    %p101 = scmp.ne.s32.totalorder %s90, %s91
    %p102 = scmp.eq.s32.totalorder %s14, 0
    %p103 = por %p101, %p102
    %p104 = scmp.ne.s32.totalorder %s90, %s91
    %p105 = scmp.eq.s32.totalorder %s15, 1
    %p106 = por %p104, %p105
    %p108 = scmp.ne.s32.totalorder %s91, %s107
    %p109 = scmp.eq.s32.totalorder %s15, 0
    %p110 = por %p108, %p109
    %p111 = scmp.le.s32.totalorder 1, %s9
    %p112 = scmp.lt.s32.totalorder %s9, 3
    %p113 = pnand %p111, %p112
    %p114 = pneg %p113
    // Predicated region
    $region9: #{deeplabv3_forward.28} parent=5 // pred_check
      _
    $region10: #{deeplabv3_forward.28} parent=5 // pred_check_branch
      %116 = sbr.rel (%p113) target = $region12
    $region11: #{deeplabv3_forward.28} parent=5 // pred_region
      %s117 = ssub.s32 %s9, 1
      // Predicated region
      $region13: #{deeplabv3_forward.28} parent=11 // pred_check
        %p118 = pneg %p56
      $region14: #{deeplabv3_forward.28} parent=11 // pred_check_branch
        %120 = sbr.rel (%p118) target = $region16
      $region15: #{deeplabv3_forward.28} parent=11 // pred_region
        _
      $region16: #{deeplabv3_forward.28} parent=11 // pred_fallthru
        _
      // Predicated region
      $region17: #{deeplabv3_forward.28} parent=11 // pred_check
        %p121 = pneg %p77
      $region18: #{deeplabv3_forward.28} parent=11 // pred_check_branch
        %123 = sbr.rel (%p121) target = $region20
      $region19: #{deeplabv3_forward.28} parent=11 // pred_region
        _
      $region20: #{deeplabv3_forward.28} parent=11 // pred_fallthru
        _
    $region12: #{deeplabv3_forward.28} parent=5 // pred_fallthru
      _
    %p124 = scmp.lt.s32.totalorder %s9, 2
    // Predicated region
    $region21: #{deeplabv3_forward.28} parent=5 // pred_check
      %p125 = pneg %p124
    $region22: #{deeplabv3_forward.28} parent=5 // pred_check_branch
      %127 = sbr.rel (%p125) target = $region24
    $region23: #{deeplabv3_forward.28} parent=5 // pred_region
      // Predicated region
      $region25: #{deeplabv3_forward.28} parent=23 // pred_check
        %p128 = pneg %p29
      $region26: #{deeplabv3_forward.28} parent=23 // pred_check_branch
        %130 = sbr.rel (%p128) target = $region28
      $region27: #{deeplabv3_forward.28} parent=23 // pred_region
        %p131 = scmp.lt.s32.totalorder %s9, 1
        %s132 = scalar_select %p131, %s9, 1
        %s133 = smul.addr %s132, 8
        %s134 = smul.addr %s133, 4
        %s135 = scalar_lea.vmem %s0, %s134
      $region28: #{deeplabv3_forward.28} parent=23 // pred_fallthru
        _
    $region24: #{deeplabv3_forward.28} parent=5 // pred_fallthru
      _
    %p136 = scmp.le.s32.totalorder 1, %s9
    %p137 = scmp.lt.s32.totalorder %s9, 3
    %p138 = pnand %p136, %p137
    %p139 = pneg %p138
    // Predicated region
    $region29: #{deeplabv3_forward.28} parent=5 // pred_check
      _
    $region30: #{deeplabv3_forward.28} parent=5 // pred_check_branch
      %141 = sbr.rel (%p138) target = $region32
    $region31: #{deeplabv3_forward.28} parent=5 // pred_region
      %s142 = ssub.s32 %s9, 1
      %p143 = scmp.lt.s32.totalorder %s14, 1
      %s144 = scalar_select %p143, %s14, 1
      %s145 = smul.addr %s144, 8
      %s146 = smul.addr %s145, 4
      %s147 = scalar_lea.vmem %s0, %s146
      %p148 = pneg %p35
      %p149 = pneg %p32
      %p150 = pneg %p56
      %p151 = pneg %p53
      %p152 = pneg %p77
      %p153 = pneg %p74
      %p154 = pneg %p103
      %p155 = pneg %p100
      %p156 = scmp.lt.s32.totalorder %s14, 1
      %s157 = scalar_select %p156, %s14, 1
      %s158 = smul.addr %s157, 4
      %s159 = smul.addr %s158, 4
      %s160 = scalar_lea.vmem %s3, %s159
      %p161 = scmp.lt.s32.totalorder %s14, 1
      %s162 = scalar_select %p161, %s14, 1
      %s163 = smul.addr %s162, 8
      %s164 = smul.addr %s163, 4
      %s165 = scalar_lea.vmem %s0, %s164
      %p166 = scmp.lt.s32.totalorder %s14, 1
      %s167 = scalar_select %p166, %s14, 1
      %s168 = smul.addr %s167, 4
      %s169 = smul.addr %s168, 4
      %s170 = scalar_lea.vmem %s3, %s169
      %v171 = vld [vmem:[%s165] sm:$0xf]
      %v172 = vld [vmem:[%s165 + $0x4] sm:$0xf]
      %v173 = vld [vmem:[%s165 + $0x8] sm:$0xf]
      %v174 = vld [vmem:[%s165 + $0xc] sm:$0xf]
      %v175 = vld [vmem:[%s165 + $0x10] sm:$0xf]
      %v176 = vld [vmem:[%s165 + $0x14] sm:$0xf]
      %v177 = vld [vmem:[%s165 + $0x18] sm:$0xf]
      %v178 = vld [vmem:[%s165 + $0x1c] sm:$0xf]
      %v179 = vunpack.c.l.bf16 %v171
      %v180 = vunpack.c.l.bf16 %v172
      %v181 = vunpack.c.l.bf16 %v173
      %v182 = vunpack.c.l.bf16 %v174
      %v183 = vunpack.c.l.bf16 %v175
      %v184 = vunpack.c.l.bf16 %v176
      %v185 = vunpack.c.l.bf16 %v177
      %v186 = vunpack.c.l.bf16 %v178
      %v187 = vld [vmem:[%s1] sm:$0x1]
      %v188 = vld [vmem:[%s1 + $0x1] sm:$0x1]
      %v189 = vld [vmem:[%s1 + $0x2] sm:$0x1]
      %v190 = vld [vmem:[%s1 + $0x3] sm:$0x1]
      %v191 = vld [vmem:[%s1 + $0x4] sm:$0x1]
      %v192 = vld [vmem:[%s1 + $0x5] sm:$0x1]
      %v193 = vld [vmem:[%s1 + $0x6] sm:$0x1]
      %v194 = vld [vmem:[%s1 + $0x7] sm:$0x1]
      %v195 = vld [vmem:[%s1 + $0x8] sm:$0x1]
      %v197 = vlaneseq
      %v198 = vshrl.u32 %v197, 7
      %v199 = vsub.s32 0, %v198
      %v200 = vrot.slane %v187, %v199
      %v202 = vmul.f32 %v179, %v200
      %v203 = vmul.f32 %v180, %v200
      %v204 = vmul.f32 %v181, %v200
      %v205 = vmul.f32 %v182, %v200
      %v207 = vlaneseq
      %v208 = vshrl.u32 %v207, 7
      %v209 = vsub.s32 0, %v208
      %v210 = vrot.slane %v188, %v209
      %v212 = vmul.f32 %v179, %v210
      %v213 = vmul.f32 %v180, %v210
      %v214 = vmul.f32 %v181, %v210
      %v215 = vmul.f32 %v182, %v210
      %v220 = vrot.slane %v212, 2
      %v221 = vrot.slane %v213, 2
      %v222 = vrot.slane %v214, 2
      %v223 = vrot.slane %v215, 2
      %v228 = vadd.f32 %v202, %v220
      %v229 = vadd.f32 %v203, %v221
      %v230 = vadd.f32 %v204, %v222
      %v231 = vadd.f32 %v205, %v223
      %v233 = vlaneseq
      %v234 = vshrl.u32 %v233, 7
      %v235 = vsub.s32 0, %v234
      %v236 = vrot.slane %v189, %v235
      %v238 = vmul.f32 %v179, %v236
      %v239 = vmul.f32 %v180, %v236
      %v240 = vmul.f32 %v181, %v236
      %v241 = vmul.f32 %v182, %v236
      %v246 = vrot.slane %v238, 4
      %v247 = vrot.slane %v239, 4
      %v248 = vrot.slane %v240, 4
      %v249 = vrot.slane %v241, 4
      %v254 = vadd.f32 %v228, %v246
      %v255 = vadd.f32 %v229, %v247
      %v256 = vadd.f32 %v230, %v248
      %v257 = vadd.f32 %v231, %v249
      %v259 = vlaneseq
      %v260 = vshrl.u32 %v259, 7
      %v261 = vsub.s32 0, %v260
      %v262 = vrot.slane %v190, %v261
      %v264 = vmul.f32 %v181, %v262
      %v265 = vmul.f32 %v182, %v262
      %v266 = vmul.f32 %v183, %v262
      %v267 = vmul.f32 %v184, %v262
      %v268 = vadd.f32 %v254, %v264
      %v269 = vadd.f32 %v255, %v265
      %v270 = vadd.f32 %v256, %v266
      %v271 = vadd.f32 %v257, %v267
      %v273 = vlaneseq
      %v274 = vshrl.u32 %v273, 7
      %v275 = vsub.s32 0, %v274
      %v276 = vrot.slane %v191, %v275
      %v278 = vmul.f32 %v181, %v276
      %v279 = vmul.f32 %v182, %v276
      %v280 = vmul.f32 %v183, %v276
      %v281 = vmul.f32 %v184, %v276
      %v286 = vrot.slane %v278, 2
      %v287 = vrot.slane %v279, 2
      %v288 = vrot.slane %v280, 2
      %v289 = vrot.slane %v281, 2
      %v294 = vadd.f32 %v268, %v286
      %v295 = vadd.f32 %v269, %v287
      %v296 = vadd.f32 %v270, %v288
      %v297 = vadd.f32 %v271, %v289
      %v299 = vlaneseq
      %v300 = vshrl.u32 %v299, 7
      %v301 = vsub.s32 0, %v300
      %v302 = vrot.slane %v192, %v301
      %v304 = vmul.f32 %v181, %v302
      %v305 = vmul.f32 %v182, %v302
      %v306 = vmul.f32 %v183, %v302
      %v307 = vmul.f32 %v184, %v302
      %v312 = vrot.slane %v304, 4
      %v313 = vrot.slane %v305, 4
      %v314 = vrot.slane %v306, 4
      %v315 = vrot.slane %v307, 4
      %v320 = vadd.f32 %v294, %v312
      %v321 = vadd.f32 %v295, %v313
      %v322 = vadd.f32 %v296, %v314
      %v323 = vadd.f32 %v297, %v315
      %v325 = vlaneseq
      %v326 = vshrl.u32 %v325, 7
      %v327 = vsub.s32 0, %v326
      %v328 = vrot.slane %v193, %v327
      %v330 = vmul.f32 %v183, %v328
      %v331 = vmul.f32 %v184, %v328
      %v332 = vmul.f32 %v185, %v328
      %v333 = vmul.f32 %v186, %v328
      %v334 = vadd.f32 %v320, %v330
      %v335 = vadd.f32 %v321, %v331
      %v336 = vadd.f32 %v322, %v332
      %v337 = vadd.f32 %v323, %v333
      %v339 = vlaneseq
      %v340 = vshrl.u32 %v339, 7
      %v341 = vsub.s32 0, %v340
      %v342 = vrot.slane %v194, %v341
      %v344 = vmul.f32 %v183, %v342
      %v345 = vmul.f32 %v184, %v342
      %v346 = vmul.f32 %v185, %v342
      %v347 = vmul.f32 %v186, %v342
      %v352 = vrot.slane %v344, 2
      %v353 = vrot.slane %v345, 2
      %v354 = vrot.slane %v346, 2
      %v355 = vrot.slane %v347, 2
      %v360 = vadd.f32 %v334, %v352
      %v361 = vadd.f32 %v335, %v353
      %v362 = vadd.f32 %v336, %v354
      %v363 = vadd.f32 %v337, %v355
      %v365 = vlaneseq
      %v366 = vshrl.u32 %v365, 7
      %v367 = vsub.s32 0, %v366
      %v368 = vrot.slane %v195, %v367
      %v370 = vmul.f32 %v183, %v368
      %v371 = vmul.f32 %v184, %v368
      %v372 = vmul.f32 %v185, %v368
      %v373 = vmul.f32 %v186, %v368
      %v378 = vrot.slane %v370, 4
      %v379 = vrot.slane %v371, 4
      %v380 = vrot.slane %v372, 4
      %v381 = vrot.slane %v373, 4
      %v386 = vadd.f32 %v360, %v378
      %v387 = vadd.f32 %v361, %v379
      %v388 = vadd.f32 %v362, %v380
      %v389 = vadd.f32 %v363, %v381
      %v390 = vld [vmem:[%s2] sm:$0x1]
      %v392 = vlaneseq
      %v393 = vshrl.u32 %v392, 7
      %v394 = vsub.s32 0, %v393
      %v395 = vrot.slane %v390, %v394
      %v397 = vadd.f32 %v386, %v395
      %v398 = vadd.f32 %v387, %v395
      %v399 = vadd.f32 %v388, %v395
      %v400 = vadd.f32 %v389, %v395
      %v401 = vadd.f32 %v397, 3.0
      %v402 = vadd.f32 %v398, 3.0
      %v403 = vadd.f32 %v399, 3.0
      %v404 = vadd.f32 %v400, 3.0
      %v405 = vmax.f32 %v401, 0.0
      %v406 = vmax.f32 %v402, 0.0
      %v407 = vmax.f32 %v403, 0.0
      %v408 = vmax.f32 %v404, 0.0
      %v409 = vmin.f32 %v405, 6.0
      %v410 = vmin.f32 %v406, 6.0
      %v411 = vmin.f32 %v407, 6.0
      %v412 = vmin.f32 %v408, 6.0
      %v413 = vmul.f32 %v397, %v409
      %v414 = vmul.f32 %v398, %v410
      %v415 = vmul.f32 %v399, %v411
      %v416 = vmul.f32 %v400, %v412
      %v417 = vmul.f32 %v413, 0.16666667
      %v418 = vmul.f32 %v414, 0.16666667
      %v419 = vmul.f32 %v415, 0.16666667
      %v420 = vmul.f32 %v416, 0.16666667
      %vm421 = vcmask 650240
      %422 = vst.msk [vmem:[%s170] sm:$0xf] %vm421, %v417
      %423 = vst.msk [vmem:[%s170 + $0x4] sm:$0xf] %vm421, %v418
      %424 = vst.msk [vmem:[%s170 + $0x8] sm:$0xf] %vm421, %v419
      %425 = vst.msk [vmem:[%s170 + $0xc] sm:$0xf] %vm421, %v420
      %p426 = scmp.lt.s32.totalorder %s14, 1
      %s427 = scalar_select %p426, %s14, 1
      %s428 = smul.addr %s427, 4
      %s429 = smul.addr %s428, 4
      %s430 = scalar_lea.vmem %s3, %s429
      // Predicated region
      $region33: #{deeplabv3_forward.28} parent=31 // pred_check
        %p431 = pneg %p100
      $region34: #{deeplabv3_forward.28} parent=31 // pred_check_branch
        %433 = sbr.rel (%p431) target = $region36
      $region35: #{deeplabv3_forward.28} parent=31 // pred_region
        _
      $region36: #{deeplabv3_forward.28} parent=31 // pred_fallthru
        _
    $region32: #{deeplabv3_forward.28} parent=5 // pred_fallthru
      _
    %p434 = scmp.le.s32.totalorder 2, %s9
    // Predicated region
    $region37: #{deeplabv3_forward.28} parent=5 // pred_check
      %p435 = pneg %p434
    $region38: #{deeplabv3_forward.28} parent=5 // pred_check_branch
      %437 = sbr.rel (%p435) target = $region40
    $region39: #{deeplabv3_forward.28} parent=5 // pred_region
      %s438 = ssub.s32 %s9, 2
      // Predicated region
      $region41: #{deeplabv3_forward.28} parent=39 // pred_check
        %p439 = pneg %p106
      $region42: #{deeplabv3_forward.28} parent=39 // pred_check_branch
        %441 = sbr.rel (%p439) target = $region44
      $region43: #{deeplabv3_forward.28} parent=39 // pred_region
        %p442 = scmp.lt.s32.totalorder %s15, 1
        %s443 = scalar_select %p442, %s15, 1
        %s444 = smul.addr %s443, 4
        %s445 = smul.addr %s444, 4
        %s446 = scalar_lea.vmem %s3, %s445
      $region44: #{deeplabv3_forward.28} parent=39 // pred_fallthru
        _
    $region40: #{deeplabv3_forward.28} parent=5 // pred_fallthru
      _
  $region6: #{deeplabv3_forward.28} parent=0 // loop_footer
    %s13 = sadd.s32 1, %s9
  $region7: #{deeplabv3_forward.28} parent=0 // loop_footer_branch
    %8 = sbr.rel target = $region3
  $region8: #{deeplabv3_forward.28} parent=0 // loop_exit
    _

// kernel: deeplabv3_forward.30
$region0: #{deeplabv3_forward.30}
  #allocation0 [shape = 'u32[]', space=smem, size = 0x4, offset = 0x4, fixed_abs, tag = 'smem constant byte address 0x4 - core index']
  #allocation1 [shape = 'u32[144,128]{1,0:T(1,128)}', space=vmem, size = 0x12000, scoped, tag = 'internal scratch']
  %s0 = inlined_call_operand.vmem [shape: bf16[32,80], index: 0, kind: input, shape index: {}]
  %s1 = inlined_call_operand.vmem [shape: bf16[80,40], index: 1, kind: input, shape index: {}]
  %s2 = inlined_call_operand.vmem [shape: f32[1,40], index: 2, kind: input, shape index: {}]
  %s3 = inlined_call_operand.vmem [shape: f32[32,40], index: 3, kind: output, shape index: {}]
  %s4 = sld [smem:[#allocation0]]
  $region22: #{deeplabv3_forward.30} parent=0
    _
  %s6 = ssub.s32 1, %s4
  %s7 = scalar_select 0, %s6, %s4
  // Predicated region
  $region2: #{deeplabv3_forward.30} parent=0 // pred_check
    _
  $region3: #{deeplabv3_forward.30} parent=0 // pred_check_branch
    %9 = sbr.rel (0) target = $region5
  $region4: #{deeplabv3_forward.30} parent=0 // pred_region
    _
  $region5: #{deeplabv3_forward.30} parent=0 // pred_fallthru
    _
  // Predicated region
  $region6: #{deeplabv3_forward.30} parent=0 // pred_check
    _
  $region7: #{deeplabv3_forward.30} parent=0 // pred_check_branch
    %11 = sbr.rel (0) target = $region9
  $region8: #{deeplabv3_forward.30} parent=0 // pred_region
    _
  $region9: #{deeplabv3_forward.30} parent=0 // pred_fallthru
    _
  // Predicated region
  $region10: #{deeplabv3_forward.30} parent=0 // pred_check
    _
  $region11: #{deeplabv3_forward.30} parent=0 // pred_check_branch
    %13 = sbr.rel (0) target = $region13
  $region12: #{deeplabv3_forward.30} parent=0 // pred_region
    _
  $region13: #{deeplabv3_forward.30} parent=0 // pred_fallthru
    _
  %v15 = vld [vmem:[%s0] sm:$0xf]
  %v16 = vld [vmem:[%s0 + $0x4] sm:$0xf]
  %v17 = vld [vmem:[%s0 + $0x8] sm:$0xf]
  %v18 = vld [vmem:[%s0 + $0xc] sm:$0xf]
  %v19 = vld [vmem:[%s1] sm:$0xf]
  %v20 = vld [vmem:[%s1 + $0x4] sm:$0xf]
  %v21 = vld [vmem:[%s1 + $0x8] sm:$0xf]
  %v22 = vld [vmem:[%s1 + $0xc] sm:$0xf]
  %v23 = vld [vmem:[%s1 + $0x10] sm:$0xf]
  %v24 = vld [vmem:[%s1 + $0x14] sm:$0xf]
  %v25 = vld [vmem:[%s1 + $0x18] sm:$0xf]
  %v26 = vld [vmem:[%s1 + $0x1c] sm:$0xf]
  %v27 = vld [vmem:[%s1 + $0x20] sm:$0xf]
  %v28 = vld [vmem:[%s1 + $0x24] sm:$0xf]
  %v29 = vld [vmem:[%s2] sm:$0x1]
  %v31 = vlaneseq
  %v32 = vshrl.u32 %v31, 7
  %v33 = vsub.s32 0, %v32
  %v34 = vrot.slane %v29, %v33
  %v40 = vunpack.c.l.b16 %v15
  %v41 = vunpack.c.l.b16 %v16
  %v42 = vunpack.c.l.b16 %v17
  %v43 = vunpack.c.l.b16 %v18
  %v44 = vpack.c.b16 %v41, %v40
  %v45 = vpack.c.b16 %v43, %v42
  %v56 = vunpack.c.l.b16 %v19
  %v57 = vunpack.c.l.b16 %v20
  %v58 = vunpack.c.l.b16 %v21
  %v59 = vunpack.c.l.b16 %v22
  %v60 = vunpack.c.l.b16 %v23
  %v61 = vunpack.c.l.b16 %v24
  %v62 = vunpack.c.l.b16 %v25
  %v63 = vunpack.c.l.b16 %v26
  %v64 = vunpack.c.l.b16 %v27
  %v65 = vunpack.c.l.b16 %v28
  %v66 = vpack.c.b16 %v57, %v56
  %v67 = vpack.c.b16 %v59, %v58
  %v68 = vpack.c.b16 %v61, %v60
  %v69 = vpack.c.b16 %v63, %v62
  %v70 = vpack.c.b16 %v65, %v64
  %vm76 = vcmask 654336
  %v78 = vsel %vm76, %v44, 0
  %v81 = vsel %vm76, %v45, 0
  %83 = vmatprep.subr.bf16.mxu0 0
  %84 = vmatpush1.bf16.msra.mxu0 0
  %85 = vmatprep.subr.bf16.mxu0 0
  %86 = vmatpush1.bf16.msra.mxu0 0
  %87 = vmatprep.subr.bf16.mxu0 0
  %88 = vmatpush1.bf16.msra.mxu0 0
  %89 = vmatprep.subr.bf16.mxu0 0
  %90 = vmatpush1.bf16.msra.mxu0 %v70
  %91 = vmatprep.subr.bf16.mxu0 0
  %92 = vmatpush1.bf16.msra.mxu0 %v69
  %93 = vmatprep.subr.bf16.mxu0 0
  %94 = vmatpush1.bf16.msra.mxu0 %v68
  %95 = vmatprep.subr.bf16.mxu0 0
  %96 = vmatpush1.bf16.msra.mxu0 %v67
  %97 = vmatprep.subr.bf16.mxu0 0
  %98 = vmatpush1.bf16.msra.mxu0 %v66
  %99 = vmatprep.subr.bf16.mxu0 0
  %100 = vmatpush2.bf16.msra.mxu0 0
  %101 = vmatprep.subr.bf16.mxu0 0
  %102 = vmatpush2.bf16.msra.mxu0 0
  %103 = vmatprep.subr.bf16.mxu0 0
  %104 = vmatpush2.bf16.msra.mxu0 0
  %105 = vmatprep.subr.bf16.mxu0 0
  %106 = vmatpush2.bf16.msra.mxu0 0
  %107 = vmatprep.subr.bf16.mxu0 0
  %108 = vmatpush2.bf16.msra.mxu0 0
  %109 = vmatprep.subr.bf16.mxu0 0
  %110 = vmatpush2.bf16.msra.mxu0 0
  %111 = vmatprep.subr.bf16.mxu0 0
  %112 = vmatpush2.bf16.msra.mxu0 0
  %113 = vmatprep.subr.bf16.mxu0 0
  %114 = vmatpush2.bf16.msra.mxu0 0
  %115 = vmatprep.mubr.bf16.mxu0 0
  %116 = vmatmul.mubr.bf16.gmra.mxu0 %v78
  %v117 = vpop.f32.mrf.mxu0
  %v118 = vadd.f32 %v34, %v117
  %v119 = vpop.f32.mrf.mxu0
  %v120 = vpop.f32.mrf.mxu0
  %v121 = vadd.f32 %v34, %v120
  %v122 = vpop.f32.mrf.mxu0
  %123 = vmatprep.mubr.bf16.mxu0 0
  %124 = vmatmul.mubr.bf16.gmra.mxu0 %v81
  %v125 = vpop.f32.mrf.mxu0
  %v126 = vadd.f32 %v34, %v125
  %v127 = vpop.f32.mrf.mxu0
  %v128 = vpop.f32.mrf.mxu0
  %v129 = vadd.f32 %v34, %v128
  %v130 = vpop.f32.mrf.mxu0
  %131 = vdwg.mxu0
  %vm132 = vcmask 326656
  %133 = vst.msk [vmem:[%s3] sm:$0xff] %vm132, %v118
  %134 = vst.msk [vmem:[%s3 + $0x8] sm:$0xff] %vm132, %v121
  %135 = vst.msk [vmem:[%s3 + $0x10] sm:$0xff] %vm132, %v126
  %136 = vst.msk [vmem:[%s3 + $0x18] sm:$0xff] %vm132, %v129
  // Predicated region
  $region14: #{deeplabv3_forward.30} parent=0 // pred_check
    _
  $region15: #{deeplabv3_forward.30} parent=0 // pred_check_branch
    %138 = sbr.rel (0) target = $region17
  $region16: #{deeplabv3_forward.30} parent=0 // pred_region
    _
  $region17: #{deeplabv3_forward.30} parent=0 // pred_fallthru
    _
  // Predicated region
  $region18: #{deeplabv3_forward.30} parent=0 // pred_check
    _
  $region19: #{deeplabv3_forward.30} parent=0 // pred_check_branch
    %140 = sbr.rel (0) target = $region21
  $region20: #{deeplabv3_forward.30} parent=0 // pred_region
    _
  $region21: #{deeplabv3_forward.30} parent=0 // pred_fallthru
    _

// kernel: deeplabv3_forward.31
$region0: #{deeplabv3_forward.31}
  #allocation0 [shape = 'u32[]', space=smem, size = 0x4, offset = 0x4, fixed_abs, tag = 'smem constant byte address 0x4 - core index']
  #allocation1 [shape = 'u32[144,128]{1,0:T(1,128)}', space=vmem, size = 0x12000, scoped, tag = 'internal scratch']
  %s0 = inlined_call_operand.vmem [shape: bf16[32,40], index: 0, kind: input, shape index: {}]
  %s1 = inlined_call_operand.vmem [shape: bf16[40,128], index: 1, kind: input, shape index: {}]
  %s2 = inlined_call_operand.vmem [shape: f32[1,128], index: 2, kind: input, shape index: {}]
  %s3 = inlined_call_operand.vmem [shape: f32[32,128], index: 3, kind: output, shape index: {}]
  %s4 = sld [smem:[#allocation0]]
  $region22: #{deeplabv3_forward.31} parent=0
    _
  %s6 = ssub.s32 1, %s4
  %s7 = scalar_select 0, %s6, %s4
  // Predicated region
  $region2: #{deeplabv3_forward.31} parent=0 // pred_check
    _
  $region3: #{deeplabv3_forward.31} parent=0 // pred_check_branch
    %9 = sbr.rel (0) target = $region5
  $region4: #{deeplabv3_forward.31} parent=0 // pred_region
    _
  $region5: #{deeplabv3_forward.31} parent=0 // pred_fallthru
    _
  // Predicated region
  $region6: #{deeplabv3_forward.31} parent=0 // pred_check
    _
  $region7: #{deeplabv3_forward.31} parent=0 // pred_check_branch
    %11 = sbr.rel (0) target = $region9
  $region8: #{deeplabv3_forward.31} parent=0 // pred_region
    _
  $region9: #{deeplabv3_forward.31} parent=0 // pred_fallthru
    _
  // Predicated region
  $region10: #{deeplabv3_forward.31} parent=0 // pred_check
    _
  $region11: #{deeplabv3_forward.31} parent=0 // pred_check_branch
    %13 = sbr.rel (0) target = $region13
  $region12: #{deeplabv3_forward.31} parent=0 // pred_region
    _
  $region13: #{deeplabv3_forward.31} parent=0 // pred_fallthru
    _
  %v15 = vld [vmem:[%s0] sm:$0xf]
  %v16 = vld [vmem:[%s0 + $0x4] sm:$0xf]
  %v17 = vld [vmem:[%s0 + $0x8] sm:$0xf]
  %v18 = vld [vmem:[%s0 + $0xc] sm:$0xf]
  %v19 = vld [vmem:[%s1] sm:$0xf]
  %v20 = vld [vmem:[%s1 + $0x4] sm:$0xf]
  %v21 = vld [vmem:[%s1 + $0x8] sm:$0xf]
  %v22 = vld [vmem:[%s1 + $0xc] sm:$0xf]
  %v23 = vld [vmem:[%s1 + $0x10] sm:$0xf]
  %v24 = vld [vmem:[%s2] sm:$0x1]
  %v26 = vlaneseq
  %v27 = vshrl.u32 %v26, 7
  %v28 = vsub.s32 0, %v27
  %v29 = vrot.slane %v24, %v28
  %v35 = vunpack.c.l.b16 %v15
  %v36 = vunpack.c.l.b16 %v16
  %v37 = vunpack.c.l.b16 %v17
  %v38 = vunpack.c.l.b16 %v18
  %v39 = vpack.c.b16 %v36, %v35
  %v40 = vpack.c.b16 %v38, %v37
  %v46 = vunpack.c.l.b16 %v19
  %v47 = vunpack.c.l.b16 %v20
  %v48 = vunpack.c.l.b16 %v21
  %v49 = vunpack.c.l.b16 %v22
  %v50 = vunpack.c.l.b16 %v23
  %v51 = vpack.c.b16 %v47, %v46
  %v52 = vpack.c.b16 %v49, %v48
  %v53 = vpack.c.b16 %v50, %v50
  %vm56 = vcmask 326656
  %v58 = vsel %vm56, %v39, 0
  %v61 = vsel %vm56, %v40, 0
  %vm63 = vcmask 1043456
  %v65 = vsel %vm63, %v53, 0
  %67 = vmatprep.subr.bf16.mxu0 0
  %68 = vmatpush1.bf16.msra.mxu0 0
  %69 = vmatprep.subr.bf16.mxu0 0
  %70 = vmatpush1.bf16.msra.mxu0 0
  %71 = vmatprep.subr.bf16.mxu0 0
  %72 = vmatpush1.bf16.msra.mxu0 0
  %73 = vmatprep.subr.bf16.mxu0 0
  %74 = vmatpush1.bf16.msra.mxu0 0
  %75 = vmatprep.subr.bf16.mxu0 0
  %76 = vmatpush1.bf16.msra.mxu0 0
  %77 = vmatprep.subr.bf16.mxu0 0
  %78 = vmatpush1.bf16.msra.mxu0 %v65
  %79 = vmatprep.subr.bf16.mxu0 0
  %80 = vmatpush1.bf16.msra.mxu0 %v52
  %81 = vmatprep.subr.bf16.mxu0 0
  %82 = vmatpush1.bf16.msra.mxu0 %v51
  %83 = vmatprep.subr.bf16.mxu0 0
  %84 = vmatpush2.bf16.msra.mxu0 0
  %85 = vmatprep.subr.bf16.mxu0 0
  %86 = vmatpush2.bf16.msra.mxu0 0
  %87 = vmatprep.subr.bf16.mxu0 0
  %88 = vmatpush2.bf16.msra.mxu0 0
  %89 = vmatprep.subr.bf16.mxu0 0
  %90 = vmatpush2.bf16.msra.mxu0 0
  %91 = vmatprep.subr.bf16.mxu0 0
  %92 = vmatpush2.bf16.msra.mxu0 0
  %93 = vmatprep.subr.bf16.mxu0 0
  %94 = vmatpush2.bf16.msra.mxu0 0
  %95 = vmatprep.subr.bf16.mxu0 0
  %96 = vmatpush2.bf16.msra.mxu0 0
  %97 = vmatprep.subr.bf16.mxu0 0
  %98 = vmatpush2.bf16.msra.mxu0 0
  %99 = vmatprep.mubr.bf16.mxu0 0
  %100 = vmatmul.mubr.bf16.gmra.mxu0 %v58
  %v101 = vpop.f32.mrf.mxu0
  %v102 = vadd.f32 %v29, %v101
  %v103 = vpop.f32.mrf.mxu0
  %v104 = vpop.f32.mrf.mxu0
  %v105 = vadd.f32 %v29, %v104
  %v106 = vpop.f32.mrf.mxu0
  %107 = vmatprep.mubr.bf16.mxu0 0
  %108 = vmatmul.mubr.bf16.gmra.mxu0 %v61
  %v109 = vpop.f32.mrf.mxu0
  %v110 = vadd.f32 %v29, %v109
  %v111 = vpop.f32.mrf.mxu0
  %v112 = vpop.f32.mrf.mxu0
  %v113 = vadd.f32 %v29, %v112
  %v114 = vpop.f32.mrf.mxu0
  %115 = vdwg.mxu0
  %v116 = vmax.f32 %v102, 0.0
  %v117 = vmax.f32 %v105, 0.0
  %v118 = vmax.f32 %v110, 0.0
  %v119 = vmax.f32 %v113, 0.0
  %120 = vst [vmem:[%s3] sm:$0xff] %v116
  %121 = vst [vmem:[%s3 + $0x8] sm:$0xff] %v117
  %122 = vst [vmem:[%s3 + $0x10] sm:$0xff] %v118
  %123 = vst [vmem:[%s3 + $0x18] sm:$0xff] %v119
  // Predicated region
  $region14: #{deeplabv3_forward.31} parent=0 // pred_check
    _
  $region15: #{deeplabv3_forward.31} parent=0 // pred_check_branch
    %125 = sbr.rel (0) target = $region17
  $region16: #{deeplabv3_forward.31} parent=0 // pred_region
    _
  $region17: #{deeplabv3_forward.31} parent=0 // pred_fallthru
    _
  // Predicated region
  $region18: #{deeplabv3_forward.31} parent=0 // pred_check
    _
  $region19: #{deeplabv3_forward.31} parent=0 // pred_check_branch
    %127 = sbr.rel (0) target = $region21
  $region20: #{deeplabv3_forward.31} parent=0 // pred_region
    _
  $region21: #{deeplabv3_forward.31} parent=0 // pred_fallthru
    _

// kernel: deeplabv3_forward.32
$region0: #{deeplabv3_forward.32}
  #allocation0 [shape = 'u32[]', space=smem, size = 0x4, offset = 0x4, fixed_abs, tag = 'smem constant byte address 0x4 - core index']
  #allocation1 [shape = 'u32[144,128]{1,0:T(1,128)}', space=vmem, size = 0x12000, scoped, tag = 'internal scratch']
  %s0 = inlined_call_operand.vmem [shape: f32[2,16,40], index: 0, kind: input, shape index: {}]
  %s1 = inlined_call_operand.vmem [shape: bf16[40,32], index: 1, kind: input, shape index: {}]
  %s2 = inlined_call_operand.vmem [shape: f32[1,32], index: 2, kind: input, shape index: {}]
  %s3 = inlined_call_operand.vmem [shape: f32[2,32], index: 3, kind: output, shape index: {}]
  %s4 = sld [smem:[#allocation0]]
  $region22: #{deeplabv3_forward.32} parent=0
    _
  %s6 = ssub.s32 1, %s4
  %s7 = scalar_select 0, %s6, %s4
  // Predicated region
  $region2: #{deeplabv3_forward.32} parent=0 // pred_check
    _
  $region3: #{deeplabv3_forward.32} parent=0 // pred_check_branch
    %9 = sbr.rel (0) target = $region5
  $region4: #{deeplabv3_forward.32} parent=0 // pred_region
    _
  $region5: #{deeplabv3_forward.32} parent=0 // pred_fallthru
    _
  // Predicated region
  $region6: #{deeplabv3_forward.32} parent=0 // pred_check
    _
  $region7: #{deeplabv3_forward.32} parent=0 // pred_check_branch
    %11 = sbr.rel (0) target = $region9
  $region8: #{deeplabv3_forward.32} parent=0 // pred_region
    _
  $region9: #{deeplabv3_forward.32} parent=0 // pred_fallthru
    _
  // Predicated region
  $region10: #{deeplabv3_forward.32} parent=0 // pred_check
    _
  $region11: #{deeplabv3_forward.32} parent=0 // pred_check_branch
    %13 = sbr.rel (0) target = $region13
  $region12: #{deeplabv3_forward.32} parent=0 // pred_region
    _
  $region13: #{deeplabv3_forward.32} parent=0 // pred_fallthru
    _
  %v15 = vld [vmem:[%s0] sm:$0xff]
  %v16 = vld [vmem:[%s0 + $0x8] sm:$0xff]
  %v17 = vld [vmem:[%s0 + $0x10] sm:$0xff]
  %v18 = vld [vmem:[%s0 + $0x18] sm:$0xff]
  %vm19 = vcmask 326656
  %v20 = vsel %vm19, %v15, 0.0
  %v21 = vsel %vm19, %v16, 0.0
  %v22 = vadd.f32 %v20, %v21
  %v23 = vrot.slane %v22, 4
  %v24 = vadd.f32 %v22, %v23
  %v25 = vrot.slane %v24, 2
  %v26 = vadd.f32 %v24, %v25
  %v27 = vrot.slane %v26, 1
  %v28 = vadd.f32 %v26, %v27
  %v29 = vsel %vm19, %v17, 0.0
  %v30 = vsel %vm19, %v18, 0.0
  %v31 = vadd.f32 %v29, %v30
  %v32 = vrot.slane %v31, 4
  %v33 = vadd.f32 %v31, %v32
  %v34 = vrot.slane %v33, 2
  %v35 = vadd.f32 %v33, %v34
  %v36 = vrot.slane %v35, 1
  %v37 = vadd.f32 %v35, %v36
  %v38 = vrcp.pop 16.0
  %v39 = vmul.f32 %v28, %v38
  %v40 = vmul.f32 %v37, %v38
  %v41 = vpack.c.bf16 %v39, %v39
  %v42 = vpack.c.bf16 %v40, %v40
  %v43 = vld [vmem:[%s1] sm:$0xf]
  %v44 = vld [vmem:[%s1 + $0x4] sm:$0xf]
  %v45 = vld [vmem:[%s1 + $0x8] sm:$0xf]
  %v46 = vld [vmem:[%s1 + $0xc] sm:$0xf]
  %v47 = vld [vmem:[%s1 + $0x10] sm:$0xf]
  %v48 = vld [vmem:[%s2] sm:$0x1]
  %v50 = vlaneseq
  %v51 = vshrl.u32 %v50, 7
  %v52 = vsub.s32 0, %v51
  %v53 = vrot.slane %v48, %v52
  %v57 = vunpack.c.l.b16 %v41
  %v58 = vunpack.c.l.b16 %v42
  %vm59 = vcmask 1041409
  %v60 = vsel %vm59, %v58, %v57
  %v61 = vpack.c.b16 %v60, %v60
  %v67 = vunpack.c.l.b16 %v43
  %v68 = vunpack.c.l.b16 %v44
  %v69 = vunpack.c.l.b16 %v45
  %v70 = vunpack.c.l.b16 %v46
  %v71 = vunpack.c.l.b16 %v47
  %v72 = vpack.c.b16 %v68, %v67
  %v73 = vpack.c.b16 %v70, %v69
  %v74 = vpack.c.b16 %v71, %v71
  %v78 = vsel %vm19, %v61, 0
  %vm80 = vcmask 1043456
  %v82 = vsel %vm80, %v74, 0
  %84 = vmatprep.subr.bf16.mxu0 0
  %85 = vmatpush1.bf16.msra.mxu0 0
  %86 = vmatprep.subr.bf16.mxu0 0
  %87 = vmatpush1.bf16.msra.mxu0 0
  %88 = vmatprep.subr.bf16.mxu0 0
  %89 = vmatpush1.bf16.msra.mxu0 0
  %90 = vmatprep.subr.bf16.mxu0 0
  %91 = vmatpush1.bf16.msra.mxu0 0
  %92 = vmatprep.subr.bf16.mxu0 0
  %93 = vmatpush1.bf16.msra.mxu0 0
  %94 = vmatprep.subr.bf16.mxu0 0
  %95 = vmatpush1.bf16.msra.mxu0 %v82
  %96 = vmatprep.subr.bf16.mxu0 0
  %97 = vmatpush1.bf16.msra.mxu0 %v73
  %98 = vmatprep.subr.bf16.mxu0 0
  %99 = vmatpush1.bf16.msra.mxu0 %v72
  %100 = vmatprep.subr.bf16.mxu0 0
  %101 = vmatpush2.bf16.msra.mxu0 0
  %102 = vmatprep.subr.bf16.mxu0 0
  %103 = vmatpush2.bf16.msra.mxu0 0
  %104 = vmatprep.subr.bf16.mxu0 0
  %105 = vmatpush2.bf16.msra.mxu0 0
  %106 = vmatprep.subr.bf16.mxu0 0
  %107 = vmatpush2.bf16.msra.mxu0 0
  %108 = vmatprep.subr.bf16.mxu0 0
  %109 = vmatpush2.bf16.msra.mxu0 0
  %110 = vmatprep.subr.bf16.mxu0 0
  %111 = vmatpush2.bf16.msra.mxu0 0
  %112 = vmatprep.subr.bf16.mxu0 0
  %113 = vmatpush2.bf16.msra.mxu0 0
  %114 = vmatprep.subr.bf16.mxu0 0
  %115 = vmatpush2.bf16.msra.mxu0 0
  %116 = vmatprep.mubr.bf16.mxu0 0
  %117 = vmatmul.mubr.bf16.gmra.mxu0 %v78
  %v118 = vpop.f32.mrf.mxu0
  %v119 = vadd.f32 %v53, %v118
  %v120 = vpop.f32.mrf.mxu0
  %v121 = vpop.f32.mrf.mxu0
  %v122 = vpop.f32.mrf.mxu0
  %123 = vdwg.mxu0
  %v124 = vmax.f32 %v119, 0.0
  %vm125 = vcmask 254976
  %126 = vst.msk [vmem:[%s3] sm:$0x3] %vm125, %v124
  // Predicated region
  $region14: #{deeplabv3_forward.32} parent=0 // pred_check
    _
  $region15: #{deeplabv3_forward.32} parent=0 // pred_check_branch
    %128 = sbr.rel (0) target = $region17
  $region16: #{deeplabv3_forward.32} parent=0 // pred_region
    _
  $region17: #{deeplabv3_forward.32} parent=0 // pred_fallthru
    _
  // Predicated region
  $region18: #{deeplabv3_forward.32} parent=0 // pred_check
    _
  $region19: #{deeplabv3_forward.32} parent=0 // pred_check_branch
    %130 = sbr.rel (0) target = $region21
  $region20: #{deeplabv3_forward.32} parent=0 // pred_region
    _
  $region21: #{deeplabv3_forward.32} parent=0 // pred_fallthru
    _

// kernel: deeplabv3_forward.33
$region0: #{deeplabv3_forward.33}
  #allocation0 [shape = 'u32[]', space=smem, size = 0x4, offset = 0x4, fixed_abs, tag = 'smem constant byte address 0x4 - core index']
  #allocation1 [shape = 'u32[144,128]{1,0:T(1,128)}', space=vmem, size = 0x12000, scoped, tag = 'internal scratch']
  %s0 = inlined_call_operand.vmem [shape: bf16[32,160], index: 0, kind: input, shape index: {}]
  %s1 = inlined_call_operand.vmem [shape: bf16[160,32], index: 1, kind: input, shape index: {}]
  %s2 = inlined_call_operand.vmem [shape: f32[1,32], index: 2, kind: input, shape index: {}]
  %s3 = inlined_call_operand.vmem [shape: f32[32,32], index: 3, kind: output, shape index: {}]
  %s4 = sld [smem:[#allocation0]]
  $region22: #{deeplabv3_forward.33} parent=0
    _
  %s6 = ssub.s32 1, %s4
  %s7 = scalar_select 0, %s6, %s4
  // Predicated region
  $region2: #{deeplabv3_forward.33} parent=0 // pred_check
    _
  $region3: #{deeplabv3_forward.33} parent=0 // pred_check_branch
    %9 = sbr.rel (0) target = $region5
  $region4: #{deeplabv3_forward.33} parent=0 // pred_region
    _
  $region5: #{deeplabv3_forward.33} parent=0 // pred_fallthru
    _
  // Predicated region
  $region6: #{deeplabv3_forward.33} parent=0 // pred_check
    _
  $region7: #{deeplabv3_forward.33} parent=0 // pred_check_branch
    %11 = sbr.rel (0) target = $region9
  $region8: #{deeplabv3_forward.33} parent=0 // pred_region
    _
  $region9: #{deeplabv3_forward.33} parent=0 // pred_fallthru
    _
  // Predicated region
  $region10: #{deeplabv3_forward.33} parent=0 // pred_check
    _
  $region11: #{deeplabv3_forward.33} parent=0 // pred_check_branch
    %13 = sbr.rel (0) target = $region13
  $region12: #{deeplabv3_forward.33} parent=0 // pred_region
    _
  $region13: #{deeplabv3_forward.33} parent=0 // pred_fallthru
    _
  %v15 = vld [vmem:[%s0] sm:$0xff]
  %v16 = vld [vmem:[%s0 + $0x8] sm:$0xff]
  %v17 = vld [vmem:[%s0 + $0x10] sm:$0xff]
  %v18 = vld [vmem:[%s0 + $0x18] sm:$0xff]
  %v19 = vld [vmem:[%s1] sm:$0xf]
  %v20 = vld [vmem:[%s1 + $0x4] sm:$0xf]
  %v21 = vld [vmem:[%s1 + $0x8] sm:$0xf]
  %v22 = vld [vmem:[%s1 + $0xc] sm:$0xf]
  %v23 = vld [vmem:[%s1 + $0x10] sm:$0xf]
  %v24 = vld [vmem:[%s1 + $0x14] sm:$0xf]
  %v25 = vld [vmem:[%s1 + $0x18] sm:$0xf]
  %v26 = vld [vmem:[%s1 + $0x1c] sm:$0xf]
  %v27 = vld [vmem:[%s1 + $0x20] sm:$0xf]
  %v28 = vld [vmem:[%s1 + $0x24] sm:$0xf]
  %v29 = vld [vmem:[%s1 + $0x28] sm:$0xf]
  %v30 = vld [vmem:[%s1 + $0x2c] sm:$0xf]
  %v31 = vld [vmem:[%s1 + $0x30] sm:$0xf]
  %v32 = vld [vmem:[%s1 + $0x34] sm:$0xf]
  %v33 = vld [vmem:[%s1 + $0x38] sm:$0xf]
  %v34 = vld [vmem:[%s1 + $0x3c] sm:$0xf]
  %v35 = vld [vmem:[%s1 + $0x40] sm:$0xf]
  %v36 = vld [vmem:[%s1 + $0x44] sm:$0xf]
  %v37 = vld [vmem:[%s1 + $0x48] sm:$0xf]
  %v38 = vld [vmem:[%s1 + $0x4c] sm:$0xf]
  %v39 = vld [vmem:[%s2] sm:$0x1]
  %v41 = vlaneseq
  %v42 = vshrl.u32 %v41, 7
  %v43 = vsub.s32 0, %v42
  %v44 = vrot.slane %v39, %v43
  %v50 = vunpack.c.l.b16 %v15
  %v51 = vunpack.c.h.b16 %v15
  %v52 = vunpack.c.l.b16 %v16
  %v53 = vunpack.c.h.b16 %v16
  %v54 = vunpack.c.l.b16 %v17
  %v55 = vunpack.c.h.b16 %v17
  %v56 = vunpack.c.l.b16 %v18
  %v57 = vunpack.c.h.b16 %v18
  %v58 = vpack.c.b16 %v52, %v50
  %v59 = vpack.c.b16 %v53, %v51
  %v60 = vpack.c.b16 %v56, %v54
  %v61 = vpack.c.b16 %v57, %v55
  %v84 = vunpack.c.l.b16 %v19
  %v85 = vunpack.c.l.b16 %v20
  %v86 = vunpack.c.l.b16 %v21
  %v87 = vunpack.c.l.b16 %v22
  %v88 = vunpack.c.l.b16 %v23
  %v89 = vunpack.c.l.b16 %v24
  %v90 = vunpack.c.l.b16 %v25
  %v91 = vunpack.c.l.b16 %v26
  %v92 = vunpack.c.l.b16 %v27
  %v93 = vunpack.c.l.b16 %v28
  %v94 = vunpack.c.l.b16 %v29
  %v95 = vunpack.c.l.b16 %v30
  %v96 = vunpack.c.l.b16 %v31
  %v97 = vunpack.c.l.b16 %v32
  %v98 = vunpack.c.l.b16 %v33
  %v99 = vunpack.c.l.b16 %v34
  %v100 = vunpack.c.l.b16 %v35
  %v101 = vunpack.c.l.b16 %v36
  %v102 = vunpack.c.l.b16 %v37
  %v103 = vunpack.c.l.b16 %v38
  %v104 = vpack.c.b16 %v85, %v84
  %v105 = vpack.c.b16 %v87, %v86
  %v106 = vpack.c.b16 %v89, %v88
  %v107 = vpack.c.b16 %v91, %v90
  %v108 = vpack.c.b16 %v93, %v92
  %v109 = vpack.c.b16 %v95, %v94
  %v110 = vpack.c.b16 %v97, %v96
  %v111 = vpack.c.b16 %v99, %v98
  %v112 = vpack.c.b16 %v101, %v100
  %v113 = vpack.c.b16 %v103, %v102
  %vm124 = vcmask 261120
  %v126 = vsel %vm124, %v59, 0
  %v129 = vsel %vm124, %v61, 0
  %131 = vmatprep.subr.bf16.mxu0 0
  %132 = vmatpush1.bf16.msra.mxu0 %v111
  %133 = vmatprep.subr.bf16.mxu0 0
  %134 = vmatpush1.bf16.msra.mxu0 %v110
  %135 = vmatprep.subr.bf16.mxu0 0
  %136 = vmatpush1.bf16.msra.mxu0 %v109
  %137 = vmatprep.subr.bf16.mxu0 0
  %138 = vmatpush1.bf16.msra.mxu0 %v108
  %139 = vmatprep.subr.bf16.mxu0 0
  %140 = vmatpush1.bf16.msra.mxu0 %v107
  %141 = vmatprep.subr.bf16.mxu0 0
  %142 = vmatpush1.bf16.msra.mxu0 %v106
  %143 = vmatprep.subr.bf16.mxu0 0
  %144 = vmatpush1.bf16.msra.mxu0 %v105
  %145 = vmatprep.subr.bf16.mxu0 0
  %146 = vmatpush1.bf16.msra.mxu0 %v104
  %147 = vmatprep.subr.bf16.mxu0 0
  %148 = vmatpush2.bf16.msra.mxu0 0
  %149 = vmatprep.subr.bf16.mxu0 0
  %150 = vmatpush2.bf16.msra.mxu0 0
  %151 = vmatprep.subr.bf16.mxu0 0
  %152 = vmatpush2.bf16.msra.mxu0 0
  %153 = vmatprep.subr.bf16.mxu0 0
  %154 = vmatpush2.bf16.msra.mxu0 0
  %155 = vmatprep.subr.bf16.mxu0 0
  %156 = vmatpush2.bf16.msra.mxu0 0
  %157 = vmatprep.subr.bf16.mxu0 0
  %158 = vmatpush2.bf16.msra.mxu0 0
  %159 = vmatprep.subr.bf16.mxu0 0
  %160 = vmatpush2.bf16.msra.mxu0 %v113
  %161 = vmatprep.subr.bf16.mxu0 0
  %162 = vmatpush2.bf16.msra.mxu0 %v112
  %163 = vmatprep.mubr.bf16.mxu0 %v126
  %164 = vmatmul.mubr.bf16.gmra.mxu0 %v58
  %v165 = vpop.f32.mrf.mxu0
  %v166 = vadd.f32 %v44, %v165
  %v167 = vpop.f32.mrf.mxu0
  %v168 = vpop.f32.mrf.mxu0
  %v169 = vadd.f32 %v44, %v168
  %v170 = vpop.f32.mrf.mxu0
  %171 = vmatprep.mubr.bf16.mxu0 %v129
  %172 = vmatmul.mubr.bf16.gmra.mxu0 %v60
  %v173 = vpop.f32.mrf.mxu0
  %v174 = vadd.f32 %v44, %v173
  %v175 = vpop.f32.mrf.mxu0
  %v176 = vpop.f32.mrf.mxu0
  %v177 = vadd.f32 %v44, %v176
  %v178 = vpop.f32.mrf.mxu0
  %179 = vdwg.mxu0
  %v180 = vmax.f32 %v166, 0.0
  %v181 = vmax.f32 %v169, 0.0
  %v182 = vmax.f32 %v174, 0.0
  %v183 = vmax.f32 %v177, 0.0
  %184 = vst.msk [vmem:[%s3] sm:$0xff] %vm124, %v180
  %185 = vst.msk [vmem:[%s3 + $0x8] sm:$0xff] %vm124, %v181
  %186 = vst.msk [vmem:[%s3 + $0x10] sm:$0xff] %vm124, %v182
  %187 = vst.msk [vmem:[%s3 + $0x18] sm:$0xff] %vm124, %v183
  // Predicated region
  $region14: #{deeplabv3_forward.33} parent=0 // pred_check
    _
  $region15: #{deeplabv3_forward.33} parent=0 // pred_check_branch
    %189 = sbr.rel (0) target = $region17
  $region16: #{deeplabv3_forward.33} parent=0 // pred_region
    _
  $region17: #{deeplabv3_forward.33} parent=0 // pred_fallthru
    _
  // Predicated region
  $region18: #{deeplabv3_forward.33} parent=0 // pred_check
    _
  $region19: #{deeplabv3_forward.33} parent=0 // pred_check_branch
    %191 = sbr.rel (0) target = $region21
  $region20: #{deeplabv3_forward.33} parent=0 // pred_region
    _
  $region21: #{deeplabv3_forward.33} parent=0 // pred_fallthru
    _

// kernel: deeplabv3_forward.35
$region0: #{deeplabv3_forward.35}
  #allocation0 [shape = 'u32[]', space=smem, size = 0x4, offset = 0x4, fixed_abs, tag = 'smem constant byte address 0x4 - core index']
  #allocation1 [shape = 'u32[144,128]{1,0:T(1,128)}', space=vmem, size = 0x12000, scoped, tag = 'internal scratch']
  %s0 = inlined_call_operand.vmem [shape: bf16[32,32], index: 0, kind: input, shape index: {}]
  %s1 = inlined_call_operand.vmem [shape: bf16[32,7], index: 1, kind: input, shape index: {}]
  %s2 = inlined_call_operand.vmem [shape: f32[1,7], index: 2, kind: input, shape index: {}]
  %s3 = inlined_call_operand.vmem [shape: f32[32,7], index: 3, kind: output, shape index: {}]
  %s4 = sld [smem:[#allocation0]]
  $region22: #{deeplabv3_forward.35} parent=0
    _
  %s6 = ssub.s32 1, %s4
  %s7 = scalar_select 0, %s6, %s4
  // Predicated region
  $region2: #{deeplabv3_forward.35} parent=0 // pred_check
    _
  $region3: #{deeplabv3_forward.35} parent=0 // pred_check_branch
    %9 = sbr.rel (0) target = $region5
  $region4: #{deeplabv3_forward.35} parent=0 // pred_region
    _
  $region5: #{deeplabv3_forward.35} parent=0 // pred_fallthru
    _
  // Predicated region
  $region6: #{deeplabv3_forward.35} parent=0 // pred_check
    _
  $region7: #{deeplabv3_forward.35} parent=0 // pred_check_branch
    %11 = sbr.rel (0) target = $region9
  $region8: #{deeplabv3_forward.35} parent=0 // pred_region
    _
  $region9: #{deeplabv3_forward.35} parent=0 // pred_fallthru
    _
  // Predicated region
  $region10: #{deeplabv3_forward.35} parent=0 // pred_check
    _
  $region11: #{deeplabv3_forward.35} parent=0 // pred_check_branch
    %13 = sbr.rel (0) target = $region13
  $region12: #{deeplabv3_forward.35} parent=0 // pred_region
    _
  $region13: #{deeplabv3_forward.35} parent=0 // pred_fallthru
    _
  %v15 = vld [vmem:[%s0] sm:$0xf]
  %v16 = vld [vmem:[%s0 + $0x4] sm:$0xf]
  %v17 = vld [vmem:[%s0 + $0x8] sm:$0xf]
  %v18 = vld [vmem:[%s0 + $0xc] sm:$0xf]
  %v19 = vld [vmem:[%s1] sm:$0xf]
  %v20 = vld [vmem:[%s1 + $0x4] sm:$0xf]
  %v21 = vld [vmem:[%s1 + $0x8] sm:$0xf]
  %v22 = vld [vmem:[%s1 + $0xc] sm:$0xf]
  %v23 = vld [vmem:[%s2] sm:$0x1]
  %v25 = vlaneseq
  %v26 = vshrl.u32 %v25, 7
  %v27 = vsub.s32 0, %v26
  %v28 = vrot.slane %v23, %v27
  %v34 = vunpack.c.l.b16 %v15
  %v35 = vunpack.c.l.b16 %v16
  %v36 = vunpack.c.l.b16 %v17
  %v37 = vunpack.c.l.b16 %v18
  %v38 = vpack.c.b16 %v35, %v34
  %v39 = vpack.c.b16 %v37, %v36
  %v44 = vunpack.c.l.b16 %v19
  %v45 = vunpack.c.l.b16 %v20
  %v46 = vunpack.c.l.b16 %v21
  %v47 = vunpack.c.l.b16 %v22
  %v48 = vpack.c.b16 %v45, %v44
  %v49 = vpack.c.b16 %v47, %v46
  %vm52 = vcmask 261120
  %v54 = vsel %vm52, %v38, 0
  %v57 = vsel %vm52, %v39, 0
  %59 = vmatprep.subr.bf16.mxu0 0
  %60 = vmatpush1.bf16.msra.mxu0 0
  %61 = vmatprep.subr.bf16.mxu0 0
  %62 = vmatpush1.bf16.msra.mxu0 0
  %63 = vmatprep.subr.bf16.mxu0 0
  %64 = vmatpush1.bf16.msra.mxu0 0
  %65 = vmatprep.subr.bf16.mxu0 0
  %66 = vmatpush1.bf16.msra.mxu0 0
  %67 = vmatprep.subr.bf16.mxu0 0
  %68 = vmatpush1.bf16.msra.mxu0 0
  %69 = vmatprep.subr.bf16.mxu0 0
  %70 = vmatpush1.bf16.msra.mxu0 0
  %71 = vmatprep.subr.bf16.mxu0 0
  %72 = vmatpush1.bf16.msra.mxu0 %v49
  %73 = vmatprep.subr.bf16.mxu0 0
  %74 = vmatpush1.bf16.msra.mxu0 %v48
  %75 = vmatprep.subr.bf16.mxu0 0
  %76 = vmatpush2.bf16.msra.mxu0 0
  %77 = vmatprep.subr.bf16.mxu0 0
  %78 = vmatpush2.bf16.msra.mxu0 0
  %79 = vmatprep.subr.bf16.mxu0 0
  %80 = vmatpush2.bf16.msra.mxu0 0
  %81 = vmatprep.subr.bf16.mxu0 0
  %82 = vmatpush2.bf16.msra.mxu0 0
  %83 = vmatprep.subr.bf16.mxu0 0
  %84 = vmatpush2.bf16.msra.mxu0 0
  %85 = vmatprep.subr.bf16.mxu0 0
  %86 = vmatpush2.bf16.msra.mxu0 0
  %87 = vmatprep.subr.bf16.mxu0 0
  %88 = vmatpush2.bf16.msra.mxu0 0
  %89 = vmatprep.subr.bf16.mxu0 0
  %90 = vmatpush2.bf16.msra.mxu0 0
  %91 = vmatprep.mubr.bf16.mxu0 0
  %92 = vmatmul.mubr.bf16.gmra.mxu0 %v54
  %v93 = vpop.f32.mrf.mxu0
  %v94 = vadd.f32 %v28, %v93
  %v95 = vpop.f32.mrf.mxu0
  %v96 = vpop.f32.mrf.mxu0
  %v97 = vadd.f32 %v28, %v96
  %v98 = vpop.f32.mrf.mxu0
  %99 = vmatprep.mubr.bf16.mxu0 0
  %100 = vmatmul.mubr.bf16.gmra.mxu0 %v57
  %v101 = vpop.f32.mrf.mxu0
  %v102 = vadd.f32 %v28, %v101
  %v103 = vpop.f32.mrf.mxu0
  %v104 = vpop.f32.mrf.mxu0
  %v105 = vadd.f32 %v28, %v104
  %v106 = vpop.f32.mrf.mxu0
  %107 = vdwg.mxu0
  %vm108 = vcmask 56320
  %109 = vst.msk [vmem:[%s3] sm:$0xff] %vm108, %v94
  %110 = vst.msk [vmem:[%s3 + $0x8] sm:$0xff] %vm108, %v97
  %111 = vst.msk [vmem:[%s3 + $0x10] sm:$0xff] %vm108, %v102
  %112 = vst.msk [vmem:[%s3 + $0x18] sm:$0xff] %vm108, %v105
  // Predicated region
  $region14: #{deeplabv3_forward.35} parent=0 // pred_check
    _
  $region15: #{deeplabv3_forward.35} parent=0 // pred_check_branch
    %114 = sbr.rel (0) target = $region17
  $region16: #{deeplabv3_forward.35} parent=0 // pred_region
    _
  $region17: #{deeplabv3_forward.35} parent=0 // pred_fallthru
    _
  // Predicated region
  $region18: #{deeplabv3_forward.35} parent=0 // pred_check
    _
  $region19: #{deeplabv3_forward.35} parent=0 // pred_check_branch
    %116 = sbr.rel (0) target = $region21
  $region20: #{deeplabv3_forward.35} parent=0 // pred_region
    _
  $region21: #{deeplabv3_forward.35} parent=0 // pred_fallthru
    _

// kernel: deeplabv3_forward.34
$region0: #{deeplabv3_forward.34}
  #allocation0 [shape = 'u32[]', space=smem, size = 0x4, offset = 0x4, fixed_abs, tag = 'smem constant byte address 0x4 - core index']
  #allocation1 [shape = 'u32[144,128]{1,0:T(1,128)}', space=vmem, size = 0x12000, scoped, tag = 'internal scratch']
  %s0 = inlined_call_operand.vmem [shape: bf16[32,288], index: 0, kind: input, shape index: {}]
  %s1 = inlined_call_operand.vmem [shape: bf16[288,32], index: 1, kind: input, shape index: {}]
  %s2 = inlined_call_operand.vmem [shape: f32[1,32], index: 2, kind: input, shape index: {}]
  %s3 = inlined_call_operand.vmem [shape: f32[32,32], index: 3, kind: output, shape index: {}]
  %s4 = sld [smem:[#allocation0]]
  $region22: #{deeplabv3_forward.34} parent=0
    _
  %s6 = ssub.s32 1, %s4
  %s7 = scalar_select 0, %s6, %s4
  // Predicated region
  $region2: #{deeplabv3_forward.34} parent=0 // pred_check
    _
  $region3: #{deeplabv3_forward.34} parent=0 // pred_check_branch
    %9 = sbr.rel (0) target = $region5
  $region4: #{deeplabv3_forward.34} parent=0 // pred_region
    _
  $region5: #{deeplabv3_forward.34} parent=0 // pred_fallthru
    _
  // Predicated region
  $region6: #{deeplabv3_forward.34} parent=0 // pred_check
    _
  $region7: #{deeplabv3_forward.34} parent=0 // pred_check_branch
    %11 = sbr.rel (0) target = $region9
  $region8: #{deeplabv3_forward.34} parent=0 // pred_region
    _
  $region9: #{deeplabv3_forward.34} parent=0 // pred_fallthru
    _
  // Predicated region
  $region10: #{deeplabv3_forward.34} parent=0 // pred_check
    _
  $region11: #{deeplabv3_forward.34} parent=0 // pred_check_branch
    %13 = sbr.rel (0) target = $region13
  $region12: #{deeplabv3_forward.34} parent=0 // pred_region
    _
  $region13: #{deeplabv3_forward.34} parent=0 // pred_fallthru
    _
  %v15 = vld [vmem:[%s0] sm:$0xff]
  %v16 = vld [vmem:[%s0 + $0x8] sm:$0xf]
  %v17 = vld [vmem:[%s0 + $0xc] sm:$0xff]
  %v18 = vld [vmem:[%s0 + $0x14] sm:$0xf]
  %v19 = vld [vmem:[%s0 + $0x18] sm:$0xff]
  %v20 = vld [vmem:[%s0 + $0x20] sm:$0xf]
  %v21 = vld [vmem:[%s0 + $0x24] sm:$0xff]
  %v22 = vld [vmem:[%s0 + $0x2c] sm:$0xf]
  %v23 = vld [vmem:[%s1] sm:$0xf]
  %v24 = vld [vmem:[%s1 + $0x4] sm:$0xf]
  %v25 = vld [vmem:[%s1 + $0x8] sm:$0xf]
  %v26 = vld [vmem:[%s1 + $0xc] sm:$0xf]
  %v27 = vld [vmem:[%s1 + $0x10] sm:$0xf]
  %v28 = vld [vmem:[%s1 + $0x14] sm:$0xf]
  %v29 = vld [vmem:[%s1 + $0x18] sm:$0xf]
  %v30 = vld [vmem:[%s1 + $0x1c] sm:$0xf]
  %v31 = vld [vmem:[%s1 + $0x20] sm:$0xf]
  %v32 = vld [vmem:[%s1 + $0x24] sm:$0xf]
  %v33 = vld [vmem:[%s1 + $0x28] sm:$0xf]
  %v34 = vld [vmem:[%s1 + $0x2c] sm:$0xf]
  %v35 = vld [vmem:[%s1 + $0x30] sm:$0xf]
  %v36 = vld [vmem:[%s1 + $0x34] sm:$0xf]
  %v37 = vld [vmem:[%s1 + $0x38] sm:$0xf]
  %v38 = vld [vmem:[%s1 + $0x3c] sm:$0xf]
  %v39 = vld [vmem:[%s1 + $0x40] sm:$0xf]
  %v40 = vld [vmem:[%s1 + $0x44] sm:$0xf]
  %v41 = vld [vmem:[%s1 + $0x48] sm:$0xf]
  %v42 = vld [vmem:[%s1 + $0x4c] sm:$0xf]
  %v43 = vld [vmem:[%s1 + $0x50] sm:$0xf]
  %v44 = vld [vmem:[%s1 + $0x54] sm:$0xf]
  %v45 = vld [vmem:[%s1 + $0x58] sm:$0xf]
  %v46 = vld [vmem:[%s1 + $0x5c] sm:$0xf]
  %v47 = vld [vmem:[%s1 + $0x60] sm:$0xf]
  %v48 = vld [vmem:[%s1 + $0x64] sm:$0xf]
  %v49 = vld [vmem:[%s1 + $0x68] sm:$0xf]
  %v50 = vld [vmem:[%s1 + $0x6c] sm:$0xf]
  %v51 = vld [vmem:[%s1 + $0x70] sm:$0xf]
  %v52 = vld [vmem:[%s1 + $0x74] sm:$0xf]
  %v53 = vld [vmem:[%s1 + $0x78] sm:$0xf]
  %v54 = vld [vmem:[%s1 + $0x7c] sm:$0xf]
  %v55 = vld [vmem:[%s1 + $0x80] sm:$0xf]
  %v56 = vld [vmem:[%s1 + $0x84] sm:$0xf]
  %v57 = vld [vmem:[%s1 + $0x88] sm:$0xf]
  %v58 = vld [vmem:[%s1 + $0x8c] sm:$0xf]
  %v59 = vld [vmem:[%s2] sm:$0x1]
  %v61 = vlaneseq
  %v62 = vshrl.u32 %v61, 7
  %v63 = vsub.s32 0, %v62
  %v64 = vrot.slane %v59, %v63
  %v74 = vunpack.c.l.b16 %v15
  %v75 = vunpack.c.h.b16 %v15
  %v76 = vunpack.c.l.b16 %v16
  %v77 = vunpack.c.l.b16 %v17
  %v78 = vunpack.c.h.b16 %v17
  %v79 = vunpack.c.l.b16 %v18
  %v80 = vunpack.c.l.b16 %v19
  %v81 = vunpack.c.h.b16 %v19
  %v82 = vunpack.c.l.b16 %v20
  %v83 = vunpack.c.l.b16 %v21
  %v84 = vunpack.c.h.b16 %v21
  %v85 = vunpack.c.l.b16 %v22
  %v86 = vpack.c.b16 %v77, %v74
  %v87 = vpack.c.b16 %v78, %v75
  %v88 = vpack.c.b16 %v79, %v76
  %v89 = vpack.c.b16 %v83, %v80
  %v90 = vpack.c.b16 %v84, %v81
  %v91 = vpack.c.b16 %v85, %v82
  %v132 = vunpack.c.l.b16 %v23
  %v133 = vunpack.c.l.b16 %v24
  %v134 = vunpack.c.l.b16 %v25
  %v135 = vunpack.c.l.b16 %v26
  %v136 = vunpack.c.l.b16 %v27
  %v137 = vunpack.c.l.b16 %v28
  %v138 = vunpack.c.l.b16 %v29
  %v139 = vunpack.c.l.b16 %v30
  %v140 = vunpack.c.l.b16 %v31
  %v141 = vunpack.c.l.b16 %v32
  %v142 = vunpack.c.l.b16 %v33
  %v143 = vunpack.c.l.b16 %v34
  %v144 = vunpack.c.l.b16 %v35
  %v145 = vunpack.c.l.b16 %v36
  %v146 = vunpack.c.l.b16 %v37
  %v147 = vunpack.c.l.b16 %v38
  %v148 = vunpack.c.l.b16 %v39
  %v149 = vunpack.c.l.b16 %v40
  %v150 = vunpack.c.l.b16 %v41
  %v151 = vunpack.c.l.b16 %v42
  %v152 = vunpack.c.l.b16 %v43
  %v153 = vunpack.c.l.b16 %v44
  %v154 = vunpack.c.l.b16 %v45
  %v155 = vunpack.c.l.b16 %v46
  %v156 = vunpack.c.l.b16 %v47
  %v157 = vunpack.c.l.b16 %v48
  %v158 = vunpack.c.l.b16 %v49
  %v159 = vunpack.c.l.b16 %v50
  %v160 = vunpack.c.l.b16 %v51
  %v161 = vunpack.c.l.b16 %v52
  %v162 = vunpack.c.l.b16 %v53
  %v163 = vunpack.c.l.b16 %v54
  %v164 = vunpack.c.l.b16 %v55
  %v165 = vunpack.c.l.b16 %v56
  %v166 = vunpack.c.l.b16 %v57
  %v167 = vunpack.c.l.b16 %v58
  %v168 = vpack.c.b16 %v133, %v132
  %v169 = vpack.c.b16 %v135, %v134
  %v170 = vpack.c.b16 %v137, %v136
  %v171 = vpack.c.b16 %v139, %v138
  %v172 = vpack.c.b16 %v141, %v140
  %v173 = vpack.c.b16 %v143, %v142
  %v174 = vpack.c.b16 %v145, %v144
  %v175 = vpack.c.b16 %v147, %v146
  %v176 = vpack.c.b16 %v149, %v148
  %v177 = vpack.c.b16 %v151, %v150
  %v178 = vpack.c.b16 %v153, %v152
  %v179 = vpack.c.b16 %v155, %v154
  %v180 = vpack.c.b16 %v157, %v156
  %v181 = vpack.c.b16 %v159, %v158
  %v182 = vpack.c.b16 %v161, %v160
  %v183 = vpack.c.b16 %v163, %v162
  %v184 = vpack.c.b16 %v165, %v164
  %v185 = vpack.c.b16 %v167, %v166
  %vm204 = vcmask 261120
  %v206 = vsel %vm204, %v88, 0
  %v209 = vsel %vm204, %v91, 0
  %211 = vmatprep.subr.bf16.mxu0 0
  %212 = vmatpush1.bf16.msra.mxu0 %v175
  %213 = vmatprep.subr.bf16.mxu0 0
  %214 = vmatpush1.bf16.msra.mxu0 %v174
  %215 = vmatprep.subr.bf16.mxu0 0
  %216 = vmatpush1.bf16.msra.mxu0 %v173
  %217 = vmatprep.subr.bf16.mxu0 0
  %218 = vmatpush1.bf16.msra.mxu0 %v172
  %219 = vmatprep.subr.bf16.mxu0 0
  %220 = vmatpush1.bf16.msra.mxu0 %v171
  %221 = vmatprep.subr.bf16.mxu0 0
  %222 = vmatpush1.bf16.msra.mxu0 %v170
  %223 = vmatprep.subr.bf16.mxu0 0
  %224 = vmatpush1.bf16.msra.mxu0 %v169
  %225 = vmatprep.subr.bf16.mxu0 0
  %226 = vmatpush1.bf16.msra.mxu0 %v168
  %227 = vmatprep.subr.bf16.mxu0 0
  %228 = vmatpush2.bf16.msra.mxu0 %v183
  %229 = vmatprep.subr.bf16.mxu0 0
  %230 = vmatpush2.bf16.msra.mxu0 %v182
  %231 = vmatprep.subr.bf16.mxu0 0
  %232 = vmatpush2.bf16.msra.mxu0 %v181
  %233 = vmatprep.subr.bf16.mxu0 0
  %234 = vmatpush2.bf16.msra.mxu0 %v180
  %235 = vmatprep.subr.bf16.mxu0 0
  %236 = vmatpush2.bf16.msra.mxu0 %v179
  %237 = vmatprep.subr.bf16.mxu0 0
  %238 = vmatpush2.bf16.msra.mxu0 %v178
  %239 = vmatprep.subr.bf16.mxu0 0
  %240 = vmatpush2.bf16.msra.mxu0 %v177
  %241 = vmatprep.subr.bf16.mxu0 0
  %242 = vmatpush2.bf16.msra.mxu0 %v176
  %243 = vmatprep.mubr.bf16.mxu0 %v87
  %244 = vmatmul.mubr.bf16.gmra.mxu0 %v86
  %v245 = vpop.f32.mrf.mxu0
  %v246 = vadd.f32 %v64, %v245
  %v247 = vpop.f32.mrf.mxu0
  %v248 = vpop.f32.mrf.mxu0
  %v249 = vadd.f32 %v64, %v248
  %v250 = vpop.f32.mrf.mxu0
  %251 = vmatprep.mubr.bf16.mxu0 %v90
  %252 = vmatmul.mubr.bf16.gmra.mxu0 %v89
  %v253 = vpop.f32.mrf.mxu0
  %v254 = vadd.f32 %v64, %v253
  %v255 = vpop.f32.mrf.mxu0
  %v256 = vpop.f32.mrf.mxu0
  %v257 = vadd.f32 %v64, %v256
  %v258 = vpop.f32.mrf.mxu0
  %259 = vdwg.mxu0
  %260 = vmatprep.subr.bf16.mxu0 0
  %261 = vmatpush1.bf16.msra.mxu0 0
  %262 = vmatprep.subr.bf16.mxu0 0
  %263 = vmatpush1.bf16.msra.mxu0 0
  %264 = vmatprep.subr.bf16.mxu0 0
  %265 = vmatpush1.bf16.msra.mxu0 0
  %266 = vmatprep.subr.bf16.mxu0 0
  %267 = vmatpush1.bf16.msra.mxu0 0
  %268 = vmatprep.subr.bf16.mxu0 0
  %269 = vmatpush1.bf16.msra.mxu0 0
  %270 = vmatprep.subr.bf16.mxu0 0
  %271 = vmatpush1.bf16.msra.mxu0 0
  %272 = vmatprep.subr.bf16.mxu0 0
  %273 = vmatpush1.bf16.msra.mxu0 %v185
  %274 = vmatprep.subr.bf16.mxu0 0
  %275 = vmatpush1.bf16.msra.mxu0 %v184
  %276 = vmatprep.subr.bf16.mxu0 0
  %277 = vmatpush2.bf16.msra.mxu0 0
  %278 = vmatprep.subr.bf16.mxu0 0
  %279 = vmatpush2.bf16.msra.mxu0 0
  %280 = vmatprep.subr.bf16.mxu0 0
  %281 = vmatpush2.bf16.msra.mxu0 0
  %282 = vmatprep.subr.bf16.mxu0 0
  %283 = vmatpush2.bf16.msra.mxu0 0
  %284 = vmatprep.subr.bf16.mxu0 0
  %285 = vmatpush2.bf16.msra.mxu0 0
  %286 = vmatprep.subr.bf16.mxu0 0
  %287 = vmatpush2.bf16.msra.mxu0 0
  %288 = vmatprep.subr.bf16.mxu0 0
  %289 = vmatpush2.bf16.msra.mxu0 0
  %290 = vmatprep.subr.bf16.mxu0 0
  %291 = vmatpush2.bf16.msra.mxu0 0
  %292 = vmatprep.mubr.bf16.mxu0 0
  %293 = vmatmul.mubr.bf16.gmra.mxu0 %v206
  %v294 = vpop.f32.mrf.mxu0
  %v295 = vadd.f32 %v246, %v294
  %v296 = vpop.f32.mrf.mxu0
  %v297 = vpop.f32.mrf.mxu0
  %v298 = vadd.f32 %v249, %v297
  %v299 = vpop.f32.mrf.mxu0
  %300 = vmatprep.mubr.bf16.mxu0 0
  %301 = vmatmul.mubr.bf16.gmra.mxu0 %v209
  %v302 = vpop.f32.mrf.mxu0
  %v303 = vadd.f32 %v254, %v302
  %v304 = vpop.f32.mrf.mxu0
  %v305 = vpop.f32.mrf.mxu0
  %v306 = vadd.f32 %v257, %v305
  %v307 = vpop.f32.mrf.mxu0
  %308 = vdwg.mxu0
  %v309 = vmax.f32 %v295, 0.0
  %v310 = vmax.f32 %v298, 0.0
  %v311 = vmax.f32 %v303, 0.0
  %v312 = vmax.f32 %v306, 0.0
  %313 = vst.msk [vmem:[%s3] sm:$0xff] %vm204, %v309
  %314 = vst.msk [vmem:[%s3 + $0x8] sm:$0xff] %vm204, %v310
  %315 = vst.msk [vmem:[%s3 + $0x10] sm:$0xff] %vm204, %v311
  %316 = vst.msk [vmem:[%s3 + $0x18] sm:$0xff] %vm204, %v312
  // Predicated region
  $region14: #{deeplabv3_forward.34} parent=0 // pred_check
    _
  $region15: #{deeplabv3_forward.34} parent=0 // pred_check_branch
    %318 = sbr.rel (0) target = $region17
  $region16: #{deeplabv3_forward.34} parent=0 // pred_region
    _
  $region17: #{deeplabv3_forward.34} parent=0 // pred_fallthru
    _
  // Predicated region
  $region18: #{deeplabv3_forward.34} parent=0 // pred_check
    _
  $region19: #{deeplabv3_forward.34} parent=0 // pred_check_branch
    %320 = sbr.rel (0) target = $region21
  $region20: #{deeplabv3_forward.34} parent=0 // pred_region
    _
  $region21: #{deeplabv3_forward.34} parent=0 // pred_fallthru
    _

// kernel: deeplabv3_forward.36
$region0: #{deeplabv3_forward.36}
  #allocation0 [shape = 'u32[]', space=smem, size = 0x4, offset = 0x4, fixed_abs, tag = 'smem constant byte address 0x4 - core index']
  #allocation1 [shape = 'u32[144,128]{1,0:T(1,128)}', space=vmem, size = 0x12000, scoped, tag = 'internal scratch']
  %s0 = inlined_call_operand.vmem [shape: bf16[32,4], index: 0, kind: input, shape index: {}]
  %s1 = inlined_call_operand.vmem [shape: bf16[4,56], index: 1, kind: input, shape index: {}]
  %s2 = inlined_call_operand.vmem [shape: f32[1,56], index: 2, kind: input, shape index: {}]
  %s3 = inlined_call_operand.vmem [shape: f32[32,56], index: 3, kind: output, shape index: {}]
  %s4 = sld [smem:[#allocation0]]
  $region22: #{deeplabv3_forward.36} parent=0
    _
  %s6 = ssub.s32 1, %s4
  %s7 = scalar_select 0, %s6, %s4
  // Predicated region
  $region2: #{deeplabv3_forward.36} parent=0 // pred_check
    _
  $region3: #{deeplabv3_forward.36} parent=0 // pred_check_branch
    %9 = sbr.rel (0) target = $region5
  $region4: #{deeplabv3_forward.36} parent=0 // pred_region
    _
  $region5: #{deeplabv3_forward.36} parent=0 // pred_fallthru
    _
  // Predicated region
  $region6: #{deeplabv3_forward.36} parent=0 // pred_check
    _
  $region7: #{deeplabv3_forward.36} parent=0 // pred_check_branch
    %11 = sbr.rel (0) target = $region9
  $region8: #{deeplabv3_forward.36} parent=0 // pred_region
    _
  $region9: #{deeplabv3_forward.36} parent=0 // pred_fallthru
    _
  // Predicated region
  $region10: #{deeplabv3_forward.36} parent=0 // pred_check
    _
  $region11: #{deeplabv3_forward.36} parent=0 // pred_check_branch
    %13 = sbr.rel (0) target = $region13
  $region12: #{deeplabv3_forward.36} parent=0 // pred_region
    _
  $region13: #{deeplabv3_forward.36} parent=0 // pred_fallthru
    _
  %v15 = vld [vmem:[%s0] sm:$0xf]
  %v16 = vld [vmem:[%s0 + $0x4] sm:$0xf]
  %v17 = vld [vmem:[%s0 + $0x8] sm:$0xf]
  %v18 = vld [vmem:[%s0 + $0xc] sm:$0xf]
  %v19 = vld [vmem:[%s1] sm:$0x3]
  %v20 = vld [vmem:[%s2] sm:$0x1]
  %v22 = vlaneseq
  %v23 = vshrl.u32 %v22, 7
  %v24 = vsub.s32 0, %v23
  %v25 = vrot.slane %v20, %v24
  %v31 = vunpack.c.l.b16 %v15
  %v32 = vunpack.c.l.b16 %v16
  %v33 = vunpack.c.l.b16 %v17
  %v34 = vunpack.c.l.b16 %v18
  %v35 = vpack.c.b16 %v32, %v31
  %v36 = vpack.c.b16 %v34, %v33
  %vm37 = vcmask 31744
  %v39 = vsel %vm37, %v35, 0
  %v42 = vsel %vm37, %v36, 0
  %vm44 = vcmask 1041408
  %v46 = vsel %vm44, %v19, 0
  %48 = vmatprep.subr.bf16.mxu0 0
  %49 = vmatpush1.bf16.msra.mxu0 0
  %50 = vmatprep.subr.bf16.mxu0 0
  %51 = vmatpush1.bf16.msra.mxu0 0
  %52 = vmatprep.subr.bf16.mxu0 0
  %53 = vmatpush1.bf16.msra.mxu0 0
  %54 = vmatprep.subr.bf16.mxu0 0
  %55 = vmatpush1.bf16.msra.mxu0 0
  %56 = vmatprep.subr.bf16.mxu0 0
  %57 = vmatpush1.bf16.msra.mxu0 0
  %58 = vmatprep.subr.bf16.mxu0 0
  %59 = vmatpush1.bf16.msra.mxu0 0
  %60 = vmatprep.subr.bf16.mxu0 0
  %61 = vmatpush1.bf16.msra.mxu0 0
  %62 = vmatprep.subr.bf16.mxu0 0
  %63 = vmatpush1.bf16.msra.mxu0 %v46
  %64 = vmatprep.subr.bf16.mxu0 0
  %65 = vmatpush2.bf16.msra.mxu0 0
  %66 = vmatprep.subr.bf16.mxu0 0
  %67 = vmatpush2.bf16.msra.mxu0 0
  %68 = vmatprep.subr.bf16.mxu0 0
  %69 = vmatpush2.bf16.msra.mxu0 0
  %70 = vmatprep.subr.bf16.mxu0 0
  %71 = vmatpush2.bf16.msra.mxu0 0
  %72 = vmatprep.subr.bf16.mxu0 0
  %73 = vmatpush2.bf16.msra.mxu0 0
  %74 = vmatprep.subr.bf16.mxu0 0
  %75 = vmatpush2.bf16.msra.mxu0 0
  %76 = vmatprep.subr.bf16.mxu0 0
  %77 = vmatpush2.bf16.msra.mxu0 0
  %78 = vmatprep.subr.bf16.mxu0 0
  %79 = vmatpush2.bf16.msra.mxu0 0
  %80 = vmatprep.mubr.bf16.mxu0 0
  %81 = vmatmul.mubr.bf16.gmra.mxu0 %v39
  %v82 = vpop.f32.mrf.mxu0
  %v83 = vadd.f32 %v25, %v82
  %v84 = vpop.f32.mrf.mxu0
  %v85 = vpop.f32.mrf.mxu0
  %v86 = vadd.f32 %v25, %v85
  %v87 = vpop.f32.mrf.mxu0
  %88 = vmatprep.mubr.bf16.mxu0 0
  %89 = vmatmul.mubr.bf16.gmra.mxu0 %v42
  %v90 = vpop.f32.mrf.mxu0
  %v91 = vadd.f32 %v25, %v90
  %v92 = vpop.f32.mrf.mxu0
  %v93 = vpop.f32.mrf.mxu0
  %v94 = vadd.f32 %v25, %v93
  %v95 = vpop.f32.mrf.mxu0
  %96 = vdwg.mxu0
  %vm97 = vcmask 457728
  %98 = vst.msk [vmem:[%s3] sm:$0xff] %vm97, %v83
  %99 = vst.msk [vmem:[%s3 + $0x8] sm:$0xff] %vm97, %v86
  %100 = vst.msk [vmem:[%s3 + $0x10] sm:$0xff] %vm97, %v91
  %101 = vst.msk [vmem:[%s3 + $0x18] sm:$0xff] %vm97, %v94
  // Predicated region
  $region14: #{deeplabv3_forward.36} parent=0 // pred_check
    _
  $region15: #{deeplabv3_forward.36} parent=0 // pred_check_branch
    %103 = sbr.rel (0) target = $region17
  $region16: #{deeplabv3_forward.36} parent=0 // pred_region
    _
  $region17: #{deeplabv3_forward.36} parent=0 // pred_fallthru
    _
  // Predicated region
  $region18: #{deeplabv3_forward.36} parent=0 // pred_check
    _
  $region19: #{deeplabv3_forward.36} parent=0 // pred_check_branch
    %105 = sbr.rel (0) target = $region21
  $region20: #{deeplabv3_forward.36} parent=0 // pred_region
    _
  $region21: #{deeplabv3_forward.36} parent=0 // pred_fallthru
    _

// kernel: deeplabv3_forward.37
$region0: #{deeplabv3_forward.37}
  #allocation0 [shape = 'u32[]', space=smem, size = 0x4, offset = 0x4, fixed_abs, tag = 'smem constant byte address 0x4 - core index']
  #allocation1 [shape = 'u32[144,128]{1,0:T(1,128)}', space=vmem, size = 0x12000, scoped, tag = 'internal scratch']
  %s0 = inlined_call_operand.vmem [shape: bf16[32,4], index: 0, kind: input, shape index: {}]
  %s1 = inlined_call_operand.vmem [shape: bf16[4,448], index: 1, kind: input, shape index: {}]
  %s2 = inlined_call_operand.vmem [shape: f32[1,448], index: 2, kind: input, shape index: {}]
  %s3 = inlined_call_operand.vmem [shape: f32[32,448], index: 3, kind: output, shape index: {}]
  %s4 = sld [smem:[#allocation0]]
  $region22: #{deeplabv3_forward.37} parent=0
    _
  %s6 = ssub.s32 1, %s4
  %s7 = scalar_select 0, %s6, %s4
  // Predicated region
  $region2: #{deeplabv3_forward.37} parent=0 // pred_check
    _
  $region3: #{deeplabv3_forward.37} parent=0 // pred_check_branch
    %9 = sbr.rel (0) target = $region5
  $region4: #{deeplabv3_forward.37} parent=0 // pred_region
    _
  $region5: #{deeplabv3_forward.37} parent=0 // pred_fallthru
    _
  // Predicated region
  $region6: #{deeplabv3_forward.37} parent=0 // pred_check
    _
  $region7: #{deeplabv3_forward.37} parent=0 // pred_check_branch
    %11 = sbr.rel (0) target = $region9
  $region8: #{deeplabv3_forward.37} parent=0 // pred_region
    _
  $region9: #{deeplabv3_forward.37} parent=0 // pred_fallthru
    _
  // Predicated region
  $region10: #{deeplabv3_forward.37} parent=0 // pred_check
    _
  $region11: #{deeplabv3_forward.37} parent=0 // pred_check_branch
    %13 = sbr.rel (0) target = $region13
  $region12: #{deeplabv3_forward.37} parent=0 // pred_region
    _
  $region13: #{deeplabv3_forward.37} parent=0 // pred_fallthru
    _
  %v15 = vld [vmem:[%s0] sm:$0xf]
  %v16 = vld [vmem:[%s0 + $0x4] sm:$0xf]
  %v17 = vld [vmem:[%s0 + $0x8] sm:$0xf]
  %v18 = vld [vmem:[%s0 + $0xc] sm:$0xf]
  %v19 = vld [vmem:[%s1] sm:$0xff]
  %v20 = vld [vmem:[%s2] sm:$0xf]
  %v22 = vlaneseq
  %v23 = vshrl.u32 %v22, 7
  %v24 = vsub.s32 0, %v23
  %v25 = vrot.slane %v20, %v24
  %v26 = vlaneseq
  %v27 = vshrl.u32 %v26, 7
  %v28 = vsub.s32 1, %v27
  %v29 = vrot.slane %v20, %v28
  %v30 = vlaneseq
  %v31 = vshrl.u32 %v30, 7
  %v32 = vsub.s32 2, %v31
  %v33 = vrot.slane %v20, %v32
  %v34 = vlaneseq
  %v35 = vshrl.u32 %v34, 7
  %v36 = vsub.s32 3, %v35
  %v37 = vrot.slane %v20, %v36
  %v46 = vunpack.c.l.b16 %v15
  %v47 = vunpack.c.l.b16 %v16
  %v48 = vunpack.c.l.b16 %v17
  %v49 = vunpack.c.l.b16 %v18
  %v50 = vpack.c.b16 %v47, %v46
  %v51 = vpack.c.b16 %v49, %v48
  %v53 = vcombine.high %v19, %v19
  %v55 = vunpack.c.l.s4 1983009808
  %v56 = vunpack.c.0.s8 %v55
  %v57 = vlaneseq
  %v58 = vshrl.u32 %v57, 7
  %v59 = vsub.s32 %v56, %v58
  %v60 = vrot.slane %v19, %v59
  %v62 = vunpack.c.l.s4 1983009808
  %v63 = vunpack.c.0.s8 %v62
  %v64 = vlaneseq
  %v65 = vshrl.u32 %v64, 7
  %v66 = vsub.s32 %v63, %v65
  %v67 = vrot.slane %v53, %v66
  %v68 = vcombine.high %v60, %v60
  %v69 = vcombine.high %v67, %v67
  %vm70 = vcmask 31744
  %v72 = vsel %vm70, %v50, 0
  %v75 = vsel %vm70, %v51, 0
  %vm77 = vcmask 1041408
  %v79 = vsel %vm77, %v60, 0
  %v82 = vsel %vm77, %v68, 0
  %v85 = vsel %vm77, %v67, 0
  %v88 = vsel %vm77, %v69, 0
  %90 = vmatprep.subr.bf16.mxu0 0
  %91 = vmatpush1.bf16.msra.mxu0 0
  %92 = vmatprep.subr.bf16.mxu0 0
  %93 = vmatpush1.bf16.msra.mxu0 0
  %94 = vmatprep.subr.bf16.mxu0 0
  %95 = vmatpush1.bf16.msra.mxu0 0
  %96 = vmatprep.subr.bf16.mxu0 0
  %97 = vmatpush1.bf16.msra.mxu0 0
  %98 = vmatprep.subr.bf16.mxu0 0
  %99 = vmatpush1.bf16.msra.mxu0 0
  %100 = vmatprep.subr.bf16.mxu0 0
  %101 = vmatpush1.bf16.msra.mxu0 0
  %102 = vmatprep.subr.bf16.mxu0 0
  %103 = vmatpush1.bf16.msra.mxu0 0
  %104 = vmatprep.subr.bf16.mxu0 %v82
  %105 = vmatpush1.bf16.msra.mxu0 %v79
  %106 = vmatprep.subr.bf16.mxu0 0
  %107 = vmatpush2.bf16.msra.mxu0 0
  %108 = vmatprep.subr.bf16.mxu0 0
  %109 = vmatpush2.bf16.msra.mxu0 0
  %110 = vmatprep.subr.bf16.mxu0 0
  %111 = vmatpush2.bf16.msra.mxu0 0
  %112 = vmatprep.subr.bf16.mxu0 0
  %113 = vmatpush2.bf16.msra.mxu0 0
  %114 = vmatprep.subr.bf16.mxu0 0
  %115 = vmatpush2.bf16.msra.mxu0 0
  %116 = vmatprep.subr.bf16.mxu0 0
  %117 = vmatpush2.bf16.msra.mxu0 0
  %118 = vmatprep.subr.bf16.mxu0 0
  %119 = vmatpush2.bf16.msra.mxu0 0
  %120 = vmatprep.subr.bf16.mxu0 0
  %121 = vmatpush2.bf16.msra.mxu0 0
  %122 = vmatprep.mubr.bf16.mxu0 0
  %123 = vmatmul.mubr.bf16.gmra.mxu0 %v72
  %v124 = vpop.f32.mrf.mxu0
  %v125 = vadd.f32 %v25, %v124
  %v126 = vpop.f32.mrf.mxu0
  %v127 = vadd.f32 %v29, %v126
  %v128 = vpop.f32.mrf.mxu0
  %v129 = vadd.f32 %v25, %v128
  %v130 = vpop.f32.mrf.mxu0
  %v131 = vadd.f32 %v29, %v130
  %132 = vmatprep.mubr.bf16.mxu0 0
  %133 = vmatmul.mubr.bf16.gmra.mxu0 %v75
  %v134 = vpop.f32.mrf.mxu0
  %v135 = vadd.f32 %v25, %v134
  %v136 = vpop.f32.mrf.mxu0
  %v137 = vadd.f32 %v29, %v136
  %v138 = vpop.f32.mrf.mxu0
  %v139 = vadd.f32 %v25, %v138
  %v140 = vpop.f32.mrf.mxu0
  %v141 = vadd.f32 %v29, %v140
  %142 = vdwg.mxu0
  %143 = vmatprep.subr.bf16.mxu0 0
  %144 = vmatpush1.bf16.msra.mxu0 0
  %145 = vmatprep.subr.bf16.mxu0 0
  %146 = vmatpush1.bf16.msra.mxu0 0
  %147 = vmatprep.subr.bf16.mxu0 0
  %148 = vmatpush1.bf16.msra.mxu0 0
  %149 = vmatprep.subr.bf16.mxu0 0
  %150 = vmatpush1.bf16.msra.mxu0 0
  %151 = vmatprep.subr.bf16.mxu0 0
  %152 = vmatpush1.bf16.msra.mxu0 0
  %153 = vmatprep.subr.bf16.mxu0 0
  %154 = vmatpush1.bf16.msra.mxu0 0
  %155 = vmatprep.subr.bf16.mxu0 0
  %156 = vmatpush1.bf16.msra.mxu0 0
  %157 = vmatprep.subr.bf16.mxu0 %v88
  %158 = vmatpush1.bf16.msra.mxu0 %v85
  %159 = vmatprep.subr.bf16.mxu0 0
  %160 = vmatpush2.bf16.msra.mxu0 0
  %161 = vmatprep.subr.bf16.mxu0 0
  %162 = vmatpush2.bf16.msra.mxu0 0
  %163 = vmatprep.subr.bf16.mxu0 0
  %164 = vmatpush2.bf16.msra.mxu0 0
  %165 = vmatprep.subr.bf16.mxu0 0
  %166 = vmatpush2.bf16.msra.mxu0 0
  %167 = vmatprep.subr.bf16.mxu0 0
  %168 = vmatpush2.bf16.msra.mxu0 0
  %169 = vmatprep.subr.bf16.mxu0 0
  %170 = vmatpush2.bf16.msra.mxu0 0
  %171 = vmatprep.subr.bf16.mxu0 0
  %172 = vmatpush2.bf16.msra.mxu0 0
  %173 = vmatprep.subr.bf16.mxu0 0
  %174 = vmatpush2.bf16.msra.mxu0 0
  %175 = vmatprep.mubr.bf16.mxu0 0
  %176 = vmatmul.mubr.bf16.gmra.mxu0 %v72
  %v177 = vpop.f32.mrf.mxu0
  %v178 = vadd.f32 %v33, %v177
  %v179 = vpop.f32.mrf.mxu0
  %v180 = vadd.f32 %v37, %v179
  %v181 = vpop.f32.mrf.mxu0
  %v182 = vadd.f32 %v33, %v181
  %v183 = vpop.f32.mrf.mxu0
  %v184 = vadd.f32 %v37, %v183
  %185 = vmatprep.mubr.bf16.mxu0 0
  %186 = vmatmul.mubr.bf16.gmra.mxu0 %v75
  %v187 = vpop.f32.mrf.mxu0
  %v188 = vadd.f32 %v33, %v187
  %v189 = vpop.f32.mrf.mxu0
  %v190 = vadd.f32 %v37, %v189
  %v191 = vpop.f32.mrf.mxu0
  %v192 = vadd.f32 %v33, %v191
  %v193 = vpop.f32.mrf.mxu0
  %v194 = vadd.f32 %v37, %v193
  %195 = vdwg.mxu0
  %196 = vst [vmem:[%s3] sm:$0xff] %v125
  %197 = vst [vmem:[%s3 + $0x8] sm:$0xff] %v127
  %198 = vst [vmem:[%s3 + $0x10] sm:$0xff] %v178
  %vm199 = vcmask 523264
  %200 = vst.msk [vmem:[%s3 + $0x18] sm:$0xff] %vm199, %v180
  %201 = vst [vmem:[%s3 + $0x20] sm:$0xff] %v129
  %202 = vst [vmem:[%s3 + $0x28] sm:$0xff] %v131
  %203 = vst [vmem:[%s3 + $0x30] sm:$0xff] %v182
  %204 = vst.msk [vmem:[%s3 + $0x38] sm:$0xff] %vm199, %v184
  %205 = vst [vmem:[%s3 + $0x40] sm:$0xff] %v135
  %206 = vst [vmem:[%s3 + $0x48] sm:$0xff] %v137
  %207 = vst [vmem:[%s3 + $0x50] sm:$0xff] %v188
  %208 = vst.msk [vmem:[%s3 + $0x58] sm:$0xff] %vm199, %v190
  %209 = vst [vmem:[%s3 + $0x60] sm:$0xff] %v139
  %210 = vst [vmem:[%s3 + $0x68] sm:$0xff] %v141
  %211 = vst [vmem:[%s3 + $0x70] sm:$0xff] %v192
  %212 = vst.msk [vmem:[%s3 + $0x78] sm:$0xff] %vm199, %v194
  // Predicated region
  $region14: #{deeplabv3_forward.37} parent=0 // pred_check
    _
  $region15: #{deeplabv3_forward.37} parent=0 // pred_check_branch
    %214 = sbr.rel (0) target = $region17
  $region16: #{deeplabv3_forward.37} parent=0 // pred_region
    _
  $region17: #{deeplabv3_forward.37} parent=0 // pred_fallthru
    _
  // Predicated region
  $region18: #{deeplabv3_forward.37} parent=0 // pred_check
    _
  $region19: #{deeplabv3_forward.37} parent=0 // pred_check_branch
    %216 = sbr.rel (0) target = $region21
  $region20: #{deeplabv3_forward.37} parent=0 // pred_region
    _
  $region21: #{deeplabv3_forward.37} parent=0 // pred_fallthru
    _

</llo_original>
